<compile_context>
chip_gen: v7x
topology: tpu7x:2x2x1
jax: 0.10.0
libtpu: 0.0.40
codegen_flags: <defaults>
</compile_context>

<pallas_src>
import jax
import jax.numpy as jnp
from jax.experimental import pallas as pl
from jax.experimental.pallas import tpu as pltpu

LANE = 128           # TPU lane width: output channels padded to this.
SUBLANE_BF16 = 16    # bf16 sublane granule: conv1's small Cin padded only to this.
EPS = 1e-5           # nn.BatchNorm2d default eps.
VMEM_LIMIT = 48 * 1024 * 1024   # TODO(synk): re-derive per generation (v6e can go ~96 MiB).


def _round_up(x, m):
    return (x + m - 1) // m * m


def _conv3x3_taps(y3, w_ref):
    """3x3 stride-1 'same' conv as 9 accumulating MXU matmuls (no im2col slab,
    no padded scratch buffer).

    y3:    (H, W, C) bf16 value, spatially unpadded.
    w_ref: (9, C, Cp) bf16 ref, tap t = dy*3 + dx.
    returns (H*W, Cp) float32.

    Halo handling: rows get zero headroom via an outer-dim concat (alignment
    free); the column halo is realized by zeroing the wrapped source column of
    the flattened slab, so no offset-1 masked store is ever issued.
    """
    H, W, C = y3.shape
    HW = H * W
    PR = 2  # 2*W flattened rows of zero headroom >= W+1 shift for any tap
    zrows = jnp.zeros((PR, W, C), y3.dtype)
    ypad = jnp.concatenate([zrows, y3, zrows], axis=0).reshape((H + 2 * PR) * W, C)
    col = jax.lax.broadcasted_iota(jnp.int32, (ypad.shape[0], 1), 0) % W
    zeros = jnp.zeros_like(ypad)
    src = {
        -1: jnp.where(col == W - 1, zeros, ypad),  # taps reading the left neighbour
        0: ypad,
        1: jnp.where(col == 0, zeros, ypad),       # taps reading the right neighbour
    }
    acc = jnp.zeros((HW, w_ref.shape[-1]), jnp.float32)
    for t in range(9):
        oy, ox = t // 3 - 1, t % 3 - 1
        start = (PR + oy) * W + ox
        tap = src[ox][start:start + HW, :]
        acc += jnp.dot(tap, w_ref[t], preferred_element_type=jnp.float32)
    return acc


def _conv1_stats_kernel(x_ref, w1_ref, u_ref, psum_ref, psumsq_ref):
    # x_ref:   (1, H, W, Cin_p) bf16      one batch sample
    # w1_ref:  (9, Cin_p, Cp)   bf16      resident across the grid
    # u_ref:   (1, H, W, Cp)    f32       pre-BN conv1 output
    # psum/psumsq: (1, 1, Cp)   f32       per-sample partial BN1 statistics
    _, H, W, _ = x_ref.shape
    Cp = u_ref.shape[-1]
    u = _conv3x3_taps(x_ref[0], w1_ref)             # (H*W, Cp) f32
    u_ref[0] = u.reshape(H, W, Cp)
    psum_ref[...] = jnp.sum(u, axis=0, keepdims=True)[None]
    psumsq_ref[...] = jnp.sum(u * u, axis=0, keepdims=True)[None]


def _bn_relu_conv2_stats_kernel(u1_ref, s1_ref, t1_ref, w2_ref,
                                u2_ref, psum_ref, psumsq_ref):
    # u1_ref: (1, H, W, Cp) f32; s1/t1: (1, Cp) f32 folded BN1 scale/shift
    # w2_ref: (9, Cp, Cp) bf16 resident; u2_ref: (1, H, W, Cp) f32
    _, H, W, Cp = u1_ref.shape
    y = jnp.maximum(u1_ref[0] * s1_ref[...] + t1_ref[...], 0.0)   # BN1 + ReLU, f32
    u = _conv3x3_taps(y.astype(jnp.bfloat16), w2_ref)             # bf16 MXU operands
    u2_ref[0] = u.reshape(H, W, Cp)
    psum_ref[...] = jnp.sum(u, axis=0, keepdims=True)[None]
    psumsq_ref[...] = jnp.sum(u * u, axis=0, keepdims=True)[None]


def _bn_relu_kernel(u2_ref, s2_ref, t2_ref, o_ref):
    # BN2 (folded scale/shift) + final ReLU.  downsample=None -> no residual add.
    o_ref[...] = jnp.maximum(u2_ref[...] * s2_ref[...] + t2_ref[...], 0.0)


@jax.jit
def bottleneck2conv(x_nchw, w1_hwio, g1, b1, w2_hwio, g2, b2):
    """x_nchw: (B, Cin, H, W) f32 -> (B, Cout, H, W) f32."""
    B, Cin, H, W = x_nchw.shape
    Cout = w1_hwio.shape[-1]
    Cp = _round_up(Cout, LANE)       # lane-dense output channels
    Cin_p = _round_up(Cin, SUBLANE_BF16)

    # NCHW -> NHWC (channels on the lane axis), bf16 MXU operands.
    x = jnp.transpose(x_nchw, (0, 2, 3, 1))
    x = jnp.pad(x, ((0, 0), (0, 0), (0, 0), (0, Cin_p - Cin))).astype(jnp.bfloat16)

    # HWIO weights -> (9, C, Cp) bf16 tap slabs (VMEM-resident via constant index_map).
    w1t = jnp.pad(w1_hwio, ((0, 0), (0, 0), (0, Cin_p - Cin), (0, Cp - Cout)))
    w1t = w1t.reshape(9, Cin_p, Cp).astype(jnp.bfloat16)
    w2t = jnp.pad(w2_hwio, ((0, 0), (0, 0), (0, Cp - Cout), (0, Cp - Cout)))
    w2t = w2t.reshape(9, Cp, Cp).astype(jnp.bfloat16)

    pad_c = ((0, 0), (0, Cp - Cout))
    g1p, b1p = jnp.pad(g1, pad_c), jnp.pad(b1, pad_c)   # zero gamma/beta in padded lanes
    g2p, b2p = jnp.pad(g2, pad_c), jnp.pad(b2, pad_c)   # keeps padded outputs exactly 0

    n = B * H * W
    cparams = pltpu.CompilerParams(dimension_semantics=("parallel",),
                                   vmem_limit_bytes=VMEM_LIMIT)

    def fold_bn(psum, psumsq, gamma, beta):
        # Phase-2 of the two-phase BN: tiny cross-tile reduction + fold (f32).
        mean = jnp.sum(psum, axis=0) / n                                  # (1, Cp)
        var = jnp.maximum(jnp.sum(psumsq, axis=0) / n - mean * mean, 0.0)
        scale = gamma * jax.lax.rsqrt(var + EPS)
        return scale, beta - mean * scale

    # ---- pass A: conv1 + per-sample BN1 partial stats ----
    u1, ps1, pq1 = pl.pallas_call(
        _conv1_stats_kernel,
        grid=(B,),
        in_specs=(
            pl.BlockSpec((1, H, W, Cin_p), lambda b: (b, 0, 0, 0)),
            pl.BlockSpec((9, Cin_p, Cp), lambda b: (0, 0, 0)),
        ),
        out_specs=(
            pl.BlockSpec((1, H, W, Cp), lambda b: (b, 0, 0, 0)),
            pl.BlockSpec((1, 1, Cp), lambda b: (b, 0, 0)),
            pl.BlockSpec((1, 1, Cp), lambda b: (b, 0, 0)),
        ),
        out_shape=(
            jax.ShapeDtypeStruct((B, H, W, Cp), jnp.float32),
            jax.ShapeDtypeStruct((B, 1, Cp), jnp.float32),
            jax.ShapeDtypeStruct((B, 1, Cp), jnp.float32),
        ),
        compiler_params=cparams,
        cost_estimate=pl.CostEstimate(
            flops=2 * n * 9 * Cin_p * Cp + 4 * n * Cp,
            transcendentals=0,
            bytes_accessed=2 * n * Cin_p + 2 * 9 * Cin_p * Cp + 4 * n * Cp + 8 * B * Cp),
    )(x, w1t)
    scale1, shift1 = fold_bn(ps1, pq1, g1p, b1p)

    # ---- pass B: BN1+ReLU, conv2, per-sample BN2 partial stats ----
    u2, ps2, pq2 = pl.pallas_call(
        _bn_relu_conv2_stats_kernel,
        grid=(B,),
        in_specs=(
            pl.BlockSpec((1, H, W, Cp), lambda b: (b, 0, 0, 0)),
            pl.BlockSpec((1, Cp), lambda b: (0, 0)),
            pl.BlockSpec((1, Cp), lambda b: (0, 0)),
            pl.BlockSpec((9, Cp, Cp), lambda b: (0, 0, 0)),
        ),
        out_specs=(
            pl.BlockSpec((1, H, W, Cp), lambda b: (b, 0, 0, 0)),
            pl.BlockSpec((1, 1, Cp), lambda b: (b, 0, 0)),
            pl.BlockSpec((1, 1, Cp), lambda b: (b, 0, 0)),
        ),
        out_shape=(
            jax.ShapeDtypeStruct((B, H, W, Cp), jnp.float32),
            jax.ShapeDtypeStruct((B, 1, Cp), jnp.float32),
            jax.ShapeDtypeStruct((B, 1, Cp), jnp.float32),
        ),
        compiler_params=cparams,
        cost_estimate=pl.CostEstimate(
            flops=2 * n * 9 * Cp * Cp + 6 * n * Cp,
            transcendentals=0,
            bytes_accessed=4 * n * Cp + 2 * 9 * Cp * Cp + 4 * n * Cp + 8 * B * Cp),
    )(u1, scale1, shift1, w2t)
    scale2, shift2 = fold_bn(ps2, pq2, g2p, b2p)

    # ---- pass C: BN2 + final ReLU ----
    out = pl.pallas_call(
        _bn_relu_kernel,
        grid=(B,),
        in_specs=(
            pl.BlockSpec((1, H, W, Cp), lambda b: (b, 0, 0, 0)),
            pl.BlockSpec((1, Cp), lambda b: (0, 0)),
            pl.BlockSpec((1, Cp), lambda b: (0, 0)),
        ),
        out_specs=pl.BlockSpec((1, H, W, Cp), lambda b: (b, 0, 0, 0)),
        out_shape=jax.ShapeDtypeStruct((B, H, W, Cp), jnp.float32),
        compiler_params=cparams,
        cost_estimate=pl.CostEstimate(
            flops=2 * n * Cp, transcendentals=0, bytes_accessed=8 * n * Cp),
    )(u2, scale2, shift2)

    # TODO(synk): downsample is None in this module configuration, so the
    # residual-add branch of the reference forward is a no-op here.
    return jnp.transpose(out[..., :Cout], (0, 3, 1, 2))


def reference_forward(x_nchw, w1, g1, b1, w2, g2, b2):
    """Pure-JAX reference with matching numerics (bf16 conv operands, f32
    accumulation, nn.BatchNorm2d training-mode batch statistics)."""
    def conv3x3(x, w):
        return jax.lax.conv_general_dilated(
            x.astype(jnp.bfloat16), w.astype(jnp.bfloat16),
            window_strides=(1, 1), padding=((1, 1), (1, 1)),
            dimension_numbers=("NHWC", "HWIO", "NHWC"),
            preferred_element_type=jnp.float32)

    def bn(x, g, b):
        mean = jnp.mean(x, axis=(0, 1, 2), keepdims=True)
        var = jnp.mean((x - mean) ** 2, axis=(0, 1, 2), keepdims=True)
        return (x - mean) * jax.lax.rsqrt(var + EPS) * g + b

    x = jnp.transpose(x_nchw, (0, 2, 3, 1))
    y = jnp.maximum(bn(conv3x3(x, w1), g1, b1), 0.0)
    z = jnp.maximum(bn(conv3x3(y, w2), g2, b2), 0.0)
    return jnp.transpose(z, (0, 3, 1, 2))


if __name__ == "__main__":
    B, Cin, Cout, H, W = 2, 4, 8, 16, 16

    key = jax.random.PRNGKey(0)
    kx, kw1, kw2 = jax.random.split(key, 3)

    x = jax.random.normal(kx, (B, Cin, H, W), dtype=jnp.float32)
    # Conv weights stored HWIO (PyTorch OIHW transposed), bias=False.
    w1 = 0.1 * jax.random.normal(kw1, (3, 3, Cin, Cout), dtype=jnp.float32)
    w2 = 0.1 * jax.random.normal(kw2, (3, 3, Cout, Cout), dtype=jnp.float32)
    # BatchNorm2d default init: gamma=1, beta=0.
    g1 = jnp.ones((1, Cout), jnp.float32)
    b1 = jnp.zeros((1, Cout), jnp.float32)
    g2 = jnp.ones((1, Cout), jnp.float32)
    b2 = jnp.zeros((1, Cout), jnp.float32)

    out = bottleneck2conv(x, w1, g1, b1, w2, g2, b2)
    jax.block_until_ready(out)

    ref = reference_forward(x, w1, g1, b1, w2, g2, b2)
    assert out.shape == (B, Cout, H, W)
    assert jnp.allclose(out, ref, rtol=1e-2, atol=1e-2), "mismatch vs reference"

    print("KERNEL_OK")
</pallas_src>

<mosaic_0001>
module attributes {stable_mosaic.version = 11 : i64} {
  func.func @_conv1_stats_kernel(%arg0: i32, %arg1: memref<1x16x16x16xbf16, #tpu.memory_space<vmem>>, %arg2: memref<9x16x128xbf16, #tpu.memory_space<vmem>>, %arg3: memref<1x16x16x128xf32, #tpu.memory_space<vmem>>, %arg4: memref<1x1x128xf32, #tpu.memory_space<vmem>>, %arg5: memref<1x1x128xf32, #tpu.memory_space<vmem>>) attributes {dimension_semantics = [#tpu.dimension_semantics<parallel>], iteration_bounds = array<i64: 2>, scalar_prefetch = 0 : i64, scratch_operands = 0 : i64, tpu.core_type = #tpu.core_type<tc>, window_params = [{transform_indices = @transform_0, window_bounds = array<i64: 1, 16, 16, 16>}, {pipeline_mode = #tpu.pipeline_mode<synchronous>, transform_indices = @transform_1, window_bounds = array<i64: 9, 16, 128>}, {transform_indices = @transform_2, window_bounds = array<i64: 1, 16, 16, 128>}, {transform_indices = @transform_3, window_bounds = array<i64: 1, 1, 128>}, {transform_indices = @transform_4, window_bounds = array<i64: 1, 1, 128>}]} {
    %c0 = arith.constant 0 : index
    %c0_0 = arith.constant 0 : index
    %c0_1 = arith.constant 0 : index
    %c0_2 = arith.constant 0 : index
    %0 = vector.load %arg1[%c0, %c0_0, %c0_1, %c0_2] : memref<1x16x16x16xbf16, #tpu.memory_space<vmem>>, vector<1x16x16x16xbf16>
    %1 = vector.shape_cast %0 : vector<1x16x16x16xbf16> to vector<16x16x16xbf16>
    %cst = arith.constant 0.000000e+00 : bf16
    %2 = vector.broadcast %cst : bf16 to vector<2x16x16xbf16>
    %3 = tpu.concatenate %2, %1, %2 in 0 : vector<2x16x16xbf16>, vector<16x16x16xbf16>, vector<2x16x16xbf16> -> vector<20x16x16xbf16>
    %4 = vector.shape_cast %3 : vector<20x16x16xbf16> to vector<320x16xbf16>
    %5 = tpu.iota {dimensions = array<i32: 0>} : vector<320x1xi32>
    %c16_i32 = arith.constant 16 : i32
    %c0_i32 = arith.constant 0 : i32
    %6 = arith.cmpi eq, %c16_i32, %c0_i32 : i32
    %c1_i32 = arith.constant 1 : i32
    %7 = arith.select %6, %c1_i32, %c16_i32 : i32
    %8 = vector.broadcast %7 : i32 to vector<320x1xi32>
    %9 = arith.remsi %5, %8 : vector<320x1xi32>
    %c0_i32_3 = arith.constant 0 : i32
    %10 = vector.broadcast %c0_i32_3 : i32 to vector<320x1xi32>
    %11 = arith.cmpi ne, %9, %10 : vector<320x1xi32>
    %c0_i32_4 = arith.constant 0 : i32
    %12 = vector.broadcast %c0_i32_4 : i32 to vector<320x1xi32>
    %13 = arith.cmpi slt, %9, %12 : vector<320x1xi32>
    %c0_i32_5 = arith.constant 0 : i32
    %14 = arith.cmpi slt, %7, %c0_i32_5 : i32
    %15 = vector.broadcast %14 : i1 to vector<320x1xi1>
    %16 = vector.broadcast %15 : vector<320x1xi1> to vector<320x1xi1>
    %17 = arith.xori %13, %16 : vector<320x1xi1>
    %18 = arith.andi %17, %11 : vector<320x1xi1>
    %19 = vector.broadcast %7 : i32 to vector<320x1xi32>
    %20 = arith.addi %9, %19 : vector<320x1xi32>
    %21 = arith.select %18, %20, %9 : vector<320x1xi1>, vector<320x1xi32>
    %cst_6 = arith.constant 0.000000e+00 : bf16
    %22 = vector.broadcast %cst_6 : bf16 to vector<320x16xbf16>
    %c15_i32 = arith.constant 15 : i32
    %23 = vector.broadcast %c15_i32 : i32 to vector<320x1xi32>
    %24 = arith.cmpi eq, %21, %23 : vector<320x1xi32>
    %25 = vector.shape_cast %24 : vector<320x1xi1> to vector<320x1xi1>
    %26 = vector.broadcast %25 : vector<320x1xi1> to vector<320x16xi1>
    %27 = arith.select %26, %22, %4 : vector<320x16xi1>, vector<320x16xbf16>
    %c0_i32_7 = arith.constant 0 : i32
    %28 = vector.broadcast %c0_i32_7 : i32 to vector<320x1xi32>
    %29 = arith.cmpi eq, %21, %28 : vector<320x1xi32>
    %30 = vector.shape_cast %29 : vector<320x1xi1> to vector<320x1xi1>
    %31 = vector.broadcast %30 : vector<320x1xi1> to vector<320x16xi1>
    %32 = arith.select %31, %22, %4 : vector<320x16xi1>, vector<320x16xbf16>
    %cst_8 = arith.constant 0.000000e+00 : f32
    %33 = vector.broadcast %cst_8 : f32 to vector<256x128xf32>
    %34 = vector.extract_strided_slice %27 {offsets = [15, 0], sizes = [256, 16], strides = [1, 1]} : vector<320x16xbf16> to vector<256x16xbf16>
    %c0_9 = arith.constant 0 : index
    %c0_10 = arith.constant 0 : index
    %c0_11 = arith.constant 0 : index
    %35 = vector.load %arg2[%c0_9, %c0_10, %c0_11] : memref<9x16x128xbf16, #tpu.memory_space<vmem>>, vector<1x16x128xbf16>
    %36 = vector.shape_cast %35 : vector<1x16x128xbf16> to vector<16x128xbf16>
    %cst_12 = arith.constant dense<0.000000e+00> : vector<256x128xf32>
    %37 = tpu.matmul %34, %36, %cst_12 {dimension_numbers = #tpu.dot_dimension_numbers<[1], [0], [0], [1], [0, 0, 1, 1], [], []>} : vector<256x16xbf16>, vector<16x128xbf16>, vector<256x128xf32> -> vector<256x128xf32>
    %38 = arith.addf %33, %37 : vector<256x128xf32>
    %39 = vector.extract_strided_slice %4 {offsets = [16, 0], sizes = [256, 16], strides = [1, 1]} : vector<320x16xbf16> to vector<256x16xbf16>
    %c1 = arith.constant 1 : index
    %c0_13 = arith.constant 0 : index
    %c0_14 = arith.constant 0 : index
    %40 = vector.load %arg2[%c1, %c0_13, %c0_14] : memref<9x16x128xbf16, #tpu.memory_space<vmem>>, vector<1x16x128xbf16>
    %41 = vector.shape_cast %40 : vector<1x16x128xbf16> to vector<16x128xbf16>
    %cst_15 = arith.constant dense<0.000000e+00> : vector<256x128xf32>
    %42 = tpu.matmul %39, %41, %cst_15 {dimension_numbers = #tpu.dot_dimension_numbers<[1], [0], [0], [1], [0, 0, 1, 1], [], []>} : vector<256x16xbf16>, vector<16x128xbf16>, vector<256x128xf32> -> vector<256x128xf32>
    %43 = arith.addf %38, %42 : vector<256x128xf32>
    %44 = vector.extract_strided_slice %32 {offsets = [17, 0], sizes = [256, 16], strides = [1, 1]} : vector<320x16xbf16> to vector<256x16xbf16>
    %c2 = arith.constant 2 : index
    %c0_16 = arith.constant 0 : index
    %c0_17 = arith.constant 0 : index
    %45 = vector.load %arg2[%c2, %c0_16, %c0_17] : memref<9x16x128xbf16, #tpu.memory_space<vmem>>, vector<1x16x128xbf16>
    %46 = vector.shape_cast %45 : vector<1x16x128xbf16> to vector<16x128xbf16>
    %cst_18 = arith.constant dense<0.000000e+00> : vector<256x128xf32>
    %47 = tpu.matmul %44, %46, %cst_18 {dimension_numbers = #tpu.dot_dimension_numbers<[1], [0], [0], [1], [0, 0, 1, 1], [], []>} : vector<256x16xbf16>, vector<16x128xbf16>, vector<256x128xf32> -> vector<256x128xf32>
    %48 = arith.addf %43, %47 : vector<256x128xf32>
    %49 = vector.extract_strided_slice %27 {offsets = [31, 0], sizes = [256, 16], strides = [1, 1]} : vector<320x16xbf16> to vector<256x16xbf16>
    %c3 = arith.constant 3 : index
    %c0_19 = arith.constant 0 : index
    %c0_20 = arith.constant 0 : index
    %50 = vector.load %arg2[%c3, %c0_19, %c0_20] : memref<9x16x128xbf16, #tpu.memory_space<vmem>>, vector<1x16x128xbf16>
    %51 = vector.shape_cast %50 : vector<1x16x128xbf16> to vector<16x128xbf16>
    %cst_21 = arith.constant dense<0.000000e+00> : vector<256x128xf32>
    %52 = tpu.matmul %49, %51, %cst_21 {dimension_numbers = #tpu.dot_dimension_numbers<[1], [0], [0], [1], [0, 0, 1, 1], [], []>} : vector<256x16xbf16>, vector<16x128xbf16>, vector<256x128xf32> -> vector<256x128xf32>
    %53 = arith.addf %48, %52 : vector<256x128xf32>
    %54 = vector.extract_strided_slice %4 {offsets = [32, 0], sizes = [256, 16], strides = [1, 1]} : vector<320x16xbf16> to vector<256x16xbf16>
    %c4 = arith.constant 4 : index
    %c0_22 = arith.constant 0 : index
    %c0_23 = arith.constant 0 : index
    %55 = vector.load %arg2[%c4, %c0_22, %c0_23] : memref<9x16x128xbf16, #tpu.memory_space<vmem>>, vector<1x16x128xbf16>
    %56 = vector.shape_cast %55 : vector<1x16x128xbf16> to vector<16x128xbf16>
    %cst_24 = arith.constant dense<0.000000e+00> : vector<256x128xf32>
    %57 = tpu.matmul %54, %56, %cst_24 {dimension_numbers = #tpu.dot_dimension_numbers<[1], [0], [0], [1], [0, 0, 1, 1], [], []>} : vector<256x16xbf16>, vector<16x128xbf16>, vector<256x128xf32> -> vector<256x128xf32>
    %58 = arith.addf %53, %57 : vector<256x128xf32>
    %59 = vector.extract_strided_slice %32 {offsets = [33, 0], sizes = [256, 16], strides = [1, 1]} : vector<320x16xbf16> to vector<256x16xbf16>
    %c5 = arith.constant 5 : index
    %c0_25 = arith.constant 0 : index
    %c0_26 = arith.constant 0 : index
    %60 = vector.load %arg2[%c5, %c0_25, %c0_26] : memref<9x16x128xbf16, #tpu.memory_space<vmem>>, vector<1x16x128xbf16>
    %61 = vector.shape_cast %60 : vector<1x16x128xbf16> to vector<16x128xbf16>
    %cst_27 = arith.constant dense<0.000000e+00> : vector<256x128xf32>
    %62 = tpu.matmul %59, %61, %cst_27 {dimension_numbers = #tpu.dot_dimension_numbers<[1], [0], [0], [1], [0, 0, 1, 1], [], []>} : vector<256x16xbf16>, vector<16x128xbf16>, vector<256x128xf32> -> vector<256x128xf32>
    %63 = arith.addf %58, %62 : vector<256x128xf32>
    %64 = vector.extract_strided_slice %27 {offsets = [47, 0], sizes = [256, 16], strides = [1, 1]} : vector<320x16xbf16> to vector<256x16xbf16>
    %c6 = arith.constant 6 : index
    %c0_28 = arith.constant 0 : index
    %c0_29 = arith.constant 0 : index
    %65 = vector.load %arg2[%c6, %c0_28, %c0_29] : memref<9x16x128xbf16, #tpu.memory_space<vmem>>, vector<1x16x128xbf16>
    %66 = vector.shape_cast %65 : vector<1x16x128xbf16> to vector<16x128xbf16>
    %cst_30 = arith.constant dense<0.000000e+00> : vector<256x128xf32>
    %67 = tpu.matmul %64, %66, %cst_30 {dimension_numbers = #tpu.dot_dimension_numbers<[1], [0], [0], [1], [0, 0, 1, 1], [], []>} : vector<256x16xbf16>, vector<16x128xbf16>, vector<256x128xf32> -> vector<256x128xf32>
    %68 = arith.addf %63, %67 : vector<256x128xf32>
    %69 = vector.extract_strided_slice %4 {offsets = [48, 0], sizes = [256, 16], strides = [1, 1]} : vector<320x16xbf16> to vector<256x16xbf16>
    %c7 = arith.constant 7 : index
    %c0_31 = arith.constant 0 : index
    %c0_32 = arith.constant 0 : index
    %70 = vector.load %arg2[%c7, %c0_31, %c0_32] : memref<9x16x128xbf16, #tpu.memory_space<vmem>>, vector<1x16x128xbf16>
    %71 = vector.shape_cast %70 : vector<1x16x128xbf16> to vector<16x128xbf16>
    %cst_33 = arith.constant dense<0.000000e+00> : vector<256x128xf32>
    %72 = tpu.matmul %69, %71, %cst_33 {dimension_numbers = #tpu.dot_dimension_numbers<[1], [0], [0], [1], [0, 0, 1, 1], [], []>} : vector<256x16xbf16>, vector<16x128xbf16>, vector<256x128xf32> -> vector<256x128xf32>
    %73 = arith.addf %68, %72 : vector<256x128xf32>
    %74 = vector.extract_strided_slice %32 {offsets = [49, 0], sizes = [256, 16], strides = [1, 1]} : vector<320x16xbf16> to vector<256x16xbf16>
    %c8 = arith.constant 8 : index
    %c0_34 = arith.constant 0 : index
    %c0_35 = arith.constant 0 : index
    %75 = vector.load %arg2[%c8, %c0_34, %c0_35] : memref<9x16x128xbf16, #tpu.memory_space<vmem>>, vector<1x16x128xbf16>
    %76 = vector.shape_cast %75 : vector<1x16x128xbf16> to vector<16x128xbf16>
    %cst_36 = arith.constant dense<0.000000e+00> : vector<256x128xf32>
    %77 = tpu.matmul %74, %76, %cst_36 {dimension_numbers = #tpu.dot_dimension_numbers<[1], [0], [0], [1], [0, 0, 1, 1], [], []>} : vector<256x16xbf16>, vector<16x128xbf16>, vector<256x128xf32> -> vector<256x128xf32>
    %78 = arith.addf %73, %77 : vector<256x128xf32>
    %79 = vector.shape_cast %78 : vector<256x128xf32> to vector<16x16x128xf32>
    %c0_37 = arith.constant 0 : index
    %c0_38 = arith.constant 0 : index
    %c0_39 = arith.constant 0 : index
    %c0_40 = arith.constant 0 : index
    %80 = vector.load %arg3[%c0_37, %c0_38, %c0_39, %c0_40] : memref<1x16x16x128xf32, #tpu.memory_space<vmem>>, vector<1x16x16x128xf32>
    %81 = vector.shape_cast %80 : vector<1x16x16x128xf32> to vector<16x16x128xf32>
    %82 = vector.shape_cast %79 : vector<16x16x128xf32> to vector<1x16x16x128xf32>
    tpu.vector_store %arg3[%c0_37, %c0_38, %c0_39, %c0_40], %82 {strides = array<i32>} : memref<1x16x16x128xf32, #tpu.memory_space<vmem>>, vector<1x16x16x128xf32>,
    %cst_41 = arith.constant dense<0.000000e+00> : vector<128xf32>
    %83 = vector.multi_reduction <add>, %78, %cst_41 [0] : vector<256x128xf32> to vector<128xf32>
    %84 = vector.shape_cast %83 : vector<128xf32> to vector<1x128xf32>
    %85 = vector.shape_cast %84 : vector<1x128xf32> to vector<1x1x128xf32>
    %c0_42 = arith.constant 0 : index
    %c0_43 = arith.constant 0 : index
    %c0_44 = arith.constant 0 : index
    %86 = vector.load %arg4[%c0_42, %c0_43, %c0_44] : memref<1x1x128xf32, #tpu.memory_space<vmem>>, vector<1x1x128xf32>
    tpu.vector_store %arg4[%c0_42, %c0_43, %c0_44], %85 {strides = array<i32>} : memref<1x1x128xf32, #tpu.memory_space<vmem>>, vector<1x1x128xf32>,
    %87 = arith.mulf %78, %78 : vector<256x128xf32>
    %cst_45 = arith.constant dense<0.000000e+00> : vector<128xf32>
    %88 = vector.multi_reduction <add>, %87, %cst_45 [0] : vector<256x128xf32> to vector<128xf32>
    %89 = vector.shape_cast %88 : vector<128xf32> to vector<1x128xf32>
    %90 = vector.shape_cast %89 : vector<1x128xf32> to vector<1x1x128xf32>
    %c0_46 = arith.constant 0 : index
    %c0_47 = arith.constant 0 : index
    %c0_48 = arith.constant 0 : index
    %91 = vector.load %arg5[%c0_46, %c0_47, %c0_48] : memref<1x1x128xf32, #tpu.memory_space<vmem>>, vector<1x1x128xf32>
    tpu.vector_store %arg5[%c0_46, %c0_47, %c0_48], %90 {strides = array<i32>} : memref<1x1x128xf32, #tpu.memory_space<vmem>>, vector<1x1x128xf32>,
    return
  }
  func.func @transform_0(%arg0: i32) -> (i32, i32, i32, i32) {
    %c0_i32 = arith.constant 0 : i32
    %c0_i32_0 = arith.constant 0 : i32
    %c0_i32_1 = arith.constant 0 : i32
    %c0_i32_2 = arith.constant 0 : i32
    return %arg0, %c0_i32, %c0_i32_0, %c0_i32_1 : i32, i32, i32, i32
  }
  func.func @transform_1(%arg0: i32) -> (i32, i32, i32) {
    %c0_i32 = arith.constant 0 : i32
    %c0_i32_0 = arith.constant 0 : i32
    %c0_i32_1 = arith.constant 0 : i32
    %c0_i32_2 = arith.constant 0 : i32
    return %c0_i32, %c0_i32_0, %c0_i32_1 : i32, i32, i32
  }
  func.func @transform_2(%arg0: i32) -> (i32, i32, i32, i32) {
    %c0_i32 = arith.constant 0 : i32
    %c0_i32_0 = arith.constant 0 : i32
    %c0_i32_1 = arith.constant 0 : i32
    %c0_i32_2 = arith.constant 0 : i32
    return %arg0, %c0_i32, %c0_i32_0, %c0_i32_1 : i32, i32, i32, i32
  }
  func.func @transform_3(%arg0: i32) -> (i32, i32, i32) {
    %c0_i32 = arith.constant 0 : i32
    %c0_i32_0 = arith.constant 0 : i32
    %c0_i32_1 = arith.constant 0 : i32
    return %arg0, %c0_i32, %c0_i32_0 : i32, i32, i32
  }
  func.func @transform_4(%arg0: i32) -> (i32, i32, i32) {
    %c0_i32 = arith.constant 0 : i32
    %c0_i32_0 = arith.constant 0 : i32
    %c0_i32_1 = arith.constant 0 : i32
    return %arg0, %c0_i32, %c0_i32_0 : i32, i32, i32
  }
}

module attributes {stable_mosaic.version = 11 : i64} {
  func.func @_bn_relu_conv2_stats_kernel(%arg0: i32, %arg1: memref<1x16x16x128xf32, #tpu.memory_space<vmem>>, %arg2: memref<1x128xf32, #tpu.memory_space<vmem>>, %arg3: memref<1x128xf32, #tpu.memory_space<vmem>>, %arg4: memref<9x128x128xbf16, #tpu.memory_space<vmem>>, %arg5: memref<1x16x16x128xf32, #tpu.memory_space<vmem>>, %arg6: memref<1x1x128xf32, #tpu.memory_space<vmem>>, %arg7: memref<1x1x128xf32, #tpu.memory_space<vmem>>) attributes {dimension_semantics = [#tpu.dimension_semantics<parallel>], iteration_bounds = array<i64: 2>, scalar_prefetch = 0 : i64, scratch_operands = 0 : i64, tpu.core_type = #tpu.core_type<tc>, window_params = [{transform_indices = @transform_0, window_bounds = array<i64: 1, 16, 16, 128>}, {pipeline_mode = #tpu.pipeline_mode<synchronous>, transform_indices = @transform_1, window_bounds = array<i64: 1, 128>}, {pipeline_mode = #tpu.pipeline_mode<synchronous>, transform_indices = @transform_2, window_bounds = array<i64: 1, 128>}, {pipeline_mode = #tpu.pipeline_mode<synchronous>, transform_indices = @transform_3, window_bounds = array<i64: 9, 128, 128>}, {transform_indices = @transform_4, window_bounds = array<i64: 1, 16, 16, 128>}, {transform_indices = @transform_5, window_bounds = array<i64: 1, 1, 128>}, {transform_indices = @transform_6, window_bounds = array<i64: 1, 1, 128>}]} {
    %c0 = arith.constant 0 : index
    %c0_0 = arith.constant 0 : index
    %c0_1 = arith.constant 0 : index
    %c0_2 = arith.constant 0 : index
    %0 = vector.load %arg1[%c0, %c0_0, %c0_1, %c0_2] : memref<1x16x16x128xf32, #tpu.memory_space<vmem>>, vector<1x16x16x128xf32>
    %1 = vector.shape_cast %0 : vector<1x16x16x128xf32> to vector<16x16x128xf32>
    %c0_3 = arith.constant 0 : index
    %c0_4 = arith.constant 0 : index
    %2 = vector.load %arg2[%c0_3, %c0_4] : memref<1x128xf32, #tpu.memory_space<vmem>>, vector<1x128xf32>
    %3 = vector.shape_cast %2 : vector<1x128xf32> to vector<1x1x128xf32>
    %4 = vector.broadcast %3 : vector<1x1x128xf32> to vector<16x16x128xf32>
    %5 = arith.mulf %1, %4 : vector<16x16x128xf32>
    %c0_5 = arith.constant 0 : index
    %c0_6 = arith.constant 0 : index
    %6 = vector.load %arg3[%c0_5, %c0_6] : memref<1x128xf32, #tpu.memory_space<vmem>>, vector<1x128xf32>
    %7 = vector.shape_cast %6 : vector<1x128xf32> to vector<1x1x128xf32>
    %8 = vector.broadcast %7 : vector<1x1x128xf32> to vector<16x16x128xf32>
    %9 = arith.addf %5, %8 : vector<16x16x128xf32>
    %cst = arith.constant 0.000000e+00 : f32
    %10 = vector.broadcast %cst : f32 to vector<16x16x128xf32>
    %11 = arith.maximumf %9, %10 : vector<16x16x128xf32>
    %12 = arith.truncf %11 : vector<16x16x128xf32> to vector<16x16x128xbf16>
    %cst_7 = arith.constant 0.000000e+00 : bf16
    %13 = vector.broadcast %cst_7 : bf16 to vector<2x16x128xbf16>
    %14 = tpu.concatenate %13, %12, %13 in 0 : vector<2x16x128xbf16>, vector<16x16x128xbf16>, vector<2x16x128xbf16> -> vector<20x16x128xbf16>
    %15 = vector.shape_cast %14 : vector<20x16x128xbf16> to vector<320x128xbf16>
    %16 = tpu.iota {dimensions = array<i32: 0>} : vector<320x1xi32>
    %c16_i32 = arith.constant 16 : i32
    %c0_i32 = arith.constant 0 : i32
    %17 = arith.cmpi eq, %c16_i32, %c0_i32 : i32
    %c1_i32 = arith.constant 1 : i32
    %18 = arith.select %17, %c1_i32, %c16_i32 : i32
    %19 = vector.broadcast %18 : i32 to vector<320x1xi32>
    %20 = arith.remsi %16, %19 : vector<320x1xi32>
    %c0_i32_8 = arith.constant 0 : i32
    %21 = vector.broadcast %c0_i32_8 : i32 to vector<320x1xi32>
    %22 = arith.cmpi ne, %20, %21 : vector<320x1xi32>
    %c0_i32_9 = arith.constant 0 : i32
    %23 = vector.broadcast %c0_i32_9 : i32 to vector<320x1xi32>
    %24 = arith.cmpi slt, %20, %23 : vector<320x1xi32>
    %c0_i32_10 = arith.constant 0 : i32
    %25 = arith.cmpi slt, %18, %c0_i32_10 : i32
    %26 = vector.broadcast %25 : i1 to vector<320x1xi1>
    %27 = vector.broadcast %26 : vector<320x1xi1> to vector<320x1xi1>
    %28 = arith.xori %24, %27 : vector<320x1xi1>
    %29 = arith.andi %28, %22 : vector<320x1xi1>
    %30 = vector.broadcast %18 : i32 to vector<320x1xi32>
    %31 = arith.addi %20, %30 : vector<320x1xi32>
    %32 = arith.select %29, %31, %20 : vector<320x1xi1>, vector<320x1xi32>
    %cst_11 = arith.constant 0.000000e+00 : bf16
    %33 = vector.broadcast %cst_11 : bf16 to vector<320x128xbf16>
    %c15_i32 = arith.constant 15 : i32
    %34 = vector.broadcast %c15_i32 : i32 to vector<320x1xi32>
    %35 = arith.cmpi eq, %32, %34 : vector<320x1xi32>
    %36 = vector.shape_cast %35 : vector<320x1xi1> to vector<320x1xi1>
    %37 = vector.broadcast %36 : vector<320x1xi1> to vector<320x128xi1>
    %38 = arith.select %37, %33, %15 : vector<320x128xi1>, vector<320x128xbf16>
    %c0_i32_12 = arith.constant 0 : i32
    %39 = vector.broadcast %c0_i32_12 : i32 to vector<320x1xi32>
    %40 = arith.cmpi eq, %32, %39 : vector<320x1xi32>
    %41 = vector.shape_cast %40 : vector<320x1xi1> to vector<320x1xi1>
    %42 = vector.broadcast %41 : vector<320x1xi1> to vector<320x128xi1>
    %43 = arith.select %42, %33, %15 : vector<320x128xi1>, vector<320x128xbf16>
    %cst_13 = arith.constant 0.000000e+00 : f32
    %44 = vector.broadcast %cst_13 : f32 to vector<256x128xf32>
    %45 = vector.extract_strided_slice %38 {offsets = [15, 0], sizes = [256, 128], strides = [1, 1]} : vector<320x128xbf16> to vector<256x128xbf16>
    %c0_14 = arith.constant 0 : index
    %c0_15 = arith.constant 0 : index
    %c0_16 = arith.constant 0 : index
    %46 = vector.load %arg4[%c0_14, %c0_15, %c0_16] : memref<9x128x128xbf16, #tpu.memory_space<vmem>>, vector<1x128x128xbf16>
    %47 = vector.shape_cast %46 : vector<1x128x128xbf16> to vector<128x128xbf16>
    %cst_17 = arith.constant dense<0.000000e+00> : vector<256x128xf32>
    %48 = tpu.matmul %45, %47, %cst_17 {dimension_numbers = #tpu.dot_dimension_numbers<[1], [0], [0], [1], [0, 0, 1, 1], [], []>} : vector<256x128xbf16>, vector<128x128xbf16>, vector<256x128xf32> -> vector<256x128xf32>
    %49 = arith.addf %44, %48 : vector<256x128xf32>
    %50 = vector.extract_strided_slice %15 {offsets = [16, 0], sizes = [256, 128], strides = [1, 1]} : vector<320x128xbf16> to vector<256x128xbf16>
    %c1 = arith.constant 1 : index
    %c0_18 = arith.constant 0 : index
    %c0_19 = arith.constant 0 : index
    %51 = vector.load %arg4[%c1, %c0_18, %c0_19] : memref<9x128x128xbf16, #tpu.memory_space<vmem>>, vector<1x128x128xbf16>
    %52 = vector.shape_cast %51 : vector<1x128x128xbf16> to vector<128x128xbf16>
    %cst_20 = arith.constant dense<0.000000e+00> : vector<256x128xf32>
    %53 = tpu.matmul %50, %52, %cst_20 {dimension_numbers = #tpu.dot_dimension_numbers<[1], [0], [0], [1], [0, 0, 1, 1], [], []>} : vector<256x128xbf16>, vector<128x128xbf16>, vector<256x128xf32> -> vector<256x128xf32>
    %54 = arith.addf %49, %53 : vector<256x128xf32>
    %55 = vector.extract_strided_slice %43 {offsets = [17, 0], sizes = [256, 128], strides = [1, 1]} : vector<320x128xbf16> to vector<256x128xbf16>
    %c2 = arith.constant 2 : index
    %c0_21 = arith.constant 0 : index
    %c0_22 = arith.constant 0 : index
    %56 = vector.load %arg4[%c2, %c0_21, %c0_22] : memref<9x128x128xbf16, #tpu.memory_space<vmem>>, vector<1x128x128xbf16>
    %57 = vector.shape_cast %56 : vector<1x128x128xbf16> to vector<128x128xbf16>
    %cst_23 = arith.constant dense<0.000000e+00> : vector<256x128xf32>
    %58 = tpu.matmul %55, %57, %cst_23 {dimension_numbers = #tpu.dot_dimension_numbers<[1], [0], [0], [1], [0, 0, 1, 1], [], []>} : vector<256x128xbf16>, vector<128x128xbf16>, vector<256x128xf32> -> vector<256x128xf32>
    %59 = arith.addf %54, %58 : vector<256x128xf32>
    %60 = vector.extract_strided_slice %38 {offsets = [31, 0], sizes = [256, 128], strides = [1, 1]} : vector<320x128xbf16> to vector<256x128xbf16>
    %c3 = arith.constant 3 : index
    %c0_24 = arith.constant 0 : index
    %c0_25 = arith.constant 0 : index
    %61 = vector.load %arg4[%c3, %c0_24, %c0_25] : memref<9x128x128xbf16, #tpu.memory_space<vmem>>, vector<1x128x128xbf16>
    %62 = vector.shape_cast %61 : vector<1x128x128xbf16> to vector<128x128xbf16>
    %cst_26 = arith.constant dense<0.000000e+00> : vector<256x128xf32>
    %63 = tpu.matmul %60, %62, %cst_26 {dimension_numbers = #tpu.dot_dimension_numbers<[1], [0], [0], [1], [0, 0, 1, 1], [], []>} : vector<256x128xbf16>, vector<128x128xbf16>, vector<256x128xf32> -> vector<256x128xf32>
    %64 = arith.addf %59, %63 : vector<256x128xf32>
    %65 = vector.extract_strided_slice %15 {offsets = [32, 0], sizes = [256, 128], strides = [1, 1]} : vector<320x128xbf16> to vector<256x128xbf16>
    %c4 = arith.constant 4 : index
    %c0_27 = arith.constant 0 : index
    %c0_28 = arith.constant 0 : index
    %66 = vector.load %arg4[%c4, %c0_27, %c0_28] : memref<9x128x128xbf16, #tpu.memory_space<vmem>>, vector<1x128x128xbf16>
    %67 = vector.shape_cast %66 : vector<1x128x128xbf16> to vector<128x128xbf16>
    %cst_29 = arith.constant dense<0.000000e+00> : vector<256x128xf32>
    %68 = tpu.matmul %65, %67, %cst_29 {dimension_numbers = #tpu.dot_dimension_numbers<[1], [0], [0], [1], [0, 0, 1, 1], [], []>} : vector<256x128xbf16>, vector<128x128xbf16>, vector<256x128xf32> -> vector<256x128xf32>
    %69 = arith.addf %64, %68 : vector<256x128xf32>
    %70 = vector.extract_strided_slice %43 {offsets = [33, 0], sizes = [256, 128], strides = [1, 1]} : vector<320x128xbf16> to vector<256x128xbf16>
    %c5 = arith.constant 5 : index
    %c0_30 = arith.constant 0 : index
    %c0_31 = arith.constant 0 : index
    %71 = vector.load %arg4[%c5, %c0_30, %c0_31] : memref<9x128x128xbf16, #tpu.memory_space<vmem>>, vector<1x128x128xbf16>
    %72 = vector.shape_cast %71 : vector<1x128x128xbf16> to vector<128x128xbf16>
    %cst_32 = arith.constant dense<0.000000e+00> : vector<256x128xf32>
    %73 = tpu.matmul %70, %72, %cst_32 {dimension_numbers = #tpu.dot_dimension_numbers<[1], [0], [0], [1], [0, 0, 1, 1], [], []>} : vector<256x128xbf16>, vector<128x128xbf16>, vector<256x128xf32> -> vector<256x128xf32>
    %74 = arith.addf %69, %73 : vector<256x128xf32>
    %75 = vector.extract_strided_slice %38 {offsets = [47, 0], sizes = [256, 128], strides = [1, 1]} : vector<320x128xbf16> to vector<256x128xbf16>
    %c6 = arith.constant 6 : index
    %c0_33 = arith.constant 0 : index
    %c0_34 = arith.constant 0 : index
    %76 = vector.load %arg4[%c6, %c0_33, %c0_34] : memref<9x128x128xbf16, #tpu.memory_space<vmem>>, vector<1x128x128xbf16>
    %77 = vector.shape_cast %76 : vector<1x128x128xbf16> to vector<128x128xbf16>
    %cst_35 = arith.constant dense<0.000000e+00> : vector<256x128xf32>
    %78 = tpu.matmul %75, %77, %cst_35 {dimension_numbers = #tpu.dot_dimension_numbers<[1], [0], [0], [1], [0, 0, 1, 1], [], []>} : vector<256x128xbf16>, vector<128x128xbf16>, vector<256x128xf32> -> vector<256x128xf32>
    %79 = arith.addf %74, %78 : vector<256x128xf32>
    %80 = vector.extract_strided_slice %15 {offsets = [48, 0], sizes = [256, 128], strides = [1, 1]} : vector<320x128xbf16> to vector<256x128xbf16>
    %c7 = arith.constant 7 : index
    %c0_36 = arith.constant 0 : index
    %c0_37 = arith.constant 0 : index
    %81 = vector.load %arg4[%c7, %c0_36, %c0_37] : memref<9x128x128xbf16, #tpu.memory_space<vmem>>, vector<1x128x128xbf16>
    %82 = vector.shape_cast %81 : vector<1x128x128xbf16> to vector<128x128xbf16>
    %cst_38 = arith.constant dense<0.000000e+00> : vector<256x128xf32>
    %83 = tpu.matmul %80, %82, %cst_38 {dimension_numbers = #tpu.dot_dimension_numbers<[1], [0], [0], [1], [0, 0, 1, 1], [], []>} : vector<256x128xbf16>, vector<128x128xbf16>, vector<256x128xf32> -> vector<256x128xf32>
    %84 = arith.addf %79, %83 : vector<256x128xf32>
    %85 = vector.extract_strided_slice %43 {offsets = [49, 0], sizes = [256, 128], strides = [1, 1]} : vector<320x128xbf16> to vector<256x128xbf16>
    %c8 = arith.constant 8 : index
    %c0_39 = arith.constant 0 : index
    %c0_40 = arith.constant 0 : index
    %86 = vector.load %arg4[%c8, %c0_39, %c0_40] : memref<9x128x128xbf16, #tpu.memory_space<vmem>>, vector<1x128x128xbf16>
    %87 = vector.shape_cast %86 : vector<1x128x128xbf16> to vector<128x128xbf16>
    %cst_41 = arith.constant dense<0.000000e+00> : vector<256x128xf32>
    %88 = tpu.matmul %85, %87, %cst_41 {dimension_numbers = #tpu.dot_dimension_numbers<[1], [0], [0], [1], [0, 0, 1, 1], [], []>} : vector<256x128xbf16>, vector<128x128xbf16>, vector<256x128xf32> -> vector<256x128xf32>
    %89 = arith.addf %84, %88 : vector<256x128xf32>
    %90 = vector.shape_cast %89 : vector<256x128xf32> to vector<16x16x128xf32>
    %c0_42 = arith.constant 0 : index
    %c0_43 = arith.constant 0 : index
    %c0_44 = arith.constant 0 : index
    %c0_45 = arith.constant 0 : index
    %91 = vector.load %arg5[%c0_42, %c0_43, %c0_44, %c0_45] : memref<1x16x16x128xf32, #tpu.memory_space<vmem>>, vector<1x16x16x128xf32>
    %92 = vector.shape_cast %91 : vector<1x16x16x128xf32> to vector<16x16x128xf32>
    %93 = vector.shape_cast %90 : vector<16x16x128xf32> to vector<1x16x16x128xf32>
    tpu.vector_store %arg5[%c0_42, %c0_43, %c0_44, %c0_45], %93 {strides = array<i32>} : memref<1x16x16x128xf32, #tpu.memory_space<vmem>>, vector<1x16x16x128xf32>,
    %cst_46 = arith.constant dense<0.000000e+00> : vector<128xf32>
    %94 = vector.multi_reduction <add>, %89, %cst_46 [0] : vector<256x128xf32> to vector<128xf32>
    %95 = vector.shape_cast %94 : vector<128xf32> to vector<1x128xf32>
    %96 = vector.shape_cast %95 : vector<1x128xf32> to vector<1x1x128xf32>
    %c0_47 = arith.constant 0 : index
    %c0_48 = arith.constant 0 : index
    %c0_49 = arith.constant 0 : index
    %97 = vector.load %arg6[%c0_47, %c0_48, %c0_49] : memref<1x1x128xf32, #tpu.memory_space<vmem>>, vector<1x1x128xf32>
    tpu.vector_store %arg6[%c0_47, %c0_48, %c0_49], %96 {strides = array<i32>} : memref<1x1x128xf32, #tpu.memory_space<vmem>>, vector<1x1x128xf32>,
    %98 = arith.mulf %89, %89 : vector<256x128xf32>
    %cst_50 = arith.constant dense<0.000000e+00> : vector<128xf32>
    %99 = vector.multi_reduction <add>, %98, %cst_50 [0] : vector<256x128xf32> to vector<128xf32>
    %100 = vector.shape_cast %99 : vector<128xf32> to vector<1x128xf32>
    %101 = vector.shape_cast %100 : vector<1x128xf32> to vector<1x1x128xf32>
    %c0_51 = arith.constant 0 : index
    %c0_52 = arith.constant 0 : index
    %c0_53 = arith.constant 0 : index
    %102 = vector.load %arg7[%c0_51, %c0_52, %c0_53] : memref<1x1x128xf32, #tpu.memory_space<vmem>>, vector<1x1x128xf32>
    tpu.vector_store %arg7[%c0_51, %c0_52, %c0_53], %101 {strides = array<i32>} : memref<1x1x128xf32, #tpu.memory_space<vmem>>, vector<1x1x128xf32>,
    return
  }
  func.func @transform_0(%arg0: i32) -> (i32, i32, i32, i32) {
    %c0_i32 = arith.constant 0 : i32
    %c0_i32_0 = arith.constant 0 : i32
    %c0_i32_1 = arith.constant 0 : i32
    %c0_i32_2 = arith.constant 0 : i32
    return %arg0, %c0_i32, %c0_i32_0, %c0_i32_1 : i32, i32, i32, i32
  }
  func.func @transform_1(%arg0: i32) -> (i32, i32) {
    %c0_i32 = arith.constant 0 : i32
    %c0_i32_0 = arith.constant 0 : i32
    %c0_i32_1 = arith.constant 0 : i32
    return %c0_i32, %c0_i32_0 : i32, i32
  }
  func.func @transform_2(%arg0: i32) -> (i32, i32) {
    %c0_i32 = arith.constant 0 : i32
    %c0_i32_0 = arith.constant 0 : i32
    %c0_i32_1 = arith.constant 0 : i32
    return %c0_i32, %c0_i32_0 : i32, i32
  }
  func.func @transform_3(%arg0: i32) -> (i32, i32, i32) {
    %c0_i32 = arith.constant 0 : i32
    %c0_i32_0 = arith.constant 0 : i32
    %c0_i32_1 = arith.constant 0 : i32
    %c0_i32_2 = arith.constant 0 : i32
    return %c0_i32, %c0_i32_0, %c0_i32_1 : i32, i32, i32
  }
  func.func @transform_4(%arg0: i32) -> (i32, i32, i32, i32) {
    %c0_i32 = arith.constant 0 : i32
    %c0_i32_0 = arith.constant 0 : i32
    %c0_i32_1 = arith.constant 0 : i32
    %c0_i32_2 = arith.constant 0 : i32
    return %arg0, %c0_i32, %c0_i32_0, %c0_i32_1 : i32, i32, i32, i32
  }
  func.func @transform_5(%arg0: i32) -> (i32, i32, i32) {
    %c0_i32 = arith.constant 0 : i32
    %c0_i32_0 = arith.constant 0 : i32
    %c0_i32_1 = arith.constant 0 : i32
    return %arg0, %c0_i32, %c0_i32_0 : i32, i32, i32
  }
  func.func @transform_6(%arg0: i32) -> (i32, i32, i32) {
    %c0_i32 = arith.constant 0 : i32
    %c0_i32_0 = arith.constant 0 : i32
    %c0_i32_1 = arith.constant 0 : i32
    return %arg0, %c0_i32, %c0_i32_0 : i32, i32, i32
  }
}

module attributes {stable_mosaic.version = 11 : i64} {
  func.func @_bn_relu_kernel(%arg0: i32, %arg1: memref<1x16x16x128xf32, #tpu.memory_space<vmem>>, %arg2: memref<1x128xf32, #tpu.memory_space<vmem>>, %arg3: memref<1x128xf32, #tpu.memory_space<vmem>>, %arg4: memref<1x16x16x128xf32, #tpu.memory_space<vmem>>) attributes {dimension_semantics = [#tpu.dimension_semantics<parallel>], iteration_bounds = array<i64: 2>, scalar_prefetch = 0 : i64, scratch_operands = 0 : i64, tpu.core_type = #tpu.core_type<tc>, window_params = [{transform_indices = @transform_0, window_bounds = array<i64: 1, 16, 16, 128>}, {pipeline_mode = #tpu.pipeline_mode<synchronous>, transform_indices = @transform_1, window_bounds = array<i64: 1, 128>}, {pipeline_mode = #tpu.pipeline_mode<synchronous>, transform_indices = @transform_2, window_bounds = array<i64: 1, 128>}, {transform_indices = @transform_3, window_bounds = array<i64: 1, 16, 16, 128>}]} {
    %c0 = arith.constant 0 : index
    %c0_0 = arith.constant 0 : index
    %c0_1 = arith.constant 0 : index
    %c0_2 = arith.constant 0 : index
    %0 = vector.load %arg1[%c0, %c0_0, %c0_1, %c0_2] : memref<1x16x16x128xf32, #tpu.memory_space<vmem>>, vector<1x16x16x128xf32>
    %c0_3 = arith.constant 0 : index
    %c0_4 = arith.constant 0 : index
    %1 = vector.load %arg2[%c0_3, %c0_4] : memref<1x128xf32, #tpu.memory_space<vmem>>, vector<1x128xf32>
    %2 = vector.shape_cast %1 : vector<1x128xf32> to vector<1x1x1x128xf32>
    %3 = vector.broadcast %2 : vector<1x1x1x128xf32> to vector<1x16x16x128xf32>
    %4 = arith.mulf %0, %3 : vector<1x16x16x128xf32>
    %c0_5 = arith.constant 0 : index
    %c0_6 = arith.constant 0 : index
    %5 = vector.load %arg3[%c0_5, %c0_6] : memref<1x128xf32, #tpu.memory_space<vmem>>, vector<1x128xf32>
    %6 = vector.shape_cast %5 : vector<1x128xf32> to vector<1x1x1x128xf32>
    %7 = vector.broadcast %6 : vector<1x1x1x128xf32> to vector<1x16x16x128xf32>
    %8 = arith.addf %4, %7 : vector<1x16x16x128xf32>
    %cst = arith.constant 0.000000e+00 : f32
    %9 = vector.broadcast %cst : f32 to vector<1x16x16x128xf32>
    %10 = arith.maximumf %8, %9 : vector<1x16x16x128xf32>
    %c0_7 = arith.constant 0 : index
    %c0_8 = arith.constant 0 : index
    %c0_9 = arith.constant 0 : index
    %c0_10 = arith.constant 0 : index
    %11 = vector.load %arg4[%c0_7, %c0_8, %c0_9, %c0_10] : memref<1x16x16x128xf32, #tpu.memory_space<vmem>>, vector<1x16x16x128xf32>
    tpu.vector_store %arg4[%c0_7, %c0_8, %c0_9, %c0_10], %10 {strides = array<i32>} : memref<1x16x16x128xf32, #tpu.memory_space<vmem>>, vector<1x16x16x128xf32>,
    return
  }
  func.func @transform_0(%arg0: i32) -> (i32, i32, i32, i32) {
    %c0_i32 = arith.constant 0 : i32
    %c0_i32_0 = arith.constant 0 : i32
    %c0_i32_1 = arith.constant 0 : i32
    %c0_i32_2 = arith.constant 0 : i32
    return %arg0, %c0_i32, %c0_i32_0, %c0_i32_1 : i32, i32, i32, i32
  }
  func.func @transform_1(%arg0: i32) -> (i32, i32) {
    %c0_i32 = arith.constant 0 : i32
    %c0_i32_0 = arith.constant 0 : i32
    %c0_i32_1 = arith.constant 0 : i32
    return %c0_i32, %c0_i32_0 : i32, i32
  }
  func.func @transform_2(%arg0: i32) -> (i32, i32) {
    %c0_i32 = arith.constant 0 : i32
    %c0_i32_0 = arith.constant 0 : i32
    %c0_i32_1 = arith.constant 0 : i32
    return %c0_i32, %c0_i32_0 : i32, i32
  }
  func.func @transform_3(%arg0: i32) -> (i32, i32, i32, i32) {
    %c0_i32 = arith.constant 0 : i32
    %c0_i32_0 = arith.constant 0 : i32
    %c0_i32_1 = arith.constant 0 : i32
    %c0_i32_2 = arith.constant 0 : i32
    return %arg0, %c0_i32, %c0_i32_0, %c0_i32_1 : i32, i32, i32, i32
  }
}

</mosaic_0001>

<llo_original>
// kernel: bottleneck2conv.5
$region0: #{bottleneck2conv.5}
  #allocation0 [shape = 'u32[]', space=smem, size = 0x4, offset = 0x4, fixed_abs, tag = 'smem constant byte address 0x4 - core index']
  #allocation1 [shape = 'u32[144,128]{1,0:T(1,128)}', space=vmem, size = 0x12000, scoped, tag = 'internal scratch']
  %s0 = inlined_call_operand.vmem [shape: f32[2,16,16,128], index: 0, kind: input, shape index: {}]
  %s1 = inlined_call_operand.vmem [shape: f32[1,128], index: 1, kind: input, shape index: {}]
  %s2 = inlined_call_operand.vmem [shape: f32[1,128], index: 2, kind: input, shape index: {}]
  %s3 = inlined_call_operand.vmem [shape: f32[2,16,16,128], index: 3, kind: output, shape index: {}]
  %s4 = sld [smem:[#allocation0]]
  $region45: #{bottleneck2conv.5} parent=0
    _
  %s6 = ssub.s32 1, %s4
  %s7 = scalar_select 0, %s6, %s4
  loop: start=0, step=1, limit=4
  $region2: #{bottleneck2conv.5} parent=0 // loop_pre_header
    _
  $region3: #{bottleneck2conv.5} parent=0 // loop_header
    %s9 = sphi 0, %s13
    %p10 = scmp.ge.s32.totalorder %s9, 4
    %s19 = sphi 0, %s21
    %s22 = sphi 0, %s19
    %s23 = sphi 0, %s22
    %s39 = sphi 0, %s23
    %s43 = sphi 0, %s43
    %s45 = sphi 0, %s43
    %s46 = sphi 0, %s45
    %s60 = sphi 0, %s46
    %s64 = sphi 0, %s64
    %s66 = sphi 0, %s64
    %s67 = sphi 0, %s66
    %s81 = sphi 0, %s67
    %s87 = sphi 0, %s89
    %s90 = sphi 0, %s87
    %s91 = sphi 0, %s90
    %s107 = sphi 0, %s91
  $region4: #{bottleneck2conv.5} parent=0 // loop_header_branch
    %12 = sbr.rel (%p10) target = $region8
  $region5: #{bottleneck2conv.5} parent=0 // loop_body
    %s14 = ssub.s32 %s9, 1
    %s15 = ssub.s32 %s9, 2
    %s16 = sadd.s32 %s9, 1
    %s17 = ssub.s32 %s9, %s16
    %p18 = scmp.eq.s32.totalorder %s17, 0
    %s20 = sadd.s32 %s19, 1
    %s21 = scalar_select %p18, %s19, %s20
    %p24 = pneg %p18
    %p25 = scmp.eq.s32.totalorder %s9, 1
    %p26 = por %p24, %p25
    %p27 = scmp.ne.s32.totalorder %s19, %s22
    %p28 = scmp.eq.s32.totalorder %s9, 0
    %p29 = por %p27, %p28
    %p30 = scmp.ne.s32.totalorder %s19, %s22
    %p31 = scmp.eq.s32.totalorder %s14, 1
    %p32 = por %p30, %p31
    %p33 = scmp.ne.s32.totalorder %s22, %s23
    %p34 = scmp.eq.s32.totalorder %s14, 0
    %p35 = por %p33, %p34
    %p36 = scmp.ne.s32.totalorder %s22, %s23
    %p37 = scmp.eq.s32.totalorder %s15, 1
    %p38 = por %p36, %p37
    %p40 = scmp.ne.s32.totalorder %s23, %s39
    %p41 = scmp.eq.s32.totalorder %s15, 0
    %p42 = por %p40, %p41
    %s44 = sadd.s32 %s43, 1
    %p47 = scmp.eq.s32.totalorder %s9, 1
    %p48 = scmp.ne.s32.totalorder %s43, %s45
    %p49 = scmp.eq.s32.totalorder %s9, 0
    %p50 = por %p48, %p49
    %p51 = scmp.ne.s32.totalorder %s43, %s45
    %p52 = scmp.eq.s32.totalorder %s14, 1
    %p53 = por %p51, %p52
    %p54 = scmp.ne.s32.totalorder %s45, %s46
    %p55 = scmp.eq.s32.totalorder %s14, 0
    %p56 = por %p54, %p55
    %p57 = scmp.ne.s32.totalorder %s45, %s46
    %p58 = scmp.eq.s32.totalorder %s15, 1
    %p59 = por %p57, %p58
    %p61 = scmp.ne.s32.totalorder %s46, %s60
    %p62 = scmp.eq.s32.totalorder %s15, 0
    %p63 = por %p61, %p62
    %s65 = sadd.s32 %s64, 1
    %p68 = scmp.eq.s32.totalorder %s9, 1
    %p69 = scmp.ne.s32.totalorder %s64, %s66
    %p70 = scmp.eq.s32.totalorder %s9, 0
    %p71 = por %p69, %p70
    %p72 = scmp.ne.s32.totalorder %s64, %s66
    %p73 = scmp.eq.s32.totalorder %s14, 1
    %p74 = por %p72, %p73
    %p75 = scmp.ne.s32.totalorder %s66, %s67
    %p76 = scmp.eq.s32.totalorder %s14, 0
    %p77 = por %p75, %p76
    %p78 = scmp.ne.s32.totalorder %s66, %s67
    %p79 = scmp.eq.s32.totalorder %s15, 1
    %p80 = por %p78, %p79
    %p82 = scmp.ne.s32.totalorder %s67, %s81
    %p83 = scmp.eq.s32.totalorder %s15, 0
    %p84 = por %p82, %p83
    %s85 = ssub.s32 %s9, %s16
    %p86 = scmp.eq.s32.totalorder %s85, 0
    %s88 = sadd.s32 %s87, 1
    %s89 = scalar_select %p86, %s87, %s88
    %p92 = pneg %p86
    %p93 = scmp.eq.s32.totalorder %s9, 1
    %p94 = por %p92, %p93
    %p95 = scmp.ne.s32.totalorder %s87, %s90
    %p96 = scmp.eq.s32.totalorder %s9, 0
    %p97 = por %p95, %p96
    %p98 = scmp.ne.s32.totalorder %s87, %s90
    %p99 = scmp.eq.s32.totalorder %s14, 1
    %p100 = por %p98, %p99
    %p101 = scmp.ne.s32.totalorder %s90, %s91
    %p102 = scmp.eq.s32.totalorder %s14, 0
    %p103 = por %p101, %p102
    %p104 = scmp.ne.s32.totalorder %s90, %s91
    %p105 = scmp.eq.s32.totalorder %s15, 1
    %p106 = por %p104, %p105
    %p108 = scmp.ne.s32.totalorder %s91, %s107
    %p109 = scmp.eq.s32.totalorder %s15, 0
    %p110 = por %p108, %p109
    %p111 = scmp.le.s32.totalorder 1, %s9
    %p112 = scmp.lt.s32.totalorder %s9, 3
    %p113 = pnand %p111, %p112
    %p114 = pneg %p113
    // Predicated region
    $region9: #{bottleneck2conv.5} parent=5 // pred_check
      _
    $region10: #{bottleneck2conv.5} parent=5 // pred_check_branch
      %116 = sbr.rel (%p113) target = $region12
    $region11: #{bottleneck2conv.5} parent=5 // pred_region
      %s117 = ssub.s32 %s9, 1
      // Predicated region
      $region13: #{bottleneck2conv.5} parent=11 // pred_check
        %p118 = pneg %p56
      $region14: #{bottleneck2conv.5} parent=11 // pred_check_branch
        %120 = sbr.rel (%p118) target = $region16
      $region15: #{bottleneck2conv.5} parent=11 // pred_region
        _
      $region16: #{bottleneck2conv.5} parent=11 // pred_fallthru
        _
      // Predicated region
      $region17: #{bottleneck2conv.5} parent=11 // pred_check
        %p121 = pneg %p77
      $region18: #{bottleneck2conv.5} parent=11 // pred_check_branch
        %123 = sbr.rel (%p121) target = $region20
      $region19: #{bottleneck2conv.5} parent=11 // pred_region
        _
      $region20: #{bottleneck2conv.5} parent=11 // pred_fallthru
        _
    $region12: #{bottleneck2conv.5} parent=5 // pred_fallthru
      _
    %p124 = scmp.lt.s32.totalorder %s9, 2
    // Predicated region
    $region21: #{bottleneck2conv.5} parent=5 // pred_check
      %p125 = pneg %p124
    $region22: #{bottleneck2conv.5} parent=5 // pred_check_branch
      %127 = sbr.rel (%p125) target = $region24
    $region23: #{bottleneck2conv.5} parent=5 // pred_region
      // Predicated region
      $region25: #{bottleneck2conv.5} parent=23 // pred_check
        %p128 = pneg %p29
      $region26: #{bottleneck2conv.5} parent=23 // pred_check_branch
        %130 = sbr.rel (%p128) target = $region28
      $region27: #{bottleneck2conv.5} parent=23 // pred_region
        %p131 = scmp.lt.s32.totalorder %s9, 1
        %s132 = scalar_select %p131, %s9, 1
        %s133 = smul.addr %s132, 32
        %s134 = smul.addr %s133, 8
        %s135 = scalar_lea.vmem %s0, %s134
      $region28: #{bottleneck2conv.5} parent=23 // pred_fallthru
        _
    $region24: #{bottleneck2conv.5} parent=5 // pred_fallthru
      _
    %p136 = scmp.le.s32.totalorder 1, %s9
    %p137 = scmp.lt.s32.totalorder %s9, 3
    %p138 = pnand %p136, %p137
    %p139 = pneg %p138
    // Predicated region
    $region29: #{bottleneck2conv.5} parent=5 // pred_check
      _
    $region30: #{bottleneck2conv.5} parent=5 // pred_check_branch
      %141 = sbr.rel (%p138) target = $region32
    $region31: #{bottleneck2conv.5} parent=5 // pred_region
      %s142 = ssub.s32 %s9, 1
      %p143 = scmp.lt.s32.totalorder %s14, 1
      %s144 = scalar_select %p143, %s14, 1
      %s145 = smul.addr %s144, 32
      %s146 = smul.addr %s145, 8
      %s147 = scalar_lea.vmem %s0, %s146
      %p148 = pneg %p35
      %p149 = pneg %p32
      %p150 = pneg %p56
      %p151 = pneg %p53
      %p152 = pneg %p77
      %p153 = pneg %p74
      %p154 = pneg %p103
      %p155 = pneg %p100
      %p156 = scmp.lt.s32.totalorder %s14, 1
      %s157 = scalar_select %p156, %s14, 1
      %s158 = smul.addr %s157, 32
      %s159 = smul.addr %s158, 8
      %s160 = scalar_lea.vmem %s3, %s159
      %p161 = scmp.lt.s32.totalorder %s14, 1
      %s162 = scalar_select %p161, %s14, 1
      %s163 = smul.addr %s162, 32
      %s164 = smul.addr %s163, 8
      %s165 = scalar_lea.vmem %s0, %s164
      %p166 = scmp.lt.s32.totalorder %s14, 1
      %s167 = scalar_select %p166, %s14, 1
      %s168 = smul.addr %s167, 32
      %s169 = smul.addr %s168, 8
      %s170 = scalar_lea.vmem %s3, %s169
      %v171 = vld [vmem:[%s165] sm:$0xff]
      %v172 = vld [vmem:[%s165 + $0x8] sm:$0xff]
      %v173 = vld [vmem:[%s165 + $0x10] sm:$0xff]
      %v174 = vld [vmem:[%s165 + $0x18] sm:$0xff]
      %v175 = vld [vmem:[%s165 + $0x20] sm:$0xff]
      %v176 = vld [vmem:[%s165 + $0x28] sm:$0xff]
      %v177 = vld [vmem:[%s165 + $0x30] sm:$0xff]
      %v178 = vld [vmem:[%s165 + $0x38] sm:$0xff]
      %v179 = vld [vmem:[%s165 + $0x40] sm:$0xff]
      %v180 = vld [vmem:[%s165 + $0x48] sm:$0xff]
      %v181 = vld [vmem:[%s165 + $0x50] sm:$0xff]
      %v182 = vld [vmem:[%s165 + $0x58] sm:$0xff]
      %v183 = vld [vmem:[%s165 + $0x60] sm:$0xff]
      %v184 = vld [vmem:[%s165 + $0x68] sm:$0xff]
      %v185 = vld [vmem:[%s165 + $0x70] sm:$0xff]
      %v186 = vld [vmem:[%s165 + $0x78] sm:$0xff]
      %v187 = vld [vmem:[%s165 + $0x80] sm:$0xff]
      %v188 = vld [vmem:[%s165 + $0x88] sm:$0xff]
      %v189 = vld [vmem:[%s165 + $0x90] sm:$0xff]
      %v190 = vld [vmem:[%s165 + $0x98] sm:$0xff]
      %v191 = vld [vmem:[%s165 + $0xa0] sm:$0xff]
      %v192 = vld [vmem:[%s165 + $0xa8] sm:$0xff]
      %v193 = vld [vmem:[%s165 + $0xb0] sm:$0xff]
      %v194 = vld [vmem:[%s165 + $0xb8] sm:$0xff]
      %v195 = vld [vmem:[%s165 + $0xc0] sm:$0xff]
      %v196 = vld [vmem:[%s165 + $0xc8] sm:$0xff]
      %v197 = vld [vmem:[%s165 + $0xd0] sm:$0xff]
      %v198 = vld [vmem:[%s165 + $0xd8] sm:$0xff]
      %v199 = vld [vmem:[%s165 + $0xe0] sm:$0xff]
      %v200 = vld [vmem:[%s165 + $0xe8] sm:$0xff]
      %v201 = vld [vmem:[%s165 + $0xf0] sm:$0xff]
      %v202 = vld [vmem:[%s165 + $0xf8] sm:$0xff]
      %v203 = vld [vmem:[%s1] sm:$0x1]
      %v205 = vlaneseq
      %v206 = vshrl.u32 %v205, 7
      %v207 = vsub.s32 0, %v206
      %v208 = vrot.slane %v203, %v207
      %v210 = vmul.f32 %v171, %v208
      %v211 = vmul.f32 %v172, %v208
      %v212 = vmul.f32 %v173, %v208
      %v213 = vmul.f32 %v174, %v208
      %v214 = vmul.f32 %v175, %v208
      %v215 = vmul.f32 %v176, %v208
      %v216 = vmul.f32 %v177, %v208
      %v217 = vmul.f32 %v178, %v208
      %v218 = vmul.f32 %v179, %v208
      %v219 = vmul.f32 %v180, %v208
      %v220 = vmul.f32 %v181, %v208
      %v221 = vmul.f32 %v182, %v208
      %v222 = vmul.f32 %v183, %v208
      %v223 = vmul.f32 %v184, %v208
      %v224 = vmul.f32 %v185, %v208
      %v225 = vmul.f32 %v186, %v208
      %v226 = vmul.f32 %v187, %v208
      %v227 = vmul.f32 %v188, %v208
      %v228 = vmul.f32 %v189, %v208
      %v229 = vmul.f32 %v190, %v208
      %v230 = vmul.f32 %v191, %v208
      %v231 = vmul.f32 %v192, %v208
      %v232 = vmul.f32 %v193, %v208
      %v233 = vmul.f32 %v194, %v208
      %v234 = vmul.f32 %v195, %v208
      %v235 = vmul.f32 %v196, %v208
      %v236 = vmul.f32 %v197, %v208
      %v237 = vmul.f32 %v198, %v208
      %v238 = vmul.f32 %v199, %v208
      %v239 = vmul.f32 %v200, %v208
      %v240 = vmul.f32 %v201, %v208
      %v241 = vmul.f32 %v202, %v208
      %v242 = vld [vmem:[%s2] sm:$0x1]
      %v244 = vlaneseq
      %v245 = vshrl.u32 %v244, 7
      %v246 = vsub.s32 0, %v245
      %v247 = vrot.slane %v242, %v246
      %v249 = vadd.f32 %v210, %v247
      %v250 = vadd.f32 %v211, %v247
      %v251 = vadd.f32 %v212, %v247
      %v252 = vadd.f32 %v213, %v247
      %v253 = vadd.f32 %v214, %v247
      %v254 = vadd.f32 %v215, %v247
      %v255 = vadd.f32 %v216, %v247
      %v256 = vadd.f32 %v217, %v247
      %v257 = vadd.f32 %v218, %v247
      %v258 = vadd.f32 %v219, %v247
      %v259 = vadd.f32 %v220, %v247
      %v260 = vadd.f32 %v221, %v247
      %v261 = vadd.f32 %v222, %v247
      %v262 = vadd.f32 %v223, %v247
      %v263 = vadd.f32 %v224, %v247
      %v264 = vadd.f32 %v225, %v247
      %v265 = vadd.f32 %v226, %v247
      %v266 = vadd.f32 %v227, %v247
      %v267 = vadd.f32 %v228, %v247
      %v268 = vadd.f32 %v229, %v247
      %v269 = vadd.f32 %v230, %v247
      %v270 = vadd.f32 %v231, %v247
      %v271 = vadd.f32 %v232, %v247
      %v272 = vadd.f32 %v233, %v247
      %v273 = vadd.f32 %v234, %v247
      %v274 = vadd.f32 %v235, %v247
      %v275 = vadd.f32 %v236, %v247
      %v276 = vadd.f32 %v237, %v247
      %v277 = vadd.f32 %v238, %v247
      %v278 = vadd.f32 %v239, %v247
      %v279 = vadd.f32 %v240, %v247
      %v280 = vadd.f32 %v241, %v247
      %v281 = vmax.f32 %v249, 0.0
      %v282 = vmax.f32 %v250, 0.0
      %v283 = vmax.f32 %v251, 0.0
      %v284 = vmax.f32 %v252, 0.0
      %v285 = vmax.f32 %v253, 0.0
      %v286 = vmax.f32 %v254, 0.0
      %v287 = vmax.f32 %v255, 0.0
      %v288 = vmax.f32 %v256, 0.0
      %v289 = vmax.f32 %v257, 0.0
      %v290 = vmax.f32 %v258, 0.0
      %v291 = vmax.f32 %v259, 0.0
      %v292 = vmax.f32 %v260, 0.0
      %v293 = vmax.f32 %v261, 0.0
      %v294 = vmax.f32 %v262, 0.0
      %v295 = vmax.f32 %v263, 0.0
      %v296 = vmax.f32 %v264, 0.0
      %v297 = vmax.f32 %v265, 0.0
      %v298 = vmax.f32 %v266, 0.0
      %v299 = vmax.f32 %v267, 0.0
      %v300 = vmax.f32 %v268, 0.0
      %v301 = vmax.f32 %v269, 0.0
      %v302 = vmax.f32 %v270, 0.0
      %v303 = vmax.f32 %v271, 0.0
      %v304 = vmax.f32 %v272, 0.0
      %v305 = vmax.f32 %v273, 0.0
      %v306 = vmax.f32 %v274, 0.0
      %v307 = vmax.f32 %v275, 0.0
      %v308 = vmax.f32 %v276, 0.0
      %v309 = vmax.f32 %v277, 0.0
      %v310 = vmax.f32 %v278, 0.0
      %v311 = vmax.f32 %v279, 0.0
      %v312 = vmax.f32 %v280, 0.0
      %313 = vst [vmem:[%s170] sm:$0xff] %v281
      %314 = vst [vmem:[%s170 + $0x8] sm:$0xff] %v282
      %315 = vst [vmem:[%s170 + $0x10] sm:$0xff] %v283
      %316 = vst [vmem:[%s170 + $0x18] sm:$0xff] %v284
      %317 = vst [vmem:[%s170 + $0x20] sm:$0xff] %v285
      %318 = vst [vmem:[%s170 + $0x28] sm:$0xff] %v286
      %319 = vst [vmem:[%s170 + $0x30] sm:$0xff] %v287
      %320 = vst [vmem:[%s170 + $0x38] sm:$0xff] %v288
      %321 = vst [vmem:[%s170 + $0x40] sm:$0xff] %v289
      %322 = vst [vmem:[%s170 + $0x48] sm:$0xff] %v290
      %323 = vst [vmem:[%s170 + $0x50] sm:$0xff] %v291
      %324 = vst [vmem:[%s170 + $0x58] sm:$0xff] %v292
      %325 = vst [vmem:[%s170 + $0x60] sm:$0xff] %v293
      %326 = vst [vmem:[%s170 + $0x68] sm:$0xff] %v294
      %327 = vst [vmem:[%s170 + $0x70] sm:$0xff] %v295
      %328 = vst [vmem:[%s170 + $0x78] sm:$0xff] %v296
      %329 = vst [vmem:[%s170 + $0x80] sm:$0xff] %v297
      %330 = vst [vmem:[%s170 + $0x88] sm:$0xff] %v298
      %331 = vst [vmem:[%s170 + $0x90] sm:$0xff] %v299
      %332 = vst [vmem:[%s170 + $0x98] sm:$0xff] %v300
      %333 = vst [vmem:[%s170 + $0xa0] sm:$0xff] %v301
      %334 = vst [vmem:[%s170 + $0xa8] sm:$0xff] %v302
      %335 = vst [vmem:[%s170 + $0xb0] sm:$0xff] %v303
      %336 = vst [vmem:[%s170 + $0xb8] sm:$0xff] %v304
      %337 = vst [vmem:[%s170 + $0xc0] sm:$0xff] %v305
      %338 = vst [vmem:[%s170 + $0xc8] sm:$0xff] %v306
      %339 = vst [vmem:[%s170 + $0xd0] sm:$0xff] %v307
      %340 = vst [vmem:[%s170 + $0xd8] sm:$0xff] %v308
      %341 = vst [vmem:[%s170 + $0xe0] sm:$0xff] %v309
      %342 = vst [vmem:[%s170 + $0xe8] sm:$0xff] %v310
      %343 = vst [vmem:[%s170 + $0xf0] sm:$0xff] %v311
      %344 = vst [vmem:[%s170 + $0xf8] sm:$0xff] %v312
      %p345 = scmp.lt.s32.totalorder %s14, 1
      %s346 = scalar_select %p345, %s14, 1
      %s347 = smul.addr %s346, 32
      %s348 = smul.addr %s347, 8
      %s349 = scalar_lea.vmem %s3, %s348
      // Predicated region
      $region33: #{bottleneck2conv.5} parent=31 // pred_check
        %p350 = pneg %p100
      $region34: #{bottleneck2conv.5} parent=31 // pred_check_branch
        %352 = sbr.rel (%p350) target = $region36
      $region35: #{bottleneck2conv.5} parent=31 // pred_region
        _
      $region36: #{bottleneck2conv.5} parent=31 // pred_fallthru
        _
    $region32: #{bottleneck2conv.5} parent=5 // pred_fallthru
      _
    %p353 = scmp.le.s32.totalorder 2, %s9
    // Predicated region
    $region37: #{bottleneck2conv.5} parent=5 // pred_check
      %p354 = pneg %p353
    $region38: #{bottleneck2conv.5} parent=5 // pred_check_branch
      %356 = sbr.rel (%p354) target = $region40
    $region39: #{bottleneck2conv.5} parent=5 // pred_region
      %s357 = ssub.s32 %s9, 2
      // Predicated region
      $region41: #{bottleneck2conv.5} parent=39 // pred_check
        %p358 = pneg %p106
      $region42: #{bottleneck2conv.5} parent=39 // pred_check_branch
        %360 = sbr.rel (%p358) target = $region44
      $region43: #{bottleneck2conv.5} parent=39 // pred_region
        %p361 = scmp.lt.s32.totalorder %s15, 1
        %s362 = scalar_select %p361, %s15, 1
        %s363 = smul.addr %s362, 32
        %s364 = smul.addr %s363, 8
        %s365 = scalar_lea.vmem %s3, %s364
      $region44: #{bottleneck2conv.5} parent=39 // pred_fallthru
        _
    $region40: #{bottleneck2conv.5} parent=5 // pred_fallthru
      _
  $region6: #{bottleneck2conv.5} parent=0 // loop_footer
    %s13 = sadd.s32 1, %s9
  $region7: #{bottleneck2conv.5} parent=0 // loop_footer_branch
    %8 = sbr.rel target = $region3
  $region8: #{bottleneck2conv.5} parent=0 // loop_exit
    _

// kernel: bottleneck2conv.3
$region0: #{bottleneck2conv.3}
  #allocation0 [shape = 'u32[]', space=smem, size = 0x4, offset = 0x4, fixed_abs, tag = 'smem constant byte address 0x4 - core index']
  #allocation1 [shape = 'u32[144,128]{1,0:T(1,128)}', space=vmem, size = 0x12000, scoped, tag = 'internal scratch']
  %s0 = inlined_call_operand.vmem [shape: bf16[2,16,16,16], index: 0, kind: input, shape index: {}]
  %s1 = inlined_call_operand.vmem [shape: bf16[9,16,128], index: 1, kind: input, shape index: {}]
  %s2 = inlined_call_operand.vmem [shape: f32[2,16,16,128], index: 2, kind: output, shape index: {0}]
  %s3 = inlined_call_operand.vmem [shape: f32[2,1,128], index: 3, kind: output, shape index: {1}]
  %s4 = inlined_call_operand.vmem [shape: f32[2,1,128], index: 4, kind: output, shape index: {2}]
  %5 = xla_tuple %s2, %s3, %s4
  %s6 = sld [smem:[#allocation0]]
  $region57: #{bottleneck2conv.3} parent=0
    _
  %s8 = ssub.s32 1, %s6
  %s9 = scalar_select 0, %s8, %s6
  loop: start=0, step=1, limit=4
  $region2: #{bottleneck2conv.3} parent=0 // loop_pre_header
    _
  $region3: #{bottleneck2conv.3} parent=0 // loop_header
    %s11 = sphi 0, %s15
    %p12 = scmp.ge.s32.totalorder %s11, 4
    %s21 = sphi 0, %s23
    %s24 = sphi 0, %s21
    %s25 = sphi 0, %s24
    %s41 = sphi 0, %s25
    %s45 = sphi 0, %s45
    %s47 = sphi 0, %s45
    %s48 = sphi 0, %s47
    %s62 = sphi 0, %s48
    %s68 = sphi 0, %s70
    %s71 = sphi 0, %s68
    %s72 = sphi 0, %s71
    %s88 = sphi 0, %s72
    %s94 = sphi 0, %s96
    %s97 = sphi 0, %s94
    %s98 = sphi 0, %s97
    %s114 = sphi 0, %s98
    %s120 = sphi 0, %s122
    %s123 = sphi 0, %s120
    %s124 = sphi 0, %s123
    %s140 = sphi 0, %s124
  $region4: #{bottleneck2conv.3} parent=0 // loop_header_branch
    %14 = sbr.rel (%p12) target = $region8
  $region5: #{bottleneck2conv.3} parent=0 // loop_body
    %s16 = ssub.s32 %s11, 1
    %s17 = ssub.s32 %s11, 2
    %s18 = sadd.s32 %s11, 1
    %s19 = ssub.s32 %s11, %s18
    %p20 = scmp.eq.s32.totalorder %s19, 0
    %s22 = sadd.s32 %s21, 1
    %s23 = scalar_select %p20, %s21, %s22
    %p26 = pneg %p20
    %p27 = scmp.eq.s32.totalorder %s11, 1
    %p28 = por %p26, %p27
    %p29 = scmp.ne.s32.totalorder %s21, %s24
    %p30 = scmp.eq.s32.totalorder %s11, 0
    %p31 = por %p29, %p30
    %p32 = scmp.ne.s32.totalorder %s21, %s24
    %p33 = scmp.eq.s32.totalorder %s16, 1
    %p34 = por %p32, %p33
    %p35 = scmp.ne.s32.totalorder %s24, %s25
    %p36 = scmp.eq.s32.totalorder %s16, 0
    %p37 = por %p35, %p36
    %p38 = scmp.ne.s32.totalorder %s24, %s25
    %p39 = scmp.eq.s32.totalorder %s17, 1
    %p40 = por %p38, %p39
    %p42 = scmp.ne.s32.totalorder %s25, %s41
    %p43 = scmp.eq.s32.totalorder %s17, 0
    %p44 = por %p42, %p43
    %s46 = sadd.s32 %s45, 1
    %p49 = scmp.eq.s32.totalorder %s11, 1
    %p50 = scmp.ne.s32.totalorder %s45, %s47
    %p51 = scmp.eq.s32.totalorder %s11, 0
    %p52 = por %p50, %p51
    %p53 = scmp.ne.s32.totalorder %s45, %s47
    %p54 = scmp.eq.s32.totalorder %s16, 1
    %p55 = por %p53, %p54
    %p56 = scmp.ne.s32.totalorder %s47, %s48
    %p57 = scmp.eq.s32.totalorder %s16, 0
    %p58 = por %p56, %p57
    %p59 = scmp.ne.s32.totalorder %s47, %s48
    %p60 = scmp.eq.s32.totalorder %s17, 1
    %p61 = por %p59, %p60
    %p63 = scmp.ne.s32.totalorder %s48, %s62
    %p64 = scmp.eq.s32.totalorder %s17, 0
    %p65 = por %p63, %p64
    %s66 = ssub.s32 %s11, %s18
    %p67 = scmp.eq.s32.totalorder %s66, 0
    %s69 = sadd.s32 %s68, 1
    %s70 = scalar_select %p67, %s68, %s69
    %p73 = pneg %p67
    %p74 = scmp.eq.s32.totalorder %s11, 1
    %p75 = por %p73, %p74
    %p76 = scmp.ne.s32.totalorder %s68, %s71
    %p77 = scmp.eq.s32.totalorder %s11, 0
    %p78 = por %p76, %p77
    %p79 = scmp.ne.s32.totalorder %s68, %s71
    %p80 = scmp.eq.s32.totalorder %s16, 1
    %p81 = por %p79, %p80
    %p82 = scmp.ne.s32.totalorder %s71, %s72
    %p83 = scmp.eq.s32.totalorder %s16, 0
    %p84 = por %p82, %p83
    %p85 = scmp.ne.s32.totalorder %s71, %s72
    %p86 = scmp.eq.s32.totalorder %s17, 1
    %p87 = por %p85, %p86
    %p89 = scmp.ne.s32.totalorder %s72, %s88
    %p90 = scmp.eq.s32.totalorder %s17, 0
    %p91 = por %p89, %p90
    %s92 = ssub.s32 %s11, %s18
    %p93 = scmp.eq.s32.totalorder %s92, 0
    %s95 = sadd.s32 %s94, 1
    %s96 = scalar_select %p93, %s94, %s95
    %p99 = pneg %p93
    %p100 = scmp.eq.s32.totalorder %s11, 1
    %p101 = por %p99, %p100
    %p102 = scmp.ne.s32.totalorder %s94, %s97
    %p103 = scmp.eq.s32.totalorder %s11, 0
    %p104 = por %p102, %p103
    %p105 = scmp.ne.s32.totalorder %s94, %s97
    %p106 = scmp.eq.s32.totalorder %s16, 1
    %p107 = por %p105, %p106
    %p108 = scmp.ne.s32.totalorder %s97, %s98
    %p109 = scmp.eq.s32.totalorder %s16, 0
    %p110 = por %p108, %p109
    %p111 = scmp.ne.s32.totalorder %s97, %s98
    %p112 = scmp.eq.s32.totalorder %s17, 1
    %p113 = por %p111, %p112
    %p115 = scmp.ne.s32.totalorder %s98, %s114
    %p116 = scmp.eq.s32.totalorder %s17, 0
    %p117 = por %p115, %p116
    %s118 = ssub.s32 %s11, %s18
    %p119 = scmp.eq.s32.totalorder %s118, 0
    %s121 = sadd.s32 %s120, 1
    %s122 = scalar_select %p119, %s120, %s121
    %p125 = pneg %p119
    %p126 = scmp.eq.s32.totalorder %s11, 1
    %p127 = por %p125, %p126
    %p128 = scmp.ne.s32.totalorder %s120, %s123
    %p129 = scmp.eq.s32.totalorder %s11, 0
    %p130 = por %p128, %p129
    %p131 = scmp.ne.s32.totalorder %s120, %s123
    %p132 = scmp.eq.s32.totalorder %s16, 1
    %p133 = por %p131, %p132
    %p134 = scmp.ne.s32.totalorder %s123, %s124
    %p135 = scmp.eq.s32.totalorder %s16, 0
    %p136 = por %p134, %p135
    %p137 = scmp.ne.s32.totalorder %s123, %s124
    %p138 = scmp.eq.s32.totalorder %s17, 1
    %p139 = por %p137, %p138
    %p141 = scmp.ne.s32.totalorder %s124, %s140
    %p142 = scmp.eq.s32.totalorder %s17, 0
    %p143 = por %p141, %p142
    %p144 = scmp.le.s32.totalorder 1, %s11
    %p145 = scmp.lt.s32.totalorder %s11, 3
    %p146 = pnand %p144, %p145
    %p147 = pneg %p146
    // Predicated region
    $region9: #{bottleneck2conv.3} parent=5 // pred_check
      _
    $region10: #{bottleneck2conv.3} parent=5 // pred_check_branch
      %149 = sbr.rel (%p146) target = $region12
    $region11: #{bottleneck2conv.3} parent=5 // pred_region
      %s150 = ssub.s32 %s11, 1
      // Predicated region
      $region13: #{bottleneck2conv.3} parent=11 // pred_check
        %p151 = pneg %p58
      $region14: #{bottleneck2conv.3} parent=11 // pred_check_branch
        %153 = sbr.rel (%p151) target = $region16
      $region15: #{bottleneck2conv.3} parent=11 // pred_region
        _
      $region16: #{bottleneck2conv.3} parent=11 // pred_fallthru
        _
    $region12: #{bottleneck2conv.3} parent=5 // pred_fallthru
      _
    %p154 = scmp.lt.s32.totalorder %s11, 2
    // Predicated region
    $region17: #{bottleneck2conv.3} parent=5 // pred_check
      %p155 = pneg %p154
    $region18: #{bottleneck2conv.3} parent=5 // pred_check_branch
      %157 = sbr.rel (%p155) target = $region20
    $region19: #{bottleneck2conv.3} parent=5 // pred_region
      // Predicated region
      $region21: #{bottleneck2conv.3} parent=19 // pred_check
        %p158 = pneg %p31
      $region22: #{bottleneck2conv.3} parent=19 // pred_check_branch
        %160 = sbr.rel (%p158) target = $region24
      $region23: #{bottleneck2conv.3} parent=19 // pred_region
        %p161 = scmp.lt.s32.totalorder %s11, 1
        %s162 = scalar_select %p161, %s11, 1
        %s163 = smul.addr %s162, 32
        %s164 = smul.addr %s163, 4
        %s165 = scalar_lea.vmem %s0, %s164
      $region24: #{bottleneck2conv.3} parent=19 // pred_fallthru
        _
    $region20: #{bottleneck2conv.3} parent=5 // pred_fallthru
      _
    %p166 = scmp.le.s32.totalorder 1, %s11
    %p167 = scmp.lt.s32.totalorder %s11, 3
    %p168 = pnand %p166, %p167
    %p169 = pneg %p168
    // Predicated region
    $region25: #{bottleneck2conv.3} parent=5 // pred_check
      _
    $region26: #{bottleneck2conv.3} parent=5 // pred_check_branch
      %171 = sbr.rel (%p168) target = $region28
    $region27: #{bottleneck2conv.3} parent=5 // pred_region
      %s172 = ssub.s32 %s11, 1
      %p173 = scmp.lt.s32.totalorder %s16, 1
      %s174 = scalar_select %p173, %s16, 1
      %s175 = smul.addr %s174, 32
      %s176 = smul.addr %s175, 4
      %s177 = scalar_lea.vmem %s0, %s176
      %p178 = pneg %p37
      %p179 = pneg %p34
      %p180 = pneg %p58
      %p181 = pneg %p55
      %p182 = pneg %p84
      %p183 = pneg %p81
      %p184 = scmp.lt.s32.totalorder %s16, 1
      %s185 = scalar_select %p184, %s16, 1
      %s186 = smul.addr %s185, 32
      %s187 = smul.addr %s186, 8
      %s188 = scalar_lea.vmem %s2, %s187
      %p189 = pneg %p110
      %p190 = pneg %p107
      %p191 = scmp.lt.s32.totalorder %s16, 1
      %s192 = scalar_select %p191, %s16, 1
      %s193 = scalar_lea.vmem %s3, %s192
      %p194 = pneg %p136
      %p195 = pneg %p133
      %p196 = scmp.lt.s32.totalorder %s16, 1
      %s197 = scalar_select %p196, %s16, 1
      %s198 = scalar_lea.vmem %s4, %s197
      %p199 = scmp.lt.s32.totalorder %s16, 1
      %s200 = scalar_select %p199, %s16, 1
      %s201 = smul.addr %s200, 32
      %s202 = smul.addr %s201, 4
      %s203 = scalar_lea.vmem %s0, %s202
      %p204 = scmp.lt.s32.totalorder %s16, 1
      %s205 = scalar_select %p204, %s16, 1
      %s206 = smul.addr %s205, 32
      %s207 = smul.addr %s206, 8
      %s208 = scalar_lea.vmem %s2, %s207
      %p209 = scmp.lt.s32.totalorder %s16, 1
      %s210 = scalar_select %p209, %s16, 1
      %s211 = scalar_lea.vmem %s3, %s210
      %p212 = scmp.lt.s32.totalorder %s16, 1
      %s213 = scalar_select %p212, %s16, 1
      %s214 = scalar_lea.vmem %s4, %s213
      %v218 = vld [vmem:[%s203] sm:$0xf]
      %v219 = vld [vmem:[%s203 + $0x4] sm:$0xf]
      %v220 = vld [vmem:[%s203 + $0x8] sm:$0xf]
      %v221 = vld [vmem:[%s203 + $0xc] sm:$0xf]
      %v222 = vld [vmem:[%s203 + $0x10] sm:$0xf]
      %v223 = vld [vmem:[%s203 + $0x14] sm:$0xf]
      %v224 = vld [vmem:[%s203 + $0x18] sm:$0xf]
      %v225 = vld [vmem:[%s203 + $0x1c] sm:$0xf]
      %v226 = vld [vmem:[%s203 + $0x20] sm:$0xf]
      %v227 = vld [vmem:[%s203 + $0x24] sm:$0xf]
      %v228 = vld [vmem:[%s203 + $0x28] sm:$0xf]
      %v229 = vld [vmem:[%s203 + $0x2c] sm:$0xf]
      %v230 = vld [vmem:[%s203 + $0x30] sm:$0xf]
      %v231 = vld [vmem:[%s203 + $0x34] sm:$0xf]
      %v232 = vld [vmem:[%s203 + $0x38] sm:$0xf]
      %v233 = vld [vmem:[%s203 + $0x3c] sm:$0xf]
      %v234 = vld [vmem:[%s203 + $0x40] sm:$0xf]
      %v235 = vld [vmem:[%s203 + $0x44] sm:$0xf]
      %v236 = vld [vmem:[%s203 + $0x48] sm:$0xf]
      %v237 = vld [vmem:[%s203 + $0x4c] sm:$0xf]
      %v238 = vld [vmem:[%s203 + $0x50] sm:$0xf]
      %v239 = vld [vmem:[%s203 + $0x54] sm:$0xf]
      %v240 = vld [vmem:[%s203 + $0x58] sm:$0xf]
      %v241 = vld [vmem:[%s203 + $0x5c] sm:$0xf]
      %v242 = vld [vmem:[%s203 + $0x60] sm:$0xf]
      %v243 = vld [vmem:[%s203 + $0x64] sm:$0xf]
      %v244 = vld [vmem:[%s203 + $0x68] sm:$0xf]
      %v245 = vld [vmem:[%s203 + $0x6c] sm:$0xf]
      %v246 = vld [vmem:[%s203 + $0x70] sm:$0xf]
      %v247 = vld [vmem:[%s203 + $0x74] sm:$0xf]
      %v248 = vld [vmem:[%s203 + $0x78] sm:$0xf]
      %v249 = vld [vmem:[%s203 + $0x7c] sm:$0xf]
      %v282 = vunpack.c.l.b16 %v218
      %v283 = vunpack.c.l.b16 %v219
      %v284 = vunpack.c.l.b16 %v220
      %v285 = vunpack.c.l.b16 %v221
      %v286 = vunpack.c.l.b16 %v222
      %v287 = vunpack.c.l.b16 %v223
      %v288 = vunpack.c.l.b16 %v224
      %v289 = vunpack.c.l.b16 %v225
      %v290 = vunpack.c.l.b16 %v226
      %v291 = vunpack.c.l.b16 %v227
      %v292 = vunpack.c.l.b16 %v228
      %v293 = vunpack.c.l.b16 %v229
      %v294 = vunpack.c.l.b16 %v230
      %v295 = vunpack.c.l.b16 %v231
      %v296 = vunpack.c.l.b16 %v232
      %v297 = vunpack.c.l.b16 %v233
      %v298 = vunpack.c.l.b16 %v234
      %v299 = vunpack.c.l.b16 %v235
      %v300 = vunpack.c.l.b16 %v236
      %v301 = vunpack.c.l.b16 %v237
      %v302 = vunpack.c.l.b16 %v238
      %v303 = vunpack.c.l.b16 %v239
      %v304 = vunpack.c.l.b16 %v240
      %v305 = vunpack.c.l.b16 %v241
      %v306 = vunpack.c.l.b16 %v242
      %v307 = vunpack.c.l.b16 %v243
      %v308 = vunpack.c.l.b16 %v244
      %v309 = vunpack.c.l.b16 %v245
      %v310 = vunpack.c.l.b16 %v246
      %v311 = vunpack.c.l.b16 %v247
      %v312 = vunpack.c.l.b16 %v248
      %v313 = vunpack.c.l.b16 %v249
      %v314 = vpack.c.b16 %v283, %v282
      %v315 = vpack.c.b16 %v285, %v284
      %v316 = vpack.c.b16 %v287, %v286
      %v317 = vpack.c.b16 %v289, %v288
      %v318 = vpack.c.b16 %v291, %v290
      %v319 = vpack.c.b16 %v293, %v292
      %v320 = vpack.c.b16 %v295, %v294
      %v321 = vpack.c.b16 %v297, %v296
      %v322 = vpack.c.b16 %v299, %v298
      %v323 = vpack.c.b16 %v301, %v300
      %v324 = vpack.c.b16 %v303, %v302
      %v325 = vpack.c.b16 %v305, %v304
      %v326 = vpack.c.b16 %v307, %v306
      %v327 = vpack.c.b16 %v309, %v308
      %v328 = vpack.c.b16 %v311, %v310
      %v329 = vpack.c.b16 %v313, %v312
      %v346 = vlaneseq
      %v347 = vshrl.u32 %v346, 7
      %v348 = vadd.s32 %v347, 32
      %v349 = vadd.s32 %v347, 40
      %v350 = vadd.s32 %v347, 48
      %v351 = vadd.s32 %v347, 56
      %v352 = vadd.s32 %v347, 64
      %v353 = vadd.s32 %v347, 72
      %v354 = vadd.s32 %v347, 80
      %v355 = vadd.s32 %v347, 88
      %v356 = vadd.s32 %v347, 96
      %v357 = vadd.s32 %v347, 104
      %v358 = vadd.s32 %v347, 112
      %v359 = vadd.s32 %v347, 120
      %v360 = vadd.s32 %v347, 128
      %v361 = vadd.s32 %v347, 136
      %v362 = vadd.s32 %v347, 144
      %v363 = vadd.s32 %v347, 152
      %v364 = vadd.s32 %v347, 160
      %v365 = vadd.s32 %v347, 168
      %v366 = vadd.s32 %v347, 176
      %v367 = vadd.s32 %v347, 184
      %v368 = vadd.s32 %v347, 192
      %v369 = vadd.s32 %v347, 200
      %v370 = vadd.s32 %v347, 208
      %v371 = vadd.s32 %v347, 216
      %v372 = vadd.s32 %v347, 224
      %v373 = vadd.s32 %v347, 232
      %v374 = vadd.s32 %v347, 240
      %v375 = vadd.s32 %v347, 248
      %v376 = vadd.s32 %v347, 256
      %v377 = vadd.s32 %v347, 264
      %v378 = vadd.s32 %v347, 272
      %v379 = vadd.s32 %v347, 280
      %vm380 = vcmp.lt.s32.totalorder %v348, 0
      %v381 = vsub.s32 0, %v348
      %v382 = vsel %vm380, %v381, %v348
      %v383 = vshrl.u32 %v382, 4
      %v384 = vand.u32 %v382, 15
      %v385 = vsub.s32 0, %v384
      %v386 = vsel %vm380, %v385, %v384
      %vm387 = vcmp.lt.s32.totalorder %v349, 0
      %v388 = vsub.s32 0, %v349
      %v389 = vsel %vm387, %v388, %v349
      %v390 = vshrl.u32 %v389, 4
      %v391 = vand.u32 %v389, 15
      %v392 = vsub.s32 0, %v391
      %v393 = vsel %vm387, %v392, %v391
      %vm394 = vcmp.lt.s32.totalorder %v350, 0
      %v395 = vsub.s32 0, %v350
      %v396 = vsel %vm394, %v395, %v350
      %v397 = vshrl.u32 %v396, 4
      %v398 = vand.u32 %v396, 15
      %v399 = vsub.s32 0, %v398
      %v400 = vsel %vm394, %v399, %v398
      %vm401 = vcmp.lt.s32.totalorder %v351, 0
      %v402 = vsub.s32 0, %v351
      %v403 = vsel %vm401, %v402, %v351
      %v404 = vshrl.u32 %v403, 4
      %v405 = vand.u32 %v403, 15
      %v406 = vsub.s32 0, %v405
      %v407 = vsel %vm401, %v406, %v405
      %vm408 = vcmp.lt.s32.totalorder %v352, 0
      %v409 = vsub.s32 0, %v352
      %v410 = vsel %vm408, %v409, %v352
      %v411 = vshrl.u32 %v410, 4
      %v412 = vand.u32 %v410, 15
      %v413 = vsub.s32 0, %v412
      %v414 = vsel %vm408, %v413, %v412
      %vm415 = vcmp.lt.s32.totalorder %v353, 0
      %v416 = vsub.s32 0, %v353
      %v417 = vsel %vm415, %v416, %v353
      %v418 = vshrl.u32 %v417, 4
      %v419 = vand.u32 %v417, 15
      %v420 = vsub.s32 0, %v419
      %v421 = vsel %vm415, %v420, %v419
      %vm422 = vcmp.lt.s32.totalorder %v354, 0
      %v423 = vsub.s32 0, %v354
      %v424 = vsel %vm422, %v423, %v354
      %v425 = vshrl.u32 %v424, 4
      %v426 = vand.u32 %v424, 15
      %v427 = vsub.s32 0, %v426
      %v428 = vsel %vm422, %v427, %v426
      %vm429 = vcmp.lt.s32.totalorder %v355, 0
      %v430 = vsub.s32 0, %v355
      %v431 = vsel %vm429, %v430, %v355
      %v432 = vshrl.u32 %v431, 4
      %v433 = vand.u32 %v431, 15
      %v434 = vsub.s32 0, %v433
      %v435 = vsel %vm429, %v434, %v433
      %vm436 = vcmp.lt.s32.totalorder %v356, 0
      %v437 = vsub.s32 0, %v356
      %v438 = vsel %vm436, %v437, %v356
      %v439 = vshrl.u32 %v438, 4
      %v440 = vand.u32 %v438, 15
      %v441 = vsub.s32 0, %v440
      %v442 = vsel %vm436, %v441, %v440
      %vm443 = vcmp.lt.s32.totalorder %v357, 0
      %v444 = vsub.s32 0, %v357
      %v445 = vsel %vm443, %v444, %v357
      %v446 = vshrl.u32 %v445, 4
      %v447 = vand.u32 %v445, 15
      %v448 = vsub.s32 0, %v447
      %v449 = vsel %vm443, %v448, %v447
      %vm450 = vcmp.lt.s32.totalorder %v358, 0
      %v451 = vsub.s32 0, %v358
      %v452 = vsel %vm450, %v451, %v358
      %v453 = vshrl.u32 %v452, 4
      %v454 = vand.u32 %v452, 15
      %v455 = vsub.s32 0, %v454
      %v456 = vsel %vm450, %v455, %v454
      %vm457 = vcmp.lt.s32.totalorder %v359, 0
      %v458 = vsub.s32 0, %v359
      %v459 = vsel %vm457, %v458, %v359
      %v460 = vshrl.u32 %v459, 4
      %v461 = vand.u32 %v459, 15
      %v462 = vsub.s32 0, %v461
      %v463 = vsel %vm457, %v462, %v461
      %vm464 = vcmp.lt.s32.totalorder %v360, 0
      %v465 = vsub.s32 0, %v360
      %v466 = vsel %vm464, %v465, %v360
      %v467 = vshrl.u32 %v466, 4
      %v468 = vand.u32 %v466, 15
      %v469 = vsub.s32 0, %v468
      %v470 = vsel %vm464, %v469, %v468
      %vm471 = vcmp.lt.s32.totalorder %v361, 0
      %v472 = vsub.s32 0, %v361
      %v473 = vsel %vm471, %v472, %v361
      %v474 = vshrl.u32 %v473, 4
      %v475 = vand.u32 %v473, 15
      %v476 = vsub.s32 0, %v475
      %v477 = vsel %vm471, %v476, %v475
      %vm478 = vcmp.lt.s32.totalorder %v362, 0
      %v479 = vsub.s32 0, %v362
      %v480 = vsel %vm478, %v479, %v362
      %v481 = vshrl.u32 %v480, 4
      %v482 = vand.u32 %v480, 15
      %v483 = vsub.s32 0, %v482
      %v484 = vsel %vm478, %v483, %v482
      %vm485 = vcmp.lt.s32.totalorder %v363, 0
      %v486 = vsub.s32 0, %v363
      %v487 = vsel %vm485, %v486, %v363
      %v488 = vshrl.u32 %v487, 4
      %v489 = vand.u32 %v487, 15
      %v490 = vsub.s32 0, %v489
      %v491 = vsel %vm485, %v490, %v489
      %vm492 = vcmp.lt.s32.totalorder %v364, 0
      %v493 = vsub.s32 0, %v364
      %v494 = vsel %vm492, %v493, %v364
      %v495 = vshrl.u32 %v494, 4
      %v496 = vand.u32 %v494, 15
      %v497 = vsub.s32 0, %v496
      %v498 = vsel %vm492, %v497, %v496
      %vm499 = vcmp.lt.s32.totalorder %v365, 0
      %v500 = vsub.s32 0, %v365
      %v501 = vsel %vm499, %v500, %v365
      %v502 = vshrl.u32 %v501, 4
      %v503 = vand.u32 %v501, 15
      %v504 = vsub.s32 0, %v503
      %v505 = vsel %vm499, %v504, %v503
      %vm506 = vcmp.lt.s32.totalorder %v366, 0
      %v507 = vsub.s32 0, %v366
      %v508 = vsel %vm506, %v507, %v366
      %v509 = vshrl.u32 %v508, 4
      %v510 = vand.u32 %v508, 15
      %v511 = vsub.s32 0, %v510
      %v512 = vsel %vm506, %v511, %v510
      %vm513 = vcmp.lt.s32.totalorder %v367, 0
      %v514 = vsub.s32 0, %v367
      %v515 = vsel %vm513, %v514, %v367
      %v516 = vshrl.u32 %v515, 4
      %v517 = vand.u32 %v515, 15
      %v518 = vsub.s32 0, %v517
      %v519 = vsel %vm513, %v518, %v517
      %vm520 = vcmp.lt.s32.totalorder %v368, 0
      %v521 = vsub.s32 0, %v368
      %v522 = vsel %vm520, %v521, %v368
      %v523 = vshrl.u32 %v522, 4
      %v524 = vand.u32 %v522, 15
      %v525 = vsub.s32 0, %v524
      %v526 = vsel %vm520, %v525, %v524
      %vm527 = vcmp.lt.s32.totalorder %v369, 0
      %v528 = vsub.s32 0, %v369
      %v529 = vsel %vm527, %v528, %v369
      %v530 = vshrl.u32 %v529, 4
      %v531 = vand.u32 %v529, 15
      %v532 = vsub.s32 0, %v531
      %v533 = vsel %vm527, %v532, %v531
      %vm534 = vcmp.lt.s32.totalorder %v370, 0
      %v535 = vsub.s32 0, %v370
      %v536 = vsel %vm534, %v535, %v370
      %v537 = vshrl.u32 %v536, 4
      %v538 = vand.u32 %v536, 15
      %v539 = vsub.s32 0, %v538
      %v540 = vsel %vm534, %v539, %v538
      %vm541 = vcmp.lt.s32.totalorder %v371, 0
      %v542 = vsub.s32 0, %v371
      %v543 = vsel %vm541, %v542, %v371
      %v544 = vshrl.u32 %v543, 4
      %v545 = vand.u32 %v543, 15
      %v546 = vsub.s32 0, %v545
      %v547 = vsel %vm541, %v546, %v545
      %vm548 = vcmp.lt.s32.totalorder %v372, 0
      %v549 = vsub.s32 0, %v372
      %v550 = vsel %vm548, %v549, %v372
      %v551 = vshrl.u32 %v550, 4
      %v552 = vand.u32 %v550, 15
      %v553 = vsub.s32 0, %v552
      %v554 = vsel %vm548, %v553, %v552
      %vm555 = vcmp.lt.s32.totalorder %v373, 0
      %v556 = vsub.s32 0, %v373
      %v557 = vsel %vm555, %v556, %v373
      %v558 = vshrl.u32 %v557, 4
      %v559 = vand.u32 %v557, 15
      %v560 = vsub.s32 0, %v559
      %v561 = vsel %vm555, %v560, %v559
      %vm562 = vcmp.lt.s32.totalorder %v374, 0
      %v563 = vsub.s32 0, %v374
      %v564 = vsel %vm562, %v563, %v374
      %v565 = vshrl.u32 %v564, 4
      %v566 = vand.u32 %v564, 15
      %v567 = vsub.s32 0, %v566
      %v568 = vsel %vm562, %v567, %v566
      %vm569 = vcmp.lt.s32.totalorder %v375, 0
      %v570 = vsub.s32 0, %v375
      %v571 = vsel %vm569, %v570, %v375
      %v572 = vshrl.u32 %v571, 4
      %v573 = vand.u32 %v571, 15
      %v574 = vsub.s32 0, %v573
      %v575 = vsel %vm569, %v574, %v573
      %vm576 = vcmp.lt.s32.totalorder %v376, 0
      %v577 = vsub.s32 0, %v376
      %v578 = vsel %vm576, %v577, %v376
      %v579 = vshrl.u32 %v578, 4
      %v580 = vand.u32 %v578, 15
      %v581 = vsub.s32 0, %v580
      %v582 = vsel %vm576, %v581, %v580
      %vm583 = vcmp.lt.s32.totalorder %v377, 0
      %v584 = vsub.s32 0, %v377
      %v585 = vsel %vm583, %v584, %v377
      %v586 = vshrl.u32 %v585, 4
      %v587 = vand.u32 %v585, 15
      %v588 = vsub.s32 0, %v587
      %v589 = vsel %vm583, %v588, %v587
      %vm590 = vcmp.lt.s32.totalorder %v378, 0
      %v591 = vsub.s32 0, %v378
      %v592 = vsel %vm590, %v591, %v378
      %v593 = vshrl.u32 %v592, 4
      %v594 = vand.u32 %v592, 15
      %v595 = vsub.s32 0, %v594
      %v596 = vsel %vm590, %v595, %v594
      %vm597 = vcmp.lt.s32.totalorder %v379, 0
      %v598 = vsub.s32 0, %v379
      %v599 = vsel %vm597, %v598, %v379
      %v600 = vshrl.u32 %v599, 4
      %v601 = vand.u32 %v599, 15
      %v602 = vsub.s32 0, %v601
      %v603 = vsel %vm597, %v602, %v601
      %vm604 = vcmp.ne.s32.totalorder %v386, 0
      %vm605 = vcmp.ne.s32.totalorder %v393, 0
      %vm606 = vcmp.ne.s32.totalorder %v400, 0
      %vm607 = vcmp.ne.s32.totalorder %v407, 0
      %vm608 = vcmp.ne.s32.totalorder %v414, 0
      %vm609 = vcmp.ne.s32.totalorder %v421, 0
      %vm610 = vcmp.ne.s32.totalorder %v428, 0
      %vm611 = vcmp.ne.s32.totalorder %v435, 0
      %vm612 = vcmp.ne.s32.totalorder %v442, 0
      %vm613 = vcmp.ne.s32.totalorder %v449, 0
      %vm614 = vcmp.ne.s32.totalorder %v456, 0
      %vm615 = vcmp.ne.s32.totalorder %v463, 0
      %vm616 = vcmp.ne.s32.totalorder %v470, 0
      %vm617 = vcmp.ne.s32.totalorder %v477, 0
      %vm618 = vcmp.ne.s32.totalorder %v484, 0
      %vm619 = vcmp.ne.s32.totalorder %v491, 0
      %vm620 = vcmp.ne.s32.totalorder %v498, 0
      %vm621 = vcmp.ne.s32.totalorder %v505, 0
      %vm622 = vcmp.ne.s32.totalorder %v512, 0
      %vm623 = vcmp.ne.s32.totalorder %v519, 0
      %vm624 = vcmp.ne.s32.totalorder %v526, 0
      %vm625 = vcmp.ne.s32.totalorder %v533, 0
      %vm626 = vcmp.ne.s32.totalorder %v540, 0
      %vm627 = vcmp.ne.s32.totalorder %v547, 0
      %vm628 = vcmp.ne.s32.totalorder %v554, 0
      %vm629 = vcmp.ne.s32.totalorder %v561, 0
      %vm630 = vcmp.ne.s32.totalorder %v568, 0
      %vm631 = vcmp.ne.s32.totalorder %v575, 0
      %vm632 = vcmp.ne.s32.totalorder %v582, 0
      %vm633 = vcmp.ne.s32.totalorder %v589, 0
      %vm634 = vcmp.ne.s32.totalorder %v596, 0
      %vm635 = vcmp.ne.s32.totalorder %v603, 0
      %vm636 = vcmp.lt.s32.totalorder %v386, 0
      %vm637 = vcmp.lt.s32.totalorder %v393, 0
      %vm638 = vcmp.lt.s32.totalorder %v400, 0
      %vm639 = vcmp.lt.s32.totalorder %v407, 0
      %vm640 = vcmp.lt.s32.totalorder %v414, 0
      %vm641 = vcmp.lt.s32.totalorder %v421, 0
      %vm642 = vcmp.lt.s32.totalorder %v428, 0
      %vm643 = vcmp.lt.s32.totalorder %v435, 0
      %vm644 = vcmp.lt.s32.totalorder %v442, 0
      %vm645 = vcmp.lt.s32.totalorder %v449, 0
      %vm646 = vcmp.lt.s32.totalorder %v456, 0
      %vm647 = vcmp.lt.s32.totalorder %v463, 0
      %vm648 = vcmp.lt.s32.totalorder %v470, 0
      %vm649 = vcmp.lt.s32.totalorder %v477, 0
      %vm650 = vcmp.lt.s32.totalorder %v484, 0
      %vm651 = vcmp.lt.s32.totalorder %v491, 0
      %vm652 = vcmp.lt.s32.totalorder %v498, 0
      %vm653 = vcmp.lt.s32.totalorder %v505, 0
      %vm654 = vcmp.lt.s32.totalorder %v512, 0
      %vm655 = vcmp.lt.s32.totalorder %v519, 0
      %vm656 = vcmp.lt.s32.totalorder %v526, 0
      %vm657 = vcmp.lt.s32.totalorder %v533, 0
      %vm658 = vcmp.lt.s32.totalorder %v540, 0
      %vm659 = vcmp.lt.s32.totalorder %v547, 0
      %vm660 = vcmp.lt.s32.totalorder %v554, 0
      %vm661 = vcmp.lt.s32.totalorder %v561, 0
      %vm662 = vcmp.lt.s32.totalorder %v568, 0
      %vm663 = vcmp.lt.s32.totalorder %v575, 0
      %vm664 = vcmp.lt.s32.totalorder %v582, 0
      %vm665 = vcmp.lt.s32.totalorder %v589, 0
      %vm666 = vcmp.lt.s32.totalorder %v596, 0
      %vm667 = vcmp.lt.s32.totalorder %v603, 0
      %vm668 = vmand %vm636, %vm604
      %vm669 = vmand %vm637, %vm605
      %vm670 = vmand %vm638, %vm606
      %vm671 = vmand %vm639, %vm607
      %vm672 = vmand %vm640, %vm608
      %vm673 = vmand %vm641, %vm609
      %vm674 = vmand %vm642, %vm610
      %vm675 = vmand %vm643, %vm611
      %vm676 = vmand %vm644, %vm612
      %vm677 = vmand %vm645, %vm613
      %vm678 = vmand %vm646, %vm614
      %vm679 = vmand %vm647, %vm615
      %vm680 = vmand %vm648, %vm616
      %vm681 = vmand %vm649, %vm617
      %vm682 = vmand %vm650, %vm618
      %vm683 = vmand %vm651, %vm619
      %vm684 = vmand %vm652, %vm620
      %vm685 = vmand %vm653, %vm621
      %vm686 = vmand %vm654, %vm622
      %vm687 = vmand %vm655, %vm623
      %vm688 = vmand %vm656, %vm624
      %vm689 = vmand %vm657, %vm625
      %vm690 = vmand %vm658, %vm626
      %vm691 = vmand %vm659, %vm627
      %vm692 = vmand %vm660, %vm628
      %vm693 = vmand %vm661, %vm629
      %vm694 = vmand %vm662, %vm630
      %vm695 = vmand %vm663, %vm631
      %vm696 = vmand %vm664, %vm632
      %vm697 = vmand %vm665, %vm633
      %vm698 = vmand %vm666, %vm634
      %vm699 = vmand %vm667, %vm635
      %v700 = vadd.s32 %v386, 16
      %v701 = vadd.s32 %v393, 16
      %v702 = vadd.s32 %v400, 16
      %v703 = vadd.s32 %v407, 16
      %v704 = vadd.s32 %v414, 16
      %v705 = vadd.s32 %v421, 16
      %v706 = vadd.s32 %v428, 16
      %v707 = vadd.s32 %v435, 16
      %v708 = vadd.s32 %v442, 16
      %v709 = vadd.s32 %v449, 16
      %v710 = vadd.s32 %v456, 16
      %v711 = vadd.s32 %v463, 16
      %v712 = vadd.s32 %v470, 16
      %v713 = vadd.s32 %v477, 16
      %v714 = vadd.s32 %v484, 16
      %v715 = vadd.s32 %v491, 16
      %v716 = vadd.s32 %v498, 16
      %v717 = vadd.s32 %v505, 16
      %v718 = vadd.s32 %v512, 16
      %v719 = vadd.s32 %v519, 16
      %v720 = vadd.s32 %v526, 16
      %v721 = vadd.s32 %v533, 16
      %v722 = vadd.s32 %v540, 16
      %v723 = vadd.s32 %v547, 16
      %v724 = vadd.s32 %v554, 16
      %v725 = vadd.s32 %v561, 16
      %v726 = vadd.s32 %v568, 16
      %v727 = vadd.s32 %v575, 16
      %v728 = vadd.s32 %v582, 16
      %v729 = vadd.s32 %v589, 16
      %v730 = vadd.s32 %v596, 16
      %v731 = vadd.s32 %v603, 16
      %v732 = vsel %vm668, %v700, %v386
      %v733 = vsel %vm669, %v701, %v393
      %v734 = vsel %vm670, %v702, %v400
      %v735 = vsel %vm671, %v703, %v407
      %v736 = vsel %vm672, %v704, %v414
      %v737 = vsel %vm673, %v705, %v421
      %v738 = vsel %vm674, %v706, %v428
      %v739 = vsel %vm675, %v707, %v435
      %v740 = vsel %vm676, %v708, %v442
      %v741 = vsel %vm677, %v709, %v449
      %v742 = vsel %vm678, %v710, %v456
      %v743 = vsel %vm679, %v711, %v463
      %v744 = vsel %vm680, %v712, %v470
      %v745 = vsel %vm681, %v713, %v477
      %v746 = vsel %vm682, %v714, %v484
      %v747 = vsel %vm683, %v715, %v491
      %v748 = vsel %vm684, %v716, %v498
      %v749 = vsel %vm685, %v717, %v505
      %v750 = vsel %vm686, %v718, %v512
      %v751 = vsel %vm687, %v719, %v519
      %v752 = vsel %vm688, %v720, %v526
      %v753 = vsel %vm689, %v721, %v533
      %v754 = vsel %vm690, %v722, %v540
      %v755 = vsel %vm691, %v723, %v547
      %v756 = vsel %vm692, %v724, %v554
      %v757 = vsel %vm693, %v725, %v561
      %v758 = vsel %vm694, %v726, %v568
      %v759 = vsel %vm695, %v727, %v575
      %v760 = vsel %vm696, %v728, %v582
      %v761 = vsel %vm697, %v729, %v589
      %v762 = vsel %vm698, %v730, %v596
      %v763 = vsel %vm699, %v731, %v603
      %vm764 = vcmp.eq.s32.totalorder %v732, 15
      %vm765 = vcmp.eq.s32.totalorder %v733, 15
      %vm766 = vcmp.eq.s32.totalorder %v734, 15
      %vm767 = vcmp.eq.s32.totalorder %v735, 15
      %vm768 = vcmp.eq.s32.totalorder %v736, 15
      %vm769 = vcmp.eq.s32.totalorder %v737, 15
      %vm770 = vcmp.eq.s32.totalorder %v738, 15
      %vm771 = vcmp.eq.s32.totalorder %v739, 15
      %vm772 = vcmp.eq.s32.totalorder %v740, 15
      %vm773 = vcmp.eq.s32.totalorder %v741, 15
      %vm774 = vcmp.eq.s32.totalorder %v742, 15
      %vm775 = vcmp.eq.s32.totalorder %v743, 15
      %vm776 = vcmp.eq.s32.totalorder %v744, 15
      %vm777 = vcmp.eq.s32.totalorder %v745, 15
      %vm778 = vcmp.eq.s32.totalorder %v746, 15
      %vm779 = vcmp.eq.s32.totalorder %v747, 15
      %vm780 = vcmp.eq.s32.totalorder %v748, 15
      %vm781 = vcmp.eq.s32.totalorder %v749, 15
      %vm782 = vcmp.eq.s32.totalorder %v750, 15
      %vm783 = vcmp.eq.s32.totalorder %v751, 15
      %vm784 = vcmp.eq.s32.totalorder %v752, 15
      %vm785 = vcmp.eq.s32.totalorder %v753, 15
      %vm786 = vcmp.eq.s32.totalorder %v754, 15
      %vm787 = vcmp.eq.s32.totalorder %v755, 15
      %vm788 = vcmp.eq.s32.totalorder %v756, 15
      %vm789 = vcmp.eq.s32.totalorder %v757, 15
      %vm790 = vcmp.eq.s32.totalorder %v758, 15
      %vm791 = vcmp.eq.s32.totalorder %v759, 15
      %vm792 = vcmp.eq.s32.totalorder %v760, 15
      %vm793 = vcmp.eq.s32.totalorder %v761, 15
      %vm794 = vcmp.eq.s32.totalorder %v762, 15
      %vm795 = vcmp.eq.s32.totalorder %v763, 15
      %v796 = vsel %vm764, 1, 0
      %v797 = vsel %vm765, 1, 0
      %v798 = vsel %vm766, 1, 0
      %v799 = vsel %vm767, 1, 0
      %v800 = vsel %vm768, 1, 0
      %v801 = vsel %vm769, 1, 0
      %v802 = vsel %vm770, 1, 0
      %v803 = vsel %vm771, 1, 0
      %v804 = vsel %vm772, 1, 0
      %v805 = vsel %vm773, 1, 0
      %v806 = vsel %vm774, 1, 0
      %v807 = vsel %vm775, 1, 0
      %v808 = vsel %vm776, 1, 0
      %v809 = vsel %vm777, 1, 0
      %v810 = vsel %vm778, 1, 0
      %v811 = vsel %vm779, 1, 0
      %v812 = vsel %vm780, 1, 0
      %v813 = vsel %vm781, 1, 0
      %v814 = vsel %vm782, 1, 0
      %v815 = vsel %vm783, 1, 0
      %v816 = vsel %vm784, 1, 0
      %v817 = vsel %vm785, 1, 0
      %v818 = vsel %vm786, 1, 0
      %v819 = vsel %vm787, 1, 0
      %v820 = vsel %vm788, 1, 0
      %v821 = vsel %vm789, 1, 0
      %v822 = vsel %vm790, 1, 0
      %v823 = vsel %vm791, 1, 0
      %v824 = vsel %vm792, 1, 0
      %v825 = vsel %vm793, 1, 0
      %v826 = vsel %vm794, 1, 0
      %v827 = vsel %vm795, 1, 0
      %vm828 = vcmp.eq.s32.totalorder %v796, 1
      %vm829 = vcmp.eq.s32.totalorder %v797, 1
      %vm830 = vcmp.eq.s32.totalorder %v798, 1
      %vm831 = vcmp.eq.s32.totalorder %v799, 1
      %vm832 = vcmp.eq.s32.totalorder %v800, 1
      %vm833 = vcmp.eq.s32.totalorder %v801, 1
      %vm834 = vcmp.eq.s32.totalorder %v802, 1
      %vm835 = vcmp.eq.s32.totalorder %v803, 1
      %vm836 = vcmp.eq.s32.totalorder %v804, 1
      %vm837 = vcmp.eq.s32.totalorder %v805, 1
      %vm838 = vcmp.eq.s32.totalorder %v806, 1
      %vm839 = vcmp.eq.s32.totalorder %v807, 1
      %vm840 = vcmp.eq.s32.totalorder %v808, 1
      %vm841 = vcmp.eq.s32.totalorder %v809, 1
      %vm842 = vcmp.eq.s32.totalorder %v810, 1
      %vm843 = vcmp.eq.s32.totalorder %v811, 1
      %vm844 = vcmp.eq.s32.totalorder %v812, 1
      %vm845 = vcmp.eq.s32.totalorder %v813, 1
      %vm846 = vcmp.eq.s32.totalorder %v814, 1
      %vm847 = vcmp.eq.s32.totalorder %v815, 1
      %vm848 = vcmp.eq.s32.totalorder %v816, 1
      %vm849 = vcmp.eq.s32.totalorder %v817, 1
      %vm850 = vcmp.eq.s32.totalorder %v818, 1
      %vm851 = vcmp.eq.s32.totalorder %v819, 1
      %vm852 = vcmp.eq.s32.totalorder %v820, 1
      %vm853 = vcmp.eq.s32.totalorder %v821, 1
      %vm854 = vcmp.eq.s32.totalorder %v822, 1
      %vm855 = vcmp.eq.s32.totalorder %v823, 1
      %vm856 = vcmp.eq.s32.totalorder %v824, 1
      %vm857 = vcmp.eq.s32.totalorder %v825, 1
      %vm858 = vcmp.eq.s32.totalorder %v826, 1
      %vm859 = vcmp.eq.s32.totalorder %v827, 1
      %vm860 = vmpackc.low %vm828, %vm828
      %vm861 = vmpackc.low %vm829, %vm829
      %vm862 = vmpackc.low %vm830, %vm830
      %vm863 = vmpackc.low %vm831, %vm831
      %vm864 = vmpackc.low %vm832, %vm832
      %vm865 = vmpackc.low %vm833, %vm833
      %vm866 = vmpackc.low %vm834, %vm834
      %vm867 = vmpackc.low %vm835, %vm835
      %vm868 = vmpackc.low %vm836, %vm836
      %vm869 = vmpackc.low %vm837, %vm837
      %vm870 = vmpackc.low %vm838, %vm838
      %vm871 = vmpackc.low %vm839, %vm839
      %vm872 = vmpackc.low %vm840, %vm840
      %vm873 = vmpackc.low %vm841, %vm841
      %vm874 = vmpackc.low %vm842, %vm842
      %vm875 = vmpackc.low %vm843, %vm843
      %vm876 = vmpackc.low %vm844, %vm844
      %vm877 = vmpackc.low %vm845, %vm845
      %vm878 = vmpackc.low %vm846, %vm846
      %vm879 = vmpackc.low %vm847, %vm847
      %vm880 = vmpackc.low %vm848, %vm848
      %vm881 = vmpackc.low %vm849, %vm849
      %vm882 = vmpackc.low %vm850, %vm850
      %vm883 = vmpackc.low %vm851, %vm851
      %vm884 = vmpackc.low %vm852, %vm852
      %vm885 = vmpackc.low %vm853, %vm853
      %vm886 = vmpackc.low %vm854, %vm854
      %vm887 = vmpackc.low %vm855, %vm855
      %vm888 = vmpackc.low %vm856, %vm856
      %vm889 = vmpackc.low %vm857, %vm857
      %vm890 = vmpackc.low %vm858, %vm858
      %vm891 = vmpackc.low %vm859, %vm859
      %v892 = vsel %vm860, 65537, 0
      %v893 = vsel %vm861, 65537, 0
      %v894 = vsel %vm862, 65537, 0
      %v895 = vsel %vm863, 65537, 0
      %v896 = vsel %vm864, 65537, 0
      %v897 = vsel %vm865, 65537, 0
      %v898 = vsel %vm866, 65537, 0
      %v899 = vsel %vm867, 65537, 0
      %v900 = vsel %vm868, 65537, 0
      %v901 = vsel %vm869, 65537, 0
      %v902 = vsel %vm870, 65537, 0
      %v903 = vsel %vm871, 65537, 0
      %v904 = vsel %vm872, 65537, 0
      %v905 = vsel %vm873, 65537, 0
      %v906 = vsel %vm874, 65537, 0
      %v907 = vsel %vm875, 65537, 0
      %v908 = vsel %vm876, 65537, 0
      %v909 = vsel %vm877, 65537, 0
      %v910 = vsel %vm878, 65537, 0
      %v911 = vsel %vm879, 65537, 0
      %v912 = vsel %vm880, 65537, 0
      %v913 = vsel %vm881, 65537, 0
      %v914 = vsel %vm882, 65537, 0
      %v915 = vsel %vm883, 65537, 0
      %v916 = vsel %vm884, 65537, 0
      %v917 = vsel %vm885, 65537, 0
      %v918 = vsel %vm886, 65537, 0
      %v919 = vsel %vm887, 65537, 0
      %v920 = vsel %vm888, 65537, 0
      %v921 = vsel %vm889, 65537, 0
      %v922 = vsel %vm890, 65537, 0
      %v923 = vsel %vm891, 65537, 0
      %v924 = vunpack.c.l.b16 %v892
      %v925 = vunpack.c.l.b16 %v893
      %v926 = vunpack.c.l.b16 %v894
      %v927 = vunpack.c.l.b16 %v895
      %v928 = vunpack.c.l.b16 %v896
      %v929 = vunpack.c.l.b16 %v897
      %v930 = vunpack.c.l.b16 %v898
      %v931 = vunpack.c.l.b16 %v899
      %v932 = vunpack.c.l.b16 %v900
      %v933 = vunpack.c.l.b16 %v901
      %v934 = vunpack.c.l.b16 %v902
      %v935 = vunpack.c.l.b16 %v903
      %v936 = vunpack.c.l.b16 %v904
      %v937 = vunpack.c.l.b16 %v905
      %v938 = vunpack.c.l.b16 %v906
      %v939 = vunpack.c.l.b16 %v907
      %v940 = vunpack.c.l.b16 %v908
      %v941 = vunpack.c.l.b16 %v909
      %v942 = vunpack.c.l.b16 %v910
      %v943 = vunpack.c.l.b16 %v911
      %v944 = vunpack.c.l.b16 %v912
      %v945 = vunpack.c.l.b16 %v913
      %v946 = vunpack.c.l.b16 %v914
      %v947 = vunpack.c.l.b16 %v915
      %v948 = vunpack.c.l.b16 %v916
      %v949 = vunpack.c.l.b16 %v917
      %v950 = vunpack.c.l.b16 %v918
      %v951 = vunpack.c.l.b16 %v919
      %v952 = vunpack.c.l.b16 %v920
      %v953 = vunpack.c.l.b16 %v921
      %v954 = vunpack.c.l.b16 %v922
      %v955 = vunpack.c.l.b16 %v923
      %v956 = vpack.c.b16 %v925, %v924
      %v957 = vpack.c.b16 %v927, %v926
      %v958 = vpack.c.b16 %v929, %v928
      %v959 = vpack.c.b16 %v931, %v930
      %v960 = vpack.c.b16 %v933, %v932
      %v961 = vpack.c.b16 %v935, %v934
      %v962 = vpack.c.b16 %v937, %v936
      %v963 = vpack.c.b16 %v939, %v938
      %v964 = vpack.c.b16 %v941, %v940
      %v965 = vpack.c.b16 %v943, %v942
      %v966 = vpack.c.b16 %v945, %v944
      %v967 = vpack.c.b16 %v947, %v946
      %v968 = vpack.c.b16 %v949, %v948
      %v969 = vpack.c.b16 %v951, %v950
      %v970 = vpack.c.b16 %v953, %v952
      %v971 = vpack.c.b16 %v955, %v954
      %vm972 = vcmp.ne.s16.totalorder %v956, 0
      %vm973 = vcmp.ne.s16.totalorder %v957, 0
      %vm974 = vcmp.ne.s16.totalorder %v958, 0
      %vm975 = vcmp.ne.s16.totalorder %v959, 0
      %vm976 = vcmp.ne.s16.totalorder %v960, 0
      %vm977 = vcmp.ne.s16.totalorder %v961, 0
      %vm978 = vcmp.ne.s16.totalorder %v962, 0
      %vm979 = vcmp.ne.s16.totalorder %v963, 0
      %vm980 = vcmp.ne.s16.totalorder %v964, 0
      %vm981 = vcmp.ne.s16.totalorder %v965, 0
      %vm982 = vcmp.ne.s16.totalorder %v966, 0
      %vm983 = vcmp.ne.s16.totalorder %v967, 0
      %vm984 = vcmp.ne.s16.totalorder %v968, 0
      %vm985 = vcmp.ne.s16.totalorder %v969, 0
      %vm986 = vcmp.ne.s16.totalorder %v970, 0
      %vm987 = vcmp.ne.s16.totalorder %v971, 0
      %v988 = vsel %vm972, 0, %v314
      %v989 = vsel %vm973, 0, %v315
      %v990 = vsel %vm974, 0, %v316
      %v991 = vsel %vm975, 0, %v317
      %v992 = vsel %vm976, 0, %v318
      %v993 = vsel %vm977, 0, %v319
      %v994 = vsel %vm978, 0, %v320
      %v995 = vsel %vm979, 0, %v321
      %v996 = vsel %vm980, 0, %v322
      %v997 = vsel %vm981, 0, %v323
      %v998 = vsel %vm982, 0, %v324
      %v999 = vsel %vm983, 0, %v325
      %v1000 = vsel %vm984, 0, %v326
      %v1001 = vsel %vm985, 0, %v327
      %v1002 = vsel %vm986, 0, %v328
      %v1003 = vsel %vm987, 0, %v329
      %vm1004 = vcmp.eq.s32.totalorder %v732, 0
      %vm1005 = vcmp.eq.s32.totalorder %v733, 0
      %vm1006 = vcmp.eq.s32.totalorder %v734, 0
      %vm1007 = vcmp.eq.s32.totalorder %v735, 0
      %vm1008 = vcmp.eq.s32.totalorder %v736, 0
      %vm1009 = vcmp.eq.s32.totalorder %v737, 0
      %vm1010 = vcmp.eq.s32.totalorder %v738, 0
      %vm1011 = vcmp.eq.s32.totalorder %v739, 0
      %vm1012 = vcmp.eq.s32.totalorder %v740, 0
      %vm1013 = vcmp.eq.s32.totalorder %v741, 0
      %vm1014 = vcmp.eq.s32.totalorder %v742, 0
      %vm1015 = vcmp.eq.s32.totalorder %v743, 0
      %vm1016 = vcmp.eq.s32.totalorder %v744, 0
      %vm1017 = vcmp.eq.s32.totalorder %v745, 0
      %vm1018 = vcmp.eq.s32.totalorder %v746, 0
      %vm1019 = vcmp.eq.s32.totalorder %v747, 0
      %vm1020 = vcmp.eq.s32.totalorder %v748, 0
      %vm1021 = vcmp.eq.s32.totalorder %v749, 0
      %vm1022 = vcmp.eq.s32.totalorder %v750, 0
      %vm1023 = vcmp.eq.s32.totalorder %v751, 0
      %vm1024 = vcmp.eq.s32.totalorder %v752, 0
      %vm1025 = vcmp.eq.s32.totalorder %v753, 0
      %vm1026 = vcmp.eq.s32.totalorder %v754, 0
      %vm1027 = vcmp.eq.s32.totalorder %v755, 0
      %vm1028 = vcmp.eq.s32.totalorder %v756, 0
      %vm1029 = vcmp.eq.s32.totalorder %v757, 0
      %vm1030 = vcmp.eq.s32.totalorder %v758, 0
      %vm1031 = vcmp.eq.s32.totalorder %v759, 0
      %vm1032 = vcmp.eq.s32.totalorder %v760, 0
      %vm1033 = vcmp.eq.s32.totalorder %v761, 0
      %vm1034 = vcmp.eq.s32.totalorder %v762, 0
      %vm1035 = vcmp.eq.s32.totalorder %v763, 0
      %v1036 = vsel %vm1004, 1, 0
      %v1037 = vsel %vm1005, 1, 0
      %v1038 = vsel %vm1006, 1, 0
      %v1039 = vsel %vm1007, 1, 0
      %v1040 = vsel %vm1008, 1, 0
      %v1041 = vsel %vm1009, 1, 0
      %v1042 = vsel %vm1010, 1, 0
      %v1043 = vsel %vm1011, 1, 0
      %v1044 = vsel %vm1012, 1, 0
      %v1045 = vsel %vm1013, 1, 0
      %v1046 = vsel %vm1014, 1, 0
      %v1047 = vsel %vm1015, 1, 0
      %v1048 = vsel %vm1016, 1, 0
      %v1049 = vsel %vm1017, 1, 0
      %v1050 = vsel %vm1018, 1, 0
      %v1051 = vsel %vm1019, 1, 0
      %v1052 = vsel %vm1020, 1, 0
      %v1053 = vsel %vm1021, 1, 0
      %v1054 = vsel %vm1022, 1, 0
      %v1055 = vsel %vm1023, 1, 0
      %v1056 = vsel %vm1024, 1, 0
      %v1057 = vsel %vm1025, 1, 0
      %v1058 = vsel %vm1026, 1, 0
      %v1059 = vsel %vm1027, 1, 0
      %v1060 = vsel %vm1028, 1, 0
      %v1061 = vsel %vm1029, 1, 0
      %v1062 = vsel %vm1030, 1, 0
      %v1063 = vsel %vm1031, 1, 0
      %v1064 = vsel %vm1032, 1, 0
      %v1065 = vsel %vm1033, 1, 0
      %v1066 = vsel %vm1034, 1, 0
      %v1067 = vsel %vm1035, 1, 0
      %vm1068 = vcmp.eq.s32.totalorder %v1036, 1
      %vm1069 = vcmp.eq.s32.totalorder %v1037, 1
      %vm1070 = vcmp.eq.s32.totalorder %v1038, 1
      %vm1071 = vcmp.eq.s32.totalorder %v1039, 1
      %vm1072 = vcmp.eq.s32.totalorder %v1040, 1
      %vm1073 = vcmp.eq.s32.totalorder %v1041, 1
      %vm1074 = vcmp.eq.s32.totalorder %v1042, 1
      %vm1075 = vcmp.eq.s32.totalorder %v1043, 1
      %vm1076 = vcmp.eq.s32.totalorder %v1044, 1
      %vm1077 = vcmp.eq.s32.totalorder %v1045, 1
      %vm1078 = vcmp.eq.s32.totalorder %v1046, 1
      %vm1079 = vcmp.eq.s32.totalorder %v1047, 1
      %vm1080 = vcmp.eq.s32.totalorder %v1048, 1
      %vm1081 = vcmp.eq.s32.totalorder %v1049, 1
      %vm1082 = vcmp.eq.s32.totalorder %v1050, 1
      %vm1083 = vcmp.eq.s32.totalorder %v1051, 1
      %vm1084 = vcmp.eq.s32.totalorder %v1052, 1
      %vm1085 = vcmp.eq.s32.totalorder %v1053, 1
      %vm1086 = vcmp.eq.s32.totalorder %v1054, 1
      %vm1087 = vcmp.eq.s32.totalorder %v1055, 1
      %vm1088 = vcmp.eq.s32.totalorder %v1056, 1
      %vm1089 = vcmp.eq.s32.totalorder %v1057, 1
      %vm1090 = vcmp.eq.s32.totalorder %v1058, 1
      %vm1091 = vcmp.eq.s32.totalorder %v1059, 1
      %vm1092 = vcmp.eq.s32.totalorder %v1060, 1
      %vm1093 = vcmp.eq.s32.totalorder %v1061, 1
      %vm1094 = vcmp.eq.s32.totalorder %v1062, 1
      %vm1095 = vcmp.eq.s32.totalorder %v1063, 1
      %vm1096 = vcmp.eq.s32.totalorder %v1064, 1
      %vm1097 = vcmp.eq.s32.totalorder %v1065, 1
      %vm1098 = vcmp.eq.s32.totalorder %v1066, 1
      %vm1099 = vcmp.eq.s32.totalorder %v1067, 1
      %vm1100 = vmpackc.low %vm1068, %vm1068
      %vm1101 = vmpackc.low %vm1069, %vm1069
      %vm1102 = vmpackc.low %vm1070, %vm1070
      %vm1103 = vmpackc.low %vm1071, %vm1071
      %vm1104 = vmpackc.low %vm1072, %vm1072
      %vm1105 = vmpackc.low %vm1073, %vm1073
      %vm1106 = vmpackc.low %vm1074, %vm1074
      %vm1107 = vmpackc.low %vm1075, %vm1075
      %vm1108 = vmpackc.low %vm1076, %vm1076
      %vm1109 = vmpackc.low %vm1077, %vm1077
      %vm1110 = vmpackc.low %vm1078, %vm1078
      %vm1111 = vmpackc.low %vm1079, %vm1079
      %vm1112 = vmpackc.low %vm1080, %vm1080
      %vm1113 = vmpackc.low %vm1081, %vm1081
      %vm1114 = vmpackc.low %vm1082, %vm1082
      %vm1115 = vmpackc.low %vm1083, %vm1083
      %vm1116 = vmpackc.low %vm1084, %vm1084
      %vm1117 = vmpackc.low %vm1085, %vm1085
      %vm1118 = vmpackc.low %vm1086, %vm1086
      %vm1119 = vmpackc.low %vm1087, %vm1087
      %vm1120 = vmpackc.low %vm1088, %vm1088
      %vm1121 = vmpackc.low %vm1089, %vm1089
      %vm1122 = vmpackc.low %vm1090, %vm1090
      %vm1123 = vmpackc.low %vm1091, %vm1091
      %vm1124 = vmpackc.low %vm1092, %vm1092
      %vm1125 = vmpackc.low %vm1093, %vm1093
      %vm1126 = vmpackc.low %vm1094, %vm1094
      %vm1127 = vmpackc.low %vm1095, %vm1095
      %vm1128 = vmpackc.low %vm1096, %vm1096
      %vm1129 = vmpackc.low %vm1097, %vm1097
      %vm1130 = vmpackc.low %vm1098, %vm1098
      %vm1131 = vmpackc.low %vm1099, %vm1099
      %v1132 = vsel %vm1100, 65537, 0
      %v1133 = vsel %vm1101, 65537, 0
      %v1134 = vsel %vm1102, 65537, 0
      %v1135 = vsel %vm1103, 65537, 0
      %v1136 = vsel %vm1104, 65537, 0
      %v1137 = vsel %vm1105, 65537, 0
      %v1138 = vsel %vm1106, 65537, 0
      %v1139 = vsel %vm1107, 65537, 0
      %v1140 = vsel %vm1108, 65537, 0
      %v1141 = vsel %vm1109, 65537, 0
      %v1142 = vsel %vm1110, 65537, 0
      %v1143 = vsel %vm1111, 65537, 0
      %v1144 = vsel %vm1112, 65537, 0
      %v1145 = vsel %vm1113, 65537, 0
      %v1146 = vsel %vm1114, 65537, 0
      %v1147 = vsel %vm1115, 65537, 0
      %v1148 = vsel %vm1116, 65537, 0
      %v1149 = vsel %vm1117, 65537, 0
      %v1150 = vsel %vm1118, 65537, 0
      %v1151 = vsel %vm1119, 65537, 0
      %v1152 = vsel %vm1120, 65537, 0
      %v1153 = vsel %vm1121, 65537, 0
      %v1154 = vsel %vm1122, 65537, 0
      %v1155 = vsel %vm1123, 65537, 0
      %v1156 = vsel %vm1124, 65537, 0
      %v1157 = vsel %vm1125, 65537, 0
      %v1158 = vsel %vm1126, 65537, 0
      %v1159 = vsel %vm1127, 65537, 0
      %v1160 = vsel %vm1128, 65537, 0
      %v1161 = vsel %vm1129, 65537, 0
      %v1162 = vsel %vm1130, 65537, 0
      %v1163 = vsel %vm1131, 65537, 0
      %v1164 = vunpack.c.l.b16 %v1132
      %v1165 = vunpack.c.l.b16 %v1133
      %v1166 = vunpack.c.l.b16 %v1134
      %v1167 = vunpack.c.l.b16 %v1135
      %v1168 = vunpack.c.l.b16 %v1136
      %v1169 = vunpack.c.l.b16 %v1137
      %v1170 = vunpack.c.l.b16 %v1138
      %v1171 = vunpack.c.l.b16 %v1139
      %v1172 = vunpack.c.l.b16 %v1140
      %v1173 = vunpack.c.l.b16 %v1141
      %v1174 = vunpack.c.l.b16 %v1142
      %v1175 = vunpack.c.l.b16 %v1143
      %v1176 = vunpack.c.l.b16 %v1144
      %v1177 = vunpack.c.l.b16 %v1145
      %v1178 = vunpack.c.l.b16 %v1146
      %v1179 = vunpack.c.l.b16 %v1147
      %v1180 = vunpack.c.l.b16 %v1148
      %v1181 = vunpack.c.l.b16 %v1149
      %v1182 = vunpack.c.l.b16 %v1150
      %v1183 = vunpack.c.l.b16 %v1151
      %v1184 = vunpack.c.l.b16 %v1152
      %v1185 = vunpack.c.l.b16 %v1153
      %v1186 = vunpack.c.l.b16 %v1154
      %v1187 = vunpack.c.l.b16 %v1155
      %v1188 = vunpack.c.l.b16 %v1156
      %v1189 = vunpack.c.l.b16 %v1157
      %v1190 = vunpack.c.l.b16 %v1158
      %v1191 = vunpack.c.l.b16 %v1159
      %v1192 = vunpack.c.l.b16 %v1160
      %v1193 = vunpack.c.l.b16 %v1161
      %v1194 = vunpack.c.l.b16 %v1162
      %v1195 = vunpack.c.l.b16 %v1163
      %v1196 = vpack.c.b16 %v1165, %v1164
      %v1197 = vpack.c.b16 %v1167, %v1166
      %v1198 = vpack.c.b16 %v1169, %v1168
      %v1199 = vpack.c.b16 %v1171, %v1170
      %v1200 = vpack.c.b16 %v1173, %v1172
      %v1201 = vpack.c.b16 %v1175, %v1174
      %v1202 = vpack.c.b16 %v1177, %v1176
      %v1203 = vpack.c.b16 %v1179, %v1178
      %v1204 = vpack.c.b16 %v1181, %v1180
      %v1205 = vpack.c.b16 %v1183, %v1182
      %v1206 = vpack.c.b16 %v1185, %v1184
      %v1207 = vpack.c.b16 %v1187, %v1186
      %v1208 = vpack.c.b16 %v1189, %v1188
      %v1209 = vpack.c.b16 %v1191, %v1190
      %v1210 = vpack.c.b16 %v1193, %v1192
      %v1211 = vpack.c.b16 %v1195, %v1194
      %vm1212 = vcmp.ne.s16.totalorder %v1196, 0
      %vm1213 = vcmp.ne.s16.totalorder %v1197, 0
      %vm1214 = vcmp.ne.s16.totalorder %v1198, 0
      %vm1215 = vcmp.ne.s16.totalorder %v1199, 0
      %vm1216 = vcmp.ne.s16.totalorder %v1200, 0
      %vm1217 = vcmp.ne.s16.totalorder %v1201, 0
      %vm1218 = vcmp.ne.s16.totalorder %v1202, 0
      %vm1219 = vcmp.ne.s16.totalorder %v1203, 0
      %vm1220 = vcmp.ne.s16.totalorder %v1204, 0
      %vm1221 = vcmp.ne.s16.totalorder %v1205, 0
      %vm1222 = vcmp.ne.s16.totalorder %v1206, 0
      %vm1223 = vcmp.ne.s16.totalorder %v1207, 0
      %vm1224 = vcmp.ne.s16.totalorder %v1208, 0
      %vm1225 = vcmp.ne.s16.totalorder %v1209, 0
      %vm1226 = vcmp.ne.s16.totalorder %v1210, 0
      %vm1227 = vcmp.ne.s16.totalorder %v1211, 0
      %v1228 = vsel %vm1212, 0, %v314
      %v1229 = vsel %vm1213, 0, %v315
      %v1230 = vsel %vm1214, 0, %v316
      %v1231 = vsel %vm1215, 0, %v317
      %v1232 = vsel %vm1216, 0, %v318
      %v1233 = vsel %vm1217, 0, %v319
      %v1234 = vsel %vm1218, 0, %v320
      %v1235 = vsel %vm1219, 0, %v321
      %v1236 = vsel %vm1220, 0, %v322
      %v1237 = vsel %vm1221, 0, %v323
      %v1238 = vsel %vm1222, 0, %v324
      %v1239 = vsel %vm1223, 0, %v325
      %v1240 = vsel %vm1224, 0, %v326
      %v1241 = vsel %vm1225, 0, %v327
      %v1242 = vsel %vm1226, 0, %v328
      %v1243 = vsel %vm1227, 0, %v329
      %v1244 = vld [vmem:[%s1] sm:$0xf]
      %v1245 = vld [vmem:[%s1 + $0x4] sm:$0xf]
      %s1246 = scalar_lea.vmem %s1, 8
      %v1247 = vld [vmem:[%s1246] sm:$0xf]
      %v1248 = vld [vmem:[%s1246 + $0x4] sm:$0xf]
      %v1251 = vunpack.c.l.b16 %v1247
      %v1252 = vunpack.c.l.b16 %v1248
      %v1253 = vpack.c.b16 %v1252, %v1251
      %vm1255 = vcmask 130048
      %v1257 = vsel %vm1255, 0, 0
      %v1260 = vsel %vm1255, %v314, 0
      %v1263 = vsel %vm1255, %v315, 0
      %v1266 = vsel %vm1255, %v316, 0
      %v1269 = vsel %vm1255, %v317, 0
      %v1272 = vsel %vm1255, %v318, 0
      %v1275 = vsel %vm1255, %v319, 0
      %v1278 = vsel %vm1255, %v320, 0
      %v1281 = vsel %vm1255, %v321, 0
      %v1284 = vsel %vm1255, %v322, 0
      %v1287 = vsel %vm1255, %v323, 0
      %v1290 = vsel %vm1255, %v324, 0
      %v1293 = vsel %vm1255, %v325, 0
      %v1296 = vsel %vm1255, %v326, 0
      %v1299 = vsel %vm1255, %v327, 0
      %v1302 = vsel %vm1255, %v328, 0
      %1304 = vmatprep.subr.bf16.mxu0 0
      %1305 = vmatpush1.bf16.msra.mxu0 %v1253
      %1306 = vmatprep.subr.bf16.mxu0 0
      %1307 = vmatpush1.bf16.msra.mxu0 0
      %1308 = vmatprep.subr.bf16.mxu0 0
      %1309 = vmatpush1.bf16.msra.mxu0 0
      %1310 = vmatprep.subr.bf16.mxu0 0
      %1311 = vmatpush1.bf16.msra.mxu0 0
      %1312 = vmatprep.subr.bf16.mxu0 0
      %1313 = vmatpush1.bf16.msra.mxu0 0
      %1314 = vmatprep.subr.bf16.mxu0 0
      %1315 = vmatpush1.bf16.msra.mxu0 0
      %1316 = vmatprep.subr.bf16.mxu0 0
      %1317 = vmatpush1.bf16.msra.mxu0 0
      %1318 = vmatprep.subr.bf16.mxu0 0
      %1319 = vmatpush1.bf16.msra.mxu0 0
      %1320 = vmatprep.subr.bf16.mxu0 0
      %1321 = vmatpush1.bf16.msra.mxu0 0
      %1322 = vmatprep.subr.bf16.mxu0 0
      %1323 = vmatpush1.bf16.msra.mxu0 0
      %1324 = vmatprep.subr.bf16.mxu0 0
      %1325 = vmatpush1.bf16.msra.mxu0 0
      %1326 = vmatprep.subr.bf16.mxu0 0
      %1327 = vmatpush1.bf16.msra.mxu0 0
      %1328 = vmatprep.subr.bf16.mxu0 0
      %1329 = vmatpush1.bf16.msra.mxu0 0
      %1330 = vmatprep.subr.bf16.mxu0 0
      %1331 = vmatpush1.bf16.msra.mxu0 0
      %1332 = vmatprep.subr.bf16.mxu0 0
      %1333 = vmatpush1.bf16.msra.mxu0 0
      %1334 = vmatprep.subr.bf16.mxu0 0
      %1335 = vmatpush1.bf16.msra.mxu0 0
      %1336 = vmatprep.mubr.bf16.mxu0 0
      %1337 = vmatmul.mubr.bf16.gmra.mrb[0].mxu0 %v1257
      %v1338 = vpop.f32.mrb[0].mxu0
      %v1339 = vadd.f32 0.0, %v1338
      %v1340 = vpop.f32.mrb[0].mxu0
      %v1341 = vpop.f32.mrb[0].mxu0
      %v1342 = vadd.f32 0.0, %v1341
      %v1343 = vpop.f32.mrb[0].mxu0
      %1344 = vmatprep.mubr.bf16.mxu0 0
      %1345 = vmatmul.mubr.bf16.gmra.mrb[0].mxu0 %v1260
      %v1346 = vpop.f32.mrb[0].mxu0
      %v1347 = vadd.f32 0.0, %v1346
      %v1348 = vpop.f32.mrb[0].mxu0
      %v1349 = vpop.f32.mrb[0].mxu0
      %v1350 = vadd.f32 0.0, %v1349
      %v1351 = vpop.f32.mrb[0].mxu0
      %1352 = vmatprep.mubr.bf16.mxu0 0
      %1353 = vmatmul.mubr.bf16.gmra.mrb[0].mxu0 %v1263
      %v1354 = vpop.f32.mrb[0].mxu0
      %v1355 = vadd.f32 0.0, %v1354
      %v1356 = vpop.f32.mrb[0].mxu0
      %v1357 = vpop.f32.mrb[0].mxu0
      %v1358 = vadd.f32 0.0, %v1357
      %v1359 = vpop.f32.mrb[0].mxu0
      %1360 = vmatprep.mubr.bf16.mxu0 0
      %1361 = vmatmul.mubr.bf16.gmra.mrb[0].mxu0 %v1266
      %v1362 = vpop.f32.mrb[0].mxu0
      %v1363 = vadd.f32 0.0, %v1362
      %v1364 = vpop.f32.mrb[0].mxu0
      %v1365 = vpop.f32.mrb[0].mxu0
      %v1366 = vadd.f32 0.0, %v1365
      %v1367 = vpop.f32.mrb[0].mxu0
      %1368 = vmatprep.mubr.bf16.mxu0 0
      %1369 = vmatmul.mubr.bf16.gmra.mrb[0].mxu0 %v1269
      %v1370 = vpop.f32.mrb[0].mxu0
      %v1371 = vadd.f32 0.0, %v1370
      %v1372 = vpop.f32.mrb[0].mxu0
      %v1373 = vpop.f32.mrb[0].mxu0
      %v1374 = vadd.f32 0.0, %v1373
      %v1375 = vpop.f32.mrb[0].mxu0
      %1376 = vmatprep.mubr.bf16.mxu0 0
      %1377 = vmatmul.mubr.bf16.gmra.mrb[0].mxu0 %v1272
      %v1378 = vpop.f32.mrb[0].mxu0
      %v1379 = vadd.f32 0.0, %v1378
      %v1380 = vpop.f32.mrb[0].mxu0
      %v1381 = vpop.f32.mrb[0].mxu0
      %v1382 = vadd.f32 0.0, %v1381
      %v1383 = vpop.f32.mrb[0].mxu0
      %1384 = vmatprep.mubr.bf16.mxu0 0
      %1385 = vmatmul.mubr.bf16.gmra.mrb[0].mxu0 %v1275
      %v1386 = vpop.f32.mrb[0].mxu0
      %v1387 = vadd.f32 0.0, %v1386
      %v1388 = vpop.f32.mrb[0].mxu0
      %v1389 = vpop.f32.mrb[0].mxu0
      %v1390 = vadd.f32 0.0, %v1389
      %v1391 = vpop.f32.mrb[0].mxu0
      %1392 = vmatprep.mubr.bf16.mxu0 0
      %1393 = vmatmul.mubr.bf16.gmra.mrb[0].mxu0 %v1278
      %v1394 = vpop.f32.mrb[0].mxu0
      %v1395 = vadd.f32 0.0, %v1394
      %v1396 = vpop.f32.mrb[0].mxu0
      %v1397 = vpop.f32.mrb[0].mxu0
      %v1398 = vadd.f32 0.0, %v1397
      %v1399 = vpop.f32.mrb[0].mxu0
      %1400 = vmatprep.mubr.bf16.mxu0 0
      %1401 = vmatmul.mubr.bf16.gmra.mrb[0].mxu0 %v1281
      %v1402 = vpop.f32.mrb[0].mxu0
      %v1403 = vadd.f32 0.0, %v1402
      %v1404 = vpop.f32.mrb[0].mxu0
      %v1405 = vpop.f32.mrb[0].mxu0
      %v1406 = vadd.f32 0.0, %v1405
      %v1407 = vpop.f32.mrb[0].mxu0
      %1408 = vmatprep.mubr.bf16.mxu0 0
      %1409 = vmatmul.mubr.bf16.gmra.mrb[0].mxu0 %v1284
      %v1410 = vpop.f32.mrb[0].mxu0
      %v1411 = vadd.f32 0.0, %v1410
      %v1412 = vpop.f32.mrb[0].mxu0
      %v1413 = vpop.f32.mrb[0].mxu0
      %v1414 = vadd.f32 0.0, %v1413
      %v1415 = vpop.f32.mrb[0].mxu0
      %1416 = vmatprep.mubr.bf16.mxu0 0
      %1417 = vmatmul.mubr.bf16.gmra.mrb[0].mxu0 %v1287
      %v1418 = vpop.f32.mrb[0].mxu0
      %v1419 = vadd.f32 0.0, %v1418
      %v1420 = vpop.f32.mrb[0].mxu0
      %v1421 = vpop.f32.mrb[0].mxu0
      %v1422 = vadd.f32 0.0, %v1421
      %v1423 = vpop.f32.mrb[0].mxu0
      %1424 = vmatprep.mubr.bf16.mxu0 0
      %1425 = vmatmul.mubr.bf16.gmra.mrb[0].mxu0 %v1290
      %v1426 = vpop.f32.mrb[0].mxu0
      %v1427 = vadd.f32 0.0, %v1426
      %v1428 = vpop.f32.mrb[0].mxu0
      %v1429 = vpop.f32.mrb[0].mxu0
      %v1430 = vadd.f32 0.0, %v1429
      %v1431 = vpop.f32.mrb[0].mxu0
      %1432 = vmatprep.mubr.bf16.mxu0 0
      %1433 = vmatmul.mubr.bf16.gmra.mrb[0].mxu0 %v1293
      %v1434 = vpop.f32.mrb[0].mxu0
      %v1435 = vadd.f32 0.0, %v1434
      %v1436 = vpop.f32.mrb[0].mxu0
      %v1437 = vpop.f32.mrb[0].mxu0
      %v1438 = vadd.f32 0.0, %v1437
      %v1439 = vpop.f32.mrb[0].mxu0
      %1440 = vmatprep.mubr.bf16.mxu0 0
      %1441 = vmatmul.mubr.bf16.gmra.mrb[0].mxu0 %v1296
      %v1442 = vpop.f32.mrb[0].mxu0
      %v1443 = vadd.f32 0.0, %v1442
      %v1444 = vpop.f32.mrb[0].mxu0
      %v1445 = vpop.f32.mrb[0].mxu0
      %v1446 = vadd.f32 0.0, %v1445
      %v1447 = vpop.f32.mrb[0].mxu0
      %1448 = vmatprep.mubr.bf16.mxu0 0
      %1449 = vmatmul.mubr.bf16.gmra.mrb[0].mxu0 %v1299
      %v1450 = vpop.f32.mrb[0].mxu0
      %v1451 = vadd.f32 0.0, %v1450
      %v1452 = vpop.f32.mrb[0].mxu0
      %v1453 = vpop.f32.mrb[0].mxu0
      %v1454 = vadd.f32 0.0, %v1453
      %v1455 = vpop.f32.mrb[0].mxu0
      %1456 = vmatprep.mubr.bf16.mxu0 0
      %1457 = vmatmul.mubr.bf16.gmra.mrb[0].mxu0 %v1302
      %v1458 = vpop.f32.mrb[0].mxu0
      %v1459 = vadd.f32 0.0, %v1458
      %v1460 = vpop.f32.mrb[0].mxu0
      %v1461 = vpop.f32.mrb[0].mxu0
      %v1462 = vadd.f32 0.0, %v1461
      %v1463 = vpop.f32.mrb[0].mxu0
      %1464 = vdwg.mxu0
      %vm1465 = vsmask.f32 256
      %v1466 = vshrl.u32 0, 16
      %v1468 = vrot.slane %v1466, 7
      %v1469 = vshll.u32 0, 16
      %v1471 = vor.u32 %v1468, %v1469
      %v1472 = vsel %vm1465, %v1468, %v1471
      %v1474 = vshrl.u32 %v988, 16
      %v1476 = vrot.slane %v1474, 7
      %v1477 = vshll.u32 %v988, 16
      %v1479 = vor.u32 %v1476, %v1477
      %v1480 = vsel %vm1465, %v1468, %v1479
      %v1482 = vshrl.u32 %v989, 16
      %v1484 = vrot.slane %v1482, 7
      %v1485 = vshll.u32 %v989, 16
      %v1487 = vor.u32 %v1484, %v1485
      %v1488 = vsel %vm1465, %v1476, %v1487
      %v1490 = vshrl.u32 %v990, 16
      %v1492 = vrot.slane %v1490, 7
      %v1493 = vshll.u32 %v990, 16
      %v1495 = vor.u32 %v1492, %v1493
      %v1496 = vsel %vm1465, %v1484, %v1495
      %v1498 = vshrl.u32 %v991, 16
      %v1500 = vrot.slane %v1498, 7
      %v1501 = vshll.u32 %v991, 16
      %v1503 = vor.u32 %v1500, %v1501
      %v1504 = vsel %vm1465, %v1492, %v1503
      %v1506 = vshrl.u32 %v992, 16
      %v1508 = vrot.slane %v1506, 7
      %v1509 = vshll.u32 %v992, 16
      %v1511 = vor.u32 %v1508, %v1509
      %v1512 = vsel %vm1465, %v1500, %v1511
      %v1514 = vshrl.u32 %v993, 16
      %v1516 = vrot.slane %v1514, 7
      %v1517 = vshll.u32 %v993, 16
      %v1519 = vor.u32 %v1516, %v1517
      %v1520 = vsel %vm1465, %v1508, %v1519
      %v1522 = vshrl.u32 %v994, 16
      %v1524 = vrot.slane %v1522, 7
      %v1525 = vshll.u32 %v994, 16
      %v1527 = vor.u32 %v1524, %v1525
      %v1528 = vsel %vm1465, %v1516, %v1527
      %v1530 = vshrl.u32 %v995, 16
      %v1532 = vrot.slane %v1530, 7
      %v1533 = vshll.u32 %v995, 16
      %v1535 = vor.u32 %v1532, %v1533
      %v1536 = vsel %vm1465, %v1524, %v1535
      %v1538 = vshrl.u32 %v996, 16
      %v1540 = vrot.slane %v1538, 7
      %v1541 = vshll.u32 %v996, 16
      %v1543 = vor.u32 %v1540, %v1541
      %v1544 = vsel %vm1465, %v1532, %v1543
      %v1546 = vshrl.u32 %v997, 16
      %v1548 = vrot.slane %v1546, 7
      %v1549 = vshll.u32 %v997, 16
      %v1551 = vor.u32 %v1548, %v1549
      %v1552 = vsel %vm1465, %v1540, %v1551
      %v1554 = vshrl.u32 %v998, 16
      %v1556 = vrot.slane %v1554, 7
      %v1557 = vshll.u32 %v998, 16
      %v1559 = vor.u32 %v1556, %v1557
      %v1560 = vsel %vm1465, %v1548, %v1559
      %v1562 = vshrl.u32 %v999, 16
      %v1564 = vrot.slane %v1562, 7
      %v1565 = vshll.u32 %v999, 16
      %v1567 = vor.u32 %v1564, %v1565
      %v1568 = vsel %vm1465, %v1556, %v1567
      %v1570 = vshrl.u32 %v1000, 16
      %v1572 = vrot.slane %v1570, 7
      %v1573 = vshll.u32 %v1000, 16
      %v1575 = vor.u32 %v1572, %v1573
      %v1576 = vsel %vm1465, %v1564, %v1575
      %v1578 = vshrl.u32 %v1001, 16
      %v1580 = vrot.slane %v1578, 7
      %v1581 = vshll.u32 %v1001, 16
      %v1583 = vor.u32 %v1580, %v1581
      %v1584 = vsel %vm1465, %v1572, %v1583
      %v1586 = vshrl.u32 %v1002, 16
      %v1588 = vrot.slane %v1586, 7
      %v1589 = vshll.u32 %v1002, 16
      %v1591 = vor.u32 %v1588, %v1589
      %v1592 = vsel %vm1465, %v1580, %v1591
      %v1595 = vunpack.c.l.b16 %v1244
      %v1596 = vunpack.c.l.b16 %v1245
      %v1597 = vpack.c.b16 %v1596, %v1595
      %v1600 = vsel %vm1255, %v1472, 0
      %v1603 = vsel %vm1255, %v1480, 0
      %v1606 = vsel %vm1255, %v1488, 0
      %v1609 = vsel %vm1255, %v1496, 0
      %v1612 = vsel %vm1255, %v1504, 0
      %v1615 = vsel %vm1255, %v1512, 0
      %v1618 = vsel %vm1255, %v1520, 0
      %v1621 = vsel %vm1255, %v1528, 0
      %v1624 = vsel %vm1255, %v1536, 0
      %v1627 = vsel %vm1255, %v1544, 0
      %v1630 = vsel %vm1255, %v1552, 0
      %v1633 = vsel %vm1255, %v1560, 0
      %v1636 = vsel %vm1255, %v1568, 0
      %v1639 = vsel %vm1255, %v1576, 0
      %v1642 = vsel %vm1255, %v1584, 0
      %v1645 = vsel %vm1255, %v1592, 0
      %1647 = vmatprep.subr.bf16.mxu0 0
      %1648 = vmatpush1.bf16.msra.mxu0 %v1597
      %1649 = vmatprep.subr.bf16.mxu0 0
      %1650 = vmatpush1.bf16.msra.mxu0 0
      %1651 = vmatprep.subr.bf16.mxu0 0
      %1652 = vmatpush1.bf16.msra.mxu0 0
      %1653 = vmatprep.subr.bf16.mxu0 0
      %1654 = vmatpush1.bf16.msra.mxu0 0
      %1655 = vmatprep.subr.bf16.mxu0 0
      %1656 = vmatpush1.bf16.msra.mxu0 0
      %1657 = vmatprep.subr.bf16.mxu0 0
      %1658 = vmatpush1.bf16.msra.mxu0 0
      %1659 = vmatprep.subr.bf16.mxu0 0
      %1660 = vmatpush1.bf16.msra.mxu0 0
      %1661 = vmatprep.subr.bf16.mxu0 0
      %1662 = vmatpush1.bf16.msra.mxu0 0
      %1663 = vmatprep.subr.bf16.mxu0 0
      %1664 = vmatpush1.bf16.msra.mxu0 0
      %1665 = vmatprep.subr.bf16.mxu0 0
      %1666 = vmatpush1.bf16.msra.mxu0 0
      %1667 = vmatprep.subr.bf16.mxu0 0
      %1668 = vmatpush1.bf16.msra.mxu0 0
      %1669 = vmatprep.subr.bf16.mxu0 0
      %1670 = vmatpush1.bf16.msra.mxu0 0
      %1671 = vmatprep.subr.bf16.mxu0 0
      %1672 = vmatpush1.bf16.msra.mxu0 0
      %1673 = vmatprep.subr.bf16.mxu0 0
      %1674 = vmatpush1.bf16.msra.mxu0 0
      %1675 = vmatprep.subr.bf16.mxu0 0
      %1676 = vmatpush1.bf16.msra.mxu0 0
      %1677 = vmatprep.subr.bf16.mxu0 0
      %1678 = vmatpush1.bf16.msra.mxu0 0
      %1679 = vmatprep.mubr.bf16.mxu0 0
      %1680 = vmatmul.mubr.bf16.gmra.mrb[0].mxu0 %v1600
      %v1681 = vpop.f32.mrb[0].mxu0
      %v1682 = vadd.f32 %v1339, %v1681
      %v1683 = vpop.f32.mrb[0].mxu0
      %v1684 = vpop.f32.mrb[0].mxu0
      %v1685 = vadd.f32 %v1342, %v1684
      %v1686 = vpop.f32.mrb[0].mxu0
      %1687 = vmatprep.mubr.bf16.mxu0 0
      %1688 = vmatmul.mubr.bf16.gmra.mrb[0].mxu0 %v1603
      %v1689 = vpop.f32.mrb[0].mxu0
      %v1690 = vadd.f32 %v1347, %v1689
      %v1691 = vpop.f32.mrb[0].mxu0
      %v1692 = vpop.f32.mrb[0].mxu0
      %v1693 = vadd.f32 %v1350, %v1692
      %v1694 = vpop.f32.mrb[0].mxu0
      %1695 = vmatprep.mubr.bf16.mxu0 0
      %1696 = vmatmul.mubr.bf16.gmra.mrb[0].mxu0 %v1606
      %v1697 = vpop.f32.mrb[0].mxu0
      %v1698 = vadd.f32 %v1355, %v1697
      %v1699 = vpop.f32.mrb[0].mxu0
      %v1700 = vpop.f32.mrb[0].mxu0
      %v1701 = vadd.f32 %v1358, %v1700
      %v1702 = vpop.f32.mrb[0].mxu0
      %1703 = vmatprep.mubr.bf16.mxu0 0
      %1704 = vmatmul.mubr.bf16.gmra.mrb[0].mxu0 %v1609
      %v1705 = vpop.f32.mrb[0].mxu0
      %v1706 = vadd.f32 %v1363, %v1705
      %v1707 = vpop.f32.mrb[0].mxu0
      %v1708 = vpop.f32.mrb[0].mxu0
      %v1709 = vadd.f32 %v1366, %v1708
      %v1710 = vpop.f32.mrb[0].mxu0
      %1711 = vmatprep.mubr.bf16.mxu0 0
      %1712 = vmatmul.mubr.bf16.gmra.mrb[0].mxu0 %v1612
      %v1713 = vpop.f32.mrb[0].mxu0
      %v1714 = vadd.f32 %v1371, %v1713
      %v1715 = vpop.f32.mrb[0].mxu0
      %v1716 = vpop.f32.mrb[0].mxu0
      %v1717 = vadd.f32 %v1374, %v1716
      %v1718 = vpop.f32.mrb[0].mxu0
      %1719 = vmatprep.mubr.bf16.mxu0 0
      %1720 = vmatmul.mubr.bf16.gmra.mrb[0].mxu0 %v1615
      %v1721 = vpop.f32.mrb[0].mxu0
      %v1722 = vadd.f32 %v1379, %v1721
      %v1723 = vpop.f32.mrb[0].mxu0
      %v1724 = vpop.f32.mrb[0].mxu0
      %v1725 = vadd.f32 %v1382, %v1724
      %v1726 = vpop.f32.mrb[0].mxu0
      %1727 = vmatprep.mubr.bf16.mxu0 0
      %1728 = vmatmul.mubr.bf16.gmra.mrb[0].mxu0 %v1618
      %v1729 = vpop.f32.mrb[0].mxu0
      %v1730 = vadd.f32 %v1387, %v1729
      %v1731 = vpop.f32.mrb[0].mxu0
      %v1732 = vpop.f32.mrb[0].mxu0
      %v1733 = vadd.f32 %v1390, %v1732
      %v1734 = vpop.f32.mrb[0].mxu0
      %1735 = vmatprep.mubr.bf16.mxu0 0
      %1736 = vmatmul.mubr.bf16.gmra.mrb[0].mxu0 %v1621
      %v1737 = vpop.f32.mrb[0].mxu0
      %v1738 = vadd.f32 %v1395, %v1737
      %v1739 = vpop.f32.mrb[0].mxu0
      %v1740 = vpop.f32.mrb[0].mxu0
      %v1741 = vadd.f32 %v1398, %v1740
      %v1742 = vpop.f32.mrb[0].mxu0
      %1743 = vmatprep.mubr.bf16.mxu0 0
      %1744 = vmatmul.mubr.bf16.gmra.mrb[0].mxu0 %v1624
      %v1745 = vpop.f32.mrb[0].mxu0
      %v1746 = vadd.f32 %v1403, %v1745
      %v1747 = vpop.f32.mrb[0].mxu0
      %v1748 = vpop.f32.mrb[0].mxu0
      %v1749 = vadd.f32 %v1406, %v1748
      %v1750 = vpop.f32.mrb[0].mxu0
      %1751 = vmatprep.mubr.bf16.mxu0 0
      %1752 = vmatmul.mubr.bf16.gmra.mrb[0].mxu0 %v1627
      %v1753 = vpop.f32.mrb[0].mxu0
      %v1754 = vadd.f32 %v1411, %v1753
      %v1755 = vpop.f32.mrb[0].mxu0
      %v1756 = vpop.f32.mrb[0].mxu0
      %v1757 = vadd.f32 %v1414, %v1756
      %v1758 = vpop.f32.mrb[0].mxu0
      %1759 = vmatprep.mubr.bf16.mxu0 0
      %1760 = vmatmul.mubr.bf16.gmra.mrb[0].mxu0 %v1630
      %v1761 = vpop.f32.mrb[0].mxu0
      %v1762 = vadd.f32 %v1419, %v1761
      %v1763 = vpop.f32.mrb[0].mxu0
      %v1764 = vpop.f32.mrb[0].mxu0
      %v1765 = vadd.f32 %v1422, %v1764
      %v1766 = vpop.f32.mrb[0].mxu0
      %1767 = vmatprep.mubr.bf16.mxu0 0
      %1768 = vmatmul.mubr.bf16.gmra.mrb[0].mxu0 %v1633
      %v1769 = vpop.f32.mrb[0].mxu0
      %v1770 = vadd.f32 %v1427, %v1769
      %v1771 = vpop.f32.mrb[0].mxu0
      %v1772 = vpop.f32.mrb[0].mxu0
      %v1773 = vadd.f32 %v1430, %v1772
      %v1774 = vpop.f32.mrb[0].mxu0
      %1775 = vmatprep.mubr.bf16.mxu0 0
      %1776 = vmatmul.mubr.bf16.gmra.mrb[0].mxu0 %v1636
      %v1777 = vpop.f32.mrb[0].mxu0
      %v1778 = vadd.f32 %v1435, %v1777
      %v1779 = vpop.f32.mrb[0].mxu0
      %v1780 = vpop.f32.mrb[0].mxu0
      %v1781 = vadd.f32 %v1438, %v1780
      %v1782 = vpop.f32.mrb[0].mxu0
      %1783 = vmatprep.mubr.bf16.mxu0 0
      %1784 = vmatmul.mubr.bf16.gmra.mrb[0].mxu0 %v1639
      %v1785 = vpop.f32.mrb[0].mxu0
      %v1786 = vadd.f32 %v1443, %v1785
      %v1787 = vpop.f32.mrb[0].mxu0
      %v1788 = vpop.f32.mrb[0].mxu0
      %v1789 = vadd.f32 %v1446, %v1788
      %v1790 = vpop.f32.mrb[0].mxu0
      %1791 = vmatprep.mubr.bf16.mxu0 0
      %1792 = vmatmul.mubr.bf16.gmra.mrb[0].mxu0 %v1642
      %v1793 = vpop.f32.mrb[0].mxu0
      %v1794 = vadd.f32 %v1451, %v1793
      %v1795 = vpop.f32.mrb[0].mxu0
      %v1796 = vpop.f32.mrb[0].mxu0
      %v1797 = vadd.f32 %v1454, %v1796
      %v1798 = vpop.f32.mrb[0].mxu0
      %1799 = vmatprep.mubr.bf16.mxu0 0
      %1800 = vmatmul.mubr.bf16.gmra.mrb[0].mxu0 %v1645
      %v1801 = vpop.f32.mrb[0].mxu0
      %v1802 = vadd.f32 %v1459, %v1801
      %v1803 = vpop.f32.mrb[0].mxu0
      %v1804 = vpop.f32.mrb[0].mxu0
      %v1805 = vadd.f32 %v1462, %v1804
      %v1806 = vpop.f32.mrb[0].mxu0
      %1807 = vdwg.mxu0
      %s1808 = scalar_lea.vmem %s1, 16
      %v1809 = vld [vmem:[%s1808] sm:$0xf]
      %v1810 = vld [vmem:[%s1808 + $0x4] sm:$0xf]
      %vm1811 = vsmask.f32 7424
      %v1812 = vrot.slane %v1469, 1
      %v1813 = vor.u32 %v1466, %v1812
      %v1815 = vshll.u32 %v1228, 16
      %v1817 = vrot.slane %v1815, 1
      %v1818 = vsel %vm1811, %v1813, %v1817
      %v1819 = vshrl.u32 %v1228, 16
      %v1821 = vor.u32 %v1819, %v1817
      %v1823 = vshll.u32 %v1229, 16
      %v1825 = vrot.slane %v1823, 1
      %v1826 = vsel %vm1811, %v1821, %v1825
      %v1827 = vshrl.u32 %v1229, 16
      %v1829 = vor.u32 %v1827, %v1825
      %v1831 = vshll.u32 %v1230, 16
      %v1833 = vrot.slane %v1831, 1
      %v1834 = vsel %vm1811, %v1829, %v1833
      %v1835 = vshrl.u32 %v1230, 16
      %v1837 = vor.u32 %v1835, %v1833
      %v1839 = vshll.u32 %v1231, 16
      %v1841 = vrot.slane %v1839, 1
      %v1842 = vsel %vm1811, %v1837, %v1841
      %v1843 = vshrl.u32 %v1231, 16
      %v1845 = vor.u32 %v1843, %v1841
      %v1847 = vshll.u32 %v1232, 16
      %v1849 = vrot.slane %v1847, 1
      %v1850 = vsel %vm1811, %v1845, %v1849
      %v1851 = vshrl.u32 %v1232, 16
      %v1853 = vor.u32 %v1851, %v1849
      %v1855 = vshll.u32 %v1233, 16
      %v1857 = vrot.slane %v1855, 1
      %v1858 = vsel %vm1811, %v1853, %v1857
      %v1859 = vshrl.u32 %v1233, 16
      %v1861 = vor.u32 %v1859, %v1857
      %v1863 = vshll.u32 %v1234, 16
      %v1865 = vrot.slane %v1863, 1
      %v1866 = vsel %vm1811, %v1861, %v1865
      %v1867 = vshrl.u32 %v1234, 16
      %v1869 = vor.u32 %v1867, %v1865
      %v1871 = vshll.u32 %v1235, 16
      %v1873 = vrot.slane %v1871, 1
      %v1874 = vsel %vm1811, %v1869, %v1873
      %v1875 = vshrl.u32 %v1235, 16
      %v1877 = vor.u32 %v1875, %v1873
      %v1879 = vshll.u32 %v1236, 16
      %v1881 = vrot.slane %v1879, 1
      %v1882 = vsel %vm1811, %v1877, %v1881
      %v1883 = vshrl.u32 %v1236, 16
      %v1885 = vor.u32 %v1883, %v1881
      %v1887 = vshll.u32 %v1237, 16
      %v1889 = vrot.slane %v1887, 1
      %v1890 = vsel %vm1811, %v1885, %v1889
      %v1891 = vshrl.u32 %v1237, 16
      %v1893 = vor.u32 %v1891, %v1889
      %v1895 = vshll.u32 %v1238, 16
      %v1897 = vrot.slane %v1895, 1
      %v1898 = vsel %vm1811, %v1893, %v1897
      %v1899 = vshrl.u32 %v1238, 16
      %v1901 = vor.u32 %v1899, %v1897
      %v1903 = vshll.u32 %v1239, 16
      %v1905 = vrot.slane %v1903, 1
      %v1906 = vsel %vm1811, %v1901, %v1905
      %v1907 = vshrl.u32 %v1239, 16
      %v1909 = vor.u32 %v1907, %v1905
      %v1911 = vshll.u32 %v1240, 16
      %v1913 = vrot.slane %v1911, 1
      %v1914 = vsel %vm1811, %v1909, %v1913
      %v1915 = vshrl.u32 %v1240, 16
      %v1917 = vor.u32 %v1915, %v1913
      %v1919 = vshll.u32 %v1241, 16
      %v1921 = vrot.slane %v1919, 1
      %v1922 = vsel %vm1811, %v1917, %v1921
      %v1923 = vshrl.u32 %v1241, 16
      %v1925 = vor.u32 %v1923, %v1921
      %v1927 = vshll.u32 %v1242, 16
      %v1929 = vrot.slane %v1927, 1
      %v1930 = vsel %vm1811, %v1925, %v1929
      %v1931 = vshrl.u32 %v1242, 16
      %v1933 = vor.u32 %v1931, %v1929
      %v1935 = vshll.u32 %v1243, 16
      %v1937 = vrot.slane %v1935, 1
      %v1938 = vsel %vm1811, %v1933, %v1937
      %v1941 = vunpack.c.l.b16 %v1809
      %v1942 = vunpack.c.l.b16 %v1810
      %v1943 = vpack.c.b16 %v1942, %v1941
      %v1946 = vsel %vm1255, %v1818, 0
      %v1949 = vsel %vm1255, %v1826, 0
      %v1952 = vsel %vm1255, %v1834, 0
      %v1955 = vsel %vm1255, %v1842, 0
      %v1958 = vsel %vm1255, %v1850, 0
      %v1961 = vsel %vm1255, %v1858, 0
      %v1964 = vsel %vm1255, %v1866, 0
      %v1967 = vsel %vm1255, %v1874, 0
      %v1970 = vsel %vm1255, %v1882, 0
      %v1973 = vsel %vm1255, %v1890, 0
      %v1976 = vsel %vm1255, %v1898, 0
      %v1979 = vsel %vm1255, %v1906, 0
      %v1982 = vsel %vm1255, %v1914, 0
      %v1985 = vsel %vm1255, %v1922, 0
      %v1988 = vsel %vm1255, %v1930, 0
      %v1991 = vsel %vm1255, %v1938, 0
      %1993 = vmatprep.subr.bf16.mxu0 0
      %1994 = vmatpush1.bf16.msra.mxu0 %v1943
      %1995 = vmatprep.subr.bf16.mxu0 0
      %1996 = vmatpush1.bf16.msra.mxu0 0
      %1997 = vmatprep.subr.bf16.mxu0 0
      %1998 = vmatpush1.bf16.msra.mxu0 0
      %1999 = vmatprep.subr.bf16.mxu0 0
      %2000 = vmatpush1.bf16.msra.mxu0 0
      %2001 = vmatprep.subr.bf16.mxu0 0
      %2002 = vmatpush1.bf16.msra.mxu0 0
      %2003 = vmatprep.subr.bf16.mxu0 0
      %2004 = vmatpush1.bf16.msra.mxu0 0
      %2005 = vmatprep.subr.bf16.mxu0 0
      %2006 = vmatpush1.bf16.msra.mxu0 0
      %2007 = vmatprep.subr.bf16.mxu0 0
      %2008 = vmatpush1.bf16.msra.mxu0 0
      %2009 = vmatprep.subr.bf16.mxu0 0
      %2010 = vmatpush1.bf16.msra.mxu0 0
      %2011 = vmatprep.subr.bf16.mxu0 0
      %2012 = vmatpush1.bf16.msra.mxu0 0
      %2013 = vmatprep.subr.bf16.mxu0 0
      %2014 = vmatpush1.bf16.msra.mxu0 0
      %2015 = vmatprep.subr.bf16.mxu0 0
      %2016 = vmatpush1.bf16.msra.mxu0 0
      %2017 = vmatprep.subr.bf16.mxu0 0
      %2018 = vmatpush1.bf16.msra.mxu0 0
      %2019 = vmatprep.subr.bf16.mxu0 0
      %2020 = vmatpush1.bf16.msra.mxu0 0
      %2021 = vmatprep.subr.bf16.mxu0 0
      %2022 = vmatpush1.bf16.msra.mxu0 0
      %2023 = vmatprep.subr.bf16.mxu0 0
      %2024 = vmatpush1.bf16.msra.mxu0 0
      %2025 = vmatprep.mubr.bf16.mxu0 0
      %2026 = vmatmul.mubr.bf16.gmra.mrb[0].mxu0 %v1946
      %v2027 = vpop.f32.mrb[0].mxu0
      %v2028 = vadd.f32 0.0, %v2027
      %v2029 = vpop.f32.mrb[0].mxu0
      %v2030 = vpop.f32.mrb[0].mxu0
      %v2031 = vadd.f32 0.0, %v2030
      %v2032 = vpop.f32.mrb[0].mxu0
      %2033 = vmatprep.mubr.bf16.mxu0 0
      %2034 = vmatmul.mubr.bf16.gmra.mrb[0].mxu0 %v1949
      %v2035 = vpop.f32.mrb[0].mxu0
      %v2036 = vadd.f32 0.0, %v2035
      %v2037 = vpop.f32.mrb[0].mxu0
      %v2038 = vpop.f32.mrb[0].mxu0
      %v2039 = vadd.f32 0.0, %v2038
      %v2040 = vpop.f32.mrb[0].mxu0
      %2041 = vmatprep.mubr.bf16.mxu0 0
      %2042 = vmatmul.mubr.bf16.gmra.mrb[0].mxu0 %v1952
      %v2043 = vpop.f32.mrb[0].mxu0
      %v2044 = vadd.f32 0.0, %v2043
      %v2045 = vpop.f32.mrb[0].mxu0
      %v2046 = vpop.f32.mrb[0].mxu0
      %v2047 = vadd.f32 0.0, %v2046
      %v2048 = vpop.f32.mrb[0].mxu0
      %2049 = vmatprep.mubr.bf16.mxu0 0
      %2050 = vmatmul.mubr.bf16.gmra.mrb[0].mxu0 %v1955
      %v2051 = vpop.f32.mrb[0].mxu0
      %v2052 = vadd.f32 0.0, %v2051
      %v2053 = vpop.f32.mrb[0].mxu0
      %v2054 = vpop.f32.mrb[0].mxu0
      %v2055 = vadd.f32 0.0, %v2054
      %v2056 = vpop.f32.mrb[0].mxu0
      %2057 = vmatprep.mubr.bf16.mxu0 0
      %2058 = vmatmul.mubr.bf16.gmra.mrb[0].mxu0 %v1958
      %v2059 = vpop.f32.mrb[0].mxu0
      %v2060 = vadd.f32 0.0, %v2059
      %v2061 = vpop.f32.mrb[0].mxu0
      %v2062 = vpop.f32.mrb[0].mxu0
      %v2063 = vadd.f32 0.0, %v2062
      %v2064 = vpop.f32.mrb[0].mxu0
      %2065 = vmatprep.mubr.bf16.mxu0 0
      %2066 = vmatmul.mubr.bf16.gmra.mrb[0].mxu0 %v1961
      %v2067 = vpop.f32.mrb[0].mxu0
      %v2068 = vadd.f32 0.0, %v2067
      %v2069 = vpop.f32.mrb[0].mxu0
      %v2070 = vpop.f32.mrb[0].mxu0
      %v2071 = vadd.f32 0.0, %v2070
      %v2072 = vpop.f32.mrb[0].mxu0
      %2073 = vmatprep.mubr.bf16.mxu0 0
      %2074 = vmatmul.mubr.bf16.gmra.mrb[0].mxu0 %v1964
      %v2075 = vpop.f32.mrb[0].mxu0
      %v2076 = vadd.f32 0.0, %v2075
      %v2077 = vpop.f32.mrb[0].mxu0
      %v2078 = vpop.f32.mrb[0].mxu0
      %v2079 = vadd.f32 0.0, %v2078
      %v2080 = vpop.f32.mrb[0].mxu0
      %2081 = vmatprep.mubr.bf16.mxu0 0
      %2082 = vmatmul.mubr.bf16.gmra.mrb[0].mxu0 %v1967
      %v2083 = vpop.f32.mrb[0].mxu0
      %v2084 = vadd.f32 0.0, %v2083
      %v2085 = vpop.f32.mrb[0].mxu0
      %v2086 = vpop.f32.mrb[0].mxu0
      %v2087 = vadd.f32 0.0, %v2086
      %v2088 = vpop.f32.mrb[0].mxu0
      %2089 = vmatprep.mubr.bf16.mxu0 0
      %2090 = vmatmul.mubr.bf16.gmra.mrb[0].mxu0 %v1970
      %v2091 = vpop.f32.mrb[0].mxu0
      %v2092 = vadd.f32 0.0, %v2091
      %v2093 = vpop.f32.mrb[0].mxu0
      %v2094 = vpop.f32.mrb[0].mxu0
      %v2095 = vadd.f32 0.0, %v2094
      %v2096 = vpop.f32.mrb[0].mxu0
      %2097 = vmatprep.mubr.bf16.mxu0 0
      %2098 = vmatmul.mubr.bf16.gmra.mrb[0].mxu0 %v1973
      %v2099 = vpop.f32.mrb[0].mxu0
      %v2100 = vadd.f32 0.0, %v2099
      %v2101 = vpop.f32.mrb[0].mxu0
      %v2102 = vpop.f32.mrb[0].mxu0
      %v2103 = vadd.f32 0.0, %v2102
      %v2104 = vpop.f32.mrb[0].mxu0
      %2105 = vmatprep.mubr.bf16.mxu0 0
      %2106 = vmatmul.mubr.bf16.gmra.mrb[0].mxu0 %v1976
      %v2107 = vpop.f32.mrb[0].mxu0
      %v2108 = vadd.f32 0.0, %v2107
      %v2109 = vpop.f32.mrb[0].mxu0
      %v2110 = vpop.f32.mrb[0].mxu0
      %v2111 = vadd.f32 0.0, %v2110
      %v2112 = vpop.f32.mrb[0].mxu0
      %2113 = vmatprep.mubr.bf16.mxu0 0
      %2114 = vmatmul.mubr.bf16.gmra.mrb[0].mxu0 %v1979
      %v2115 = vpop.f32.mrb[0].mxu0
      %v2116 = vadd.f32 0.0, %v2115
      %v2117 = vpop.f32.mrb[0].mxu0
      %v2118 = vpop.f32.mrb[0].mxu0
      %v2119 = vadd.f32 0.0, %v2118
      %v2120 = vpop.f32.mrb[0].mxu0
      %2121 = vmatprep.mubr.bf16.mxu0 0
      %2122 = vmatmul.mubr.bf16.gmra.mrb[0].mxu0 %v1982
      %v2123 = vpop.f32.mrb[0].mxu0
      %v2124 = vadd.f32 0.0, %v2123
      %v2125 = vpop.f32.mrb[0].mxu0
      %v2126 = vpop.f32.mrb[0].mxu0
      %v2127 = vadd.f32 0.0, %v2126
      %v2128 = vpop.f32.mrb[0].mxu0
      %2129 = vmatprep.mubr.bf16.mxu0 0
      %2130 = vmatmul.mubr.bf16.gmra.mrb[0].mxu0 %v1985
      %v2131 = vpop.f32.mrb[0].mxu0
      %v2132 = vadd.f32 0.0, %v2131
      %v2133 = vpop.f32.mrb[0].mxu0
      %v2134 = vpop.f32.mrb[0].mxu0
      %v2135 = vadd.f32 0.0, %v2134
      %v2136 = vpop.f32.mrb[0].mxu0
      %2137 = vmatprep.mubr.bf16.mxu0 0
      %2138 = vmatmul.mubr.bf16.gmra.mrb[0].mxu0 %v1988
      %v2139 = vpop.f32.mrb[0].mxu0
      %v2140 = vadd.f32 0.0, %v2139
      %v2141 = vpop.f32.mrb[0].mxu0
      %v2142 = vpop.f32.mrb[0].mxu0
      %v2143 = vadd.f32 0.0, %v2142
      %v2144 = vpop.f32.mrb[0].mxu0
      %2145 = vmatprep.mubr.bf16.mxu0 0
      %2146 = vmatmul.mubr.bf16.gmra.mrb[0].mxu0 %v1991
      %v2147 = vpop.f32.mrb[0].mxu0
      %v2148 = vadd.f32 0.0, %v2147
      %v2149 = vpop.f32.mrb[0].mxu0
      %v2150 = vpop.f32.mrb[0].mxu0
      %v2151 = vadd.f32 0.0, %v2150
      %v2152 = vpop.f32.mrb[0].mxu0
      %2153 = vdwg.mxu0
      %v2154 = vadd.f32 %v1682, %v2028
      %v2155 = vadd.f32 %v1685, %v2031
      %v2156 = vadd.f32 %v1690, %v2036
      %v2157 = vadd.f32 %v1693, %v2039
      %v2158 = vadd.f32 %v1698, %v2044
      %v2159 = vadd.f32 %v1701, %v2047
      %v2160 = vadd.f32 %v1706, %v2052
      %v2161 = vadd.f32 %v1709, %v2055
      %v2162 = vadd.f32 %v1714, %v2060
      %v2163 = vadd.f32 %v1717, %v2063
      %v2164 = vadd.f32 %v1722, %v2068
      %v2165 = vadd.f32 %v1725, %v2071
      %v2166 = vadd.f32 %v1730, %v2076
      %v2167 = vadd.f32 %v1733, %v2079
      %v2168 = vadd.f32 %v1738, %v2084
      %v2169 = vadd.f32 %v1741, %v2087
      %v2170 = vadd.f32 %v1746, %v2092
      %v2171 = vadd.f32 %v1749, %v2095
      %v2172 = vadd.f32 %v1754, %v2100
      %v2173 = vadd.f32 %v1757, %v2103
      %v2174 = vadd.f32 %v1762, %v2108
      %v2175 = vadd.f32 %v1765, %v2111
      %v2176 = vadd.f32 %v1770, %v2116
      %v2177 = vadd.f32 %v1773, %v2119
      %v2178 = vadd.f32 %v1778, %v2124
      %v2179 = vadd.f32 %v1781, %v2127
      %v2180 = vadd.f32 %v1786, %v2132
      %v2181 = vadd.f32 %v1789, %v2135
      %v2182 = vadd.f32 %v1794, %v2140
      %v2183 = vadd.f32 %v1797, %v2143
      %v2184 = vadd.f32 %v1802, %v2148
      %v2185 = vadd.f32 %v1805, %v2151
      %s2186 = scalar_lea.vmem %s1, 24
      %v2187 = vld [vmem:[%s2186] sm:$0xf]
      %v2188 = vld [vmem:[%s2186 + $0x4] sm:$0xf]
      %v2190 = vshrl.u32 %v1003, 16
      %v2192 = vrot.slane %v2190, 7
      %v2193 = vshll.u32 %v1003, 16
      %v2195 = vor.u32 %v2192, %v2193
      %v2196 = vsel %vm1465, %v1588, %v2195
      %v2199 = vunpack.c.l.b16 %v2187
      %v2200 = vunpack.c.l.b16 %v2188
      %v2201 = vpack.c.b16 %v2200, %v2199
      %v2204 = vsel %vm1255, %v2196, 0
      %2206 = vmatprep.subr.bf16.mxu0 0
      %2207 = vmatpush1.bf16.msra.mxu0 %v2201
      %2208 = vmatprep.subr.bf16.mxu0 0
      %2209 = vmatpush1.bf16.msra.mxu0 0
      %2210 = vmatprep.subr.bf16.mxu0 0
      %2211 = vmatpush1.bf16.msra.mxu0 0
      %2212 = vmatprep.subr.bf16.mxu0 0
      %2213 = vmatpush1.bf16.msra.mxu0 0
      %2214 = vmatprep.subr.bf16.mxu0 0
      %2215 = vmatpush1.bf16.msra.mxu0 0
      %2216 = vmatprep.subr.bf16.mxu0 0
      %2217 = vmatpush1.bf16.msra.mxu0 0
      %2218 = vmatprep.subr.bf16.mxu0 0
      %2219 = vmatpush1.bf16.msra.mxu0 0
      %2220 = vmatprep.subr.bf16.mxu0 0
      %2221 = vmatpush1.bf16.msra.mxu0 0
      %2222 = vmatprep.subr.bf16.mxu0 0
      %2223 = vmatpush1.bf16.msra.mxu0 0
      %2224 = vmatprep.subr.bf16.mxu0 0
      %2225 = vmatpush1.bf16.msra.mxu0 0
      %2226 = vmatprep.subr.bf16.mxu0 0
      %2227 = vmatpush1.bf16.msra.mxu0 0
      %2228 = vmatprep.subr.bf16.mxu0 0
      %2229 = vmatpush1.bf16.msra.mxu0 0
      %2230 = vmatprep.subr.bf16.mxu0 0
      %2231 = vmatpush1.bf16.msra.mxu0 0
      %2232 = vmatprep.subr.bf16.mxu0 0
      %2233 = vmatpush1.bf16.msra.mxu0 0
      %2234 = vmatprep.subr.bf16.mxu0 0
      %2235 = vmatpush1.bf16.msra.mxu0 0
      %2236 = vmatprep.subr.bf16.mxu0 0
      %2237 = vmatpush1.bf16.msra.mxu0 0
      %2238 = vmatprep.mubr.bf16.mxu0 0
      %2239 = vmatmul.mubr.bf16.gmra.mrb[0].mxu0 %v1603
      %v2240 = vpop.f32.mrb[0].mxu0
      %v2241 = vadd.f32 0.0, %v2240
      %v2242 = vpop.f32.mrb[0].mxu0
      %v2243 = vpop.f32.mrb[0].mxu0
      %v2244 = vadd.f32 0.0, %v2243
      %v2245 = vpop.f32.mrb[0].mxu0
      %2246 = vmatprep.mubr.bf16.mxu0 0
      %2247 = vmatmul.mubr.bf16.gmra.mrb[0].mxu0 %v1606
      %v2248 = vpop.f32.mrb[0].mxu0
      %v2249 = vadd.f32 0.0, %v2248
      %v2250 = vpop.f32.mrb[0].mxu0
      %v2251 = vpop.f32.mrb[0].mxu0
      %v2252 = vadd.f32 0.0, %v2251
      %v2253 = vpop.f32.mrb[0].mxu0
      %2254 = vmatprep.mubr.bf16.mxu0 0
      %2255 = vmatmul.mubr.bf16.gmra.mrb[0].mxu0 %v1609
      %v2256 = vpop.f32.mrb[0].mxu0
      %v2257 = vadd.f32 0.0, %v2256
      %v2258 = vpop.f32.mrb[0].mxu0
      %v2259 = vpop.f32.mrb[0].mxu0
      %v2260 = vadd.f32 0.0, %v2259
      %v2261 = vpop.f32.mrb[0].mxu0
      %2262 = vmatprep.mubr.bf16.mxu0 0
      %2263 = vmatmul.mubr.bf16.gmra.mrb[0].mxu0 %v1612
      %v2264 = vpop.f32.mrb[0].mxu0
      %v2265 = vadd.f32 0.0, %v2264
      %v2266 = vpop.f32.mrb[0].mxu0
      %v2267 = vpop.f32.mrb[0].mxu0
      %v2268 = vadd.f32 0.0, %v2267
      %v2269 = vpop.f32.mrb[0].mxu0
      %2270 = vmatprep.mubr.bf16.mxu0 0
      %2271 = vmatmul.mubr.bf16.gmra.mrb[0].mxu0 %v1615
      %v2272 = vpop.f32.mrb[0].mxu0
      %v2273 = vadd.f32 0.0, %v2272
      %v2274 = vpop.f32.mrb[0].mxu0
      %v2275 = vpop.f32.mrb[0].mxu0
      %v2276 = vadd.f32 0.0, %v2275
      %v2277 = vpop.f32.mrb[0].mxu0
      %2278 = vmatprep.mubr.bf16.mxu0 0
      %2279 = vmatmul.mubr.bf16.gmra.mrb[0].mxu0 %v1618
      %v2280 = vpop.f32.mrb[0].mxu0
      %v2281 = vadd.f32 0.0, %v2280
      %v2282 = vpop.f32.mrb[0].mxu0
      %v2283 = vpop.f32.mrb[0].mxu0
      %v2284 = vadd.f32 0.0, %v2283
      %v2285 = vpop.f32.mrb[0].mxu0
      %2286 = vmatprep.mubr.bf16.mxu0 0
      %2287 = vmatmul.mubr.bf16.gmra.mrb[0].mxu0 %v1621
      %v2288 = vpop.f32.mrb[0].mxu0
      %v2289 = vadd.f32 0.0, %v2288
      %v2290 = vpop.f32.mrb[0].mxu0
      %v2291 = vpop.f32.mrb[0].mxu0
      %v2292 = vadd.f32 0.0, %v2291
      %v2293 = vpop.f32.mrb[0].mxu0
      %2294 = vmatprep.mubr.bf16.mxu0 0
      %2295 = vmatmul.mubr.bf16.gmra.mrb[0].mxu0 %v1624
      %v2296 = vpop.f32.mrb[0].mxu0
      %v2297 = vadd.f32 0.0, %v2296
      %v2298 = vpop.f32.mrb[0].mxu0
      %v2299 = vpop.f32.mrb[0].mxu0
      %v2300 = vadd.f32 0.0, %v2299
      %v2301 = vpop.f32.mrb[0].mxu0
      %2302 = vmatprep.mubr.bf16.mxu0 0
      %2303 = vmatmul.mubr.bf16.gmra.mrb[0].mxu0 %v1627
      %v2304 = vpop.f32.mrb[0].mxu0
      %v2305 = vadd.f32 0.0, %v2304
      %v2306 = vpop.f32.mrb[0].mxu0
      %v2307 = vpop.f32.mrb[0].mxu0
      %v2308 = vadd.f32 0.0, %v2307
      %v2309 = vpop.f32.mrb[0].mxu0
      %2310 = vmatprep.mubr.bf16.mxu0 0
      %2311 = vmatmul.mubr.bf16.gmra.mrb[0].mxu0 %v1630
      %v2312 = vpop.f32.mrb[0].mxu0
      %v2313 = vadd.f32 0.0, %v2312
      %v2314 = vpop.f32.mrb[0].mxu0
      %v2315 = vpop.f32.mrb[0].mxu0
      %v2316 = vadd.f32 0.0, %v2315
      %v2317 = vpop.f32.mrb[0].mxu0
      %2318 = vmatprep.mubr.bf16.mxu0 0
      %2319 = vmatmul.mubr.bf16.gmra.mrb[0].mxu0 %v1633
      %v2320 = vpop.f32.mrb[0].mxu0
      %v2321 = vadd.f32 0.0, %v2320
      %v2322 = vpop.f32.mrb[0].mxu0
      %v2323 = vpop.f32.mrb[0].mxu0
      %v2324 = vadd.f32 0.0, %v2323
      %v2325 = vpop.f32.mrb[0].mxu0
      %2326 = vmatprep.mubr.bf16.mxu0 0
      %2327 = vmatmul.mubr.bf16.gmra.mrb[0].mxu0 %v1636
      %v2328 = vpop.f32.mrb[0].mxu0
      %v2329 = vadd.f32 0.0, %v2328
      %v2330 = vpop.f32.mrb[0].mxu0
      %v2331 = vpop.f32.mrb[0].mxu0
      %v2332 = vadd.f32 0.0, %v2331
      %v2333 = vpop.f32.mrb[0].mxu0
      %2334 = vmatprep.mubr.bf16.mxu0 0
      %2335 = vmatmul.mubr.bf16.gmra.mrb[0].mxu0 %v1639
      %v2336 = vpop.f32.mrb[0].mxu0
      %v2337 = vadd.f32 0.0, %v2336
      %v2338 = vpop.f32.mrb[0].mxu0
      %v2339 = vpop.f32.mrb[0].mxu0
      %v2340 = vadd.f32 0.0, %v2339
      %v2341 = vpop.f32.mrb[0].mxu0
      %2342 = vmatprep.mubr.bf16.mxu0 0
      %2343 = vmatmul.mubr.bf16.gmra.mrb[0].mxu0 %v1642
      %v2344 = vpop.f32.mrb[0].mxu0
      %v2345 = vadd.f32 0.0, %v2344
      %v2346 = vpop.f32.mrb[0].mxu0
      %v2347 = vpop.f32.mrb[0].mxu0
      %v2348 = vadd.f32 0.0, %v2347
      %v2349 = vpop.f32.mrb[0].mxu0
      %2350 = vmatprep.mubr.bf16.mxu0 0
      %2351 = vmatmul.mubr.bf16.gmra.mrb[0].mxu0 %v1645
      %v2352 = vpop.f32.mrb[0].mxu0
      %v2353 = vadd.f32 0.0, %v2352
      %v2354 = vpop.f32.mrb[0].mxu0
      %v2355 = vpop.f32.mrb[0].mxu0
      %v2356 = vadd.f32 0.0, %v2355
      %v2357 = vpop.f32.mrb[0].mxu0
      %2358 = vmatprep.mubr.bf16.mxu0 0
      %2359 = vmatmul.mubr.bf16.gmra.mrb[0].mxu0 %v2204
      %v2360 = vpop.f32.mrb[0].mxu0
      %v2361 = vadd.f32 0.0, %v2360
      %v2362 = vpop.f32.mrb[0].mxu0
      %v2363 = vpop.f32.mrb[0].mxu0
      %v2364 = vadd.f32 0.0, %v2363
      %v2365 = vpop.f32.mrb[0].mxu0
      %2366 = vdwg.mxu0
      %v2367 = vadd.f32 %v2154, %v2241
      %v2368 = vadd.f32 %v2155, %v2244
      %v2369 = vadd.f32 %v2156, %v2249
      %v2370 = vadd.f32 %v2157, %v2252
      %v2371 = vadd.f32 %v2158, %v2257
      %v2372 = vadd.f32 %v2159, %v2260
      %v2373 = vadd.f32 %v2160, %v2265
      %v2374 = vadd.f32 %v2161, %v2268
      %v2375 = vadd.f32 %v2162, %v2273
      %v2376 = vadd.f32 %v2163, %v2276
      %v2377 = vadd.f32 %v2164, %v2281
      %v2378 = vadd.f32 %v2165, %v2284
      %v2379 = vadd.f32 %v2166, %v2289
      %v2380 = vadd.f32 %v2167, %v2292
      %v2381 = vadd.f32 %v2168, %v2297
      %v2382 = vadd.f32 %v2169, %v2300
      %v2383 = vadd.f32 %v2170, %v2305
      %v2384 = vadd.f32 %v2171, %v2308
      %v2385 = vadd.f32 %v2172, %v2313
      %v2386 = vadd.f32 %v2173, %v2316
      %v2387 = vadd.f32 %v2174, %v2321
      %v2388 = vadd.f32 %v2175, %v2324
      %v2389 = vadd.f32 %v2176, %v2329
      %v2390 = vadd.f32 %v2177, %v2332
      %v2391 = vadd.f32 %v2178, %v2337
      %v2392 = vadd.f32 %v2179, %v2340
      %v2393 = vadd.f32 %v2180, %v2345
      %v2394 = vadd.f32 %v2181, %v2348
      %v2395 = vadd.f32 %v2182, %v2353
      %v2396 = vadd.f32 %v2183, %v2356
      %v2397 = vadd.f32 %v2184, %v2361
      %v2398 = vadd.f32 %v2185, %v2364
      %s2399 = scalar_lea.vmem %s1, 32
      %v2400 = vld [vmem:[%s2399] sm:$0xf]
      %v2401 = vld [vmem:[%s2399 + $0x4] sm:$0xf]
      %v2404 = vunpack.c.l.b16 %v2400
      %v2405 = vunpack.c.l.b16 %v2401
      %v2406 = vpack.c.b16 %v2405, %v2404
      %v2409 = vsel %vm1255, %v329, 0
      %2411 = vmatprep.subr.bf16.mxu0 0
      %2412 = vmatpush1.bf16.msra.mxu0 %v2406
      %2413 = vmatprep.subr.bf16.mxu0 0
      %2414 = vmatpush1.bf16.msra.mxu0 0
      %2415 = vmatprep.subr.bf16.mxu0 0
      %2416 = vmatpush1.bf16.msra.mxu0 0
      %2417 = vmatprep.subr.bf16.mxu0 0
      %2418 = vmatpush1.bf16.msra.mxu0 0
      %2419 = vmatprep.subr.bf16.mxu0 0
      %2420 = vmatpush1.bf16.msra.mxu0 0
      %2421 = vmatprep.subr.bf16.mxu0 0
      %2422 = vmatpush1.bf16.msra.mxu0 0
      %2423 = vmatprep.subr.bf16.mxu0 0
      %2424 = vmatpush1.bf16.msra.mxu0 0
      %2425 = vmatprep.subr.bf16.mxu0 0
      %2426 = vmatpush1.bf16.msra.mxu0 0
      %2427 = vmatprep.subr.bf16.mxu0 0
      %2428 = vmatpush1.bf16.msra.mxu0 0
      %2429 = vmatprep.subr.bf16.mxu0 0
      %2430 = vmatpush1.bf16.msra.mxu0 0
      %2431 = vmatprep.subr.bf16.mxu0 0
      %2432 = vmatpush1.bf16.msra.mxu0 0
      %2433 = vmatprep.subr.bf16.mxu0 0
      %2434 = vmatpush1.bf16.msra.mxu0 0
      %2435 = vmatprep.subr.bf16.mxu0 0
      %2436 = vmatpush1.bf16.msra.mxu0 0
      %2437 = vmatprep.subr.bf16.mxu0 0
      %2438 = vmatpush1.bf16.msra.mxu0 0
      %2439 = vmatprep.subr.bf16.mxu0 0
      %2440 = vmatpush1.bf16.msra.mxu0 0
      %2441 = vmatprep.subr.bf16.mxu0 0
      %2442 = vmatpush1.bf16.msra.mxu0 0
      %2443 = vmatprep.mubr.bf16.mxu0 0
      %2444 = vmatmul.mubr.bf16.gmra.mrb[0].mxu0 %v1260
      %v2445 = vpop.f32.mrb[0].mxu0
      %v2446 = vadd.f32 0.0, %v2445
      %v2447 = vpop.f32.mrb[0].mxu0
      %v2448 = vpop.f32.mrb[0].mxu0
      %v2449 = vadd.f32 0.0, %v2448
      %v2450 = vpop.f32.mrb[0].mxu0
      %2451 = vmatprep.mubr.bf16.mxu0 0
      %2452 = vmatmul.mubr.bf16.gmra.mrb[0].mxu0 %v1263
      %v2453 = vpop.f32.mrb[0].mxu0
      %v2454 = vadd.f32 0.0, %v2453
      %v2455 = vpop.f32.mrb[0].mxu0
      %v2456 = vpop.f32.mrb[0].mxu0
      %v2457 = vadd.f32 0.0, %v2456
      %v2458 = vpop.f32.mrb[0].mxu0
      %2459 = vmatprep.mubr.bf16.mxu0 0
      %2460 = vmatmul.mubr.bf16.gmra.mrb[0].mxu0 %v1266
      %v2461 = vpop.f32.mrb[0].mxu0
      %v2462 = vadd.f32 0.0, %v2461
      %v2463 = vpop.f32.mrb[0].mxu0
      %v2464 = vpop.f32.mrb[0].mxu0
      %v2465 = vadd.f32 0.0, %v2464
      %v2466 = vpop.f32.mrb[0].mxu0
      %2467 = vmatprep.mubr.bf16.mxu0 0
      %2468 = vmatmul.mubr.bf16.gmra.mrb[0].mxu0 %v1269
      %v2469 = vpop.f32.mrb[0].mxu0
      %v2470 = vadd.f32 0.0, %v2469
      %v2471 = vpop.f32.mrb[0].mxu0
      %v2472 = vpop.f32.mrb[0].mxu0
      %v2473 = vadd.f32 0.0, %v2472
      %v2474 = vpop.f32.mrb[0].mxu0
      %2475 = vmatprep.mubr.bf16.mxu0 0
      %2476 = vmatmul.mubr.bf16.gmra.mrb[0].mxu0 %v1272
      %v2477 = vpop.f32.mrb[0].mxu0
      %v2478 = vadd.f32 0.0, %v2477
      %v2479 = vpop.f32.mrb[0].mxu0
      %v2480 = vpop.f32.mrb[0].mxu0
      %v2481 = vadd.f32 0.0, %v2480
      %v2482 = vpop.f32.mrb[0].mxu0
      %2483 = vmatprep.mubr.bf16.mxu0 0
      %2484 = vmatmul.mubr.bf16.gmra.mrb[0].mxu0 %v1275
      %v2485 = vpop.f32.mrb[0].mxu0
      %v2486 = vadd.f32 0.0, %v2485
      %v2487 = vpop.f32.mrb[0].mxu0
      %v2488 = vpop.f32.mrb[0].mxu0
      %v2489 = vadd.f32 0.0, %v2488
      %v2490 = vpop.f32.mrb[0].mxu0
      %2491 = vmatprep.mubr.bf16.mxu0 0
      %2492 = vmatmul.mubr.bf16.gmra.mrb[0].mxu0 %v1278
      %v2493 = vpop.f32.mrb[0].mxu0
      %v2494 = vadd.f32 0.0, %v2493
      %v2495 = vpop.f32.mrb[0].mxu0
      %v2496 = vpop.f32.mrb[0].mxu0
      %v2497 = vadd.f32 0.0, %v2496
      %v2498 = vpop.f32.mrb[0].mxu0
      %2499 = vmatprep.mubr.bf16.mxu0 0
      %2500 = vmatmul.mubr.bf16.gmra.mrb[0].mxu0 %v1281
      %v2501 = vpop.f32.mrb[0].mxu0
      %v2502 = vadd.f32 0.0, %v2501
      %v2503 = vpop.f32.mrb[0].mxu0
      %v2504 = vpop.f32.mrb[0].mxu0
      %v2505 = vadd.f32 0.0, %v2504
      %v2506 = vpop.f32.mrb[0].mxu0
      %2507 = vmatprep.mubr.bf16.mxu0 0
      %2508 = vmatmul.mubr.bf16.gmra.mrb[0].mxu0 %v1284
      %v2509 = vpop.f32.mrb[0].mxu0
      %v2510 = vadd.f32 0.0, %v2509
      %v2511 = vpop.f32.mrb[0].mxu0
      %v2512 = vpop.f32.mrb[0].mxu0
      %v2513 = vadd.f32 0.0, %v2512
      %v2514 = vpop.f32.mrb[0].mxu0
      %2515 = vmatprep.mubr.bf16.mxu0 0
      %2516 = vmatmul.mubr.bf16.gmra.mrb[0].mxu0 %v1287
      %v2517 = vpop.f32.mrb[0].mxu0
      %v2518 = vadd.f32 0.0, %v2517
      %v2519 = vpop.f32.mrb[0].mxu0
      %v2520 = vpop.f32.mrb[0].mxu0
      %v2521 = vadd.f32 0.0, %v2520
      %v2522 = vpop.f32.mrb[0].mxu0
      %2523 = vmatprep.mubr.bf16.mxu0 0
      %2524 = vmatmul.mubr.bf16.gmra.mrb[0].mxu0 %v1290
      %v2525 = vpop.f32.mrb[0].mxu0
      %v2526 = vadd.f32 0.0, %v2525
      %v2527 = vpop.f32.mrb[0].mxu0
      %v2528 = vpop.f32.mrb[0].mxu0
      %v2529 = vadd.f32 0.0, %v2528
      %v2530 = vpop.f32.mrb[0].mxu0
      %2531 = vmatprep.mubr.bf16.mxu0 0
      %2532 = vmatmul.mubr.bf16.gmra.mrb[0].mxu0 %v1293
      %v2533 = vpop.f32.mrb[0].mxu0
      %v2534 = vadd.f32 0.0, %v2533
      %v2535 = vpop.f32.mrb[0].mxu0
      %v2536 = vpop.f32.mrb[0].mxu0
      %v2537 = vadd.f32 0.0, %v2536
      %v2538 = vpop.f32.mrb[0].mxu0
      %2539 = vmatprep.mubr.bf16.mxu0 0
      %2540 = vmatmul.mubr.bf16.gmra.mrb[0].mxu0 %v1296
      %v2541 = vpop.f32.mrb[0].mxu0
      %v2542 = vadd.f32 0.0, %v2541
      %v2543 = vpop.f32.mrb[0].mxu0
      %v2544 = vpop.f32.mrb[0].mxu0
      %v2545 = vadd.f32 0.0, %v2544
      %v2546 = vpop.f32.mrb[0].mxu0
      %2547 = vmatprep.mubr.bf16.mxu0 0
      %2548 = vmatmul.mubr.bf16.gmra.mrb[0].mxu0 %v1299
      %v2549 = vpop.f32.mrb[0].mxu0
      %v2550 = vadd.f32 0.0, %v2549
      %v2551 = vpop.f32.mrb[0].mxu0
      %v2552 = vpop.f32.mrb[0].mxu0
      %v2553 = vadd.f32 0.0, %v2552
      %v2554 = vpop.f32.mrb[0].mxu0
      %2555 = vmatprep.mubr.bf16.mxu0 0
      %2556 = vmatmul.mubr.bf16.gmra.mrb[0].mxu0 %v1302
      %v2557 = vpop.f32.mrb[0].mxu0
      %v2558 = vadd.f32 0.0, %v2557
      %v2559 = vpop.f32.mrb[0].mxu0
      %v2560 = vpop.f32.mrb[0].mxu0
      %v2561 = vadd.f32 0.0, %v2560
      %v2562 = vpop.f32.mrb[0].mxu0
      %2563 = vmatprep.mubr.bf16.mxu0 0
      %2564 = vmatmul.mubr.bf16.gmra.mrb[0].mxu0 %v2409
      %v2565 = vpop.f32.mrb[0].mxu0
      %v2566 = vadd.f32 0.0, %v2565
      %v2567 = vpop.f32.mrb[0].mxu0
      %v2568 = vpop.f32.mrb[0].mxu0
      %v2569 = vadd.f32 0.0, %v2568
      %v2570 = vpop.f32.mrb[0].mxu0
      %2571 = vdwg.mxu0
      %v2572 = vadd.f32 %v2367, %v2446
      %v2573 = vadd.f32 %v2368, %v2449
      %v2574 = vadd.f32 %v2369, %v2454
      %v2575 = vadd.f32 %v2370, %v2457
      %v2576 = vadd.f32 %v2371, %v2462
      %v2577 = vadd.f32 %v2372, %v2465
      %v2578 = vadd.f32 %v2373, %v2470
      %v2579 = vadd.f32 %v2374, %v2473
      %v2580 = vadd.f32 %v2375, %v2478
      %v2581 = vadd.f32 %v2376, %v2481
      %v2582 = vadd.f32 %v2377, %v2486
      %v2583 = vadd.f32 %v2378, %v2489
      %v2584 = vadd.f32 %v2379, %v2494
      %v2585 = vadd.f32 %v2380, %v2497
      %v2586 = vadd.f32 %v2381, %v2502
      %v2587 = vadd.f32 %v2382, %v2505
      %v2588 = vadd.f32 %v2383, %v2510
      %v2589 = vadd.f32 %v2384, %v2513
      %v2590 = vadd.f32 %v2385, %v2518
      %v2591 = vadd.f32 %v2386, %v2521
      %v2592 = vadd.f32 %v2387, %v2526
      %v2593 = vadd.f32 %v2388, %v2529
      %v2594 = vadd.f32 %v2389, %v2534
      %v2595 = vadd.f32 %v2390, %v2537
      %v2596 = vadd.f32 %v2391, %v2542
      %v2597 = vadd.f32 %v2392, %v2545
      %v2598 = vadd.f32 %v2393, %v2550
      %v2599 = vadd.f32 %v2394, %v2553
      %v2600 = vadd.f32 %v2395, %v2558
      %v2601 = vadd.f32 %v2396, %v2561
      %v2602 = vadd.f32 %v2397, %v2566
      %v2603 = vadd.f32 %v2398, %v2569
      %s2604 = scalar_lea.vmem %s1, 40
      %v2605 = vld [vmem:[%s2604] sm:$0xf]
      %v2606 = vld [vmem:[%s2604 + $0x4] sm:$0xf]
      %v2607 = vshrl.u32 %v1243, 16
      %v2609 = vor.u32 %v2607, %v1937
      %v2610 = vsel %vm1811, %v2609, %v1812
      %v2613 = vunpack.c.l.b16 %v2605
      %v2614 = vunpack.c.l.b16 %v2606
      %v2615 = vpack.c.b16 %v2614, %v2613
      %v2618 = vsel %vm1255, %v2610, 0
      %2620 = vmatprep.subr.bf16.mxu0 0
      %2621 = vmatpush1.bf16.msra.mxu0 %v2615
      %2622 = vmatprep.subr.bf16.mxu0 0
      %2623 = vmatpush1.bf16.msra.mxu0 0
      %2624 = vmatprep.subr.bf16.mxu0 0
      %2625 = vmatpush1.bf16.msra.mxu0 0
      %2626 = vmatprep.subr.bf16.mxu0 0
      %2627 = vmatpush1.bf16.msra.mxu0 0
      %2628 = vmatprep.subr.bf16.mxu0 0
      %2629 = vmatpush1.bf16.msra.mxu0 0
      %2630 = vmatprep.subr.bf16.mxu0 0
      %2631 = vmatpush1.bf16.msra.mxu0 0
      %2632 = vmatprep.subr.bf16.mxu0 0
      %2633 = vmatpush1.bf16.msra.mxu0 0
      %2634 = vmatprep.subr.bf16.mxu0 0
      %2635 = vmatpush1.bf16.msra.mxu0 0
      %2636 = vmatprep.subr.bf16.mxu0 0
      %2637 = vmatpush1.bf16.msra.mxu0 0
      %2638 = vmatprep.subr.bf16.mxu0 0
      %2639 = vmatpush1.bf16.msra.mxu0 0
      %2640 = vmatprep.subr.bf16.mxu0 0
      %2641 = vmatpush1.bf16.msra.mxu0 0
      %2642 = vmatprep.subr.bf16.mxu0 0
      %2643 = vmatpush1.bf16.msra.mxu0 0
      %2644 = vmatprep.subr.bf16.mxu0 0
      %2645 = vmatpush1.bf16.msra.mxu0 0
      %2646 = vmatprep.subr.bf16.mxu0 0
      %2647 = vmatpush1.bf16.msra.mxu0 0
      %2648 = vmatprep.subr.bf16.mxu0 0
      %2649 = vmatpush1.bf16.msra.mxu0 0
      %2650 = vmatprep.subr.bf16.mxu0 0
      %2651 = vmatpush1.bf16.msra.mxu0 0
      %2652 = vmatprep.mubr.bf16.mxu0 0
      %2653 = vmatmul.mubr.bf16.gmra.mrb[0].mxu0 %v1949
      %v2654 = vpop.f32.mrb[0].mxu0
      %v2655 = vadd.f32 0.0, %v2654
      %v2656 = vpop.f32.mrb[0].mxu0
      %v2657 = vpop.f32.mrb[0].mxu0
      %v2658 = vadd.f32 0.0, %v2657
      %v2659 = vpop.f32.mrb[0].mxu0
      %2660 = vmatprep.mubr.bf16.mxu0 0
      %2661 = vmatmul.mubr.bf16.gmra.mrb[0].mxu0 %v1952
      %v2662 = vpop.f32.mrb[0].mxu0
      %v2663 = vadd.f32 0.0, %v2662
      %v2664 = vpop.f32.mrb[0].mxu0
      %v2665 = vpop.f32.mrb[0].mxu0
      %v2666 = vadd.f32 0.0, %v2665
      %v2667 = vpop.f32.mrb[0].mxu0
      %2668 = vmatprep.mubr.bf16.mxu0 0
      %2669 = vmatmul.mubr.bf16.gmra.mrb[0].mxu0 %v1955
      %v2670 = vpop.f32.mrb[0].mxu0
      %v2671 = vadd.f32 0.0, %v2670
      %v2672 = vpop.f32.mrb[0].mxu0
      %v2673 = vpop.f32.mrb[0].mxu0
      %v2674 = vadd.f32 0.0, %v2673
      %v2675 = vpop.f32.mrb[0].mxu0
      %2676 = vmatprep.mubr.bf16.mxu0 0
      %2677 = vmatmul.mubr.bf16.gmra.mrb[0].mxu0 %v1958
      %v2678 = vpop.f32.mrb[0].mxu0
      %v2679 = vadd.f32 0.0, %v2678
      %v2680 = vpop.f32.mrb[0].mxu0
      %v2681 = vpop.f32.mrb[0].mxu0
      %v2682 = vadd.f32 0.0, %v2681
      %v2683 = vpop.f32.mrb[0].mxu0
      %2684 = vmatprep.mubr.bf16.mxu0 0
      %2685 = vmatmul.mubr.bf16.gmra.mrb[0].mxu0 %v1961
      %v2686 = vpop.f32.mrb[0].mxu0
      %v2687 = vadd.f32 0.0, %v2686
      %v2688 = vpop.f32.mrb[0].mxu0
      %v2689 = vpop.f32.mrb[0].mxu0
      %v2690 = vadd.f32 0.0, %v2689
      %v2691 = vpop.f32.mrb[0].mxu0
      %2692 = vmatprep.mubr.bf16.mxu0 0
      %2693 = vmatmul.mubr.bf16.gmra.mrb[0].mxu0 %v1964
      %v2694 = vpop.f32.mrb[0].mxu0
      %v2695 = vadd.f32 0.0, %v2694
      %v2696 = vpop.f32.mrb[0].mxu0
      %v2697 = vpop.f32.mrb[0].mxu0
      %v2698 = vadd.f32 0.0, %v2697
      %v2699 = vpop.f32.mrb[0].mxu0
      %2700 = vmatprep.mubr.bf16.mxu0 0
      %2701 = vmatmul.mubr.bf16.gmra.mrb[0].mxu0 %v1967
      %v2702 = vpop.f32.mrb[0].mxu0
      %v2703 = vadd.f32 0.0, %v2702
      %v2704 = vpop.f32.mrb[0].mxu0
      %v2705 = vpop.f32.mrb[0].mxu0
      %v2706 = vadd.f32 0.0, %v2705
      %v2707 = vpop.f32.mrb[0].mxu0
      %2708 = vmatprep.mubr.bf16.mxu0 0
      %2709 = vmatmul.mubr.bf16.gmra.mrb[0].mxu0 %v1970
      %v2710 = vpop.f32.mrb[0].mxu0
      %v2711 = vadd.f32 0.0, %v2710
      %v2712 = vpop.f32.mrb[0].mxu0
      %v2713 = vpop.f32.mrb[0].mxu0
      %v2714 = vadd.f32 0.0, %v2713
      %v2715 = vpop.f32.mrb[0].mxu0
      %2716 = vmatprep.mubr.bf16.mxu0 0
      %2717 = vmatmul.mubr.bf16.gmra.mrb[0].mxu0 %v1973
      %v2718 = vpop.f32.mrb[0].mxu0
      %v2719 = vadd.f32 0.0, %v2718
      %v2720 = vpop.f32.mrb[0].mxu0
      %v2721 = vpop.f32.mrb[0].mxu0
      %v2722 = vadd.f32 0.0, %v2721
      %v2723 = vpop.f32.mrb[0].mxu0
      %2724 = vmatprep.mubr.bf16.mxu0 0
      %2725 = vmatmul.mubr.bf16.gmra.mrb[0].mxu0 %v1976
      %v2726 = vpop.f32.mrb[0].mxu0
      %v2727 = vadd.f32 0.0, %v2726
      %v2728 = vpop.f32.mrb[0].mxu0
      %v2729 = vpop.f32.mrb[0].mxu0
      %v2730 = vadd.f32 0.0, %v2729
      %v2731 = vpop.f32.mrb[0].mxu0
      %2732 = vmatprep.mubr.bf16.mxu0 0
      %2733 = vmatmul.mubr.bf16.gmra.mrb[0].mxu0 %v1979
      %v2734 = vpop.f32.mrb[0].mxu0
      %v2735 = vadd.f32 0.0, %v2734
      %v2736 = vpop.f32.mrb[0].mxu0
      %v2737 = vpop.f32.mrb[0].mxu0
      %v2738 = vadd.f32 0.0, %v2737
      %v2739 = vpop.f32.mrb[0].mxu0
      %2740 = vmatprep.mubr.bf16.mxu0 0
      %2741 = vmatmul.mubr.bf16.gmra.mrb[0].mxu0 %v1982
      %v2742 = vpop.f32.mrb[0].mxu0
      %v2743 = vadd.f32 0.0, %v2742
      %v2744 = vpop.f32.mrb[0].mxu0
      %v2745 = vpop.f32.mrb[0].mxu0
      %v2746 = vadd.f32 0.0, %v2745
      %v2747 = vpop.f32.mrb[0].mxu0
      %2748 = vmatprep.mubr.bf16.mxu0 0
      %2749 = vmatmul.mubr.bf16.gmra.mrb[0].mxu0 %v1985
      %v2750 = vpop.f32.mrb[0].mxu0
      %v2751 = vadd.f32 0.0, %v2750
      %v2752 = vpop.f32.mrb[0].mxu0
      %v2753 = vpop.f32.mrb[0].mxu0
      %v2754 = vadd.f32 0.0, %v2753
      %v2755 = vpop.f32.mrb[0].mxu0
      %2756 = vmatprep.mubr.bf16.mxu0 0
      %2757 = vmatmul.mubr.bf16.gmra.mrb[0].mxu0 %v1988
      %v2758 = vpop.f32.mrb[0].mxu0
      %v2759 = vadd.f32 0.0, %v2758
      %v2760 = vpop.f32.mrb[0].mxu0
      %v2761 = vpop.f32.mrb[0].mxu0
      %v2762 = vadd.f32 0.0, %v2761
      %v2763 = vpop.f32.mrb[0].mxu0
      %2764 = vmatprep.mubr.bf16.mxu0 0
      %2765 = vmatmul.mubr.bf16.gmra.mrb[0].mxu0 %v1991
      %v2766 = vpop.f32.mrb[0].mxu0
      %v2767 = vadd.f32 0.0, %v2766
      %v2768 = vpop.f32.mrb[0].mxu0
      %v2769 = vpop.f32.mrb[0].mxu0
      %v2770 = vadd.f32 0.0, %v2769
      %v2771 = vpop.f32.mrb[0].mxu0
      %2772 = vmatprep.mubr.bf16.mxu0 0
      %2773 = vmatmul.mubr.bf16.gmra.mrb[0].mxu0 %v2618
      %v2774 = vpop.f32.mrb[0].mxu0
      %v2775 = vadd.f32 0.0, %v2774
      %v2776 = vpop.f32.mrb[0].mxu0
      %v2777 = vpop.f32.mrb[0].mxu0
      %v2778 = vadd.f32 0.0, %v2777
      %v2779 = vpop.f32.mrb[0].mxu0
      %2780 = vdwg.mxu0
      %v2781 = vadd.f32 %v2572, %v2655
      %v2782 = vadd.f32 %v2573, %v2658
      %v2783 = vadd.f32 %v2574, %v2663
      %v2784 = vadd.f32 %v2575, %v2666
      %v2785 = vadd.f32 %v2576, %v2671
      %v2786 = vadd.f32 %v2577, %v2674
      %v2787 = vadd.f32 %v2578, %v2679
      %v2788 = vadd.f32 %v2579, %v2682
      %v2789 = vadd.f32 %v2580, %v2687
      %v2790 = vadd.f32 %v2581, %v2690
      %v2791 = vadd.f32 %v2582, %v2695
      %v2792 = vadd.f32 %v2583, %v2698
      %v2793 = vadd.f32 %v2584, %v2703
      %v2794 = vadd.f32 %v2585, %v2706
      %v2795 = vadd.f32 %v2586, %v2711
      %v2796 = vadd.f32 %v2587, %v2714
      %v2797 = vadd.f32 %v2588, %v2719
      %v2798 = vadd.f32 %v2589, %v2722
      %v2799 = vadd.f32 %v2590, %v2727
      %v2800 = vadd.f32 %v2591, %v2730
      %v2801 = vadd.f32 %v2592, %v2735
      %v2802 = vadd.f32 %v2593, %v2738
      %v2803 = vadd.f32 %v2594, %v2743
      %v2804 = vadd.f32 %v2595, %v2746
      %v2805 = vadd.f32 %v2596, %v2751
      %v2806 = vadd.f32 %v2597, %v2754
      %v2807 = vadd.f32 %v2598, %v2759
      %v2808 = vadd.f32 %v2599, %v2762
      %v2809 = vadd.f32 %v2600, %v2767
      %v2810 = vadd.f32 %v2601, %v2770
      %v2811 = vadd.f32 %v2602, %v2775
      %v2812 = vadd.f32 %v2603, %v2778
      %s2813 = scalar_lea.vmem %s1, 48
      %v2814 = vld [vmem:[%s2813] sm:$0xf]
      %v2815 = vld [vmem:[%s2813 + $0x4] sm:$0xf]
      %v2816 = vsel %vm1465, %v2192, %v1471
      %v2819 = vunpack.c.l.b16 %v2814
      %v2820 = vunpack.c.l.b16 %v2815
      %v2821 = vpack.c.b16 %v2820, %v2819
      %v2824 = vsel %vm1255, %v2816, 0
      %2826 = vmatprep.subr.bf16.mxu0 0
      %2827 = vmatpush1.bf16.msra.mxu0 %v2821
      %2828 = vmatprep.subr.bf16.mxu0 0
      %2829 = vmatpush1.bf16.msra.mxu0 0
      %2830 = vmatprep.subr.bf16.mxu0 0
      %2831 = vmatpush1.bf16.msra.mxu0 0
      %2832 = vmatprep.subr.bf16.mxu0 0
      %2833 = vmatpush1.bf16.msra.mxu0 0
      %2834 = vmatprep.subr.bf16.mxu0 0
      %2835 = vmatpush1.bf16.msra.mxu0 0
      %2836 = vmatprep.subr.bf16.mxu0 0
      %2837 = vmatpush1.bf16.msra.mxu0 0
      %2838 = vmatprep.subr.bf16.mxu0 0
      %2839 = vmatpush1.bf16.msra.mxu0 0
      %2840 = vmatprep.subr.bf16.mxu0 0
      %2841 = vmatpush1.bf16.msra.mxu0 0
      %2842 = vmatprep.subr.bf16.mxu0 0
      %2843 = vmatpush1.bf16.msra.mxu0 0
      %2844 = vmatprep.subr.bf16.mxu0 0
      %2845 = vmatpush1.bf16.msra.mxu0 0
      %2846 = vmatprep.subr.bf16.mxu0 0
      %2847 = vmatpush1.bf16.msra.mxu0 0
      %2848 = vmatprep.subr.bf16.mxu0 0
      %2849 = vmatpush1.bf16.msra.mxu0 0
      %2850 = vmatprep.subr.bf16.mxu0 0
      %2851 = vmatpush1.bf16.msra.mxu0 0
      %2852 = vmatprep.subr.bf16.mxu0 0
      %2853 = vmatpush1.bf16.msra.mxu0 0
      %2854 = vmatprep.subr.bf16.mxu0 0
      %2855 = vmatpush1.bf16.msra.mxu0 0
      %2856 = vmatprep.subr.bf16.mxu0 0
      %2857 = vmatpush1.bf16.msra.mxu0 0
      %2858 = vmatprep.mubr.bf16.mxu0 0
      %2859 = vmatmul.mubr.bf16.gmra.mrb[0].mxu0 %v1606
      %v2860 = vpop.f32.mrb[0].mxu0
      %v2861 = vadd.f32 0.0, %v2860
      %v2862 = vpop.f32.mrb[0].mxu0
      %v2863 = vpop.f32.mrb[0].mxu0
      %v2864 = vadd.f32 0.0, %v2863
      %v2865 = vpop.f32.mrb[0].mxu0
      %2866 = vmatprep.mubr.bf16.mxu0 0
      %2867 = vmatmul.mubr.bf16.gmra.mrb[0].mxu0 %v1609
      %v2868 = vpop.f32.mrb[0].mxu0
      %v2869 = vadd.f32 0.0, %v2868
      %v2870 = vpop.f32.mrb[0].mxu0
      %v2871 = vpop.f32.mrb[0].mxu0
      %v2872 = vadd.f32 0.0, %v2871
      %v2873 = vpop.f32.mrb[0].mxu0
      %2874 = vmatprep.mubr.bf16.mxu0 0
      %2875 = vmatmul.mubr.bf16.gmra.mrb[0].mxu0 %v1612
      %v2876 = vpop.f32.mrb[0].mxu0
      %v2877 = vadd.f32 0.0, %v2876
      %v2878 = vpop.f32.mrb[0].mxu0
      %v2879 = vpop.f32.mrb[0].mxu0
      %v2880 = vadd.f32 0.0, %v2879
      %v2881 = vpop.f32.mrb[0].mxu0
      %2882 = vmatprep.mubr.bf16.mxu0 0
      %2883 = vmatmul.mubr.bf16.gmra.mrb[0].mxu0 %v1615
      %v2884 = vpop.f32.mrb[0].mxu0
      %v2885 = vadd.f32 0.0, %v2884
      %v2886 = vpop.f32.mrb[0].mxu0
      %v2887 = vpop.f32.mrb[0].mxu0
      %v2888 = vadd.f32 0.0, %v2887
      %v2889 = vpop.f32.mrb[0].mxu0
      %2890 = vmatprep.mubr.bf16.mxu0 0
      %2891 = vmatmul.mubr.bf16.gmra.mrb[0].mxu0 %v1618
      %v2892 = vpop.f32.mrb[0].mxu0
      %v2893 = vadd.f32 0.0, %v2892
      %v2894 = vpop.f32.mrb[0].mxu0
      %v2895 = vpop.f32.mrb[0].mxu0
      %v2896 = vadd.f32 0.0, %v2895
      %v2897 = vpop.f32.mrb[0].mxu0
      %2898 = vmatprep.mubr.bf16.mxu0 0
      %2899 = vmatmul.mubr.bf16.gmra.mrb[0].mxu0 %v1621
      %v2900 = vpop.f32.mrb[0].mxu0
      %v2901 = vadd.f32 0.0, %v2900
      %v2902 = vpop.f32.mrb[0].mxu0
      %v2903 = vpop.f32.mrb[0].mxu0
      %v2904 = vadd.f32 0.0, %v2903
      %v2905 = vpop.f32.mrb[0].mxu0
      %2906 = vmatprep.mubr.bf16.mxu0 0
      %2907 = vmatmul.mubr.bf16.gmra.mrb[0].mxu0 %v1624
      %v2908 = vpop.f32.mrb[0].mxu0
      %v2909 = vadd.f32 0.0, %v2908
      %v2910 = vpop.f32.mrb[0].mxu0
      %v2911 = vpop.f32.mrb[0].mxu0
      %v2912 = vadd.f32 0.0, %v2911
      %v2913 = vpop.f32.mrb[0].mxu0
      %2914 = vmatprep.mubr.bf16.mxu0 0
      %2915 = vmatmul.mubr.bf16.gmra.mrb[0].mxu0 %v1627
      %v2916 = vpop.f32.mrb[0].mxu0
      %v2917 = vadd.f32 0.0, %v2916
      %v2918 = vpop.f32.mrb[0].mxu0
      %v2919 = vpop.f32.mrb[0].mxu0
      %v2920 = vadd.f32 0.0, %v2919
      %v2921 = vpop.f32.mrb[0].mxu0
      %2922 = vmatprep.mubr.bf16.mxu0 0
      %2923 = vmatmul.mubr.bf16.gmra.mrb[0].mxu0 %v1630
      %v2924 = vpop.f32.mrb[0].mxu0
      %v2925 = vadd.f32 0.0, %v2924
      %v2926 = vpop.f32.mrb[0].mxu0
      %v2927 = vpop.f32.mrb[0].mxu0
      %v2928 = vadd.f32 0.0, %v2927
      %v2929 = vpop.f32.mrb[0].mxu0
      %2930 = vmatprep.mubr.bf16.mxu0 0
      %2931 = vmatmul.mubr.bf16.gmra.mrb[0].mxu0 %v1633
      %v2932 = vpop.f32.mrb[0].mxu0
      %v2933 = vadd.f32 0.0, %v2932
      %v2934 = vpop.f32.mrb[0].mxu0
      %v2935 = vpop.f32.mrb[0].mxu0
      %v2936 = vadd.f32 0.0, %v2935
      %v2937 = vpop.f32.mrb[0].mxu0
      %2938 = vmatprep.mubr.bf16.mxu0 0
      %2939 = vmatmul.mubr.bf16.gmra.mrb[0].mxu0 %v1636
      %v2940 = vpop.f32.mrb[0].mxu0
      %v2941 = vadd.f32 0.0, %v2940
      %v2942 = vpop.f32.mrb[0].mxu0
      %v2943 = vpop.f32.mrb[0].mxu0
      %v2944 = vadd.f32 0.0, %v2943
      %v2945 = vpop.f32.mrb[0].mxu0
      %2946 = vmatprep.mubr.bf16.mxu0 0
      %2947 = vmatmul.mubr.bf16.gmra.mrb[0].mxu0 %v1639
      %v2948 = vpop.f32.mrb[0].mxu0
      %v2949 = vadd.f32 0.0, %v2948
      %v2950 = vpop.f32.mrb[0].mxu0
      %v2951 = vpop.f32.mrb[0].mxu0
      %v2952 = vadd.f32 0.0, %v2951
      %v2953 = vpop.f32.mrb[0].mxu0
      %2954 = vmatprep.mubr.bf16.mxu0 0
      %2955 = vmatmul.mubr.bf16.gmra.mrb[0].mxu0 %v1642
      %v2956 = vpop.f32.mrb[0].mxu0
      %v2957 = vadd.f32 0.0, %v2956
      %v2958 = vpop.f32.mrb[0].mxu0
      %v2959 = vpop.f32.mrb[0].mxu0
      %v2960 = vadd.f32 0.0, %v2959
      %v2961 = vpop.f32.mrb[0].mxu0
      %2962 = vmatprep.mubr.bf16.mxu0 0
      %2963 = vmatmul.mubr.bf16.gmra.mrb[0].mxu0 %v1645
      %v2964 = vpop.f32.mrb[0].mxu0
      %v2965 = vadd.f32 0.0, %v2964
      %v2966 = vpop.f32.mrb[0].mxu0
      %v2967 = vpop.f32.mrb[0].mxu0
      %v2968 = vadd.f32 0.0, %v2967
      %v2969 = vpop.f32.mrb[0].mxu0
      %2970 = vmatprep.mubr.bf16.mxu0 0
      %2971 = vmatmul.mubr.bf16.gmra.mrb[0].mxu0 %v2204
      %v2972 = vpop.f32.mrb[0].mxu0
      %v2973 = vadd.f32 0.0, %v2972
      %v2974 = vpop.f32.mrb[0].mxu0
      %v2975 = vpop.f32.mrb[0].mxu0
      %v2976 = vadd.f32 0.0, %v2975
      %v2977 = vpop.f32.mrb[0].mxu0
      %2978 = vmatprep.mubr.bf16.mxu0 0
      %2979 = vmatmul.mubr.bf16.gmra.mrb[0].mxu0 %v2824
      %v2980 = vpop.f32.mrb[0].mxu0
      %v2981 = vadd.f32 0.0, %v2980
      %v2982 = vpop.f32.mrb[0].mxu0
      %v2983 = vpop.f32.mrb[0].mxu0
      %v2984 = vadd.f32 0.0, %v2983
      %v2985 = vpop.f32.mrb[0].mxu0
      %2986 = vdwg.mxu0
      %v2987 = vadd.f32 %v2781, %v2861
      %v2988 = vadd.f32 %v2782, %v2864
      %v2989 = vadd.f32 %v2783, %v2869
      %v2990 = vadd.f32 %v2784, %v2872
      %v2991 = vadd.f32 %v2785, %v2877
      %v2992 = vadd.f32 %v2786, %v2880
      %v2993 = vadd.f32 %v2787, %v2885
      %v2994 = vadd.f32 %v2788, %v2888
      %v2995 = vadd.f32 %v2789, %v2893
      %v2996 = vadd.f32 %v2790, %v2896
      %v2997 = vadd.f32 %v2791, %v2901
      %v2998 = vadd.f32 %v2792, %v2904
      %v2999 = vadd.f32 %v2793, %v2909
      %v3000 = vadd.f32 %v2794, %v2912
      %v3001 = vadd.f32 %v2795, %v2917
      %v3002 = vadd.f32 %v2796, %v2920
      %v3003 = vadd.f32 %v2797, %v2925
      %v3004 = vadd.f32 %v2798, %v2928
      %v3005 = vadd.f32 %v2799, %v2933
      %v3006 = vadd.f32 %v2800, %v2936
      %v3007 = vadd.f32 %v2801, %v2941
      %v3008 = vadd.f32 %v2802, %v2944
      %v3009 = vadd.f32 %v2803, %v2949
      %v3010 = vadd.f32 %v2804, %v2952
      %v3011 = vadd.f32 %v2805, %v2957
      %v3012 = vadd.f32 %v2806, %v2960
      %v3013 = vadd.f32 %v2807, %v2965
      %v3014 = vadd.f32 %v2808, %v2968
      %v3015 = vadd.f32 %v2809, %v2973
      %v3016 = vadd.f32 %v2810, %v2976
      %v3017 = vadd.f32 %v2811, %v2981
      %v3018 = vadd.f32 %v2812, %v2984
      %s3019 = scalar_lea.vmem %s1, 56
      %v3020 = vld [vmem:[%s3019] sm:$0xf]
      %v3021 = vld [vmem:[%s3019 + $0x4] sm:$0xf]
      %v3024 = vunpack.c.l.b16 %v3020
      %v3025 = vunpack.c.l.b16 %v3021
      %v3026 = vpack.c.b16 %v3025, %v3024
      %3028 = vmatprep.subr.bf16.mxu0 0
      %3029 = vmatpush1.bf16.msra.mxu0 %v3026
      %3030 = vmatprep.subr.bf16.mxu0 0
      %3031 = vmatpush1.bf16.msra.mxu0 0
      %3032 = vmatprep.subr.bf16.mxu0 0
      %3033 = vmatpush1.bf16.msra.mxu0 0
      %3034 = vmatprep.subr.bf16.mxu0 0
      %3035 = vmatpush1.bf16.msra.mxu0 0
      %3036 = vmatprep.subr.bf16.mxu0 0
      %3037 = vmatpush1.bf16.msra.mxu0 0
      %3038 = vmatprep.subr.bf16.mxu0 0
      %3039 = vmatpush1.bf16.msra.mxu0 0
      %3040 = vmatprep.subr.bf16.mxu0 0
      %3041 = vmatpush1.bf16.msra.mxu0 0
      %3042 = vmatprep.subr.bf16.mxu0 0
      %3043 = vmatpush1.bf16.msra.mxu0 0
      %3044 = vmatprep.subr.bf16.mxu0 0
      %3045 = vmatpush1.bf16.msra.mxu0 0
      %3046 = vmatprep.subr.bf16.mxu0 0
      %3047 = vmatpush1.bf16.msra.mxu0 0
      %3048 = vmatprep.subr.bf16.mxu0 0
      %3049 = vmatpush1.bf16.msra.mxu0 0
      %3050 = vmatprep.subr.bf16.mxu0 0
      %3051 = vmatpush1.bf16.msra.mxu0 0
      %3052 = vmatprep.subr.bf16.mxu0 0
      %3053 = vmatpush1.bf16.msra.mxu0 0
      %3054 = vmatprep.subr.bf16.mxu0 0
      %3055 = vmatpush1.bf16.msra.mxu0 0
      %3056 = vmatprep.subr.bf16.mxu0 0
      %3057 = vmatpush1.bf16.msra.mxu0 0
      %3058 = vmatprep.subr.bf16.mxu0 0
      %3059 = vmatpush1.bf16.msra.mxu0 0
      %3060 = vmatprep.mubr.bf16.mxu0 0
      %3061 = vmatmul.mubr.bf16.gmra.mrb[0].mxu0 %v1263
      %v3062 = vpop.f32.mrb[0].mxu0
      %v3063 = vadd.f32 0.0, %v3062
      %v3064 = vpop.f32.mrb[0].mxu0
      %v3065 = vpop.f32.mrb[0].mxu0
      %v3066 = vadd.f32 0.0, %v3065
      %v3067 = vpop.f32.mrb[0].mxu0
      %3068 = vmatprep.mubr.bf16.mxu0 0
      %3069 = vmatmul.mubr.bf16.gmra.mrb[0].mxu0 %v1266
      %v3070 = vpop.f32.mrb[0].mxu0
      %v3071 = vadd.f32 0.0, %v3070
      %v3072 = vpop.f32.mrb[0].mxu0
      %v3073 = vpop.f32.mrb[0].mxu0
      %v3074 = vadd.f32 0.0, %v3073
      %v3075 = vpop.f32.mrb[0].mxu0
      %3076 = vmatprep.mubr.bf16.mxu0 0
      %3077 = vmatmul.mubr.bf16.gmra.mrb[0].mxu0 %v1269
      %v3078 = vpop.f32.mrb[0].mxu0
      %v3079 = vadd.f32 0.0, %v3078
      %v3080 = vpop.f32.mrb[0].mxu0
      %v3081 = vpop.f32.mrb[0].mxu0
      %v3082 = vadd.f32 0.0, %v3081
      %v3083 = vpop.f32.mrb[0].mxu0
      %3084 = vmatprep.mubr.bf16.mxu0 0
      %3085 = vmatmul.mubr.bf16.gmra.mrb[0].mxu0 %v1272
      %v3086 = vpop.f32.mrb[0].mxu0
      %v3087 = vadd.f32 0.0, %v3086
      %v3088 = vpop.f32.mrb[0].mxu0
      %v3089 = vpop.f32.mrb[0].mxu0
      %v3090 = vadd.f32 0.0, %v3089
      %v3091 = vpop.f32.mrb[0].mxu0
      %3092 = vmatprep.mubr.bf16.mxu0 0
      %3093 = vmatmul.mubr.bf16.gmra.mrb[0].mxu0 %v1275
      %v3094 = vpop.f32.mrb[0].mxu0
      %v3095 = vadd.f32 0.0, %v3094
      %v3096 = vpop.f32.mrb[0].mxu0
      %v3097 = vpop.f32.mrb[0].mxu0
      %v3098 = vadd.f32 0.0, %v3097
      %v3099 = vpop.f32.mrb[0].mxu0
      %3100 = vmatprep.mubr.bf16.mxu0 0
      %3101 = vmatmul.mubr.bf16.gmra.mrb[0].mxu0 %v1278
      %v3102 = vpop.f32.mrb[0].mxu0
      %v3103 = vadd.f32 0.0, %v3102
      %v3104 = vpop.f32.mrb[0].mxu0
      %v3105 = vpop.f32.mrb[0].mxu0
      %v3106 = vadd.f32 0.0, %v3105
      %v3107 = vpop.f32.mrb[0].mxu0
      %3108 = vmatprep.mubr.bf16.mxu0 0
      %3109 = vmatmul.mubr.bf16.gmra.mrb[0].mxu0 %v1281
      %v3110 = vpop.f32.mrb[0].mxu0
      %v3111 = vadd.f32 0.0, %v3110
      %v3112 = vpop.f32.mrb[0].mxu0
      %v3113 = vpop.f32.mrb[0].mxu0
      %v3114 = vadd.f32 0.0, %v3113
      %v3115 = vpop.f32.mrb[0].mxu0
      %3116 = vmatprep.mubr.bf16.mxu0 0
      %3117 = vmatmul.mubr.bf16.gmra.mrb[0].mxu0 %v1284
      %v3118 = vpop.f32.mrb[0].mxu0
      %v3119 = vadd.f32 0.0, %v3118
      %v3120 = vpop.f32.mrb[0].mxu0
      %v3121 = vpop.f32.mrb[0].mxu0
      %v3122 = vadd.f32 0.0, %v3121
      %v3123 = vpop.f32.mrb[0].mxu0
      %3124 = vmatprep.mubr.bf16.mxu0 0
      %3125 = vmatmul.mubr.bf16.gmra.mrb[0].mxu0 %v1287
      %v3126 = vpop.f32.mrb[0].mxu0
      %v3127 = vadd.f32 0.0, %v3126
      %v3128 = vpop.f32.mrb[0].mxu0
      %v3129 = vpop.f32.mrb[0].mxu0
      %v3130 = vadd.f32 0.0, %v3129
      %v3131 = vpop.f32.mrb[0].mxu0
      %3132 = vmatprep.mubr.bf16.mxu0 0
      %3133 = vmatmul.mubr.bf16.gmra.mrb[0].mxu0 %v1290
      %v3134 = vpop.f32.mrb[0].mxu0
      %v3135 = vadd.f32 0.0, %v3134
      %v3136 = vpop.f32.mrb[0].mxu0
      %v3137 = vpop.f32.mrb[0].mxu0
      %v3138 = vadd.f32 0.0, %v3137
      %v3139 = vpop.f32.mrb[0].mxu0
      %3140 = vmatprep.mubr.bf16.mxu0 0
      %3141 = vmatmul.mubr.bf16.gmra.mrb[0].mxu0 %v1293
      %v3142 = vpop.f32.mrb[0].mxu0
      %v3143 = vadd.f32 0.0, %v3142
      %v3144 = vpop.f32.mrb[0].mxu0
      %v3145 = vpop.f32.mrb[0].mxu0
      %v3146 = vadd.f32 0.0, %v3145
      %v3147 = vpop.f32.mrb[0].mxu0
      %3148 = vmatprep.mubr.bf16.mxu0 0
      %3149 = vmatmul.mubr.bf16.gmra.mrb[0].mxu0 %v1296
      %v3150 = vpop.f32.mrb[0].mxu0
      %v3151 = vadd.f32 0.0, %v3150
      %v3152 = vpop.f32.mrb[0].mxu0
      %v3153 = vpop.f32.mrb[0].mxu0
      %v3154 = vadd.f32 0.0, %v3153
      %v3155 = vpop.f32.mrb[0].mxu0
      %3156 = vmatprep.mubr.bf16.mxu0 0
      %3157 = vmatmul.mubr.bf16.gmra.mrb[0].mxu0 %v1299
      %v3158 = vpop.f32.mrb[0].mxu0
      %v3159 = vadd.f32 0.0, %v3158
      %v3160 = vpop.f32.mrb[0].mxu0
      %v3161 = vpop.f32.mrb[0].mxu0
      %v3162 = vadd.f32 0.0, %v3161
      %v3163 = vpop.f32.mrb[0].mxu0
      %3164 = vmatprep.mubr.bf16.mxu0 0
      %3165 = vmatmul.mubr.bf16.gmra.mrb[0].mxu0 %v1302
      %v3166 = vpop.f32.mrb[0].mxu0
      %v3167 = vadd.f32 0.0, %v3166
      %v3168 = vpop.f32.mrb[0].mxu0
      %v3169 = vpop.f32.mrb[0].mxu0
      %v3170 = vadd.f32 0.0, %v3169
      %v3171 = vpop.f32.mrb[0].mxu0
      %3172 = vmatprep.mubr.bf16.mxu0 0
      %3173 = vmatmul.mubr.bf16.gmra.mrb[0].mxu0 %v2409
      %v3174 = vpop.f32.mrb[0].mxu0
      %v3175 = vadd.f32 0.0, %v3174
      %v3176 = vpop.f32.mrb[0].mxu0
      %v3177 = vpop.f32.mrb[0].mxu0
      %v3178 = vadd.f32 0.0, %v3177
      %v3179 = vpop.f32.mrb[0].mxu0
      %3180 = vmatprep.mubr.bf16.mxu0 0
      %3181 = vmatmul.mubr.bf16.gmra.mrb[0].mxu0 %v1257
      %v3182 = vpop.f32.mrb[0].mxu0
      %v3183 = vadd.f32 0.0, %v3182
      %v3184 = vpop.f32.mrb[0].mxu0
      %v3185 = vpop.f32.mrb[0].mxu0
      %v3186 = vadd.f32 0.0, %v3185
      %v3187 = vpop.f32.mrb[0].mxu0
      %3188 = vdwg.mxu0
      %v3189 = vadd.f32 %v2987, %v3063
      %v3190 = vadd.f32 %v2988, %v3066
      %v3191 = vadd.f32 %v2989, %v3071
      %v3192 = vadd.f32 %v2990, %v3074
      %v3193 = vadd.f32 %v2991, %v3079
      %v3194 = vadd.f32 %v2992, %v3082
      %v3195 = vadd.f32 %v2993, %v3087
      %v3196 = vadd.f32 %v2994, %v3090
      %v3197 = vadd.f32 %v2995, %v3095
      %v3198 = vadd.f32 %v2996, %v3098
      %v3199 = vadd.f32 %v2997, %v3103
      %v3200 = vadd.f32 %v2998, %v3106
      %v3201 = vadd.f32 %v2999, %v3111
      %v3202 = vadd.f32 %v3000, %v3114
      %v3203 = vadd.f32 %v3001, %v3119
      %v3204 = vadd.f32 %v3002, %v3122
      %v3205 = vadd.f32 %v3003, %v3127
      %v3206 = vadd.f32 %v3004, %v3130
      %v3207 = vadd.f32 %v3005, %v3135
      %v3208 = vadd.f32 %v3006, %v3138
      %v3209 = vadd.f32 %v3007, %v3143
      %v3210 = vadd.f32 %v3008, %v3146
      %v3211 = vadd.f32 %v3009, %v3151
      %v3212 = vadd.f32 %v3010, %v3154
      %v3213 = vadd.f32 %v3011, %v3159
      %v3214 = vadd.f32 %v3012, %v3162
      %v3215 = vadd.f32 %v3013, %v3167
      %v3216 = vadd.f32 %v3014, %v3170
      %v3217 = vadd.f32 %v3015, %v3175
      %v3218 = vadd.f32 %v3016, %v3178
      %v3219 = vadd.f32 %v3017, %v3183
      %v3220 = vadd.f32 %v3018, %v3186
      %s3221 = scalar_lea.vmem %s1, 64
      %v3222 = vld [vmem:[%s3221] sm:$0xf]
      %v3223 = vld [vmem:[%s3221 + $0x4] sm:$0xf]
      %v3224 = vsel %vm1811, %v1813, %v1812
      %v3227 = vunpack.c.l.b16 %v3222
      %v3228 = vunpack.c.l.b16 %v3223
      %v3229 = vpack.c.b16 %v3228, %v3227
      %v3232 = vsel %vm1255, %v3224, 0
      %3234 = vmatprep.subr.bf16.mxu0 0
      %3235 = vmatpush1.bf16.msra.mxu0 %v3229
      %3236 = vmatprep.subr.bf16.mxu0 0
      %3237 = vmatpush1.bf16.msra.mxu0 0
      %3238 = vmatprep.subr.bf16.mxu0 0
      %3239 = vmatpush1.bf16.msra.mxu0 0
      %3240 = vmatprep.subr.bf16.mxu0 0
      %3241 = vmatpush1.bf16.msra.mxu0 0
      %3242 = vmatprep.subr.bf16.mxu0 0
      %3243 = vmatpush1.bf16.msra.mxu0 0
      %3244 = vmatprep.subr.bf16.mxu0 0
      %3245 = vmatpush1.bf16.msra.mxu0 0
      %3246 = vmatprep.subr.bf16.mxu0 0
      %3247 = vmatpush1.bf16.msra.mxu0 0
      %3248 = vmatprep.subr.bf16.mxu0 0
      %3249 = vmatpush1.bf16.msra.mxu0 0
      %3250 = vmatprep.subr.bf16.mxu0 0
      %3251 = vmatpush1.bf16.msra.mxu0 0
      %3252 = vmatprep.subr.bf16.mxu0 0
      %3253 = vmatpush1.bf16.msra.mxu0 0
      %3254 = vmatprep.subr.bf16.mxu0 0
      %3255 = vmatpush1.bf16.msra.mxu0 0
      %3256 = vmatprep.subr.bf16.mxu0 0
      %3257 = vmatpush1.bf16.msra.mxu0 0
      %3258 = vmatprep.subr.bf16.mxu0 0
      %3259 = vmatpush1.bf16.msra.mxu0 0
      %3260 = vmatprep.subr.bf16.mxu0 0
      %3261 = vmatpush1.bf16.msra.mxu0 0
      %3262 = vmatprep.subr.bf16.mxu0 0
      %3263 = vmatpush1.bf16.msra.mxu0 0
      %3264 = vmatprep.subr.bf16.mxu0 0
      %3265 = vmatpush1.bf16.msra.mxu0 0
      %3266 = vmatprep.mubr.bf16.mxu0 0
      %3267 = vmatmul.mubr.bf16.gmra.mrb[0].mxu0 %v1952
      %v3268 = vpop.f32.mrb[0].mxu0
      %v3269 = vadd.f32 0.0, %v3268
      %v3270 = vpop.f32.mrb[0].mxu0
      %v3271 = vpop.f32.mrb[0].mxu0
      %v3272 = vadd.f32 0.0, %v3271
      %v3273 = vpop.f32.mrb[0].mxu0
      %3274 = vmatprep.mubr.bf16.mxu0 0
      %3275 = vmatmul.mubr.bf16.gmra.mrb[0].mxu0 %v1955
      %v3276 = vpop.f32.mrb[0].mxu0
      %v3277 = vadd.f32 0.0, %v3276
      %v3278 = vpop.f32.mrb[0].mxu0
      %v3279 = vpop.f32.mrb[0].mxu0
      %v3280 = vadd.f32 0.0, %v3279
      %v3281 = vpop.f32.mrb[0].mxu0
      %3282 = vmatprep.mubr.bf16.mxu0 0
      %3283 = vmatmul.mubr.bf16.gmra.mrb[0].mxu0 %v1958
      %v3284 = vpop.f32.mrb[0].mxu0
      %v3285 = vadd.f32 0.0, %v3284
      %v3286 = vpop.f32.mrb[0].mxu0
      %v3287 = vpop.f32.mrb[0].mxu0
      %v3288 = vadd.f32 0.0, %v3287
      %v3289 = vpop.f32.mrb[0].mxu0
      %3290 = vmatprep.mubr.bf16.mxu0 0
      %3291 = vmatmul.mubr.bf16.gmra.mrb[0].mxu0 %v1961
      %v3292 = vpop.f32.mrb[0].mxu0
      %v3293 = vadd.f32 0.0, %v3292
      %v3294 = vpop.f32.mrb[0].mxu0
      %v3295 = vpop.f32.mrb[0].mxu0
      %v3296 = vadd.f32 0.0, %v3295
      %v3297 = vpop.f32.mrb[0].mxu0
      %3298 = vmatprep.mubr.bf16.mxu0 0
      %3299 = vmatmul.mubr.bf16.gmra.mrb[0].mxu0 %v1964
      %v3300 = vpop.f32.mrb[0].mxu0
      %v3301 = vadd.f32 0.0, %v3300
      %v3302 = vpop.f32.mrb[0].mxu0
      %v3303 = vpop.f32.mrb[0].mxu0
      %v3304 = vadd.f32 0.0, %v3303
      %v3305 = vpop.f32.mrb[0].mxu0
      %3306 = vmatprep.mubr.bf16.mxu0 0
      %3307 = vmatmul.mubr.bf16.gmra.mrb[0].mxu0 %v1967
      %v3308 = vpop.f32.mrb[0].mxu0
      %v3309 = vadd.f32 0.0, %v3308
      %v3310 = vpop.f32.mrb[0].mxu0
      %v3311 = vpop.f32.mrb[0].mxu0
      %v3312 = vadd.f32 0.0, %v3311
      %v3313 = vpop.f32.mrb[0].mxu0
      %3314 = vmatprep.mubr.bf16.mxu0 0
      %3315 = vmatmul.mubr.bf16.gmra.mrb[0].mxu0 %v1970
      %v3316 = vpop.f32.mrb[0].mxu0
      %v3317 = vadd.f32 0.0, %v3316
      %v3318 = vpop.f32.mrb[0].mxu0
      %v3319 = vpop.f32.mrb[0].mxu0
      %v3320 = vadd.f32 0.0, %v3319
      %v3321 = vpop.f32.mrb[0].mxu0
      %3322 = vmatprep.mubr.bf16.mxu0 0
      %3323 = vmatmul.mubr.bf16.gmra.mrb[0].mxu0 %v1973
      %v3324 = vpop.f32.mrb[0].mxu0
      %v3325 = vadd.f32 0.0, %v3324
      %v3326 = vpop.f32.mrb[0].mxu0
      %v3327 = vpop.f32.mrb[0].mxu0
      %v3328 = vadd.f32 0.0, %v3327
      %v3329 = vpop.f32.mrb[0].mxu0
      %3330 = vmatprep.mubr.bf16.mxu0 0
      %3331 = vmatmul.mubr.bf16.gmra.mrb[0].mxu0 %v1976
      %v3332 = vpop.f32.mrb[0].mxu0
      %v3333 = vadd.f32 0.0, %v3332
      %v3334 = vpop.f32.mrb[0].mxu0
      %v3335 = vpop.f32.mrb[0].mxu0
      %v3336 = vadd.f32 0.0, %v3335
      %v3337 = vpop.f32.mrb[0].mxu0
      %3338 = vmatprep.mubr.bf16.mxu0 0
      %3339 = vmatmul.mubr.bf16.gmra.mrb[0].mxu0 %v1979
      %v3340 = vpop.f32.mrb[0].mxu0
      %v3341 = vadd.f32 0.0, %v3340
      %v3342 = vpop.f32.mrb[0].mxu0
      %v3343 = vpop.f32.mrb[0].mxu0
      %v3344 = vadd.f32 0.0, %v3343
      %v3345 = vpop.f32.mrb[0].mxu0
      %3346 = vmatprep.mubr.bf16.mxu0 0
      %3347 = vmatmul.mubr.bf16.gmra.mrb[0].mxu0 %v1982
      %v3348 = vpop.f32.mrb[0].mxu0
      %v3349 = vadd.f32 0.0, %v3348
      %v3350 = vpop.f32.mrb[0].mxu0
      %v3351 = vpop.f32.mrb[0].mxu0
      %v3352 = vadd.f32 0.0, %v3351
      %v3353 = vpop.f32.mrb[0].mxu0
      %3354 = vmatprep.mubr.bf16.mxu0 0
      %3355 = vmatmul.mubr.bf16.gmra.mrb[0].mxu0 %v1985
      %v3356 = vpop.f32.mrb[0].mxu0
      %v3357 = vadd.f32 0.0, %v3356
      %v3358 = vpop.f32.mrb[0].mxu0
      %v3359 = vpop.f32.mrb[0].mxu0
      %v3360 = vadd.f32 0.0, %v3359
      %v3361 = vpop.f32.mrb[0].mxu0
      %3362 = vmatprep.mubr.bf16.mxu0 0
      %3363 = vmatmul.mubr.bf16.gmra.mrb[0].mxu0 %v1988
      %v3364 = vpop.f32.mrb[0].mxu0
      %v3365 = vadd.f32 0.0, %v3364
      %v3366 = vpop.f32.mrb[0].mxu0
      %v3367 = vpop.f32.mrb[0].mxu0
      %v3368 = vadd.f32 0.0, %v3367
      %v3369 = vpop.f32.mrb[0].mxu0
      %3370 = vmatprep.mubr.bf16.mxu0 0
      %3371 = vmatmul.mubr.bf16.gmra.mrb[0].mxu0 %v1991
      %v3372 = vpop.f32.mrb[0].mxu0
      %v3373 = vadd.f32 0.0, %v3372
      %v3374 = vpop.f32.mrb[0].mxu0
      %v3375 = vpop.f32.mrb[0].mxu0
      %v3376 = vadd.f32 0.0, %v3375
      %v3377 = vpop.f32.mrb[0].mxu0
      %3378 = vmatprep.mubr.bf16.mxu0 0
      %3379 = vmatmul.mubr.bf16.gmra.mrb[0].mxu0 %v2618
      %v3380 = vpop.f32.mrb[0].mxu0
      %v3381 = vadd.f32 0.0, %v3380
      %v3382 = vpop.f32.mrb[0].mxu0
      %v3383 = vpop.f32.mrb[0].mxu0
      %v3384 = vadd.f32 0.0, %v3383
      %v3385 = vpop.f32.mrb[0].mxu0
      %3386 = vmatprep.mubr.bf16.mxu0 0
      %3387 = vmatmul.mubr.bf16.gmra.mrb[0].mxu0 %v3232
      %v3388 = vpop.f32.mrb[0].mxu0
      %v3389 = vadd.f32 0.0, %v3388
      %v3390 = vpop.f32.mrb[0].mxu0
      %v3391 = vpop.f32.mrb[0].mxu0
      %v3392 = vadd.f32 0.0, %v3391
      %v3393 = vpop.f32.mrb[0].mxu0
      %3394 = vdwg.mxu0
      %v3395 = vadd.f32 %v3189, %v3269
      %v3396 = vadd.f32 %v3190, %v3272
      %v3397 = vadd.f32 %v3191, %v3277
      %v3398 = vadd.f32 %v3192, %v3280
      %v3399 = vadd.f32 %v3193, %v3285
      %v3400 = vadd.f32 %v3194, %v3288
      %v3401 = vadd.f32 %v3195, %v3293
      %v3402 = vadd.f32 %v3196, %v3296
      %v3403 = vadd.f32 %v3197, %v3301
      %v3404 = vadd.f32 %v3198, %v3304
      %v3405 = vadd.f32 %v3199, %v3309
      %v3406 = vadd.f32 %v3200, %v3312
      %v3407 = vadd.f32 %v3201, %v3317
      %v3408 = vadd.f32 %v3202, %v3320
      %v3409 = vadd.f32 %v3203, %v3325
      %v3410 = vadd.f32 %v3204, %v3328
      %v3411 = vadd.f32 %v3205, %v3333
      %v3412 = vadd.f32 %v3206, %v3336
      %v3413 = vadd.f32 %v3207, %v3341
      %v3414 = vadd.f32 %v3208, %v3344
      %v3415 = vadd.f32 %v3209, %v3349
      %v3416 = vadd.f32 %v3210, %v3352
      %v3417 = vadd.f32 %v3211, %v3357
      %v3418 = vadd.f32 %v3212, %v3360
      %v3419 = vadd.f32 %v3213, %v3365
      %v3420 = vadd.f32 %v3214, %v3368
      %v3421 = vadd.f32 %v3215, %v3373
      %v3422 = vadd.f32 %v3216, %v3376
      %v3423 = vadd.f32 %v3217, %v3381
      %v3424 = vadd.f32 %v3218, %v3384
      %v3425 = vadd.f32 %v3219, %v3389
      %v3426 = vadd.f32 %v3220, %v3392
      %3427 = vst [vmem:[%s208] sm:$0xff] %v3395
      %3428 = vst [vmem:[%s208 + $0x8] sm:$0xff] %v3396
      %3429 = vst [vmem:[%s208 + $0x10] sm:$0xff] %v3397
      %3430 = vst [vmem:[%s208 + $0x18] sm:$0xff] %v3398
      %3431 = vst [vmem:[%s208 + $0x20] sm:$0xff] %v3399
      %3432 = vst [vmem:[%s208 + $0x28] sm:$0xff] %v3400
      %3433 = vst [vmem:[%s208 + $0x30] sm:$0xff] %v3401
      %3434 = vst [vmem:[%s208 + $0x38] sm:$0xff] %v3402
      %3435 = vst [vmem:[%s208 + $0x40] sm:$0xff] %v3403
      %3436 = vst [vmem:[%s208 + $0x48] sm:$0xff] %v3404
      %3437 = vst [vmem:[%s208 + $0x50] sm:$0xff] %v3405
      %3438 = vst [vmem:[%s208 + $0x58] sm:$0xff] %v3406
      %3439 = vst [vmem:[%s208 + $0x60] sm:$0xff] %v3407
      %3440 = vst [vmem:[%s208 + $0x68] sm:$0xff] %v3408
      %3441 = vst [vmem:[%s208 + $0x70] sm:$0xff] %v3409
      %3442 = vst [vmem:[%s208 + $0x78] sm:$0xff] %v3410
      %3443 = vst [vmem:[%s208 + $0x80] sm:$0xff] %v3411
      %3444 = vst [vmem:[%s208 + $0x88] sm:$0xff] %v3412
      %3445 = vst [vmem:[%s208 + $0x90] sm:$0xff] %v3413
      %3446 = vst [vmem:[%s208 + $0x98] sm:$0xff] %v3414
      %3447 = vst [vmem:[%s208 + $0xa0] sm:$0xff] %v3415
      %3448 = vst [vmem:[%s208 + $0xa8] sm:$0xff] %v3416
      %3449 = vst [vmem:[%s208 + $0xb0] sm:$0xff] %v3417
      %3450 = vst [vmem:[%s208 + $0xb8] sm:$0xff] %v3418
      %3451 = vst [vmem:[%s208 + $0xc0] sm:$0xff] %v3419
      %3452 = vst [vmem:[%s208 + $0xc8] sm:$0xff] %v3420
      %3453 = vst [vmem:[%s208 + $0xd0] sm:$0xff] %v3421
      %3454 = vst [vmem:[%s208 + $0xd8] sm:$0xff] %v3422
      %3455 = vst [vmem:[%s208 + $0xe0] sm:$0xff] %v3423
      %3456 = vst [vmem:[%s208 + $0xe8] sm:$0xff] %v3424
      %3457 = vst [vmem:[%s208 + $0xf0] sm:$0xff] %v3425
      %3458 = vst [vmem:[%s208 + $0xf8] sm:$0xff] %v3426
      %v3459 = vadd.f32 %v3395, %v3396
      %v3460 = vadd.f32 %v3459, %v3397
      %v3461 = vadd.f32 %v3460, %v3398
      %v3462 = vadd.f32 %v3461, %v3399
      %v3463 = vadd.f32 %v3462, %v3400
      %v3464 = vadd.f32 %v3463, %v3401
      %v3465 = vadd.f32 %v3464, %v3402
      %v3466 = vadd.f32 %v3465, %v3403
      %v3467 = vadd.f32 %v3466, %v3404
      %v3468 = vadd.f32 %v3467, %v3405
      %v3469 = vadd.f32 %v3468, %v3406
      %v3470 = vadd.f32 %v3469, %v3407
      %v3471 = vadd.f32 %v3470, %v3408
      %v3472 = vadd.f32 %v3471, %v3409
      %v3473 = vadd.f32 %v3472, %v3410
      %v3474 = vadd.f32 %v3473, %v3411
      %v3475 = vadd.f32 %v3474, %v3412
      %v3476 = vadd.f32 %v3475, %v3413
      %v3477 = vadd.f32 %v3476, %v3414
      %v3478 = vadd.f32 %v3477, %v3415
      %v3479 = vadd.f32 %v3478, %v3416
      %v3480 = vadd.f32 %v3479, %v3417
      %v3481 = vadd.f32 %v3480, %v3418
      %v3482 = vadd.f32 %v3481, %v3419
      %v3483 = vadd.f32 %v3482, %v3420
      %v3484 = vadd.f32 %v3483, %v3421
      %v3485 = vadd.f32 %v3484, %v3422
      %v3486 = vadd.f32 %v3485, %v3423
      %v3487 = vadd.f32 %v3486, %v3424
      %v3488 = vadd.f32 %v3487, %v3425
      %v3489 = vadd.f32 %v3488, %v3426
      %v3490 = vrot.slane %v3489, 4
      %v3491 = vadd.f32 %v3489, %v3490
      %v3492 = vrot.slane %v3491, 2
      %v3493 = vadd.f32 %v3491, %v3492
      %v3494 = vrot.slane %v3493, 1
      %v3495 = vadd.f32 %v3493, %v3494
      %3496 = vst [vmem:[%s211] sm:$0x1] %v3495
      %v3497 = vmul.f32 %v3395, %v3395
      %v3498 = vmul.f32 %v3396, %v3396
      %v3499 = vmul.f32 %v3397, %v3397
      %v3500 = vmul.f32 %v3398, %v3398
      %v3501 = vmul.f32 %v3399, %v3399
      %v3502 = vmul.f32 %v3400, %v3400
      %v3503 = vmul.f32 %v3401, %v3401
      %v3504 = vmul.f32 %v3402, %v3402
      %v3505 = vmul.f32 %v3403, %v3403
      %v3506 = vmul.f32 %v3404, %v3404
      %v3507 = vmul.f32 %v3405, %v3405
      %v3508 = vmul.f32 %v3406, %v3406
      %v3509 = vmul.f32 %v3407, %v3407
      %v3510 = vmul.f32 %v3408, %v3408
      %v3511 = vmul.f32 %v3409, %v3409
      %v3512 = vmul.f32 %v3410, %v3410
      %v3513 = vmul.f32 %v3411, %v3411
      %v3514 = vmul.f32 %v3412, %v3412
      %v3515 = vmul.f32 %v3413, %v3413
      %v3516 = vmul.f32 %v3414, %v3414
      %v3517 = vmul.f32 %v3415, %v3415
      %v3518 = vmul.f32 %v3416, %v3416
      %v3519 = vmul.f32 %v3417, %v3417
      %v3520 = vmul.f32 %v3418, %v3418
      %v3521 = vmul.f32 %v3419, %v3419
      %v3522 = vmul.f32 %v3420, %v3420
      %v3523 = vmul.f32 %v3421, %v3421
      %v3524 = vmul.f32 %v3422, %v3422
      %v3525 = vmul.f32 %v3423, %v3423
      %v3526 = vmul.f32 %v3424, %v3424
      %v3527 = vmul.f32 %v3425, %v3425
      %v3528 = vmul.f32 %v3426, %v3426
      %v3529 = vadd.f32 %v3497, %v3498
      %v3530 = vadd.f32 %v3529, %v3499
      %v3531 = vadd.f32 %v3530, %v3500
      %v3532 = vadd.f32 %v3531, %v3501
      %v3533 = vadd.f32 %v3532, %v3502
      %v3534 = vadd.f32 %v3533, %v3503
      %v3535 = vadd.f32 %v3534, %v3504
      %v3536 = vadd.f32 %v3535, %v3505
      %v3537 = vadd.f32 %v3536, %v3506
      %v3538 = vadd.f32 %v3537, %v3507
      %v3539 = vadd.f32 %v3538, %v3508
      %v3540 = vadd.f32 %v3539, %v3509
      %v3541 = vadd.f32 %v3540, %v3510
      %v3542 = vadd.f32 %v3541, %v3511
      %v3543 = vadd.f32 %v3542, %v3512
      %v3544 = vadd.f32 %v3543, %v3513
      %v3545 = vadd.f32 %v3544, %v3514
      %v3546 = vadd.f32 %v3545, %v3515
      %v3547 = vadd.f32 %v3546, %v3516
      %v3548 = vadd.f32 %v3547, %v3517
      %v3549 = vadd.f32 %v3548, %v3518
      %v3550 = vadd.f32 %v3549, %v3519
      %v3551 = vadd.f32 %v3550, %v3520
      %v3552 = vadd.f32 %v3551, %v3521
      %v3553 = vadd.f32 %v3552, %v3522
      %v3554 = vadd.f32 %v3553, %v3523
      %v3555 = vadd.f32 %v3554, %v3524
      %v3556 = vadd.f32 %v3555, %v3525
      %v3557 = vadd.f32 %v3556, %v3526
      %v3558 = vadd.f32 %v3557, %v3527
      %v3559 = vadd.f32 %v3558, %v3528
      %v3560 = vrot.slane %v3559, 4
      %v3561 = vadd.f32 %v3559, %v3560
      %v3562 = vrot.slane %v3561, 2
      %v3563 = vadd.f32 %v3561, %v3562
      %v3564 = vrot.slane %v3563, 1
      %v3565 = vadd.f32 %v3563, %v3564
      %3566 = vst [vmem:[%s214] sm:$0x1] %v3565
      %p3567 = scmp.lt.s32.totalorder %s16, 1
      %s3568 = scalar_select %p3567, %s16, 1
      %s3569 = smul.addr %s3568, 32
      %s3570 = smul.addr %s3569, 8
      %s3571 = scalar_lea.vmem %s2, %s3570
      %p3572 = scmp.lt.s32.totalorder %s16, 1
      %s3573 = scalar_select %p3572, %s16, 1
      %s3574 = scalar_lea.vmem %s3, %s3573
      %p3575 = scmp.lt.s32.totalorder %s16, 1
      %s3576 = scalar_select %p3575, %s16, 1
      %s3577 = scalar_lea.vmem %s4, %s3576
      // Predicated region
      $region29: #{bottleneck2conv.3} parent=27 // pred_check
        %p3578 = pneg %p81
      $region30: #{bottleneck2conv.3} parent=27 // pred_check_branch
        %3580 = sbr.rel (%p3578) target = $region32
      $region31: #{bottleneck2conv.3} parent=27 // pred_region
        _
      $region32: #{bottleneck2conv.3} parent=27 // pred_fallthru
        _
      // Predicated region
      $region33: #{bottleneck2conv.3} parent=27 // pred_check
        %p3581 = pneg %p107
      $region34: #{bottleneck2conv.3} parent=27 // pred_check_branch
        %3583 = sbr.rel (%p3581) target = $region36
      $region35: #{bottleneck2conv.3} parent=27 // pred_region
        _
      $region36: #{bottleneck2conv.3} parent=27 // pred_fallthru
        _
      // Predicated region
      $region37: #{bottleneck2conv.3} parent=27 // pred_check
        %p3584 = pneg %p133
      $region38: #{bottleneck2conv.3} parent=27 // pred_check_branch
        %3586 = sbr.rel (%p3584) target = $region40
      $region39: #{bottleneck2conv.3} parent=27 // pred_region
        _
      $region40: #{bottleneck2conv.3} parent=27 // pred_fallthru
        _
    $region28: #{bottleneck2conv.3} parent=5 // pred_fallthru
      _
    %p3587 = scmp.le.s32.totalorder 2, %s11
    // Predicated region
    $region41: #{bottleneck2conv.3} parent=5 // pred_check
      %p3588 = pneg %p3587
    $region42: #{bottleneck2conv.3} parent=5 // pred_check_branch
      %3590 = sbr.rel (%p3588) target = $region44
    $region43: #{bottleneck2conv.3} parent=5 // pred_region
      %s3591 = ssub.s32 %s11, 2
      // Predicated region
      $region45: #{bottleneck2conv.3} parent=43 // pred_check
        %p3592 = pneg %p87
      $region46: #{bottleneck2conv.3} parent=43 // pred_check_branch
        %3594 = sbr.rel (%p3592) target = $region48
      $region47: #{bottleneck2conv.3} parent=43 // pred_region
        %p3595 = scmp.lt.s32.totalorder %s17, 1
        %s3596 = scalar_select %p3595, %s17, 1
        %s3597 = smul.addr %s3596, 32
        %s3598 = smul.addr %s3597, 8
        %s3599 = scalar_lea.vmem %s2, %s3598
      $region48: #{bottleneck2conv.3} parent=43 // pred_fallthru
        _
      // Predicated region
      $region49: #{bottleneck2conv.3} parent=43 // pred_check
        %p3600 = pneg %p113
      $region50: #{bottleneck2conv.3} parent=43 // pred_check_branch
        %3602 = sbr.rel (%p3600) target = $region52
      $region51: #{bottleneck2conv.3} parent=43 // pred_region
        %p3603 = scmp.lt.s32.totalorder %s17, 1
        %s3604 = scalar_select %p3603, %s17, 1
        %s3605 = scalar_lea.vmem %s3, %s3604
      $region52: #{bottleneck2conv.3} parent=43 // pred_fallthru
        _
      // Predicated region
      $region53: #{bottleneck2conv.3} parent=43 // pred_check
        %p3606 = pneg %p139
      $region54: #{bottleneck2conv.3} parent=43 // pred_check_branch
        %3608 = sbr.rel (%p3606) target = $region56
      $region55: #{bottleneck2conv.3} parent=43 // pred_region
        %p3609 = scmp.lt.s32.totalorder %s17, 1
        %s3610 = scalar_select %p3609, %s17, 1
        %s3611 = scalar_lea.vmem %s4, %s3610
      $region56: #{bottleneck2conv.3} parent=43 // pred_fallthru
        _
    $region44: #{bottleneck2conv.3} parent=5 // pred_fallthru
      _
  $region6: #{bottleneck2conv.3} parent=0 // loop_footer
    %s15 = sadd.s32 1, %s11
  $region7: #{bottleneck2conv.3} parent=0 // loop_footer_branch
    %10 = sbr.rel target = $region3
  $region8: #{bottleneck2conv.3} parent=0 // loop_exit
    _

// kernel: bottleneck2conv.4
$region0: #{bottleneck2conv.4}
  #allocation0 [shape = 'u32[]', space=smem, size = 0x4, offset = 0x4, fixed_abs, tag = 'smem constant byte address 0x4 - core index']
  #allocation1 [shape = 'u32[144,128]{1,0:T(1,128)}', space=vmem, size = 0x12000, scoped, tag = 'internal scratch']
  %s0 = inlined_call_operand.vmem [shape: f32[2,16,16,128], index: 0, kind: input, shape index: {}]
  %s1 = inlined_call_operand.vmem [shape: f32[1,128], index: 1, kind: input, shape index: {}]
  %s2 = inlined_call_operand.vmem [shape: f32[1,128], index: 2, kind: input, shape index: {}]
  %s3 = inlined_call_operand.vmem [shape: bf16[9,128,128], index: 3, kind: input, shape index: {}]
  %s4 = inlined_call_operand.vmem [shape: f32[2,16,16,128], index: 4, kind: output, shape index: {0}]
  %s5 = inlined_call_operand.vmem [shape: f32[2,1,128], index: 5, kind: output, shape index: {1}]
  %s6 = inlined_call_operand.vmem [shape: f32[2,1,128], index: 6, kind: output, shape index: {2}]
  %7 = xla_tuple %s4, %s5, %s6
  %s8 = sld [smem:[#allocation0]]
  $region65: #{bottleneck2conv.4} parent=0
    _
  %s10 = ssub.s32 1, %s8
  %s11 = scalar_select 0, %s10, %s8
  loop: start=0, step=1, limit=4
  $region2: #{bottleneck2conv.4} parent=0 // loop_pre_header
    _
  $region3: #{bottleneck2conv.4} parent=0 // loop_header
    %s13 = sphi 0, %s17
    %p14 = scmp.ge.s32.totalorder %s13, 4
    %s23 = sphi 0, %s25
    %s26 = sphi 0, %s23
    %s27 = sphi 0, %s26
    %s43 = sphi 0, %s27
    %s47 = sphi 0, %s47
    %s49 = sphi 0, %s47
    %s50 = sphi 0, %s49
    %s64 = sphi 0, %s50
    %s68 = sphi 0, %s68
    %s70 = sphi 0, %s68
    %s71 = sphi 0, %s70
    %s85 = sphi 0, %s71
    %s89 = sphi 0, %s89
    %s91 = sphi 0, %s89
    %s92 = sphi 0, %s91
    %s106 = sphi 0, %s92
    %s112 = sphi 0, %s114
    %s115 = sphi 0, %s112
    %s116 = sphi 0, %s115
    %s132 = sphi 0, %s116
    %s138 = sphi 0, %s140
    %s141 = sphi 0, %s138
    %s142 = sphi 0, %s141
    %s158 = sphi 0, %s142
    %s164 = sphi 0, %s166
    %s167 = sphi 0, %s164
    %s168 = sphi 0, %s167
    %s184 = sphi 0, %s168
  $region4: #{bottleneck2conv.4} parent=0 // loop_header_branch
    %16 = sbr.rel (%p14) target = $region8
  $region5: #{bottleneck2conv.4} parent=0 // loop_body
    %s18 = ssub.s32 %s13, 1
    %s19 = ssub.s32 %s13, 2
    %s20 = sadd.s32 %s13, 1
    %s21 = ssub.s32 %s13, %s20
    %p22 = scmp.eq.s32.totalorder %s21, 0
    %s24 = sadd.s32 %s23, 1
    %s25 = scalar_select %p22, %s23, %s24
    %p28 = pneg %p22
    %p29 = scmp.eq.s32.totalorder %s13, 1
    %p30 = por %p28, %p29
    %p31 = scmp.ne.s32.totalorder %s23, %s26
    %p32 = scmp.eq.s32.totalorder %s13, 0
    %p33 = por %p31, %p32
    %p34 = scmp.ne.s32.totalorder %s23, %s26
    %p35 = scmp.eq.s32.totalorder %s18, 1
    %p36 = por %p34, %p35
    %p37 = scmp.ne.s32.totalorder %s26, %s27
    %p38 = scmp.eq.s32.totalorder %s18, 0
    %p39 = por %p37, %p38
    %p40 = scmp.ne.s32.totalorder %s26, %s27
    %p41 = scmp.eq.s32.totalorder %s19, 1
    %p42 = por %p40, %p41
    %p44 = scmp.ne.s32.totalorder %s27, %s43
    %p45 = scmp.eq.s32.totalorder %s19, 0
    %p46 = por %p44, %p45
    %s48 = sadd.s32 %s47, 1
    %p51 = scmp.eq.s32.totalorder %s13, 1
    %p52 = scmp.ne.s32.totalorder %s47, %s49
    %p53 = scmp.eq.s32.totalorder %s13, 0
    %p54 = por %p52, %p53
    %p55 = scmp.ne.s32.totalorder %s47, %s49
    %p56 = scmp.eq.s32.totalorder %s18, 1
    %p57 = por %p55, %p56
    %p58 = scmp.ne.s32.totalorder %s49, %s50
    %p59 = scmp.eq.s32.totalorder %s18, 0
    %p60 = por %p58, %p59
    %p61 = scmp.ne.s32.totalorder %s49, %s50
    %p62 = scmp.eq.s32.totalorder %s19, 1
    %p63 = por %p61, %p62
    %p65 = scmp.ne.s32.totalorder %s50, %s64
    %p66 = scmp.eq.s32.totalorder %s19, 0
    %p67 = por %p65, %p66
    %s69 = sadd.s32 %s68, 1
    %p72 = scmp.eq.s32.totalorder %s13, 1
    %p73 = scmp.ne.s32.totalorder %s68, %s70
    %p74 = scmp.eq.s32.totalorder %s13, 0
    %p75 = por %p73, %p74
    %p76 = scmp.ne.s32.totalorder %s68, %s70
    %p77 = scmp.eq.s32.totalorder %s18, 1
    %p78 = por %p76, %p77
    %p79 = scmp.ne.s32.totalorder %s70, %s71
    %p80 = scmp.eq.s32.totalorder %s18, 0
    %p81 = por %p79, %p80
    %p82 = scmp.ne.s32.totalorder %s70, %s71
    %p83 = scmp.eq.s32.totalorder %s19, 1
    %p84 = por %p82, %p83
    %p86 = scmp.ne.s32.totalorder %s71, %s85
    %p87 = scmp.eq.s32.totalorder %s19, 0
    %p88 = por %p86, %p87
    %s90 = sadd.s32 %s89, 1
    %p93 = scmp.eq.s32.totalorder %s13, 1
    %p94 = scmp.ne.s32.totalorder %s89, %s91
    %p95 = scmp.eq.s32.totalorder %s13, 0
    %p96 = por %p94, %p95
    %p97 = scmp.ne.s32.totalorder %s89, %s91
    %p98 = scmp.eq.s32.totalorder %s18, 1
    %p99 = por %p97, %p98
    %p100 = scmp.ne.s32.totalorder %s91, %s92
    %p101 = scmp.eq.s32.totalorder %s18, 0
    %p102 = por %p100, %p101
    %p103 = scmp.ne.s32.totalorder %s91, %s92
    %p104 = scmp.eq.s32.totalorder %s19, 1
    %p105 = por %p103, %p104
    %p107 = scmp.ne.s32.totalorder %s92, %s106
    %p108 = scmp.eq.s32.totalorder %s19, 0
    %p109 = por %p107, %p108
    %s110 = ssub.s32 %s13, %s20
    %p111 = scmp.eq.s32.totalorder %s110, 0
    %s113 = sadd.s32 %s112, 1
    %s114 = scalar_select %p111, %s112, %s113
    %p117 = pneg %p111
    %p118 = scmp.eq.s32.totalorder %s13, 1
    %p119 = por %p117, %p118
    %p120 = scmp.ne.s32.totalorder %s112, %s115
    %p121 = scmp.eq.s32.totalorder %s13, 0
    %p122 = por %p120, %p121
    %p123 = scmp.ne.s32.totalorder %s112, %s115
    %p124 = scmp.eq.s32.totalorder %s18, 1
    %p125 = por %p123, %p124
    %p126 = scmp.ne.s32.totalorder %s115, %s116
    %p127 = scmp.eq.s32.totalorder %s18, 0
    %p128 = por %p126, %p127
    %p129 = scmp.ne.s32.totalorder %s115, %s116
    %p130 = scmp.eq.s32.totalorder %s19, 1
    %p131 = por %p129, %p130
    %p133 = scmp.ne.s32.totalorder %s116, %s132
    %p134 = scmp.eq.s32.totalorder %s19, 0
    %p135 = por %p133, %p134
    %s136 = ssub.s32 %s13, %s20
    %p137 = scmp.eq.s32.totalorder %s136, 0
    %s139 = sadd.s32 %s138, 1
    %s140 = scalar_select %p137, %s138, %s139
    %p143 = pneg %p137
    %p144 = scmp.eq.s32.totalorder %s13, 1
    %p145 = por %p143, %p144
    %p146 = scmp.ne.s32.totalorder %s138, %s141
    %p147 = scmp.eq.s32.totalorder %s13, 0
    %p148 = por %p146, %p147
    %p149 = scmp.ne.s32.totalorder %s138, %s141
    %p150 = scmp.eq.s32.totalorder %s18, 1
    %p151 = por %p149, %p150
    %p152 = scmp.ne.s32.totalorder %s141, %s142
    %p153 = scmp.eq.s32.totalorder %s18, 0
    %p154 = por %p152, %p153
    %p155 = scmp.ne.s32.totalorder %s141, %s142
    %p156 = scmp.eq.s32.totalorder %s19, 1
    %p157 = por %p155, %p156
    %p159 = scmp.ne.s32.totalorder %s142, %s158
    %p160 = scmp.eq.s32.totalorder %s19, 0
    %p161 = por %p159, %p160
    %s162 = ssub.s32 %s13, %s20
    %p163 = scmp.eq.s32.totalorder %s162, 0
    %s165 = sadd.s32 %s164, 1
    %s166 = scalar_select %p163, %s164, %s165
    %p169 = pneg %p163
    %p170 = scmp.eq.s32.totalorder %s13, 1
    %p171 = por %p169, %p170
    %p172 = scmp.ne.s32.totalorder %s164, %s167
    %p173 = scmp.eq.s32.totalorder %s13, 0
    %p174 = por %p172, %p173
    %p175 = scmp.ne.s32.totalorder %s164, %s167
    %p176 = scmp.eq.s32.totalorder %s18, 1
    %p177 = por %p175, %p176
    %p178 = scmp.ne.s32.totalorder %s167, %s168
    %p179 = scmp.eq.s32.totalorder %s18, 0
    %p180 = por %p178, %p179
    %p181 = scmp.ne.s32.totalorder %s167, %s168
    %p182 = scmp.eq.s32.totalorder %s19, 1
    %p183 = por %p181, %p182
    %p185 = scmp.ne.s32.totalorder %s168, %s184
    %p186 = scmp.eq.s32.totalorder %s19, 0
    %p187 = por %p185, %p186
    %p188 = scmp.le.s32.totalorder 1, %s13
    %p189 = scmp.lt.s32.totalorder %s13, 3
    %p190 = pnand %p188, %p189
    %p191 = pneg %p190
    // Predicated region
    $region9: #{bottleneck2conv.4} parent=5 // pred_check
      _
    $region10: #{bottleneck2conv.4} parent=5 // pred_check_branch
      %193 = sbr.rel (%p190) target = $region12
    $region11: #{bottleneck2conv.4} parent=5 // pred_region
      %s194 = ssub.s32 %s13, 1
      // Predicated region
      $region13: #{bottleneck2conv.4} parent=11 // pred_check
        %p195 = pneg %p60
      $region14: #{bottleneck2conv.4} parent=11 // pred_check_branch
        %197 = sbr.rel (%p195) target = $region16
      $region15: #{bottleneck2conv.4} parent=11 // pred_region
        _
      $region16: #{bottleneck2conv.4} parent=11 // pred_fallthru
        _
      // Predicated region
      $region17: #{bottleneck2conv.4} parent=11 // pred_check
        %p198 = pneg %p81
      $region18: #{bottleneck2conv.4} parent=11 // pred_check_branch
        %200 = sbr.rel (%p198) target = $region20
      $region19: #{bottleneck2conv.4} parent=11 // pred_region
        _
      $region20: #{bottleneck2conv.4} parent=11 // pred_fallthru
        _
      // Predicated region
      $region21: #{bottleneck2conv.4} parent=11 // pred_check
        %p201 = pneg %p102
      $region22: #{bottleneck2conv.4} parent=11 // pred_check_branch
        %203 = sbr.rel (%p201) target = $region24
      $region23: #{bottleneck2conv.4} parent=11 // pred_region
        _
      $region24: #{bottleneck2conv.4} parent=11 // pred_fallthru
        _
    $region12: #{bottleneck2conv.4} parent=5 // pred_fallthru
      _
    %p204 = scmp.lt.s32.totalorder %s13, 2
    // Predicated region
    $region25: #{bottleneck2conv.4} parent=5 // pred_check
      %p205 = pneg %p204
    $region26: #{bottleneck2conv.4} parent=5 // pred_check_branch
      %207 = sbr.rel (%p205) target = $region28
    $region27: #{bottleneck2conv.4} parent=5 // pred_region
      // Predicated region
      $region29: #{bottleneck2conv.4} parent=27 // pred_check
        %p208 = pneg %p33
      $region30: #{bottleneck2conv.4} parent=27 // pred_check_branch
        %210 = sbr.rel (%p208) target = $region32
      $region31: #{bottleneck2conv.4} parent=27 // pred_region
        %p211 = scmp.lt.s32.totalorder %s13, 1
        %s212 = scalar_select %p211, %s13, 1
        %s213 = smul.addr %s212, 32
        %s214 = smul.addr %s213, 8
        %s215 = scalar_lea.vmem %s0, %s214
      $region32: #{bottleneck2conv.4} parent=27 // pred_fallthru
        _
    $region28: #{bottleneck2conv.4} parent=5 // pred_fallthru
      _
    %p216 = scmp.le.s32.totalorder 1, %s13
    %p217 = scmp.lt.s32.totalorder %s13, 3
    %p218 = pnand %p216, %p217
    %p219 = pneg %p218
    // Predicated region
    $region33: #{bottleneck2conv.4} parent=5 // pred_check
      _
    $region34: #{bottleneck2conv.4} parent=5 // pred_check_branch
      %221 = sbr.rel (%p218) target = $region36
    $region35: #{bottleneck2conv.4} parent=5 // pred_region
      %s222 = ssub.s32 %s13, 1
      %p223 = scmp.lt.s32.totalorder %s18, 1
      %s224 = scalar_select %p223, %s18, 1
      %s225 = smul.addr %s224, 32
      %s226 = smul.addr %s225, 8
      %s227 = scalar_lea.vmem %s0, %s226
      %p228 = pneg %p39
      %p229 = pneg %p36
      %p230 = pneg %p60
      %p231 = pneg %p57
      %p232 = pneg %p81
      %p233 = pneg %p78
      %p234 = pneg %p102
      %p235 = pneg %p99
      %p236 = pneg %p128
      %p237 = pneg %p125
      %p238 = scmp.lt.s32.totalorder %s18, 1
      %s239 = scalar_select %p238, %s18, 1
      %s240 = smul.addr %s239, 32
      %s241 = smul.addr %s240, 8
      %s242 = scalar_lea.vmem %s4, %s241
      %p243 = pneg %p154
      %p244 = pneg %p151
      %p245 = scmp.lt.s32.totalorder %s18, 1
      %s246 = scalar_select %p245, %s18, 1
      %s247 = scalar_lea.vmem %s5, %s246
      %p248 = pneg %p180
      %p249 = pneg %p177
      %p250 = scmp.lt.s32.totalorder %s18, 1
      %s251 = scalar_select %p250, %s18, 1
      %s252 = scalar_lea.vmem %s6, %s251
      %p253 = scmp.lt.s32.totalorder %s18, 1
      %s254 = scalar_select %p253, %s18, 1
      %s255 = smul.addr %s254, 32
      %s256 = smul.addr %s255, 8
      %s257 = scalar_lea.vmem %s0, %s256
      %p258 = scmp.lt.s32.totalorder %s18, 1
      %s259 = scalar_select %p258, %s18, 1
      %s260 = smul.addr %s259, 32
      %s261 = smul.addr %s260, 8
      %s262 = scalar_lea.vmem %s4, %s261
      %p263 = scmp.lt.s32.totalorder %s18, 1
      %s264 = scalar_select %p263, %s18, 1
      %s265 = scalar_lea.vmem %s5, %s264
      %p266 = scmp.lt.s32.totalorder %s18, 1
      %s267 = scalar_select %p266, %s18, 1
      %s268 = scalar_lea.vmem %s6, %s267
      %v272 = vld [vmem:[%s257] sm:$0xff]
      %v273 = vld [vmem:[%s257 + $0x8] sm:$0xff]
      %v274 = vld [vmem:[%s257 + $0x10] sm:$0xff]
      %v275 = vld [vmem:[%s257 + $0x18] sm:$0xff]
      %v276 = vld [vmem:[%s257 + $0x20] sm:$0xff]
      %v277 = vld [vmem:[%s257 + $0x28] sm:$0xff]
      %v278 = vld [vmem:[%s257 + $0x30] sm:$0xff]
      %v279 = vld [vmem:[%s257 + $0x38] sm:$0xff]
      %v280 = vld [vmem:[%s257 + $0x40] sm:$0xff]
      %v281 = vld [vmem:[%s257 + $0x48] sm:$0xff]
      %v282 = vld [vmem:[%s257 + $0x50] sm:$0xff]
      %v283 = vld [vmem:[%s257 + $0x58] sm:$0xff]
      %v284 = vld [vmem:[%s257 + $0x60] sm:$0xff]
      %v285 = vld [vmem:[%s257 + $0x68] sm:$0xff]
      %v286 = vld [vmem:[%s257 + $0x70] sm:$0xff]
      %v287 = vld [vmem:[%s257 + $0x78] sm:$0xff]
      %v288 = vld [vmem:[%s257 + $0x80] sm:$0xff]
      %v289 = vld [vmem:[%s257 + $0x88] sm:$0xff]
      %v290 = vld [vmem:[%s257 + $0x90] sm:$0xff]
      %v291 = vld [vmem:[%s257 + $0x98] sm:$0xff]
      %v292 = vld [vmem:[%s257 + $0xa0] sm:$0xff]
      %v293 = vld [vmem:[%s257 + $0xa8] sm:$0xff]
      %v294 = vld [vmem:[%s257 + $0xb0] sm:$0xff]
      %v295 = vld [vmem:[%s257 + $0xb8] sm:$0xff]
      %v296 = vld [vmem:[%s257 + $0xc0] sm:$0xff]
      %v297 = vld [vmem:[%s257 + $0xc8] sm:$0xff]
      %v298 = vld [vmem:[%s257 + $0xd0] sm:$0xff]
      %v299 = vld [vmem:[%s257 + $0xd8] sm:$0xff]
      %v300 = vld [vmem:[%s257 + $0xe0] sm:$0xff]
      %v301 = vld [vmem:[%s257 + $0xe8] sm:$0xff]
      %v302 = vld [vmem:[%s257 + $0xf0] sm:$0xff]
      %v303 = vld [vmem:[%s257 + $0xf8] sm:$0xff]
      %v304 = vld [vmem:[%s1] sm:$0x1]
      %v306 = vlaneseq
      %v307 = vshrl.u32 %v306, 7
      %v308 = vsub.s32 0, %v307
      %v309 = vrot.slane %v304, %v308
      %v311 = vmul.f32 %v272, %v309
      %v312 = vmul.f32 %v273, %v309
      %v313 = vmul.f32 %v274, %v309
      %v314 = vmul.f32 %v275, %v309
      %v315 = vmul.f32 %v276, %v309
      %v316 = vmul.f32 %v277, %v309
      %v317 = vmul.f32 %v278, %v309
      %v318 = vmul.f32 %v279, %v309
      %v319 = vmul.f32 %v280, %v309
      %v320 = vmul.f32 %v281, %v309
      %v321 = vmul.f32 %v282, %v309
      %v322 = vmul.f32 %v283, %v309
      %v323 = vmul.f32 %v284, %v309
      %v324 = vmul.f32 %v285, %v309
      %v325 = vmul.f32 %v286, %v309
      %v326 = vmul.f32 %v287, %v309
      %v327 = vmul.f32 %v288, %v309
      %v328 = vmul.f32 %v289, %v309
      %v329 = vmul.f32 %v290, %v309
      %v330 = vmul.f32 %v291, %v309
      %v331 = vmul.f32 %v292, %v309
      %v332 = vmul.f32 %v293, %v309
      %v333 = vmul.f32 %v294, %v309
      %v334 = vmul.f32 %v295, %v309
      %v335 = vmul.f32 %v296, %v309
      %v336 = vmul.f32 %v297, %v309
      %v337 = vmul.f32 %v298, %v309
      %v338 = vmul.f32 %v299, %v309
      %v339 = vmul.f32 %v300, %v309
      %v340 = vmul.f32 %v301, %v309
      %v341 = vmul.f32 %v302, %v309
      %v342 = vmul.f32 %v303, %v309
      %v343 = vld [vmem:[%s2] sm:$0x1]
      %v345 = vlaneseq
      %v346 = vshrl.u32 %v345, 7
      %v347 = vsub.s32 0, %v346
      %v348 = vrot.slane %v343, %v347
      %v350 = vadd.f32 %v311, %v348
      %v351 = vadd.f32 %v312, %v348
      %v352 = vadd.f32 %v313, %v348
      %v353 = vadd.f32 %v314, %v348
      %v354 = vadd.f32 %v315, %v348
      %v355 = vadd.f32 %v316, %v348
      %v356 = vadd.f32 %v317, %v348
      %v357 = vadd.f32 %v318, %v348
      %v358 = vadd.f32 %v319, %v348
      %v359 = vadd.f32 %v320, %v348
      %v360 = vadd.f32 %v321, %v348
      %v361 = vadd.f32 %v322, %v348
      %v362 = vadd.f32 %v323, %v348
      %v363 = vadd.f32 %v324, %v348
      %v364 = vadd.f32 %v325, %v348
      %v365 = vadd.f32 %v326, %v348
      %v366 = vadd.f32 %v327, %v348
      %v367 = vadd.f32 %v328, %v348
      %v368 = vadd.f32 %v329, %v348
      %v369 = vadd.f32 %v330, %v348
      %v370 = vadd.f32 %v331, %v348
      %v371 = vadd.f32 %v332, %v348
      %v372 = vadd.f32 %v333, %v348
      %v373 = vadd.f32 %v334, %v348
      %v374 = vadd.f32 %v335, %v348
      %v375 = vadd.f32 %v336, %v348
      %v376 = vadd.f32 %v337, %v348
      %v377 = vadd.f32 %v338, %v348
      %v378 = vadd.f32 %v339, %v348
      %v379 = vadd.f32 %v340, %v348
      %v380 = vadd.f32 %v341, %v348
      %v381 = vadd.f32 %v342, %v348
      %v382 = vmax.f32 %v350, 0.0
      %v383 = vmax.f32 %v351, 0.0
      %v384 = vmax.f32 %v352, 0.0
      %v385 = vmax.f32 %v353, 0.0
      %v386 = vmax.f32 %v354, 0.0
      %v387 = vmax.f32 %v355, 0.0
      %v388 = vmax.f32 %v356, 0.0
      %v389 = vmax.f32 %v357, 0.0
      %v390 = vmax.f32 %v358, 0.0
      %v391 = vmax.f32 %v359, 0.0
      %v392 = vmax.f32 %v360, 0.0
      %v393 = vmax.f32 %v361, 0.0
      %v394 = vmax.f32 %v362, 0.0
      %v395 = vmax.f32 %v363, 0.0
      %v396 = vmax.f32 %v364, 0.0
      %v397 = vmax.f32 %v365, 0.0
      %v398 = vmax.f32 %v366, 0.0
      %v399 = vmax.f32 %v367, 0.0
      %v400 = vmax.f32 %v368, 0.0
      %v401 = vmax.f32 %v369, 0.0
      %v402 = vmax.f32 %v370, 0.0
      %v403 = vmax.f32 %v371, 0.0
      %v404 = vmax.f32 %v372, 0.0
      %v405 = vmax.f32 %v373, 0.0
      %v406 = vmax.f32 %v374, 0.0
      %v407 = vmax.f32 %v375, 0.0
      %v408 = vmax.f32 %v376, 0.0
      %v409 = vmax.f32 %v377, 0.0
      %v410 = vmax.f32 %v378, 0.0
      %v411 = vmax.f32 %v379, 0.0
      %v412 = vmax.f32 %v380, 0.0
      %v413 = vmax.f32 %v381, 0.0
      %v414 = vpack.c.bf16 %v383, %v382
      %v415 = vpack.c.bf16 %v385, %v384
      %v416 = vpack.c.bf16 %v387, %v386
      %v417 = vpack.c.bf16 %v389, %v388
      %v418 = vpack.c.bf16 %v391, %v390
      %v419 = vpack.c.bf16 %v393, %v392
      %v420 = vpack.c.bf16 %v395, %v394
      %v421 = vpack.c.bf16 %v397, %v396
      %v422 = vpack.c.bf16 %v399, %v398
      %v423 = vpack.c.bf16 %v401, %v400
      %v424 = vpack.c.bf16 %v403, %v402
      %v425 = vpack.c.bf16 %v405, %v404
      %v426 = vpack.c.bf16 %v407, %v406
      %v427 = vpack.c.bf16 %v409, %v408
      %v428 = vpack.c.bf16 %v411, %v410
      %v429 = vpack.c.bf16 %v413, %v412
      %v430 = vlaneseq
      %v431 = vshrl.u32 %v430, 7
      %v432 = vadd.s32 %v431, 32
      %v433 = vadd.s32 %v431, 40
      %v434 = vadd.s32 %v431, 48
      %v435 = vadd.s32 %v431, 56
      %v436 = vadd.s32 %v431, 64
      %v437 = vadd.s32 %v431, 72
      %v438 = vadd.s32 %v431, 80
      %v439 = vadd.s32 %v431, 88
      %v440 = vadd.s32 %v431, 96
      %v441 = vadd.s32 %v431, 104
      %v442 = vadd.s32 %v431, 112
      %v443 = vadd.s32 %v431, 120
      %v444 = vadd.s32 %v431, 128
      %v445 = vadd.s32 %v431, 136
      %v446 = vadd.s32 %v431, 144
      %v447 = vadd.s32 %v431, 152
      %v448 = vadd.s32 %v431, 160
      %v449 = vadd.s32 %v431, 168
      %v450 = vadd.s32 %v431, 176
      %v451 = vadd.s32 %v431, 184
      %v452 = vadd.s32 %v431, 192
      %v453 = vadd.s32 %v431, 200
      %v454 = vadd.s32 %v431, 208
      %v455 = vadd.s32 %v431, 216
      %v456 = vadd.s32 %v431, 224
      %v457 = vadd.s32 %v431, 232
      %v458 = vadd.s32 %v431, 240
      %v459 = vadd.s32 %v431, 248
      %v460 = vadd.s32 %v431, 256
      %v461 = vadd.s32 %v431, 264
      %v462 = vadd.s32 %v431, 272
      %v463 = vadd.s32 %v431, 280
      %vm464 = vcmp.lt.s32.totalorder %v432, 0
      %v465 = vsub.s32 0, %v432
      %v466 = vsel %vm464, %v465, %v432
      %v467 = vshrl.u32 %v466, 4
      %v468 = vand.u32 %v466, 15
      %v469 = vsub.s32 0, %v468
      %v470 = vsel %vm464, %v469, %v468
      %vm471 = vcmp.lt.s32.totalorder %v433, 0
      %v472 = vsub.s32 0, %v433
      %v473 = vsel %vm471, %v472, %v433
      %v474 = vshrl.u32 %v473, 4
      %v475 = vand.u32 %v473, 15
      %v476 = vsub.s32 0, %v475
      %v477 = vsel %vm471, %v476, %v475
      %vm478 = vcmp.lt.s32.totalorder %v434, 0
      %v479 = vsub.s32 0, %v434
      %v480 = vsel %vm478, %v479, %v434
      %v481 = vshrl.u32 %v480, 4
      %v482 = vand.u32 %v480, 15
      %v483 = vsub.s32 0, %v482
      %v484 = vsel %vm478, %v483, %v482
      %vm485 = vcmp.lt.s32.totalorder %v435, 0
      %v486 = vsub.s32 0, %v435
      %v487 = vsel %vm485, %v486, %v435
      %v488 = vshrl.u32 %v487, 4
      %v489 = vand.u32 %v487, 15
      %v490 = vsub.s32 0, %v489
      %v491 = vsel %vm485, %v490, %v489
      %vm492 = vcmp.lt.s32.totalorder %v436, 0
      %v493 = vsub.s32 0, %v436
      %v494 = vsel %vm492, %v493, %v436
      %v495 = vshrl.u32 %v494, 4
      %v496 = vand.u32 %v494, 15
      %v497 = vsub.s32 0, %v496
      %v498 = vsel %vm492, %v497, %v496
      %vm499 = vcmp.lt.s32.totalorder %v437, 0
      %v500 = vsub.s32 0, %v437
      %v501 = vsel %vm499, %v500, %v437
      %v502 = vshrl.u32 %v501, 4
      %v503 = vand.u32 %v501, 15
      %v504 = vsub.s32 0, %v503
      %v505 = vsel %vm499, %v504, %v503
      %vm506 = vcmp.lt.s32.totalorder %v438, 0
      %v507 = vsub.s32 0, %v438
      %v508 = vsel %vm506, %v507, %v438
      %v509 = vshrl.u32 %v508, 4
      %v510 = vand.u32 %v508, 15
      %v511 = vsub.s32 0, %v510
      %v512 = vsel %vm506, %v511, %v510
      %vm513 = vcmp.lt.s32.totalorder %v439, 0
      %v514 = vsub.s32 0, %v439
      %v515 = vsel %vm513, %v514, %v439
      %v516 = vshrl.u32 %v515, 4
      %v517 = vand.u32 %v515, 15
      %v518 = vsub.s32 0, %v517
      %v519 = vsel %vm513, %v518, %v517
      %vm520 = vcmp.lt.s32.totalorder %v440, 0
      %v521 = vsub.s32 0, %v440
      %v522 = vsel %vm520, %v521, %v440
      %v523 = vshrl.u32 %v522, 4
      %v524 = vand.u32 %v522, 15
      %v525 = vsub.s32 0, %v524
      %v526 = vsel %vm520, %v525, %v524
      %vm527 = vcmp.lt.s32.totalorder %v441, 0
      %v528 = vsub.s32 0, %v441
      %v529 = vsel %vm527, %v528, %v441
      %v530 = vshrl.u32 %v529, 4
      %v531 = vand.u32 %v529, 15
      %v532 = vsub.s32 0, %v531
      %v533 = vsel %vm527, %v532, %v531
      %vm534 = vcmp.lt.s32.totalorder %v442, 0
      %v535 = vsub.s32 0, %v442
      %v536 = vsel %vm534, %v535, %v442
      %v537 = vshrl.u32 %v536, 4
      %v538 = vand.u32 %v536, 15
      %v539 = vsub.s32 0, %v538
      %v540 = vsel %vm534, %v539, %v538
      %vm541 = vcmp.lt.s32.totalorder %v443, 0
      %v542 = vsub.s32 0, %v443
      %v543 = vsel %vm541, %v542, %v443
      %v544 = vshrl.u32 %v543, 4
      %v545 = vand.u32 %v543, 15
      %v546 = vsub.s32 0, %v545
      %v547 = vsel %vm541, %v546, %v545
      %vm548 = vcmp.lt.s32.totalorder %v444, 0
      %v549 = vsub.s32 0, %v444
      %v550 = vsel %vm548, %v549, %v444
      %v551 = vshrl.u32 %v550, 4
      %v552 = vand.u32 %v550, 15
      %v553 = vsub.s32 0, %v552
      %v554 = vsel %vm548, %v553, %v552
      %vm555 = vcmp.lt.s32.totalorder %v445, 0
      %v556 = vsub.s32 0, %v445
      %v557 = vsel %vm555, %v556, %v445
      %v558 = vshrl.u32 %v557, 4
      %v559 = vand.u32 %v557, 15
      %v560 = vsub.s32 0, %v559
      %v561 = vsel %vm555, %v560, %v559
      %vm562 = vcmp.lt.s32.totalorder %v446, 0
      %v563 = vsub.s32 0, %v446
      %v564 = vsel %vm562, %v563, %v446
      %v565 = vshrl.u32 %v564, 4
      %v566 = vand.u32 %v564, 15
      %v567 = vsub.s32 0, %v566
      %v568 = vsel %vm562, %v567, %v566
      %vm569 = vcmp.lt.s32.totalorder %v447, 0
      %v570 = vsub.s32 0, %v447
      %v571 = vsel %vm569, %v570, %v447
      %v572 = vshrl.u32 %v571, 4
      %v573 = vand.u32 %v571, 15
      %v574 = vsub.s32 0, %v573
      %v575 = vsel %vm569, %v574, %v573
      %vm576 = vcmp.lt.s32.totalorder %v448, 0
      %v577 = vsub.s32 0, %v448
      %v578 = vsel %vm576, %v577, %v448
      %v579 = vshrl.u32 %v578, 4
      %v580 = vand.u32 %v578, 15
      %v581 = vsub.s32 0, %v580
      %v582 = vsel %vm576, %v581, %v580
      %vm583 = vcmp.lt.s32.totalorder %v449, 0
      %v584 = vsub.s32 0, %v449
      %v585 = vsel %vm583, %v584, %v449
      %v586 = vshrl.u32 %v585, 4
      %v587 = vand.u32 %v585, 15
      %v588 = vsub.s32 0, %v587
      %v589 = vsel %vm583, %v588, %v587
      %vm590 = vcmp.lt.s32.totalorder %v450, 0
      %v591 = vsub.s32 0, %v450
      %v592 = vsel %vm590, %v591, %v450
      %v593 = vshrl.u32 %v592, 4
      %v594 = vand.u32 %v592, 15
      %v595 = vsub.s32 0, %v594
      %v596 = vsel %vm590, %v595, %v594
      %vm597 = vcmp.lt.s32.totalorder %v451, 0
      %v598 = vsub.s32 0, %v451
      %v599 = vsel %vm597, %v598, %v451
      %v600 = vshrl.u32 %v599, 4
      %v601 = vand.u32 %v599, 15
      %v602 = vsub.s32 0, %v601
      %v603 = vsel %vm597, %v602, %v601
      %vm604 = vcmp.lt.s32.totalorder %v452, 0
      %v605 = vsub.s32 0, %v452
      %v606 = vsel %vm604, %v605, %v452
      %v607 = vshrl.u32 %v606, 4
      %v608 = vand.u32 %v606, 15
      %v609 = vsub.s32 0, %v608
      %v610 = vsel %vm604, %v609, %v608
      %vm611 = vcmp.lt.s32.totalorder %v453, 0
      %v612 = vsub.s32 0, %v453
      %v613 = vsel %vm611, %v612, %v453
      %v614 = vshrl.u32 %v613, 4
      %v615 = vand.u32 %v613, 15
      %v616 = vsub.s32 0, %v615
      %v617 = vsel %vm611, %v616, %v615
      %vm618 = vcmp.lt.s32.totalorder %v454, 0
      %v619 = vsub.s32 0, %v454
      %v620 = vsel %vm618, %v619, %v454
      %v621 = vshrl.u32 %v620, 4
      %v622 = vand.u32 %v620, 15
      %v623 = vsub.s32 0, %v622
      %v624 = vsel %vm618, %v623, %v622
      %vm625 = vcmp.lt.s32.totalorder %v455, 0
      %v626 = vsub.s32 0, %v455
      %v627 = vsel %vm625, %v626, %v455
      %v628 = vshrl.u32 %v627, 4
      %v629 = vand.u32 %v627, 15
      %v630 = vsub.s32 0, %v629
      %v631 = vsel %vm625, %v630, %v629
      %vm632 = vcmp.lt.s32.totalorder %v456, 0
      %v633 = vsub.s32 0, %v456
      %v634 = vsel %vm632, %v633, %v456
      %v635 = vshrl.u32 %v634, 4
      %v636 = vand.u32 %v634, 15
      %v637 = vsub.s32 0, %v636
      %v638 = vsel %vm632, %v637, %v636
      %vm639 = vcmp.lt.s32.totalorder %v457, 0
      %v640 = vsub.s32 0, %v457
      %v641 = vsel %vm639, %v640, %v457
      %v642 = vshrl.u32 %v641, 4
      %v643 = vand.u32 %v641, 15
      %v644 = vsub.s32 0, %v643
      %v645 = vsel %vm639, %v644, %v643
      %vm646 = vcmp.lt.s32.totalorder %v458, 0
      %v647 = vsub.s32 0, %v458
      %v648 = vsel %vm646, %v647, %v458
      %v649 = vshrl.u32 %v648, 4
      %v650 = vand.u32 %v648, 15
      %v651 = vsub.s32 0, %v650
      %v652 = vsel %vm646, %v651, %v650
      %vm653 = vcmp.lt.s32.totalorder %v459, 0
      %v654 = vsub.s32 0, %v459
      %v655 = vsel %vm653, %v654, %v459
      %v656 = vshrl.u32 %v655, 4
      %v657 = vand.u32 %v655, 15
      %v658 = vsub.s32 0, %v657
      %v659 = vsel %vm653, %v658, %v657
      %vm660 = vcmp.lt.s32.totalorder %v460, 0
      %v661 = vsub.s32 0, %v460
      %v662 = vsel %vm660, %v661, %v460
      %v663 = vshrl.u32 %v662, 4
      %v664 = vand.u32 %v662, 15
      %v665 = vsub.s32 0, %v664
      %v666 = vsel %vm660, %v665, %v664
      %vm667 = vcmp.lt.s32.totalorder %v461, 0
      %v668 = vsub.s32 0, %v461
      %v669 = vsel %vm667, %v668, %v461
      %v670 = vshrl.u32 %v669, 4
      %v671 = vand.u32 %v669, 15
      %v672 = vsub.s32 0, %v671
      %v673 = vsel %vm667, %v672, %v671
      %vm674 = vcmp.lt.s32.totalorder %v462, 0
      %v675 = vsub.s32 0, %v462
      %v676 = vsel %vm674, %v675, %v462
      %v677 = vshrl.u32 %v676, 4
      %v678 = vand.u32 %v676, 15
      %v679 = vsub.s32 0, %v678
      %v680 = vsel %vm674, %v679, %v678
      %vm681 = vcmp.lt.s32.totalorder %v463, 0
      %v682 = vsub.s32 0, %v463
      %v683 = vsel %vm681, %v682, %v463
      %v684 = vshrl.u32 %v683, 4
      %v685 = vand.u32 %v683, 15
      %v686 = vsub.s32 0, %v685
      %v687 = vsel %vm681, %v686, %v685
      %vm688 = vcmp.ne.s32.totalorder %v470, 0
      %vm689 = vcmp.ne.s32.totalorder %v477, 0
      %vm690 = vcmp.ne.s32.totalorder %v484, 0
      %vm691 = vcmp.ne.s32.totalorder %v491, 0
      %vm692 = vcmp.ne.s32.totalorder %v498, 0
      %vm693 = vcmp.ne.s32.totalorder %v505, 0
      %vm694 = vcmp.ne.s32.totalorder %v512, 0
      %vm695 = vcmp.ne.s32.totalorder %v519, 0
      %vm696 = vcmp.ne.s32.totalorder %v526, 0
      %vm697 = vcmp.ne.s32.totalorder %v533, 0
      %vm698 = vcmp.ne.s32.totalorder %v540, 0
      %vm699 = vcmp.ne.s32.totalorder %v547, 0
      %vm700 = vcmp.ne.s32.totalorder %v554, 0
      %vm701 = vcmp.ne.s32.totalorder %v561, 0
      %vm702 = vcmp.ne.s32.totalorder %v568, 0
      %vm703 = vcmp.ne.s32.totalorder %v575, 0
      %vm704 = vcmp.ne.s32.totalorder %v582, 0
      %vm705 = vcmp.ne.s32.totalorder %v589, 0
      %vm706 = vcmp.ne.s32.totalorder %v596, 0
      %vm707 = vcmp.ne.s32.totalorder %v603, 0
      %vm708 = vcmp.ne.s32.totalorder %v610, 0
      %vm709 = vcmp.ne.s32.totalorder %v617, 0
      %vm710 = vcmp.ne.s32.totalorder %v624, 0
      %vm711 = vcmp.ne.s32.totalorder %v631, 0
      %vm712 = vcmp.ne.s32.totalorder %v638, 0
      %vm713 = vcmp.ne.s32.totalorder %v645, 0
      %vm714 = vcmp.ne.s32.totalorder %v652, 0
      %vm715 = vcmp.ne.s32.totalorder %v659, 0
      %vm716 = vcmp.ne.s32.totalorder %v666, 0
      %vm717 = vcmp.ne.s32.totalorder %v673, 0
      %vm718 = vcmp.ne.s32.totalorder %v680, 0
      %vm719 = vcmp.ne.s32.totalorder %v687, 0
      %vm720 = vcmp.lt.s32.totalorder %v470, 0
      %vm721 = vcmp.lt.s32.totalorder %v477, 0
      %vm722 = vcmp.lt.s32.totalorder %v484, 0
      %vm723 = vcmp.lt.s32.totalorder %v491, 0
      %vm724 = vcmp.lt.s32.totalorder %v498, 0
      %vm725 = vcmp.lt.s32.totalorder %v505, 0
      %vm726 = vcmp.lt.s32.totalorder %v512, 0
      %vm727 = vcmp.lt.s32.totalorder %v519, 0
      %vm728 = vcmp.lt.s32.totalorder %v526, 0
      %vm729 = vcmp.lt.s32.totalorder %v533, 0
      %vm730 = vcmp.lt.s32.totalorder %v540, 0
      %vm731 = vcmp.lt.s32.totalorder %v547, 0
      %vm732 = vcmp.lt.s32.totalorder %v554, 0
      %vm733 = vcmp.lt.s32.totalorder %v561, 0
      %vm734 = vcmp.lt.s32.totalorder %v568, 0
      %vm735 = vcmp.lt.s32.totalorder %v575, 0
      %vm736 = vcmp.lt.s32.totalorder %v582, 0
      %vm737 = vcmp.lt.s32.totalorder %v589, 0
      %vm738 = vcmp.lt.s32.totalorder %v596, 0
      %vm739 = vcmp.lt.s32.totalorder %v603, 0
      %vm740 = vcmp.lt.s32.totalorder %v610, 0
      %vm741 = vcmp.lt.s32.totalorder %v617, 0
      %vm742 = vcmp.lt.s32.totalorder %v624, 0
      %vm743 = vcmp.lt.s32.totalorder %v631, 0
      %vm744 = vcmp.lt.s32.totalorder %v638, 0
      %vm745 = vcmp.lt.s32.totalorder %v645, 0
      %vm746 = vcmp.lt.s32.totalorder %v652, 0
      %vm747 = vcmp.lt.s32.totalorder %v659, 0
      %vm748 = vcmp.lt.s32.totalorder %v666, 0
      %vm749 = vcmp.lt.s32.totalorder %v673, 0
      %vm750 = vcmp.lt.s32.totalorder %v680, 0
      %vm751 = vcmp.lt.s32.totalorder %v687, 0
      %vm752 = vmand %vm720, %vm688
      %vm753 = vmand %vm721, %vm689
      %vm754 = vmand %vm722, %vm690
      %vm755 = vmand %vm723, %vm691
      %vm756 = vmand %vm724, %vm692
      %vm757 = vmand %vm725, %vm693
      %vm758 = vmand %vm726, %vm694
      %vm759 = vmand %vm727, %vm695
      %vm760 = vmand %vm728, %vm696
      %vm761 = vmand %vm729, %vm697
      %vm762 = vmand %vm730, %vm698
      %vm763 = vmand %vm731, %vm699
      %vm764 = vmand %vm732, %vm700
      %vm765 = vmand %vm733, %vm701
      %vm766 = vmand %vm734, %vm702
      %vm767 = vmand %vm735, %vm703
      %vm768 = vmand %vm736, %vm704
      %vm769 = vmand %vm737, %vm705
      %vm770 = vmand %vm738, %vm706
      %vm771 = vmand %vm739, %vm707
      %vm772 = vmand %vm740, %vm708
      %vm773 = vmand %vm741, %vm709
      %vm774 = vmand %vm742, %vm710
      %vm775 = vmand %vm743, %vm711
      %vm776 = vmand %vm744, %vm712
      %vm777 = vmand %vm745, %vm713
      %vm778 = vmand %vm746, %vm714
      %vm779 = vmand %vm747, %vm715
      %vm780 = vmand %vm748, %vm716
      %vm781 = vmand %vm749, %vm717
      %vm782 = vmand %vm750, %vm718
      %vm783 = vmand %vm751, %vm719
      %v784 = vadd.s32 %v470, 16
      %v785 = vadd.s32 %v477, 16
      %v786 = vadd.s32 %v484, 16
      %v787 = vadd.s32 %v491, 16
      %v788 = vadd.s32 %v498, 16
      %v789 = vadd.s32 %v505, 16
      %v790 = vadd.s32 %v512, 16
      %v791 = vadd.s32 %v519, 16
      %v792 = vadd.s32 %v526, 16
      %v793 = vadd.s32 %v533, 16
      %v794 = vadd.s32 %v540, 16
      %v795 = vadd.s32 %v547, 16
      %v796 = vadd.s32 %v554, 16
      %v797 = vadd.s32 %v561, 16
      %v798 = vadd.s32 %v568, 16
      %v799 = vadd.s32 %v575, 16
      %v800 = vadd.s32 %v582, 16
      %v801 = vadd.s32 %v589, 16
      %v802 = vadd.s32 %v596, 16
      %v803 = vadd.s32 %v603, 16
      %v804 = vadd.s32 %v610, 16
      %v805 = vadd.s32 %v617, 16
      %v806 = vadd.s32 %v624, 16
      %v807 = vadd.s32 %v631, 16
      %v808 = vadd.s32 %v638, 16
      %v809 = vadd.s32 %v645, 16
      %v810 = vadd.s32 %v652, 16
      %v811 = vadd.s32 %v659, 16
      %v812 = vadd.s32 %v666, 16
      %v813 = vadd.s32 %v673, 16
      %v814 = vadd.s32 %v680, 16
      %v815 = vadd.s32 %v687, 16
      %v816 = vsel %vm752, %v784, %v470
      %v817 = vsel %vm753, %v785, %v477
      %v818 = vsel %vm754, %v786, %v484
      %v819 = vsel %vm755, %v787, %v491
      %v820 = vsel %vm756, %v788, %v498
      %v821 = vsel %vm757, %v789, %v505
      %v822 = vsel %vm758, %v790, %v512
      %v823 = vsel %vm759, %v791, %v519
      %v824 = vsel %vm760, %v792, %v526
      %v825 = vsel %vm761, %v793, %v533
      %v826 = vsel %vm762, %v794, %v540
      %v827 = vsel %vm763, %v795, %v547
      %v828 = vsel %vm764, %v796, %v554
      %v829 = vsel %vm765, %v797, %v561
      %v830 = vsel %vm766, %v798, %v568
      %v831 = vsel %vm767, %v799, %v575
      %v832 = vsel %vm768, %v800, %v582
      %v833 = vsel %vm769, %v801, %v589
      %v834 = vsel %vm770, %v802, %v596
      %v835 = vsel %vm771, %v803, %v603
      %v836 = vsel %vm772, %v804, %v610
      %v837 = vsel %vm773, %v805, %v617
      %v838 = vsel %vm774, %v806, %v624
      %v839 = vsel %vm775, %v807, %v631
      %v840 = vsel %vm776, %v808, %v638
      %v841 = vsel %vm777, %v809, %v645
      %v842 = vsel %vm778, %v810, %v652
      %v843 = vsel %vm779, %v811, %v659
      %v844 = vsel %vm780, %v812, %v666
      %v845 = vsel %vm781, %v813, %v673
      %v846 = vsel %vm782, %v814, %v680
      %v847 = vsel %vm783, %v815, %v687
      %vm848 = vcmp.eq.s32.totalorder %v816, 15
      %vm849 = vcmp.eq.s32.totalorder %v817, 15
      %vm850 = vcmp.eq.s32.totalorder %v818, 15
      %vm851 = vcmp.eq.s32.totalorder %v819, 15
      %vm852 = vcmp.eq.s32.totalorder %v820, 15
      %vm853 = vcmp.eq.s32.totalorder %v821, 15
      %vm854 = vcmp.eq.s32.totalorder %v822, 15
      %vm855 = vcmp.eq.s32.totalorder %v823, 15
      %vm856 = vcmp.eq.s32.totalorder %v824, 15
      %vm857 = vcmp.eq.s32.totalorder %v825, 15
      %vm858 = vcmp.eq.s32.totalorder %v826, 15
      %vm859 = vcmp.eq.s32.totalorder %v827, 15
      %vm860 = vcmp.eq.s32.totalorder %v828, 15
      %vm861 = vcmp.eq.s32.totalorder %v829, 15
      %vm862 = vcmp.eq.s32.totalorder %v830, 15
      %vm863 = vcmp.eq.s32.totalorder %v831, 15
      %vm864 = vcmp.eq.s32.totalorder %v832, 15
      %vm865 = vcmp.eq.s32.totalorder %v833, 15
      %vm866 = vcmp.eq.s32.totalorder %v834, 15
      %vm867 = vcmp.eq.s32.totalorder %v835, 15
      %vm868 = vcmp.eq.s32.totalorder %v836, 15
      %vm869 = vcmp.eq.s32.totalorder %v837, 15
      %vm870 = vcmp.eq.s32.totalorder %v838, 15
      %vm871 = vcmp.eq.s32.totalorder %v839, 15
      %vm872 = vcmp.eq.s32.totalorder %v840, 15
      %vm873 = vcmp.eq.s32.totalorder %v841, 15
      %vm874 = vcmp.eq.s32.totalorder %v842, 15
      %vm875 = vcmp.eq.s32.totalorder %v843, 15
      %vm876 = vcmp.eq.s32.totalorder %v844, 15
      %vm877 = vcmp.eq.s32.totalorder %v845, 15
      %vm878 = vcmp.eq.s32.totalorder %v846, 15
      %vm879 = vcmp.eq.s32.totalorder %v847, 15
      %v880 = vsel %vm848, 1, 0
      %v881 = vsel %vm849, 1, 0
      %v882 = vsel %vm850, 1, 0
      %v883 = vsel %vm851, 1, 0
      %v884 = vsel %vm852, 1, 0
      %v885 = vsel %vm853, 1, 0
      %v886 = vsel %vm854, 1, 0
      %v887 = vsel %vm855, 1, 0
      %v888 = vsel %vm856, 1, 0
      %v889 = vsel %vm857, 1, 0
      %v890 = vsel %vm858, 1, 0
      %v891 = vsel %vm859, 1, 0
      %v892 = vsel %vm860, 1, 0
      %v893 = vsel %vm861, 1, 0
      %v894 = vsel %vm862, 1, 0
      %v895 = vsel %vm863, 1, 0
      %v896 = vsel %vm864, 1, 0
      %v897 = vsel %vm865, 1, 0
      %v898 = vsel %vm866, 1, 0
      %v899 = vsel %vm867, 1, 0
      %v900 = vsel %vm868, 1, 0
      %v901 = vsel %vm869, 1, 0
      %v902 = vsel %vm870, 1, 0
      %v903 = vsel %vm871, 1, 0
      %v904 = vsel %vm872, 1, 0
      %v905 = vsel %vm873, 1, 0
      %v906 = vsel %vm874, 1, 0
      %v907 = vsel %vm875, 1, 0
      %v908 = vsel %vm876, 1, 0
      %v909 = vsel %vm877, 1, 0
      %v910 = vsel %vm878, 1, 0
      %v911 = vsel %vm879, 1, 0
      %vm912 = vcmp.eq.s32.totalorder %v880, 1
      %vm913 = vcmp.eq.s32.totalorder %v881, 1
      %vm914 = vcmp.eq.s32.totalorder %v882, 1
      %vm915 = vcmp.eq.s32.totalorder %v883, 1
      %vm916 = vcmp.eq.s32.totalorder %v884, 1
      %vm917 = vcmp.eq.s32.totalorder %v885, 1
      %vm918 = vcmp.eq.s32.totalorder %v886, 1
      %vm919 = vcmp.eq.s32.totalorder %v887, 1
      %vm920 = vcmp.eq.s32.totalorder %v888, 1
      %vm921 = vcmp.eq.s32.totalorder %v889, 1
      %vm922 = vcmp.eq.s32.totalorder %v890, 1
      %vm923 = vcmp.eq.s32.totalorder %v891, 1
      %vm924 = vcmp.eq.s32.totalorder %v892, 1
      %vm925 = vcmp.eq.s32.totalorder %v893, 1
      %vm926 = vcmp.eq.s32.totalorder %v894, 1
      %vm927 = vcmp.eq.s32.totalorder %v895, 1
      %vm928 = vcmp.eq.s32.totalorder %v896, 1
      %vm929 = vcmp.eq.s32.totalorder %v897, 1
      %vm930 = vcmp.eq.s32.totalorder %v898, 1
      %vm931 = vcmp.eq.s32.totalorder %v899, 1
      %vm932 = vcmp.eq.s32.totalorder %v900, 1
      %vm933 = vcmp.eq.s32.totalorder %v901, 1
      %vm934 = vcmp.eq.s32.totalorder %v902, 1
      %vm935 = vcmp.eq.s32.totalorder %v903, 1
      %vm936 = vcmp.eq.s32.totalorder %v904, 1
      %vm937 = vcmp.eq.s32.totalorder %v905, 1
      %vm938 = vcmp.eq.s32.totalorder %v906, 1
      %vm939 = vcmp.eq.s32.totalorder %v907, 1
      %vm940 = vcmp.eq.s32.totalorder %v908, 1
      %vm941 = vcmp.eq.s32.totalorder %v909, 1
      %vm942 = vcmp.eq.s32.totalorder %v910, 1
      %vm943 = vcmp.eq.s32.totalorder %v911, 1
      %vm944 = vmpackc.low %vm912, %vm912
      %vm945 = vmpackc.low %vm913, %vm913
      %vm946 = vmpackc.low %vm914, %vm914
      %vm947 = vmpackc.low %vm915, %vm915
      %vm948 = vmpackc.low %vm916, %vm916
      %vm949 = vmpackc.low %vm917, %vm917
      %vm950 = vmpackc.low %vm918, %vm918
      %vm951 = vmpackc.low %vm919, %vm919
      %vm952 = vmpackc.low %vm920, %vm920
      %vm953 = vmpackc.low %vm921, %vm921
      %vm954 = vmpackc.low %vm922, %vm922
      %vm955 = vmpackc.low %vm923, %vm923
      %vm956 = vmpackc.low %vm924, %vm924
      %vm957 = vmpackc.low %vm925, %vm925
      %vm958 = vmpackc.low %vm926, %vm926
      %vm959 = vmpackc.low %vm927, %vm927
      %vm960 = vmpackc.low %vm928, %vm928
      %vm961 = vmpackc.low %vm929, %vm929
      %vm962 = vmpackc.low %vm930, %vm930
      %vm963 = vmpackc.low %vm931, %vm931
      %vm964 = vmpackc.low %vm932, %vm932
      %vm965 = vmpackc.low %vm933, %vm933
      %vm966 = vmpackc.low %vm934, %vm934
      %vm967 = vmpackc.low %vm935, %vm935
      %vm968 = vmpackc.low %vm936, %vm936
      %vm969 = vmpackc.low %vm937, %vm937
      %vm970 = vmpackc.low %vm938, %vm938
      %vm971 = vmpackc.low %vm939, %vm939
      %vm972 = vmpackc.low %vm940, %vm940
      %vm973 = vmpackc.low %vm941, %vm941
      %vm974 = vmpackc.low %vm942, %vm942
      %vm975 = vmpackc.low %vm943, %vm943
      %v976 = vsel %vm944, 65537, 0
      %v977 = vsel %vm945, 65537, 0
      %v978 = vsel %vm946, 65537, 0
      %v979 = vsel %vm947, 65537, 0
      %v980 = vsel %vm948, 65537, 0
      %v981 = vsel %vm949, 65537, 0
      %v982 = vsel %vm950, 65537, 0
      %v983 = vsel %vm951, 65537, 0
      %v984 = vsel %vm952, 65537, 0
      %v985 = vsel %vm953, 65537, 0
      %v986 = vsel %vm954, 65537, 0
      %v987 = vsel %vm955, 65537, 0
      %v988 = vsel %vm956, 65537, 0
      %v989 = vsel %vm957, 65537, 0
      %v990 = vsel %vm958, 65537, 0
      %v991 = vsel %vm959, 65537, 0
      %v992 = vsel %vm960, 65537, 0
      %v993 = vsel %vm961, 65537, 0
      %v994 = vsel %vm962, 65537, 0
      %v995 = vsel %vm963, 65537, 0
      %v996 = vsel %vm964, 65537, 0
      %v997 = vsel %vm965, 65537, 0
      %v998 = vsel %vm966, 65537, 0
      %v999 = vsel %vm967, 65537, 0
      %v1000 = vsel %vm968, 65537, 0
      %v1001 = vsel %vm969, 65537, 0
      %v1002 = vsel %vm970, 65537, 0
      %v1003 = vsel %vm971, 65537, 0
      %v1004 = vsel %vm972, 65537, 0
      %v1005 = vsel %vm973, 65537, 0
      %v1006 = vsel %vm974, 65537, 0
      %v1007 = vsel %vm975, 65537, 0
      %v1008 = vunpack.c.l.b16 %v976
      %v1009 = vunpack.c.l.b16 %v977
      %v1010 = vunpack.c.l.b16 %v978
      %v1011 = vunpack.c.l.b16 %v979
      %v1012 = vunpack.c.l.b16 %v980
      %v1013 = vunpack.c.l.b16 %v981
      %v1014 = vunpack.c.l.b16 %v982
      %v1015 = vunpack.c.l.b16 %v983
      %v1016 = vunpack.c.l.b16 %v984
      %v1017 = vunpack.c.l.b16 %v985
      %v1018 = vunpack.c.l.b16 %v986
      %v1019 = vunpack.c.l.b16 %v987
      %v1020 = vunpack.c.l.b16 %v988
      %v1021 = vunpack.c.l.b16 %v989
      %v1022 = vunpack.c.l.b16 %v990
      %v1023 = vunpack.c.l.b16 %v991
      %v1024 = vunpack.c.l.b16 %v992
      %v1025 = vunpack.c.l.b16 %v993
      %v1026 = vunpack.c.l.b16 %v994
      %v1027 = vunpack.c.l.b16 %v995
      %v1028 = vunpack.c.l.b16 %v996
      %v1029 = vunpack.c.l.b16 %v997
      %v1030 = vunpack.c.l.b16 %v998
      %v1031 = vunpack.c.l.b16 %v999
      %v1032 = vunpack.c.l.b16 %v1000
      %v1033 = vunpack.c.l.b16 %v1001
      %v1034 = vunpack.c.l.b16 %v1002
      %v1035 = vunpack.c.l.b16 %v1003
      %v1036 = vunpack.c.l.b16 %v1004
      %v1037 = vunpack.c.l.b16 %v1005
      %v1038 = vunpack.c.l.b16 %v1006
      %v1039 = vunpack.c.l.b16 %v1007
      %v1040 = vpack.c.b16 %v1009, %v1008
      %v1041 = vpack.c.b16 %v1011, %v1010
      %v1042 = vpack.c.b16 %v1013, %v1012
      %v1043 = vpack.c.b16 %v1015, %v1014
      %v1044 = vpack.c.b16 %v1017, %v1016
      %v1045 = vpack.c.b16 %v1019, %v1018
      %v1046 = vpack.c.b16 %v1021, %v1020
      %v1047 = vpack.c.b16 %v1023, %v1022
      %v1048 = vpack.c.b16 %v1025, %v1024
      %v1049 = vpack.c.b16 %v1027, %v1026
      %v1050 = vpack.c.b16 %v1029, %v1028
      %v1051 = vpack.c.b16 %v1031, %v1030
      %v1052 = vpack.c.b16 %v1033, %v1032
      %v1053 = vpack.c.b16 %v1035, %v1034
      %v1054 = vpack.c.b16 %v1037, %v1036
      %v1055 = vpack.c.b16 %v1039, %v1038
      %vm1056 = vcmp.ne.s16.totalorder %v1040, 0
      %vm1057 = vcmp.ne.s16.totalorder %v1041, 0
      %vm1058 = vcmp.ne.s16.totalorder %v1042, 0
      %vm1059 = vcmp.ne.s16.totalorder %v1043, 0
      %vm1060 = vcmp.ne.s16.totalorder %v1044, 0
      %vm1061 = vcmp.ne.s16.totalorder %v1045, 0
      %vm1062 = vcmp.ne.s16.totalorder %v1046, 0
      %vm1063 = vcmp.ne.s16.totalorder %v1047, 0
      %vm1064 = vcmp.ne.s16.totalorder %v1048, 0
      %vm1065 = vcmp.ne.s16.totalorder %v1049, 0
      %vm1066 = vcmp.ne.s16.totalorder %v1050, 0
      %vm1067 = vcmp.ne.s16.totalorder %v1051, 0
      %vm1068 = vcmp.ne.s16.totalorder %v1052, 0
      %vm1069 = vcmp.ne.s16.totalorder %v1053, 0
      %vm1070 = vcmp.ne.s16.totalorder %v1054, 0
      %vm1071 = vcmp.ne.s16.totalorder %v1055, 0
      %v1072 = vsel %vm1056, 0, %v414
      %v1073 = vsel %vm1057, 0, %v415
      %v1074 = vsel %vm1058, 0, %v416
      %v1075 = vsel %vm1059, 0, %v417
      %v1076 = vsel %vm1060, 0, %v418
      %v1077 = vsel %vm1061, 0, %v419
      %v1078 = vsel %vm1062, 0, %v420
      %v1079 = vsel %vm1063, 0, %v421
      %v1080 = vsel %vm1064, 0, %v422
      %v1081 = vsel %vm1065, 0, %v423
      %v1082 = vsel %vm1066, 0, %v424
      %v1083 = vsel %vm1067, 0, %v425
      %v1084 = vsel %vm1068, 0, %v426
      %v1085 = vsel %vm1069, 0, %v427
      %v1086 = vsel %vm1070, 0, %v428
      %v1087 = vsel %vm1071, 0, %v429
      %vm1088 = vcmp.eq.s32.totalorder %v816, 0
      %vm1089 = vcmp.eq.s32.totalorder %v817, 0
      %vm1090 = vcmp.eq.s32.totalorder %v818, 0
      %vm1091 = vcmp.eq.s32.totalorder %v819, 0
      %vm1092 = vcmp.eq.s32.totalorder %v820, 0
      %vm1093 = vcmp.eq.s32.totalorder %v821, 0
      %vm1094 = vcmp.eq.s32.totalorder %v822, 0
      %vm1095 = vcmp.eq.s32.totalorder %v823, 0
      %vm1096 = vcmp.eq.s32.totalorder %v824, 0
      %vm1097 = vcmp.eq.s32.totalorder %v825, 0
      %vm1098 = vcmp.eq.s32.totalorder %v826, 0
      %vm1099 = vcmp.eq.s32.totalorder %v827, 0
      %vm1100 = vcmp.eq.s32.totalorder %v828, 0
      %vm1101 = vcmp.eq.s32.totalorder %v829, 0
      %vm1102 = vcmp.eq.s32.totalorder %v830, 0
      %vm1103 = vcmp.eq.s32.totalorder %v831, 0
      %vm1104 = vcmp.eq.s32.totalorder %v832, 0
      %vm1105 = vcmp.eq.s32.totalorder %v833, 0
      %vm1106 = vcmp.eq.s32.totalorder %v834, 0
      %vm1107 = vcmp.eq.s32.totalorder %v835, 0
      %vm1108 = vcmp.eq.s32.totalorder %v836, 0
      %vm1109 = vcmp.eq.s32.totalorder %v837, 0
      %vm1110 = vcmp.eq.s32.totalorder %v838, 0
      %vm1111 = vcmp.eq.s32.totalorder %v839, 0
      %vm1112 = vcmp.eq.s32.totalorder %v840, 0
      %vm1113 = vcmp.eq.s32.totalorder %v841, 0
      %vm1114 = vcmp.eq.s32.totalorder %v842, 0
      %vm1115 = vcmp.eq.s32.totalorder %v843, 0
      %vm1116 = vcmp.eq.s32.totalorder %v844, 0
      %vm1117 = vcmp.eq.s32.totalorder %v845, 0
      %vm1118 = vcmp.eq.s32.totalorder %v846, 0
      %vm1119 = vcmp.eq.s32.totalorder %v847, 0
      %v1120 = vsel %vm1088, 1, 0
      %v1121 = vsel %vm1089, 1, 0
      %v1122 = vsel %vm1090, 1, 0
      %v1123 = vsel %vm1091, 1, 0
      %v1124 = vsel %vm1092, 1, 0
      %v1125 = vsel %vm1093, 1, 0
      %v1126 = vsel %vm1094, 1, 0
      %v1127 = vsel %vm1095, 1, 0
      %v1128 = vsel %vm1096, 1, 0
      %v1129 = vsel %vm1097, 1, 0
      %v1130 = vsel %vm1098, 1, 0
      %v1131 = vsel %vm1099, 1, 0
      %v1132 = vsel %vm1100, 1, 0
      %v1133 = vsel %vm1101, 1, 0
      %v1134 = vsel %vm1102, 1, 0
      %v1135 = vsel %vm1103, 1, 0
      %v1136 = vsel %vm1104, 1, 0
      %v1137 = vsel %vm1105, 1, 0
      %v1138 = vsel %vm1106, 1, 0
      %v1139 = vsel %vm1107, 1, 0
      %v1140 = vsel %vm1108, 1, 0
      %v1141 = vsel %vm1109, 1, 0
      %v1142 = vsel %vm1110, 1, 0
      %v1143 = vsel %vm1111, 1, 0
      %v1144 = vsel %vm1112, 1, 0
      %v1145 = vsel %vm1113, 1, 0
      %v1146 = vsel %vm1114, 1, 0
      %v1147 = vsel %vm1115, 1, 0
      %v1148 = vsel %vm1116, 1, 0
      %v1149 = vsel %vm1117, 1, 0
      %v1150 = vsel %vm1118, 1, 0
      %v1151 = vsel %vm1119, 1, 0
      %vm1152 = vcmp.eq.s32.totalorder %v1120, 1
      %vm1153 = vcmp.eq.s32.totalorder %v1121, 1
      %vm1154 = vcmp.eq.s32.totalorder %v1122, 1
      %vm1155 = vcmp.eq.s32.totalorder %v1123, 1
      %vm1156 = vcmp.eq.s32.totalorder %v1124, 1
      %vm1157 = vcmp.eq.s32.totalorder %v1125, 1
      %vm1158 = vcmp.eq.s32.totalorder %v1126, 1
      %vm1159 = vcmp.eq.s32.totalorder %v1127, 1
      %vm1160 = vcmp.eq.s32.totalorder %v1128, 1
      %vm1161 = vcmp.eq.s32.totalorder %v1129, 1
      %vm1162 = vcmp.eq.s32.totalorder %v1130, 1
      %vm1163 = vcmp.eq.s32.totalorder %v1131, 1
      %vm1164 = vcmp.eq.s32.totalorder %v1132, 1
      %vm1165 = vcmp.eq.s32.totalorder %v1133, 1
      %vm1166 = vcmp.eq.s32.totalorder %v1134, 1
      %vm1167 = vcmp.eq.s32.totalorder %v1135, 1
      %vm1168 = vcmp.eq.s32.totalorder %v1136, 1
      %vm1169 = vcmp.eq.s32.totalorder %v1137, 1
      %vm1170 = vcmp.eq.s32.totalorder %v1138, 1
      %vm1171 = vcmp.eq.s32.totalorder %v1139, 1
      %vm1172 = vcmp.eq.s32.totalorder %v1140, 1
      %vm1173 = vcmp.eq.s32.totalorder %v1141, 1
      %vm1174 = vcmp.eq.s32.totalorder %v1142, 1
      %vm1175 = vcmp.eq.s32.totalorder %v1143, 1
      %vm1176 = vcmp.eq.s32.totalorder %v1144, 1
      %vm1177 = vcmp.eq.s32.totalorder %v1145, 1
      %vm1178 = vcmp.eq.s32.totalorder %v1146, 1
      %vm1179 = vcmp.eq.s32.totalorder %v1147, 1
      %vm1180 = vcmp.eq.s32.totalorder %v1148, 1
      %vm1181 = vcmp.eq.s32.totalorder %v1149, 1
      %vm1182 = vcmp.eq.s32.totalorder %v1150, 1
      %vm1183 = vcmp.eq.s32.totalorder %v1151, 1
      %vm1184 = vmpackc.low %vm1152, %vm1152
      %vm1185 = vmpackc.low %vm1153, %vm1153
      %vm1186 = vmpackc.low %vm1154, %vm1154
      %vm1187 = vmpackc.low %vm1155, %vm1155
      %vm1188 = vmpackc.low %vm1156, %vm1156
      %vm1189 = vmpackc.low %vm1157, %vm1157
      %vm1190 = vmpackc.low %vm1158, %vm1158
      %vm1191 = vmpackc.low %vm1159, %vm1159
      %vm1192 = vmpackc.low %vm1160, %vm1160
      %vm1193 = vmpackc.low %vm1161, %vm1161
      %vm1194 = vmpackc.low %vm1162, %vm1162
      %vm1195 = vmpackc.low %vm1163, %vm1163
      %vm1196 = vmpackc.low %vm1164, %vm1164
      %vm1197 = vmpackc.low %vm1165, %vm1165
      %vm1198 = vmpackc.low %vm1166, %vm1166
      %vm1199 = vmpackc.low %vm1167, %vm1167
      %vm1200 = vmpackc.low %vm1168, %vm1168
      %vm1201 = vmpackc.low %vm1169, %vm1169
      %vm1202 = vmpackc.low %vm1170, %vm1170
      %vm1203 = vmpackc.low %vm1171, %vm1171
      %vm1204 = vmpackc.low %vm1172, %vm1172
      %vm1205 = vmpackc.low %vm1173, %vm1173
      %vm1206 = vmpackc.low %vm1174, %vm1174
      %vm1207 = vmpackc.low %vm1175, %vm1175
      %vm1208 = vmpackc.low %vm1176, %vm1176
      %vm1209 = vmpackc.low %vm1177, %vm1177
      %vm1210 = vmpackc.low %vm1178, %vm1178
      %vm1211 = vmpackc.low %vm1179, %vm1179
      %vm1212 = vmpackc.low %vm1180, %vm1180
      %vm1213 = vmpackc.low %vm1181, %vm1181
      %vm1214 = vmpackc.low %vm1182, %vm1182
      %vm1215 = vmpackc.low %vm1183, %vm1183
      %v1216 = vsel %vm1184, 65537, 0
      %v1217 = vsel %vm1185, 65537, 0
      %v1218 = vsel %vm1186, 65537, 0
      %v1219 = vsel %vm1187, 65537, 0
      %v1220 = vsel %vm1188, 65537, 0
      %v1221 = vsel %vm1189, 65537, 0
      %v1222 = vsel %vm1190, 65537, 0
      %v1223 = vsel %vm1191, 65537, 0
      %v1224 = vsel %vm1192, 65537, 0
      %v1225 = vsel %vm1193, 65537, 0
      %v1226 = vsel %vm1194, 65537, 0
      %v1227 = vsel %vm1195, 65537, 0
      %v1228 = vsel %vm1196, 65537, 0
      %v1229 = vsel %vm1197, 65537, 0
      %v1230 = vsel %vm1198, 65537, 0
      %v1231 = vsel %vm1199, 65537, 0
      %v1232 = vsel %vm1200, 65537, 0
      %v1233 = vsel %vm1201, 65537, 0
      %v1234 = vsel %vm1202, 65537, 0
      %v1235 = vsel %vm1203, 65537, 0
      %v1236 = vsel %vm1204, 65537, 0
      %v1237 = vsel %vm1205, 65537, 0
      %v1238 = vsel %vm1206, 65537, 0
      %v1239 = vsel %vm1207, 65537, 0
      %v1240 = vsel %vm1208, 65537, 0
      %v1241 = vsel %vm1209, 65537, 0
      %v1242 = vsel %vm1210, 65537, 0
      %v1243 = vsel %vm1211, 65537, 0
      %v1244 = vsel %vm1212, 65537, 0
      %v1245 = vsel %vm1213, 65537, 0
      %v1246 = vsel %vm1214, 65537, 0
      %v1247 = vsel %vm1215, 65537, 0
      %v1248 = vunpack.c.l.b16 %v1216
      %v1249 = vunpack.c.l.b16 %v1217
      %v1250 = vunpack.c.l.b16 %v1218
      %v1251 = vunpack.c.l.b16 %v1219
      %v1252 = vunpack.c.l.b16 %v1220
      %v1253 = vunpack.c.l.b16 %v1221
      %v1254 = vunpack.c.l.b16 %v1222
      %v1255 = vunpack.c.l.b16 %v1223
      %v1256 = vunpack.c.l.b16 %v1224
      %v1257 = vunpack.c.l.b16 %v1225
      %v1258 = vunpack.c.l.b16 %v1226
      %v1259 = vunpack.c.l.b16 %v1227
      %v1260 = vunpack.c.l.b16 %v1228
      %v1261 = vunpack.c.l.b16 %v1229
      %v1262 = vunpack.c.l.b16 %v1230
      %v1263 = vunpack.c.l.b16 %v1231
      %v1264 = vunpack.c.l.b16 %v1232
      %v1265 = vunpack.c.l.b16 %v1233
      %v1266 = vunpack.c.l.b16 %v1234
      %v1267 = vunpack.c.l.b16 %v1235
      %v1268 = vunpack.c.l.b16 %v1236
      %v1269 = vunpack.c.l.b16 %v1237
      %v1270 = vunpack.c.l.b16 %v1238
      %v1271 = vunpack.c.l.b16 %v1239
      %v1272 = vunpack.c.l.b16 %v1240
      %v1273 = vunpack.c.l.b16 %v1241
      %v1274 = vunpack.c.l.b16 %v1242
      %v1275 = vunpack.c.l.b16 %v1243
      %v1276 = vunpack.c.l.b16 %v1244
      %v1277 = vunpack.c.l.b16 %v1245
      %v1278 = vunpack.c.l.b16 %v1246
      %v1279 = vunpack.c.l.b16 %v1247
      %v1280 = vpack.c.b16 %v1249, %v1248
      %v1281 = vpack.c.b16 %v1251, %v1250
      %v1282 = vpack.c.b16 %v1253, %v1252
      %v1283 = vpack.c.b16 %v1255, %v1254
      %v1284 = vpack.c.b16 %v1257, %v1256
      %v1285 = vpack.c.b16 %v1259, %v1258
      %v1286 = vpack.c.b16 %v1261, %v1260
      %v1287 = vpack.c.b16 %v1263, %v1262
      %v1288 = vpack.c.b16 %v1265, %v1264
      %v1289 = vpack.c.b16 %v1267, %v1266
      %v1290 = vpack.c.b16 %v1269, %v1268
      %v1291 = vpack.c.b16 %v1271, %v1270
      %v1292 = vpack.c.b16 %v1273, %v1272
      %v1293 = vpack.c.b16 %v1275, %v1274
      %v1294 = vpack.c.b16 %v1277, %v1276
      %v1295 = vpack.c.b16 %v1279, %v1278
      %vm1296 = vcmp.ne.s16.totalorder %v1280, 0
      %vm1297 = vcmp.ne.s16.totalorder %v1281, 0
      %vm1298 = vcmp.ne.s16.totalorder %v1282, 0
      %vm1299 = vcmp.ne.s16.totalorder %v1283, 0
      %vm1300 = vcmp.ne.s16.totalorder %v1284, 0
      %vm1301 = vcmp.ne.s16.totalorder %v1285, 0
      %vm1302 = vcmp.ne.s16.totalorder %v1286, 0
      %vm1303 = vcmp.ne.s16.totalorder %v1287, 0
      %vm1304 = vcmp.ne.s16.totalorder %v1288, 0
      %vm1305 = vcmp.ne.s16.totalorder %v1289, 0
      %vm1306 = vcmp.ne.s16.totalorder %v1290, 0
      %vm1307 = vcmp.ne.s16.totalorder %v1291, 0
      %vm1308 = vcmp.ne.s16.totalorder %v1292, 0
      %vm1309 = vcmp.ne.s16.totalorder %v1293, 0
      %vm1310 = vcmp.ne.s16.totalorder %v1294, 0
      %vm1311 = vcmp.ne.s16.totalorder %v1295, 0
      %v1312 = vsel %vm1296, 0, %v414
      %v1313 = vsel %vm1297, 0, %v415
      %v1314 = vsel %vm1298, 0, %v416
      %v1315 = vsel %vm1299, 0, %v417
      %v1316 = vsel %vm1300, 0, %v418
      %v1317 = vsel %vm1301, 0, %v419
      %v1318 = vsel %vm1302, 0, %v420
      %v1319 = vsel %vm1303, 0, %v421
      %v1320 = vsel %vm1304, 0, %v422
      %v1321 = vsel %vm1305, 0, %v423
      %v1322 = vsel %vm1306, 0, %v424
      %v1323 = vsel %vm1307, 0, %v425
      %v1324 = vsel %vm1308, 0, %v426
      %v1325 = vsel %vm1309, 0, %v427
      %v1326 = vsel %vm1310, 0, %v428
      %v1327 = vsel %vm1311, 0, %v429
      %v1328 = vld [vmem:[%s3] sm:$0xf]
      %v1329 = vld [vmem:[%s3 + $0x4] sm:$0xf]
      %v1330 = vld [vmem:[%s3 + $0x8] sm:$0xf]
      %v1331 = vld [vmem:[%s3 + $0xc] sm:$0xf]
      %v1332 = vld [vmem:[%s3 + $0x10] sm:$0xf]
      %v1333 = vld [vmem:[%s3 + $0x14] sm:$0xf]
      %v1334 = vld [vmem:[%s3 + $0x18] sm:$0xf]
      %v1335 = vld [vmem:[%s3 + $0x1c] sm:$0xf]
      %v1336 = vld [vmem:[%s3 + $0x20] sm:$0xf]
      %v1337 = vld [vmem:[%s3 + $0x24] sm:$0xf]
      %v1338 = vld [vmem:[%s3 + $0x28] sm:$0xf]
      %v1339 = vld [vmem:[%s3 + $0x2c] sm:$0xf]
      %v1340 = vld [vmem:[%s3 + $0x30] sm:$0xf]
      %v1341 = vld [vmem:[%s3 + $0x34] sm:$0xf]
      %v1342 = vld [vmem:[%s3 + $0x38] sm:$0xf]
      %v1343 = vld [vmem:[%s3 + $0x3c] sm:$0xf]
      %s1344 = scalar_lea.vmem %s3, 64
      %v1345 = vld [vmem:[%s1344] sm:$0xf]
      %v1346 = vld [vmem:[%s1344 + $0x4] sm:$0xf]
      %v1347 = vld [vmem:[%s1344 + $0x8] sm:$0xf]
      %v1348 = vld [vmem:[%s1344 + $0xc] sm:$0xf]
      %v1349 = vld [vmem:[%s1344 + $0x10] sm:$0xf]
      %v1350 = vld [vmem:[%s1344 + $0x14] sm:$0xf]
      %v1351 = vld [vmem:[%s1344 + $0x18] sm:$0xf]
      %v1352 = vld [vmem:[%s1344 + $0x1c] sm:$0xf]
      %v1353 = vld [vmem:[%s1344 + $0x20] sm:$0xf]
      %v1354 = vld [vmem:[%s1344 + $0x24] sm:$0xf]
      %v1355 = vld [vmem:[%s1344 + $0x28] sm:$0xf]
      %v1356 = vld [vmem:[%s1344 + $0x2c] sm:$0xf]
      %v1357 = vld [vmem:[%s1344 + $0x30] sm:$0xf]
      %v1358 = vld [vmem:[%s1344 + $0x34] sm:$0xf]
      %v1359 = vld [vmem:[%s1344 + $0x38] sm:$0xf]
      %v1360 = vld [vmem:[%s1344 + $0x3c] sm:$0xf]
      %v1377 = vunpack.c.l.b16 %v1345
      %v1378 = vunpack.c.l.b16 %v1346
      %v1379 = vunpack.c.l.b16 %v1347
      %v1380 = vunpack.c.l.b16 %v1348
      %v1381 = vunpack.c.l.b16 %v1349
      %v1382 = vunpack.c.l.b16 %v1350
      %v1383 = vunpack.c.l.b16 %v1351
      %v1384 = vunpack.c.l.b16 %v1352
      %v1385 = vunpack.c.l.b16 %v1353
      %v1386 = vunpack.c.l.b16 %v1354
      %v1387 = vunpack.c.l.b16 %v1355
      %v1388 = vunpack.c.l.b16 %v1356
      %v1389 = vunpack.c.l.b16 %v1357
      %v1390 = vunpack.c.l.b16 %v1358
      %v1391 = vunpack.c.l.b16 %v1359
      %v1392 = vunpack.c.l.b16 %v1360
      %v1393 = vpack.c.b16 %v1378, %v1377
      %v1394 = vpack.c.b16 %v1380, %v1379
      %v1395 = vpack.c.b16 %v1382, %v1381
      %v1396 = vpack.c.b16 %v1384, %v1383
      %v1397 = vpack.c.b16 %v1386, %v1385
      %v1398 = vpack.c.b16 %v1388, %v1387
      %v1399 = vpack.c.b16 %v1390, %v1389
      %v1400 = vpack.c.b16 %v1392, %v1391
      %1409 = vmatprep.subr.bf16.mxu0 0
      %1410 = vmatpush1.bf16.msra.mxu0 %v1393
      %1411 = vmatprep.subr.bf16.mxu0 0
      %1412 = vmatpush1.bf16.msra.mxu0 %v1394
      %1413 = vmatprep.subr.bf16.mxu0 0
      %1414 = vmatpush1.bf16.msra.mxu0 %v1395
      %1415 = vmatprep.subr.bf16.mxu0 0
      %1416 = vmatpush1.bf16.msra.mxu0 %v1396
      %1417 = vmatprep.subr.bf16.mxu0 0
      %1418 = vmatpush1.bf16.msra.mxu0 %v1397
      %1419 = vmatprep.subr.bf16.mxu0 0
      %1420 = vmatpush1.bf16.msra.mxu0 %v1398
      %1421 = vmatprep.subr.bf16.mxu0 0
      %1422 = vmatpush1.bf16.msra.mxu0 %v1399
      %1423 = vmatprep.subr.bf16.mxu0 0
      %1424 = vmatpush1.bf16.msra.mxu0 %v1400
      %1425 = vmatprep.subr.bf16.mxu0 0
      %1426 = vmatpush1.bf16.msra.mxu0 0
      %1427 = vmatprep.subr.bf16.mxu0 0
      %1428 = vmatpush1.bf16.msra.mxu0 0
      %1429 = vmatprep.subr.bf16.mxu0 0
      %1430 = vmatpush1.bf16.msra.mxu0 0
      %1431 = vmatprep.subr.bf16.mxu0 0
      %1432 = vmatpush1.bf16.msra.mxu0 0
      %1433 = vmatprep.subr.bf16.mxu0 0
      %1434 = vmatpush1.bf16.msra.mxu0 0
      %1435 = vmatprep.subr.bf16.mxu0 0
      %1436 = vmatpush1.bf16.msra.mxu0 0
      %1437 = vmatprep.subr.bf16.mxu0 0
      %1438 = vmatpush1.bf16.msra.mxu0 0
      %1439 = vmatprep.subr.bf16.mxu0 0
      %1440 = vmatpush1.bf16.msra.mxu0 0
      %1441 = vmatprep.mubr.bf16.mxu0 0
      %1442 = vmatmul.mubr.bf16.gmra.mrb[0].mxu0 0
      %v1443 = vpop.f32.mrb[0].mxu0
      %v1444 = vadd.f32 0.0, %v1443
      %v1445 = vpop.f32.mrb[0].mxu0
      %v1446 = vpop.f32.mrb[0].mxu0
      %v1447 = vadd.f32 0.0, %v1446
      %v1448 = vpop.f32.mrb[0].mxu0
      %1449 = vmatprep.mubr.bf16.mxu0 0
      %1450 = vmatmul.mubr.bf16.gmra.mrb[0].mxu0 %v414
      %v1451 = vpop.f32.mrb[0].mxu0
      %v1452 = vadd.f32 0.0, %v1451
      %v1453 = vpop.f32.mrb[0].mxu0
      %v1454 = vpop.f32.mrb[0].mxu0
      %v1455 = vadd.f32 0.0, %v1454
      %v1456 = vpop.f32.mrb[0].mxu0
      %1457 = vmatprep.mubr.bf16.mxu0 0
      %1458 = vmatmul.mubr.bf16.gmra.mrb[0].mxu0 %v415
      %v1459 = vpop.f32.mrb[0].mxu0
      %v1460 = vadd.f32 0.0, %v1459
      %v1461 = vpop.f32.mrb[0].mxu0
      %v1462 = vpop.f32.mrb[0].mxu0
      %v1463 = vadd.f32 0.0, %v1462
      %v1464 = vpop.f32.mrb[0].mxu0
      %1465 = vmatprep.mubr.bf16.mxu0 0
      %1466 = vmatmul.mubr.bf16.gmra.mrb[0].mxu0 %v416
      %v1467 = vpop.f32.mrb[0].mxu0
      %v1468 = vadd.f32 0.0, %v1467
      %v1469 = vpop.f32.mrb[0].mxu0
      %v1470 = vpop.f32.mrb[0].mxu0
      %v1471 = vadd.f32 0.0, %v1470
      %v1472 = vpop.f32.mrb[0].mxu0
      %1473 = vmatprep.mubr.bf16.mxu0 0
      %1474 = vmatmul.mubr.bf16.gmra.mrb[0].mxu0 %v417
      %v1475 = vpop.f32.mrb[0].mxu0
      %v1476 = vadd.f32 0.0, %v1475
      %v1477 = vpop.f32.mrb[0].mxu0
      %v1478 = vpop.f32.mrb[0].mxu0
      %v1479 = vadd.f32 0.0, %v1478
      %v1480 = vpop.f32.mrb[0].mxu0
      %1481 = vmatprep.mubr.bf16.mxu0 0
      %1482 = vmatmul.mubr.bf16.gmra.mrb[0].mxu0 %v418
      %v1483 = vpop.f32.mrb[0].mxu0
      %v1484 = vadd.f32 0.0, %v1483
      %v1485 = vpop.f32.mrb[0].mxu0
      %v1486 = vpop.f32.mrb[0].mxu0
      %v1487 = vadd.f32 0.0, %v1486
      %v1488 = vpop.f32.mrb[0].mxu0
      %1489 = vmatprep.mubr.bf16.mxu0 0
      %1490 = vmatmul.mubr.bf16.gmra.mrb[0].mxu0 %v419
      %v1491 = vpop.f32.mrb[0].mxu0
      %v1492 = vadd.f32 0.0, %v1491
      %v1493 = vpop.f32.mrb[0].mxu0
      %v1494 = vpop.f32.mrb[0].mxu0
      %v1495 = vadd.f32 0.0, %v1494
      %v1496 = vpop.f32.mrb[0].mxu0
      %1497 = vmatprep.mubr.bf16.mxu0 0
      %1498 = vmatmul.mubr.bf16.gmra.mrb[0].mxu0 %v420
      %v1499 = vpop.f32.mrb[0].mxu0
      %v1500 = vadd.f32 0.0, %v1499
      %v1501 = vpop.f32.mrb[0].mxu0
      %v1502 = vpop.f32.mrb[0].mxu0
      %v1503 = vadd.f32 0.0, %v1502
      %v1504 = vpop.f32.mrb[0].mxu0
      %1505 = vmatprep.mubr.bf16.mxu0 0
      %1506 = vmatmul.mubr.bf16.gmra.mrb[0].mxu0 %v421
      %v1507 = vpop.f32.mrb[0].mxu0
      %v1508 = vadd.f32 0.0, %v1507
      %v1509 = vpop.f32.mrb[0].mxu0
      %v1510 = vpop.f32.mrb[0].mxu0
      %v1511 = vadd.f32 0.0, %v1510
      %v1512 = vpop.f32.mrb[0].mxu0
      %1513 = vmatprep.mubr.bf16.mxu0 0
      %1514 = vmatmul.mubr.bf16.gmra.mrb[0].mxu0 %v422
      %v1515 = vpop.f32.mrb[0].mxu0
      %v1516 = vadd.f32 0.0, %v1515
      %v1517 = vpop.f32.mrb[0].mxu0
      %v1518 = vpop.f32.mrb[0].mxu0
      %v1519 = vadd.f32 0.0, %v1518
      %v1520 = vpop.f32.mrb[0].mxu0
      %1521 = vmatprep.mubr.bf16.mxu0 0
      %1522 = vmatmul.mubr.bf16.gmra.mrb[0].mxu0 %v423
      %v1523 = vpop.f32.mrb[0].mxu0
      %v1524 = vadd.f32 0.0, %v1523
      %v1525 = vpop.f32.mrb[0].mxu0
      %v1526 = vpop.f32.mrb[0].mxu0
      %v1527 = vadd.f32 0.0, %v1526
      %v1528 = vpop.f32.mrb[0].mxu0
      %1529 = vmatprep.mubr.bf16.mxu0 0
      %1530 = vmatmul.mubr.bf16.gmra.mrb[0].mxu0 %v424
      %v1531 = vpop.f32.mrb[0].mxu0
      %v1532 = vadd.f32 0.0, %v1531
      %v1533 = vpop.f32.mrb[0].mxu0
      %v1534 = vpop.f32.mrb[0].mxu0
      %v1535 = vadd.f32 0.0, %v1534
      %v1536 = vpop.f32.mrb[0].mxu0
      %1537 = vmatprep.mubr.bf16.mxu0 0
      %1538 = vmatmul.mubr.bf16.gmra.mrb[0].mxu0 %v425
      %v1539 = vpop.f32.mrb[0].mxu0
      %v1540 = vadd.f32 0.0, %v1539
      %v1541 = vpop.f32.mrb[0].mxu0
      %v1542 = vpop.f32.mrb[0].mxu0
      %v1543 = vadd.f32 0.0, %v1542
      %v1544 = vpop.f32.mrb[0].mxu0
      %1545 = vmatprep.mubr.bf16.mxu0 0
      %1546 = vmatmul.mubr.bf16.gmra.mrb[0].mxu0 %v426
      %v1547 = vpop.f32.mrb[0].mxu0
      %v1548 = vadd.f32 0.0, %v1547
      %v1549 = vpop.f32.mrb[0].mxu0
      %v1550 = vpop.f32.mrb[0].mxu0
      %v1551 = vadd.f32 0.0, %v1550
      %v1552 = vpop.f32.mrb[0].mxu0
      %1553 = vmatprep.mubr.bf16.mxu0 0
      %1554 = vmatmul.mubr.bf16.gmra.mrb[0].mxu0 %v427
      %v1555 = vpop.f32.mrb[0].mxu0
      %v1556 = vadd.f32 0.0, %v1555
      %v1557 = vpop.f32.mrb[0].mxu0
      %v1558 = vpop.f32.mrb[0].mxu0
      %v1559 = vadd.f32 0.0, %v1558
      %v1560 = vpop.f32.mrb[0].mxu0
      %1561 = vmatprep.mubr.bf16.mxu0 0
      %1562 = vmatmul.mubr.bf16.gmra.mrb[0].mxu0 %v428
      %v1563 = vpop.f32.mrb[0].mxu0
      %v1564 = vadd.f32 0.0, %v1563
      %v1565 = vpop.f32.mrb[0].mxu0
      %v1566 = vpop.f32.mrb[0].mxu0
      %v1567 = vadd.f32 0.0, %v1566
      %v1568 = vpop.f32.mrb[0].mxu0
      %1569 = vdwg.mxu0
      %vm1570 = vsmask.f32 256
      %v1572 = vshrl.u32 0, 16
      %v1574 = vrot.slane %v1572, 7
      %v1575 = vshll.u32 0, 16
      %v1577 = vor.u32 %v1574, %v1575
      %v1578 = vsel %vm1570, %v1574, %v1577
      %v1580 = vshrl.u32 %v1072, 16
      %v1582 = vrot.slane %v1580, 7
      %v1583 = vshll.u32 %v1072, 16
      %v1585 = vor.u32 %v1582, %v1583
      %v1586 = vsel %vm1570, %v1574, %v1585
      %v1588 = vshrl.u32 %v1073, 16
      %v1590 = vrot.slane %v1588, 7
      %v1591 = vshll.u32 %v1073, 16
      %v1593 = vor.u32 %v1590, %v1591
      %v1594 = vsel %vm1570, %v1582, %v1593
      %v1596 = vshrl.u32 %v1074, 16
      %v1598 = vrot.slane %v1596, 7
      %v1599 = vshll.u32 %v1074, 16
      %v1601 = vor.u32 %v1598, %v1599
      %v1602 = vsel %vm1570, %v1590, %v1601
      %v1604 = vshrl.u32 %v1075, 16
      %v1606 = vrot.slane %v1604, 7
      %v1607 = vshll.u32 %v1075, 16
      %v1609 = vor.u32 %v1606, %v1607
      %v1610 = vsel %vm1570, %v1598, %v1609
      %v1612 = vshrl.u32 %v1076, 16
      %v1614 = vrot.slane %v1612, 7
      %v1615 = vshll.u32 %v1076, 16
      %v1617 = vor.u32 %v1614, %v1615
      %v1618 = vsel %vm1570, %v1606, %v1617
      %v1620 = vshrl.u32 %v1077, 16
      %v1622 = vrot.slane %v1620, 7
      %v1623 = vshll.u32 %v1077, 16
      %v1625 = vor.u32 %v1622, %v1623
      %v1626 = vsel %vm1570, %v1614, %v1625
      %v1628 = vshrl.u32 %v1078, 16
      %v1630 = vrot.slane %v1628, 7
      %v1631 = vshll.u32 %v1078, 16
      %v1633 = vor.u32 %v1630, %v1631
      %v1634 = vsel %vm1570, %v1622, %v1633
      %v1636 = vshrl.u32 %v1079, 16
      %v1638 = vrot.slane %v1636, 7
      %v1639 = vshll.u32 %v1079, 16
      %v1641 = vor.u32 %v1638, %v1639
      %v1642 = vsel %vm1570, %v1630, %v1641
      %v1644 = vshrl.u32 %v1080, 16
      %v1646 = vrot.slane %v1644, 7
      %v1647 = vshll.u32 %v1080, 16
      %v1649 = vor.u32 %v1646, %v1647
      %v1650 = vsel %vm1570, %v1638, %v1649
      %v1652 = vshrl.u32 %v1081, 16
      %v1654 = vrot.slane %v1652, 7
      %v1655 = vshll.u32 %v1081, 16
      %v1657 = vor.u32 %v1654, %v1655
      %v1658 = vsel %vm1570, %v1646, %v1657
      %v1660 = vshrl.u32 %v1082, 16
      %v1662 = vrot.slane %v1660, 7
      %v1663 = vshll.u32 %v1082, 16
      %v1665 = vor.u32 %v1662, %v1663
      %v1666 = vsel %vm1570, %v1654, %v1665
      %v1668 = vshrl.u32 %v1083, 16
      %v1670 = vrot.slane %v1668, 7
      %v1671 = vshll.u32 %v1083, 16
      %v1673 = vor.u32 %v1670, %v1671
      %v1674 = vsel %vm1570, %v1662, %v1673
      %v1676 = vshrl.u32 %v1084, 16
      %v1678 = vrot.slane %v1676, 7
      %v1679 = vshll.u32 %v1084, 16
      %v1681 = vor.u32 %v1678, %v1679
      %v1682 = vsel %vm1570, %v1670, %v1681
      %v1684 = vshrl.u32 %v1085, 16
      %v1686 = vrot.slane %v1684, 7
      %v1687 = vshll.u32 %v1085, 16
      %v1689 = vor.u32 %v1686, %v1687
      %v1690 = vsel %vm1570, %v1678, %v1689
      %v1692 = vshrl.u32 %v1086, 16
      %v1694 = vrot.slane %v1692, 7
      %v1695 = vshll.u32 %v1086, 16
      %v1697 = vor.u32 %v1694, %v1695
      %v1698 = vsel %vm1570, %v1686, %v1697
      %v1731 = vunpack.c.l.b16 %v1328
      %v1732 = vunpack.c.l.b16 %v1329
      %v1733 = vunpack.c.l.b16 %v1330
      %v1734 = vunpack.c.l.b16 %v1331
      %v1735 = vunpack.c.l.b16 %v1332
      %v1736 = vunpack.c.l.b16 %v1333
      %v1737 = vunpack.c.l.b16 %v1334
      %v1738 = vunpack.c.l.b16 %v1335
      %v1739 = vunpack.c.l.b16 %v1336
      %v1740 = vunpack.c.l.b16 %v1337
      %v1741 = vunpack.c.l.b16 %v1338
      %v1742 = vunpack.c.l.b16 %v1339
      %v1743 = vunpack.c.l.b16 %v1340
      %v1744 = vunpack.c.l.b16 %v1341
      %v1745 = vunpack.c.l.b16 %v1342
      %v1746 = vunpack.c.l.b16 %v1343
      %v1747 = vpack.c.b16 %v1732, %v1731
      %v1748 = vpack.c.b16 %v1734, %v1733
      %v1749 = vpack.c.b16 %v1736, %v1735
      %v1750 = vpack.c.b16 %v1738, %v1737
      %v1751 = vpack.c.b16 %v1740, %v1739
      %v1752 = vpack.c.b16 %v1742, %v1741
      %v1753 = vpack.c.b16 %v1744, %v1743
      %v1754 = vpack.c.b16 %v1746, %v1745
      %1763 = vmatprep.subr.bf16.mxu0 0
      %1764 = vmatpush1.bf16.msra.mxu0 %v1747
      %1765 = vmatprep.subr.bf16.mxu0 0
      %1766 = vmatpush1.bf16.msra.mxu0 %v1748
      %1767 = vmatprep.subr.bf16.mxu0 0
      %1768 = vmatpush1.bf16.msra.mxu0 %v1749
      %1769 = vmatprep.subr.bf16.mxu0 0
      %1770 = vmatpush1.bf16.msra.mxu0 %v1750
      %1771 = vmatprep.subr.bf16.mxu0 0
      %1772 = vmatpush1.bf16.msra.mxu0 %v1751
      %1773 = vmatprep.subr.bf16.mxu0 0
      %1774 = vmatpush1.bf16.msra.mxu0 %v1752
      %1775 = vmatprep.subr.bf16.mxu0 0
      %1776 = vmatpush1.bf16.msra.mxu0 %v1753
      %1777 = vmatprep.subr.bf16.mxu0 0
      %1778 = vmatpush1.bf16.msra.mxu0 %v1754
      %1779 = vmatprep.subr.bf16.mxu0 0
      %1780 = vmatpush1.bf16.msra.mxu0 0
      %1781 = vmatprep.subr.bf16.mxu0 0
      %1782 = vmatpush1.bf16.msra.mxu0 0
      %1783 = vmatprep.subr.bf16.mxu0 0
      %1784 = vmatpush1.bf16.msra.mxu0 0
      %1785 = vmatprep.subr.bf16.mxu0 0
      %1786 = vmatpush1.bf16.msra.mxu0 0
      %1787 = vmatprep.subr.bf16.mxu0 0
      %1788 = vmatpush1.bf16.msra.mxu0 0
      %1789 = vmatprep.subr.bf16.mxu0 0
      %1790 = vmatpush1.bf16.msra.mxu0 0
      %1791 = vmatprep.subr.bf16.mxu0 0
      %1792 = vmatpush1.bf16.msra.mxu0 0
      %1793 = vmatprep.subr.bf16.mxu0 0
      %1794 = vmatpush1.bf16.msra.mxu0 0
      %1795 = vmatprep.mubr.bf16.mxu0 0
      %1796 = vmatmul.mubr.bf16.gmra.mrb[0].mxu0 %v1578
      %v1797 = vpop.f32.mrb[0].mxu0
      %v1798 = vadd.f32 %v1444, %v1797
      %v1799 = vpop.f32.mrb[0].mxu0
      %v1800 = vpop.f32.mrb[0].mxu0
      %v1801 = vadd.f32 %v1447, %v1800
      %v1802 = vpop.f32.mrb[0].mxu0
      %1803 = vmatprep.mubr.bf16.mxu0 0
      %1804 = vmatmul.mubr.bf16.gmra.mrb[0].mxu0 %v1586
      %v1805 = vpop.f32.mrb[0].mxu0
      %v1806 = vadd.f32 %v1452, %v1805
      %v1807 = vpop.f32.mrb[0].mxu0
      %v1808 = vpop.f32.mrb[0].mxu0
      %v1809 = vadd.f32 %v1455, %v1808
      %v1810 = vpop.f32.mrb[0].mxu0
      %1811 = vmatprep.mubr.bf16.mxu0 0
      %1812 = vmatmul.mubr.bf16.gmra.mrb[0].mxu0 %v1594
      %v1813 = vpop.f32.mrb[0].mxu0
      %v1814 = vadd.f32 %v1460, %v1813
      %v1815 = vpop.f32.mrb[0].mxu0
      %v1816 = vpop.f32.mrb[0].mxu0
      %v1817 = vadd.f32 %v1463, %v1816
      %v1818 = vpop.f32.mrb[0].mxu0
      %1819 = vmatprep.mubr.bf16.mxu0 0
      %1820 = vmatmul.mubr.bf16.gmra.mrb[0].mxu0 %v1602
      %v1821 = vpop.f32.mrb[0].mxu0
      %v1822 = vadd.f32 %v1468, %v1821
      %v1823 = vpop.f32.mrb[0].mxu0
      %v1824 = vpop.f32.mrb[0].mxu0
      %v1825 = vadd.f32 %v1471, %v1824
      %v1826 = vpop.f32.mrb[0].mxu0
      %1827 = vmatprep.mubr.bf16.mxu0 0
      %1828 = vmatmul.mubr.bf16.gmra.mrb[0].mxu0 %v1610
      %v1829 = vpop.f32.mrb[0].mxu0
      %v1830 = vadd.f32 %v1476, %v1829
      %v1831 = vpop.f32.mrb[0].mxu0
      %v1832 = vpop.f32.mrb[0].mxu0
      %v1833 = vadd.f32 %v1479, %v1832
      %v1834 = vpop.f32.mrb[0].mxu0
      %1835 = vmatprep.mubr.bf16.mxu0 0
      %1836 = vmatmul.mubr.bf16.gmra.mrb[0].mxu0 %v1618
      %v1837 = vpop.f32.mrb[0].mxu0
      %v1838 = vadd.f32 %v1484, %v1837
      %v1839 = vpop.f32.mrb[0].mxu0
      %v1840 = vpop.f32.mrb[0].mxu0
      %v1841 = vadd.f32 %v1487, %v1840
      %v1842 = vpop.f32.mrb[0].mxu0
      %1843 = vmatprep.mubr.bf16.mxu0 0
      %1844 = vmatmul.mubr.bf16.gmra.mrb[0].mxu0 %v1626
      %v1845 = vpop.f32.mrb[0].mxu0
      %v1846 = vadd.f32 %v1492, %v1845
      %v1847 = vpop.f32.mrb[0].mxu0
      %v1848 = vpop.f32.mrb[0].mxu0
      %v1849 = vadd.f32 %v1495, %v1848
      %v1850 = vpop.f32.mrb[0].mxu0
      %1851 = vmatprep.mubr.bf16.mxu0 0
      %1852 = vmatmul.mubr.bf16.gmra.mrb[0].mxu0 %v1634
      %v1853 = vpop.f32.mrb[0].mxu0
      %v1854 = vadd.f32 %v1500, %v1853
      %v1855 = vpop.f32.mrb[0].mxu0
      %v1856 = vpop.f32.mrb[0].mxu0
      %v1857 = vadd.f32 %v1503, %v1856
      %v1858 = vpop.f32.mrb[0].mxu0
      %1859 = vmatprep.mubr.bf16.mxu0 0
      %1860 = vmatmul.mubr.bf16.gmra.mrb[0].mxu0 %v1642
      %v1861 = vpop.f32.mrb[0].mxu0
      %v1862 = vadd.f32 %v1508, %v1861
      %v1863 = vpop.f32.mrb[0].mxu0
      %v1864 = vpop.f32.mrb[0].mxu0
      %v1865 = vadd.f32 %v1511, %v1864
      %v1866 = vpop.f32.mrb[0].mxu0
      %1867 = vmatprep.mubr.bf16.mxu0 0
      %1868 = vmatmul.mubr.bf16.gmra.mrb[0].mxu0 %v1650
      %v1869 = vpop.f32.mrb[0].mxu0
      %v1870 = vadd.f32 %v1516, %v1869
      %v1871 = vpop.f32.mrb[0].mxu0
      %v1872 = vpop.f32.mrb[0].mxu0
      %v1873 = vadd.f32 %v1519, %v1872
      %v1874 = vpop.f32.mrb[0].mxu0
      %1875 = vmatprep.mubr.bf16.mxu0 0
      %1876 = vmatmul.mubr.bf16.gmra.mrb[0].mxu0 %v1658
      %v1877 = vpop.f32.mrb[0].mxu0
      %v1878 = vadd.f32 %v1524, %v1877
      %v1879 = vpop.f32.mrb[0].mxu0
      %v1880 = vpop.f32.mrb[0].mxu0
      %v1881 = vadd.f32 %v1527, %v1880
      %v1882 = vpop.f32.mrb[0].mxu0
      %1883 = vmatprep.mubr.bf16.mxu0 0
      %1884 = vmatmul.mubr.bf16.gmra.mrb[0].mxu0 %v1666
      %v1885 = vpop.f32.mrb[0].mxu0
      %v1886 = vadd.f32 %v1532, %v1885
      %v1887 = vpop.f32.mrb[0].mxu0
      %v1888 = vpop.f32.mrb[0].mxu0
      %v1889 = vadd.f32 %v1535, %v1888
      %v1890 = vpop.f32.mrb[0].mxu0
      %1891 = vmatprep.mubr.bf16.mxu0 0
      %1892 = vmatmul.mubr.bf16.gmra.mrb[0].mxu0 %v1674
      %v1893 = vpop.f32.mrb[0].mxu0
      %v1894 = vadd.f32 %v1540, %v1893
      %v1895 = vpop.f32.mrb[0].mxu0
      %v1896 = vpop.f32.mrb[0].mxu0
      %v1897 = vadd.f32 %v1543, %v1896
      %v1898 = vpop.f32.mrb[0].mxu0
      %1899 = vmatprep.mubr.bf16.mxu0 0
      %1900 = vmatmul.mubr.bf16.gmra.mrb[0].mxu0 %v1682
      %v1901 = vpop.f32.mrb[0].mxu0
      %v1902 = vadd.f32 %v1548, %v1901
      %v1903 = vpop.f32.mrb[0].mxu0
      %v1904 = vpop.f32.mrb[0].mxu0
      %v1905 = vadd.f32 %v1551, %v1904
      %v1906 = vpop.f32.mrb[0].mxu0
      %1907 = vmatprep.mubr.bf16.mxu0 0
      %1908 = vmatmul.mubr.bf16.gmra.mrb[0].mxu0 %v1690
      %v1909 = vpop.f32.mrb[0].mxu0
      %v1910 = vadd.f32 %v1556, %v1909
      %v1911 = vpop.f32.mrb[0].mxu0
      %v1912 = vpop.f32.mrb[0].mxu0
      %v1913 = vadd.f32 %v1559, %v1912
      %v1914 = vpop.f32.mrb[0].mxu0
      %1915 = vmatprep.mubr.bf16.mxu0 0
      %1916 = vmatmul.mubr.bf16.gmra.mrb[0].mxu0 %v1698
      %v1917 = vpop.f32.mrb[0].mxu0
      %v1918 = vadd.f32 %v1564, %v1917
      %v1919 = vpop.f32.mrb[0].mxu0
      %v1920 = vpop.f32.mrb[0].mxu0
      %v1921 = vadd.f32 %v1567, %v1920
      %v1922 = vpop.f32.mrb[0].mxu0
      %1923 = vdwg.mxu0
      %s1924 = scalar_lea.vmem %s3, 128
      %v1925 = vld [vmem:[%s1924] sm:$0xf]
      %v1926 = vld [vmem:[%s1924 + $0x4] sm:$0xf]
      %v1927 = vld [vmem:[%s1924 + $0x8] sm:$0xf]
      %v1928 = vld [vmem:[%s1924 + $0xc] sm:$0xf]
      %v1929 = vld [vmem:[%s1924 + $0x10] sm:$0xf]
      %v1930 = vld [vmem:[%s1924 + $0x14] sm:$0xf]
      %v1931 = vld [vmem:[%s1924 + $0x18] sm:$0xf]
      %v1932 = vld [vmem:[%s1924 + $0x1c] sm:$0xf]
      %v1933 = vld [vmem:[%s1924 + $0x20] sm:$0xf]
      %v1934 = vld [vmem:[%s1924 + $0x24] sm:$0xf]
      %v1935 = vld [vmem:[%s1924 + $0x28] sm:$0xf]
      %v1936 = vld [vmem:[%s1924 + $0x2c] sm:$0xf]
      %v1937 = vld [vmem:[%s1924 + $0x30] sm:$0xf]
      %v1938 = vld [vmem:[%s1924 + $0x34] sm:$0xf]
      %v1939 = vld [vmem:[%s1924 + $0x38] sm:$0xf]
      %v1940 = vld [vmem:[%s1924 + $0x3c] sm:$0xf]
      %vm1941 = vsmask.f32 7424
      %v1942 = vrot.slane %v1575, 1
      %v1943 = vor.u32 %v1572, %v1942
      %v1945 = vshll.u32 %v1312, 16
      %v1947 = vrot.slane %v1945, 1
      %v1948 = vsel %vm1941, %v1943, %v1947
      %v1949 = vshrl.u32 %v1312, 16
      %v1951 = vor.u32 %v1949, %v1947
      %v1953 = vshll.u32 %v1313, 16
      %v1955 = vrot.slane %v1953, 1
      %v1956 = vsel %vm1941, %v1951, %v1955
      %v1957 = vshrl.u32 %v1313, 16
      %v1959 = vor.u32 %v1957, %v1955
      %v1961 = vshll.u32 %v1314, 16
      %v1963 = vrot.slane %v1961, 1
      %v1964 = vsel %vm1941, %v1959, %v1963
      %v1965 = vshrl.u32 %v1314, 16
      %v1967 = vor.u32 %v1965, %v1963
      %v1969 = vshll.u32 %v1315, 16
      %v1971 = vrot.slane %v1969, 1
      %v1972 = vsel %vm1941, %v1967, %v1971
      %v1973 = vshrl.u32 %v1315, 16
      %v1975 = vor.u32 %v1973, %v1971
      %v1977 = vshll.u32 %v1316, 16
      %v1979 = vrot.slane %v1977, 1
      %v1980 = vsel %vm1941, %v1975, %v1979
      %v1981 = vshrl.u32 %v1316, 16
      %v1983 = vor.u32 %v1981, %v1979
      %v1985 = vshll.u32 %v1317, 16
      %v1987 = vrot.slane %v1985, 1
      %v1988 = vsel %vm1941, %v1983, %v1987
      %v1989 = vshrl.u32 %v1317, 16
      %v1991 = vor.u32 %v1989, %v1987
      %v1993 = vshll.u32 %v1318, 16
      %v1995 = vrot.slane %v1993, 1
      %v1996 = vsel %vm1941, %v1991, %v1995
      %v1997 = vshrl.u32 %v1318, 16
      %v1999 = vor.u32 %v1997, %v1995
      %v2001 = vshll.u32 %v1319, 16
      %v2003 = vrot.slane %v2001, 1
      %v2004 = vsel %vm1941, %v1999, %v2003
      %v2005 = vshrl.u32 %v1319, 16
      %v2007 = vor.u32 %v2005, %v2003
      %v2009 = vshll.u32 %v1320, 16
      %v2011 = vrot.slane %v2009, 1
      %v2012 = vsel %vm1941, %v2007, %v2011
      %v2013 = vshrl.u32 %v1320, 16
      %v2015 = vor.u32 %v2013, %v2011
      %v2017 = vshll.u32 %v1321, 16
      %v2019 = vrot.slane %v2017, 1
      %v2020 = vsel %vm1941, %v2015, %v2019
      %v2021 = vshrl.u32 %v1321, 16
      %v2023 = vor.u32 %v2021, %v2019
      %v2025 = vshll.u32 %v1322, 16
      %v2027 = vrot.slane %v2025, 1
      %v2028 = vsel %vm1941, %v2023, %v2027
      %v2029 = vshrl.u32 %v1322, 16
      %v2031 = vor.u32 %v2029, %v2027
      %v2033 = vshll.u32 %v1323, 16
      %v2035 = vrot.slane %v2033, 1
      %v2036 = vsel %vm1941, %v2031, %v2035
      %v2037 = vshrl.u32 %v1323, 16
      %v2039 = vor.u32 %v2037, %v2035
      %v2041 = vshll.u32 %v1324, 16
      %v2043 = vrot.slane %v2041, 1
      %v2044 = vsel %vm1941, %v2039, %v2043
      %v2045 = vshrl.u32 %v1324, 16
      %v2047 = vor.u32 %v2045, %v2043
      %v2049 = vshll.u32 %v1325, 16
      %v2051 = vrot.slane %v2049, 1
      %v2052 = vsel %vm1941, %v2047, %v2051
      %v2053 = vshrl.u32 %v1325, 16
      %v2055 = vor.u32 %v2053, %v2051
      %v2057 = vshll.u32 %v1326, 16
      %v2059 = vrot.slane %v2057, 1
      %v2060 = vsel %vm1941, %v2055, %v2059
      %v2061 = vshrl.u32 %v1326, 16
      %v2063 = vor.u32 %v2061, %v2059
      %v2065 = vshll.u32 %v1327, 16
      %v2067 = vrot.slane %v2065, 1
      %v2068 = vsel %vm1941, %v2063, %v2067
      %v2101 = vunpack.c.l.b16 %v1925
      %v2102 = vunpack.c.l.b16 %v1926
      %v2103 = vunpack.c.l.b16 %v1927
      %v2104 = vunpack.c.l.b16 %v1928
      %v2105 = vunpack.c.l.b16 %v1929
      %v2106 = vunpack.c.l.b16 %v1930
      %v2107 = vunpack.c.l.b16 %v1931
      %v2108 = vunpack.c.l.b16 %v1932
      %v2109 = vunpack.c.l.b16 %v1933
      %v2110 = vunpack.c.l.b16 %v1934
      %v2111 = vunpack.c.l.b16 %v1935
      %v2112 = vunpack.c.l.b16 %v1936
      %v2113 = vunpack.c.l.b16 %v1937
      %v2114 = vunpack.c.l.b16 %v1938
      %v2115 = vunpack.c.l.b16 %v1939
      %v2116 = vunpack.c.l.b16 %v1940
      %v2117 = vpack.c.b16 %v2102, %v2101
      %v2118 = vpack.c.b16 %v2104, %v2103
      %v2119 = vpack.c.b16 %v2106, %v2105
      %v2120 = vpack.c.b16 %v2108, %v2107
      %v2121 = vpack.c.b16 %v2110, %v2109
      %v2122 = vpack.c.b16 %v2112, %v2111
      %v2123 = vpack.c.b16 %v2114, %v2113
      %v2124 = vpack.c.b16 %v2116, %v2115
      %2133 = vmatprep.subr.bf16.mxu0 0
      %2134 = vmatpush1.bf16.msra.mxu0 %v2117
      %2135 = vmatprep.subr.bf16.mxu0 0
      %2136 = vmatpush1.bf16.msra.mxu0 %v2118
      %2137 = vmatprep.subr.bf16.mxu0 0
      %2138 = vmatpush1.bf16.msra.mxu0 %v2119
      %2139 = vmatprep.subr.bf16.mxu0 0
      %2140 = vmatpush1.bf16.msra.mxu0 %v2120
      %2141 = vmatprep.subr.bf16.mxu0 0
      %2142 = vmatpush1.bf16.msra.mxu0 %v2121
      %2143 = vmatprep.subr.bf16.mxu0 0
      %2144 = vmatpush1.bf16.msra.mxu0 %v2122
      %2145 = vmatprep.subr.bf16.mxu0 0
      %2146 = vmatpush1.bf16.msra.mxu0 %v2123
      %2147 = vmatprep.subr.bf16.mxu0 0
      %2148 = vmatpush1.bf16.msra.mxu0 %v2124
      %2149 = vmatprep.subr.bf16.mxu0 0
      %2150 = vmatpush1.bf16.msra.mxu0 0
      %2151 = vmatprep.subr.bf16.mxu0 0
      %2152 = vmatpush1.bf16.msra.mxu0 0
      %2153 = vmatprep.subr.bf16.mxu0 0
      %2154 = vmatpush1.bf16.msra.mxu0 0
      %2155 = vmatprep.subr.bf16.mxu0 0
      %2156 = vmatpush1.bf16.msra.mxu0 0
      %2157 = vmatprep.subr.bf16.mxu0 0
      %2158 = vmatpush1.bf16.msra.mxu0 0
      %2159 = vmatprep.subr.bf16.mxu0 0
      %2160 = vmatpush1.bf16.msra.mxu0 0
      %2161 = vmatprep.subr.bf16.mxu0 0
      %2162 = vmatpush1.bf16.msra.mxu0 0
      %2163 = vmatprep.subr.bf16.mxu0 0
      %2164 = vmatpush1.bf16.msra.mxu0 0
      %2165 = vmatprep.mubr.bf16.mxu0 0
      %2166 = vmatmul.mubr.bf16.gmra.mrb[0].mxu0 %v1948
      %v2167 = vpop.f32.mrb[0].mxu0
      %v2168 = vadd.f32 0.0, %v2167
      %v2169 = vpop.f32.mrb[0].mxu0
      %v2170 = vpop.f32.mrb[0].mxu0
      %v2171 = vadd.f32 0.0, %v2170
      %v2172 = vpop.f32.mrb[0].mxu0
      %2173 = vmatprep.mubr.bf16.mxu0 0
      %2174 = vmatmul.mubr.bf16.gmra.mrb[0].mxu0 %v1956
      %v2175 = vpop.f32.mrb[0].mxu0
      %v2176 = vadd.f32 0.0, %v2175
      %v2177 = vpop.f32.mrb[0].mxu0
      %v2178 = vpop.f32.mrb[0].mxu0
      %v2179 = vadd.f32 0.0, %v2178
      %v2180 = vpop.f32.mrb[0].mxu0
      %2181 = vmatprep.mubr.bf16.mxu0 0
      %2182 = vmatmul.mubr.bf16.gmra.mrb[0].mxu0 %v1964
      %v2183 = vpop.f32.mrb[0].mxu0
      %v2184 = vadd.f32 0.0, %v2183
      %v2185 = vpop.f32.mrb[0].mxu0
      %v2186 = vpop.f32.mrb[0].mxu0
      %v2187 = vadd.f32 0.0, %v2186
      %v2188 = vpop.f32.mrb[0].mxu0
      %2189 = vmatprep.mubr.bf16.mxu0 0
      %2190 = vmatmul.mubr.bf16.gmra.mrb[0].mxu0 %v1972
      %v2191 = vpop.f32.mrb[0].mxu0
      %v2192 = vadd.f32 0.0, %v2191
      %v2193 = vpop.f32.mrb[0].mxu0
      %v2194 = vpop.f32.mrb[0].mxu0
      %v2195 = vadd.f32 0.0, %v2194
      %v2196 = vpop.f32.mrb[0].mxu0
      %2197 = vmatprep.mubr.bf16.mxu0 0
      %2198 = vmatmul.mubr.bf16.gmra.mrb[0].mxu0 %v1980
      %v2199 = vpop.f32.mrb[0].mxu0
      %v2200 = vadd.f32 0.0, %v2199
      %v2201 = vpop.f32.mrb[0].mxu0
      %v2202 = vpop.f32.mrb[0].mxu0
      %v2203 = vadd.f32 0.0, %v2202
      %v2204 = vpop.f32.mrb[0].mxu0
      %2205 = vmatprep.mubr.bf16.mxu0 0
      %2206 = vmatmul.mubr.bf16.gmra.mrb[0].mxu0 %v1988
      %v2207 = vpop.f32.mrb[0].mxu0
      %v2208 = vadd.f32 0.0, %v2207
      %v2209 = vpop.f32.mrb[0].mxu0
      %v2210 = vpop.f32.mrb[0].mxu0
      %v2211 = vadd.f32 0.0, %v2210
      %v2212 = vpop.f32.mrb[0].mxu0
      %2213 = vmatprep.mubr.bf16.mxu0 0
      %2214 = vmatmul.mubr.bf16.gmra.mrb[0].mxu0 %v1996
      %v2215 = vpop.f32.mrb[0].mxu0
      %v2216 = vadd.f32 0.0, %v2215
      %v2217 = vpop.f32.mrb[0].mxu0
      %v2218 = vpop.f32.mrb[0].mxu0
      %v2219 = vadd.f32 0.0, %v2218
      %v2220 = vpop.f32.mrb[0].mxu0
      %2221 = vmatprep.mubr.bf16.mxu0 0
      %2222 = vmatmul.mubr.bf16.gmra.mrb[0].mxu0 %v2004
      %v2223 = vpop.f32.mrb[0].mxu0
      %v2224 = vadd.f32 0.0, %v2223
      %v2225 = vpop.f32.mrb[0].mxu0
      %v2226 = vpop.f32.mrb[0].mxu0
      %v2227 = vadd.f32 0.0, %v2226
      %v2228 = vpop.f32.mrb[0].mxu0
      %2229 = vmatprep.mubr.bf16.mxu0 0
      %2230 = vmatmul.mubr.bf16.gmra.mrb[0].mxu0 %v2012
      %v2231 = vpop.f32.mrb[0].mxu0
      %v2232 = vadd.f32 0.0, %v2231
      %v2233 = vpop.f32.mrb[0].mxu0
      %v2234 = vpop.f32.mrb[0].mxu0
      %v2235 = vadd.f32 0.0, %v2234
      %v2236 = vpop.f32.mrb[0].mxu0
      %2237 = vmatprep.mubr.bf16.mxu0 0
      %2238 = vmatmul.mubr.bf16.gmra.mrb[0].mxu0 %v2020
      %v2239 = vpop.f32.mrb[0].mxu0
      %v2240 = vadd.f32 0.0, %v2239
      %v2241 = vpop.f32.mrb[0].mxu0
      %v2242 = vpop.f32.mrb[0].mxu0
      %v2243 = vadd.f32 0.0, %v2242
      %v2244 = vpop.f32.mrb[0].mxu0
      %2245 = vmatprep.mubr.bf16.mxu0 0
      %2246 = vmatmul.mubr.bf16.gmra.mrb[0].mxu0 %v2028
      %v2247 = vpop.f32.mrb[0].mxu0
      %v2248 = vadd.f32 0.0, %v2247
      %v2249 = vpop.f32.mrb[0].mxu0
      %v2250 = vpop.f32.mrb[0].mxu0
      %v2251 = vadd.f32 0.0, %v2250
      %v2252 = vpop.f32.mrb[0].mxu0
      %2253 = vmatprep.mubr.bf16.mxu0 0
      %2254 = vmatmul.mubr.bf16.gmra.mrb[0].mxu0 %v2036
      %v2255 = vpop.f32.mrb[0].mxu0
      %v2256 = vadd.f32 0.0, %v2255
      %v2257 = vpop.f32.mrb[0].mxu0
      %v2258 = vpop.f32.mrb[0].mxu0
      %v2259 = vadd.f32 0.0, %v2258
      %v2260 = vpop.f32.mrb[0].mxu0
      %2261 = vmatprep.mubr.bf16.mxu0 0
      %2262 = vmatmul.mubr.bf16.gmra.mrb[0].mxu0 %v2044
      %v2263 = vpop.f32.mrb[0].mxu0
      %v2264 = vadd.f32 0.0, %v2263
      %v2265 = vpop.f32.mrb[0].mxu0
      %v2266 = vpop.f32.mrb[0].mxu0
      %v2267 = vadd.f32 0.0, %v2266
      %v2268 = vpop.f32.mrb[0].mxu0
      %2269 = vmatprep.mubr.bf16.mxu0 0
      %2270 = vmatmul.mubr.bf16.gmra.mrb[0].mxu0 %v2052
      %v2271 = vpop.f32.mrb[0].mxu0
      %v2272 = vadd.f32 0.0, %v2271
      %v2273 = vpop.f32.mrb[0].mxu0
      %v2274 = vpop.f32.mrb[0].mxu0
      %v2275 = vadd.f32 0.0, %v2274
      %v2276 = vpop.f32.mrb[0].mxu0
      %2277 = vmatprep.mubr.bf16.mxu0 0
      %2278 = vmatmul.mubr.bf16.gmra.mrb[0].mxu0 %v2060
      %v2279 = vpop.f32.mrb[0].mxu0
      %v2280 = vadd.f32 0.0, %v2279
      %v2281 = vpop.f32.mrb[0].mxu0
      %v2282 = vpop.f32.mrb[0].mxu0
      %v2283 = vadd.f32 0.0, %v2282
      %v2284 = vpop.f32.mrb[0].mxu0
      %2285 = vmatprep.mubr.bf16.mxu0 0
      %2286 = vmatmul.mubr.bf16.gmra.mrb[0].mxu0 %v2068
      %v2287 = vpop.f32.mrb[0].mxu0
      %v2288 = vadd.f32 0.0, %v2287
      %v2289 = vpop.f32.mrb[0].mxu0
      %v2290 = vpop.f32.mrb[0].mxu0
      %v2291 = vadd.f32 0.0, %v2290
      %v2292 = vpop.f32.mrb[0].mxu0
      %2293 = vdwg.mxu0
      %v2294 = vadd.f32 %v1798, %v2168
      %v2295 = vadd.f32 %v1801, %v2171
      %v2296 = vadd.f32 %v1806, %v2176
      %v2297 = vadd.f32 %v1809, %v2179
      %v2298 = vadd.f32 %v1814, %v2184
      %v2299 = vadd.f32 %v1817, %v2187
      %v2300 = vadd.f32 %v1822, %v2192
      %v2301 = vadd.f32 %v1825, %v2195
      %v2302 = vadd.f32 %v1830, %v2200
      %v2303 = vadd.f32 %v1833, %v2203
      %v2304 = vadd.f32 %v1838, %v2208
      %v2305 = vadd.f32 %v1841, %v2211
      %v2306 = vadd.f32 %v1846, %v2216
      %v2307 = vadd.f32 %v1849, %v2219
      %v2308 = vadd.f32 %v1854, %v2224
      %v2309 = vadd.f32 %v1857, %v2227
      %v2310 = vadd.f32 %v1862, %v2232
      %v2311 = vadd.f32 %v1865, %v2235
      %v2312 = vadd.f32 %v1870, %v2240
      %v2313 = vadd.f32 %v1873, %v2243
      %v2314 = vadd.f32 %v1878, %v2248
      %v2315 = vadd.f32 %v1881, %v2251
      %v2316 = vadd.f32 %v1886, %v2256
      %v2317 = vadd.f32 %v1889, %v2259
      %v2318 = vadd.f32 %v1894, %v2264
      %v2319 = vadd.f32 %v1897, %v2267
      %v2320 = vadd.f32 %v1902, %v2272
      %v2321 = vadd.f32 %v1905, %v2275
      %v2322 = vadd.f32 %v1910, %v2280
      %v2323 = vadd.f32 %v1913, %v2283
      %v2324 = vadd.f32 %v1918, %v2288
      %v2325 = vadd.f32 %v1921, %v2291
      %s2326 = scalar_lea.vmem %s3, 192
      %v2327 = vld [vmem:[%s2326] sm:$0xf]
      %v2328 = vld [vmem:[%s2326 + $0x4] sm:$0xf]
      %v2329 = vld [vmem:[%s2326 + $0x8] sm:$0xf]
      %v2330 = vld [vmem:[%s2326 + $0xc] sm:$0xf]
      %v2331 = vld [vmem:[%s2326 + $0x10] sm:$0xf]
      %v2332 = vld [vmem:[%s2326 + $0x14] sm:$0xf]
      %v2333 = vld [vmem:[%s2326 + $0x18] sm:$0xf]
      %v2334 = vld [vmem:[%s2326 + $0x1c] sm:$0xf]
      %v2335 = vld [vmem:[%s2326 + $0x20] sm:$0xf]
      %v2336 = vld [vmem:[%s2326 + $0x24] sm:$0xf]
      %v2337 = vld [vmem:[%s2326 + $0x28] sm:$0xf]
      %v2338 = vld [vmem:[%s2326 + $0x2c] sm:$0xf]
      %v2339 = vld [vmem:[%s2326 + $0x30] sm:$0xf]
      %v2340 = vld [vmem:[%s2326 + $0x34] sm:$0xf]
      %v2341 = vld [vmem:[%s2326 + $0x38] sm:$0xf]
      %v2342 = vld [vmem:[%s2326 + $0x3c] sm:$0xf]
      %v2344 = vshrl.u32 %v1087, 16
      %v2346 = vrot.slane %v2344, 7
      %v2347 = vshll.u32 %v1087, 16
      %v2349 = vor.u32 %v2346, %v2347
      %v2350 = vsel %vm1570, %v1694, %v2349
      %v2368 = vunpack.c.l.b16 %v2327
      %v2369 = vunpack.c.l.b16 %v2328
      %v2370 = vunpack.c.l.b16 %v2329
      %v2371 = vunpack.c.l.b16 %v2330
      %v2372 = vunpack.c.l.b16 %v2331
      %v2373 = vunpack.c.l.b16 %v2332
      %v2374 = vunpack.c.l.b16 %v2333
      %v2375 = vunpack.c.l.b16 %v2334
      %v2376 = vunpack.c.l.b16 %v2335
      %v2377 = vunpack.c.l.b16 %v2336
      %v2378 = vunpack.c.l.b16 %v2337
      %v2379 = vunpack.c.l.b16 %v2338
      %v2380 = vunpack.c.l.b16 %v2339
      %v2381 = vunpack.c.l.b16 %v2340
      %v2382 = vunpack.c.l.b16 %v2341
      %v2383 = vunpack.c.l.b16 %v2342
      %v2384 = vpack.c.b16 %v2369, %v2368
      %v2385 = vpack.c.b16 %v2371, %v2370
      %v2386 = vpack.c.b16 %v2373, %v2372
      %v2387 = vpack.c.b16 %v2375, %v2374
      %v2388 = vpack.c.b16 %v2377, %v2376
      %v2389 = vpack.c.b16 %v2379, %v2378
      %v2390 = vpack.c.b16 %v2381, %v2380
      %v2391 = vpack.c.b16 %v2383, %v2382
      %2400 = vmatprep.subr.bf16.mxu0 0
      %2401 = vmatpush1.bf16.msra.mxu0 %v2384
      %2402 = vmatprep.subr.bf16.mxu0 0
      %2403 = vmatpush1.bf16.msra.mxu0 %v2385
      %2404 = vmatprep.subr.bf16.mxu0 0
      %2405 = vmatpush1.bf16.msra.mxu0 %v2386
      %2406 = vmatprep.subr.bf16.mxu0 0
      %2407 = vmatpush1.bf16.msra.mxu0 %v2387
      %2408 = vmatprep.subr.bf16.mxu0 0
      %2409 = vmatpush1.bf16.msra.mxu0 %v2388
      %2410 = vmatprep.subr.bf16.mxu0 0
      %2411 = vmatpush1.bf16.msra.mxu0 %v2389
      %2412 = vmatprep.subr.bf16.mxu0 0
      %2413 = vmatpush1.bf16.msra.mxu0 %v2390
      %2414 = vmatprep.subr.bf16.mxu0 0
      %2415 = vmatpush1.bf16.msra.mxu0 %v2391
      %2416 = vmatprep.subr.bf16.mxu0 0
      %2417 = vmatpush1.bf16.msra.mxu0 0
      %2418 = vmatprep.subr.bf16.mxu0 0
      %2419 = vmatpush1.bf16.msra.mxu0 0
      %2420 = vmatprep.subr.bf16.mxu0 0
      %2421 = vmatpush1.bf16.msra.mxu0 0
      %2422 = vmatprep.subr.bf16.mxu0 0
      %2423 = vmatpush1.bf16.msra.mxu0 0
      %2424 = vmatprep.subr.bf16.mxu0 0
      %2425 = vmatpush1.bf16.msra.mxu0 0
      %2426 = vmatprep.subr.bf16.mxu0 0
      %2427 = vmatpush1.bf16.msra.mxu0 0
      %2428 = vmatprep.subr.bf16.mxu0 0
      %2429 = vmatpush1.bf16.msra.mxu0 0
      %2430 = vmatprep.subr.bf16.mxu0 0
      %2431 = vmatpush1.bf16.msra.mxu0 0
      %2432 = vmatprep.mubr.bf16.mxu0 0
      %2433 = vmatmul.mubr.bf16.gmra.mrb[0].mxu0 %v1586
      %v2434 = vpop.f32.mrb[0].mxu0
      %v2435 = vadd.f32 0.0, %v2434
      %v2436 = vpop.f32.mrb[0].mxu0
      %v2437 = vpop.f32.mrb[0].mxu0
      %v2438 = vadd.f32 0.0, %v2437
      %v2439 = vpop.f32.mrb[0].mxu0
      %2440 = vmatprep.mubr.bf16.mxu0 0
      %2441 = vmatmul.mubr.bf16.gmra.mrb[0].mxu0 %v1594
      %v2442 = vpop.f32.mrb[0].mxu0
      %v2443 = vadd.f32 0.0, %v2442
      %v2444 = vpop.f32.mrb[0].mxu0
      %v2445 = vpop.f32.mrb[0].mxu0
      %v2446 = vadd.f32 0.0, %v2445
      %v2447 = vpop.f32.mrb[0].mxu0
      %2448 = vmatprep.mubr.bf16.mxu0 0
      %2449 = vmatmul.mubr.bf16.gmra.mrb[0].mxu0 %v1602
      %v2450 = vpop.f32.mrb[0].mxu0
      %v2451 = vadd.f32 0.0, %v2450
      %v2452 = vpop.f32.mrb[0].mxu0
      %v2453 = vpop.f32.mrb[0].mxu0
      %v2454 = vadd.f32 0.0, %v2453
      %v2455 = vpop.f32.mrb[0].mxu0
      %2456 = vmatprep.mubr.bf16.mxu0 0
      %2457 = vmatmul.mubr.bf16.gmra.mrb[0].mxu0 %v1610
      %v2458 = vpop.f32.mrb[0].mxu0
      %v2459 = vadd.f32 0.0, %v2458
      %v2460 = vpop.f32.mrb[0].mxu0
      %v2461 = vpop.f32.mrb[0].mxu0
      %v2462 = vadd.f32 0.0, %v2461
      %v2463 = vpop.f32.mrb[0].mxu0
      %2464 = vmatprep.mubr.bf16.mxu0 0
      %2465 = vmatmul.mubr.bf16.gmra.mrb[0].mxu0 %v1618
      %v2466 = vpop.f32.mrb[0].mxu0
      %v2467 = vadd.f32 0.0, %v2466
      %v2468 = vpop.f32.mrb[0].mxu0
      %v2469 = vpop.f32.mrb[0].mxu0
      %v2470 = vadd.f32 0.0, %v2469
      %v2471 = vpop.f32.mrb[0].mxu0
      %2472 = vmatprep.mubr.bf16.mxu0 0
      %2473 = vmatmul.mubr.bf16.gmra.mrb[0].mxu0 %v1626
      %v2474 = vpop.f32.mrb[0].mxu0
      %v2475 = vadd.f32 0.0, %v2474
      %v2476 = vpop.f32.mrb[0].mxu0
      %v2477 = vpop.f32.mrb[0].mxu0
      %v2478 = vadd.f32 0.0, %v2477
      %v2479 = vpop.f32.mrb[0].mxu0
      %2480 = vmatprep.mubr.bf16.mxu0 0
      %2481 = vmatmul.mubr.bf16.gmra.mrb[0].mxu0 %v1634
      %v2482 = vpop.f32.mrb[0].mxu0
      %v2483 = vadd.f32 0.0, %v2482
      %v2484 = vpop.f32.mrb[0].mxu0
      %v2485 = vpop.f32.mrb[0].mxu0
      %v2486 = vadd.f32 0.0, %v2485
      %v2487 = vpop.f32.mrb[0].mxu0
      %2488 = vmatprep.mubr.bf16.mxu0 0
      %2489 = vmatmul.mubr.bf16.gmra.mrb[0].mxu0 %v1642
      %v2490 = vpop.f32.mrb[0].mxu0
      %v2491 = vadd.f32 0.0, %v2490
      %v2492 = vpop.f32.mrb[0].mxu0
      %v2493 = vpop.f32.mrb[0].mxu0
      %v2494 = vadd.f32 0.0, %v2493
      %v2495 = vpop.f32.mrb[0].mxu0
      %2496 = vmatprep.mubr.bf16.mxu0 0
      %2497 = vmatmul.mubr.bf16.gmra.mrb[0].mxu0 %v1650
      %v2498 = vpop.f32.mrb[0].mxu0
      %v2499 = vadd.f32 0.0, %v2498
      %v2500 = vpop.f32.mrb[0].mxu0
      %v2501 = vpop.f32.mrb[0].mxu0
      %v2502 = vadd.f32 0.0, %v2501
      %v2503 = vpop.f32.mrb[0].mxu0
      %2504 = vmatprep.mubr.bf16.mxu0 0
      %2505 = vmatmul.mubr.bf16.gmra.mrb[0].mxu0 %v1658
      %v2506 = vpop.f32.mrb[0].mxu0
      %v2507 = vadd.f32 0.0, %v2506
      %v2508 = vpop.f32.mrb[0].mxu0
      %v2509 = vpop.f32.mrb[0].mxu0
      %v2510 = vadd.f32 0.0, %v2509
      %v2511 = vpop.f32.mrb[0].mxu0
      %2512 = vmatprep.mubr.bf16.mxu0 0
      %2513 = vmatmul.mubr.bf16.gmra.mrb[0].mxu0 %v1666
      %v2514 = vpop.f32.mrb[0].mxu0
      %v2515 = vadd.f32 0.0, %v2514
      %v2516 = vpop.f32.mrb[0].mxu0
      %v2517 = vpop.f32.mrb[0].mxu0
      %v2518 = vadd.f32 0.0, %v2517
      %v2519 = vpop.f32.mrb[0].mxu0
      %2520 = vmatprep.mubr.bf16.mxu0 0
      %2521 = vmatmul.mubr.bf16.gmra.mrb[0].mxu0 %v1674
      %v2522 = vpop.f32.mrb[0].mxu0
      %v2523 = vadd.f32 0.0, %v2522
      %v2524 = vpop.f32.mrb[0].mxu0
      %v2525 = vpop.f32.mrb[0].mxu0
      %v2526 = vadd.f32 0.0, %v2525
      %v2527 = vpop.f32.mrb[0].mxu0
      %2528 = vmatprep.mubr.bf16.mxu0 0
      %2529 = vmatmul.mubr.bf16.gmra.mrb[0].mxu0 %v1682
      %v2530 = vpop.f32.mrb[0].mxu0
      %v2531 = vadd.f32 0.0, %v2530
      %v2532 = vpop.f32.mrb[0].mxu0
      %v2533 = vpop.f32.mrb[0].mxu0
      %v2534 = vadd.f32 0.0, %v2533
      %v2535 = vpop.f32.mrb[0].mxu0
      %2536 = vmatprep.mubr.bf16.mxu0 0
      %2537 = vmatmul.mubr.bf16.gmra.mrb[0].mxu0 %v1690
      %v2538 = vpop.f32.mrb[0].mxu0
      %v2539 = vadd.f32 0.0, %v2538
      %v2540 = vpop.f32.mrb[0].mxu0
      %v2541 = vpop.f32.mrb[0].mxu0
      %v2542 = vadd.f32 0.0, %v2541
      %v2543 = vpop.f32.mrb[0].mxu0
      %2544 = vmatprep.mubr.bf16.mxu0 0
      %2545 = vmatmul.mubr.bf16.gmra.mrb[0].mxu0 %v1698
      %v2546 = vpop.f32.mrb[0].mxu0
      %v2547 = vadd.f32 0.0, %v2546
      %v2548 = vpop.f32.mrb[0].mxu0
      %v2549 = vpop.f32.mrb[0].mxu0
      %v2550 = vadd.f32 0.0, %v2549
      %v2551 = vpop.f32.mrb[0].mxu0
      %2552 = vmatprep.mubr.bf16.mxu0 0
      %2553 = vmatmul.mubr.bf16.gmra.mrb[0].mxu0 %v2350
      %v2554 = vpop.f32.mrb[0].mxu0
      %v2555 = vadd.f32 0.0, %v2554
      %v2556 = vpop.f32.mrb[0].mxu0
      %v2557 = vpop.f32.mrb[0].mxu0
      %v2558 = vadd.f32 0.0, %v2557
      %v2559 = vpop.f32.mrb[0].mxu0
      %2560 = vdwg.mxu0
      %v2561 = vadd.f32 %v2294, %v2435
      %v2562 = vadd.f32 %v2295, %v2438
      %v2563 = vadd.f32 %v2296, %v2443
      %v2564 = vadd.f32 %v2297, %v2446
      %v2565 = vadd.f32 %v2298, %v2451
      %v2566 = vadd.f32 %v2299, %v2454
      %v2567 = vadd.f32 %v2300, %v2459
      %v2568 = vadd.f32 %v2301, %v2462
      %v2569 = vadd.f32 %v2302, %v2467
      %v2570 = vadd.f32 %v2303, %v2470
      %v2571 = vadd.f32 %v2304, %v2475
      %v2572 = vadd.f32 %v2305, %v2478
      %v2573 = vadd.f32 %v2306, %v2483
      %v2574 = vadd.f32 %v2307, %v2486
      %v2575 = vadd.f32 %v2308, %v2491
      %v2576 = vadd.f32 %v2309, %v2494
      %v2577 = vadd.f32 %v2310, %v2499
      %v2578 = vadd.f32 %v2311, %v2502
      %v2579 = vadd.f32 %v2312, %v2507
      %v2580 = vadd.f32 %v2313, %v2510
      %v2581 = vadd.f32 %v2314, %v2515
      %v2582 = vadd.f32 %v2315, %v2518
      %v2583 = vadd.f32 %v2316, %v2523
      %v2584 = vadd.f32 %v2317, %v2526
      %v2585 = vadd.f32 %v2318, %v2531
      %v2586 = vadd.f32 %v2319, %v2534
      %v2587 = vadd.f32 %v2320, %v2539
      %v2588 = vadd.f32 %v2321, %v2542
      %v2589 = vadd.f32 %v2322, %v2547
      %v2590 = vadd.f32 %v2323, %v2550
      %v2591 = vadd.f32 %v2324, %v2555
      %v2592 = vadd.f32 %v2325, %v2558
      %s2593 = scalar_lea.vmem %s3, 256
      %v2594 = vld [vmem:[%s2593] sm:$0xf]
      %v2595 = vld [vmem:[%s2593 + $0x4] sm:$0xf]
      %v2596 = vld [vmem:[%s2593 + $0x8] sm:$0xf]
      %v2597 = vld [vmem:[%s2593 + $0xc] sm:$0xf]
      %v2598 = vld [vmem:[%s2593 + $0x10] sm:$0xf]
      %v2599 = vld [vmem:[%s2593 + $0x14] sm:$0xf]
      %v2600 = vld [vmem:[%s2593 + $0x18] sm:$0xf]
      %v2601 = vld [vmem:[%s2593 + $0x1c] sm:$0xf]
      %v2602 = vld [vmem:[%s2593 + $0x20] sm:$0xf]
      %v2603 = vld [vmem:[%s2593 + $0x24] sm:$0xf]
      %v2604 = vld [vmem:[%s2593 + $0x28] sm:$0xf]
      %v2605 = vld [vmem:[%s2593 + $0x2c] sm:$0xf]
      %v2606 = vld [vmem:[%s2593 + $0x30] sm:$0xf]
      %v2607 = vld [vmem:[%s2593 + $0x34] sm:$0xf]
      %v2608 = vld [vmem:[%s2593 + $0x38] sm:$0xf]
      %v2609 = vld [vmem:[%s2593 + $0x3c] sm:$0xf]
      %v2626 = vunpack.c.l.b16 %v2594
      %v2627 = vunpack.c.l.b16 %v2595
      %v2628 = vunpack.c.l.b16 %v2596
      %v2629 = vunpack.c.l.b16 %v2597
      %v2630 = vunpack.c.l.b16 %v2598
      %v2631 = vunpack.c.l.b16 %v2599
      %v2632 = vunpack.c.l.b16 %v2600
      %v2633 = vunpack.c.l.b16 %v2601
      %v2634 = vunpack.c.l.b16 %v2602
      %v2635 = vunpack.c.l.b16 %v2603
      %v2636 = vunpack.c.l.b16 %v2604
      %v2637 = vunpack.c.l.b16 %v2605
      %v2638 = vunpack.c.l.b16 %v2606
      %v2639 = vunpack.c.l.b16 %v2607
      %v2640 = vunpack.c.l.b16 %v2608
      %v2641 = vunpack.c.l.b16 %v2609
      %v2642 = vpack.c.b16 %v2627, %v2626
      %v2643 = vpack.c.b16 %v2629, %v2628
      %v2644 = vpack.c.b16 %v2631, %v2630
      %v2645 = vpack.c.b16 %v2633, %v2632
      %v2646 = vpack.c.b16 %v2635, %v2634
      %v2647 = vpack.c.b16 %v2637, %v2636
      %v2648 = vpack.c.b16 %v2639, %v2638
      %v2649 = vpack.c.b16 %v2641, %v2640
      %2658 = vmatprep.subr.bf16.mxu0 0
      %2659 = vmatpush1.bf16.msra.mxu0 %v2642
      %2660 = vmatprep.subr.bf16.mxu0 0
      %2661 = vmatpush1.bf16.msra.mxu0 %v2643
      %2662 = vmatprep.subr.bf16.mxu0 0
      %2663 = vmatpush1.bf16.msra.mxu0 %v2644
      %2664 = vmatprep.subr.bf16.mxu0 0
      %2665 = vmatpush1.bf16.msra.mxu0 %v2645
      %2666 = vmatprep.subr.bf16.mxu0 0
      %2667 = vmatpush1.bf16.msra.mxu0 %v2646
      %2668 = vmatprep.subr.bf16.mxu0 0
      %2669 = vmatpush1.bf16.msra.mxu0 %v2647
      %2670 = vmatprep.subr.bf16.mxu0 0
      %2671 = vmatpush1.bf16.msra.mxu0 %v2648
      %2672 = vmatprep.subr.bf16.mxu0 0
      %2673 = vmatpush1.bf16.msra.mxu0 %v2649
      %2674 = vmatprep.subr.bf16.mxu0 0
      %2675 = vmatpush1.bf16.msra.mxu0 0
      %2676 = vmatprep.subr.bf16.mxu0 0
      %2677 = vmatpush1.bf16.msra.mxu0 0
      %2678 = vmatprep.subr.bf16.mxu0 0
      %2679 = vmatpush1.bf16.msra.mxu0 0
      %2680 = vmatprep.subr.bf16.mxu0 0
      %2681 = vmatpush1.bf16.msra.mxu0 0
      %2682 = vmatprep.subr.bf16.mxu0 0
      %2683 = vmatpush1.bf16.msra.mxu0 0
      %2684 = vmatprep.subr.bf16.mxu0 0
      %2685 = vmatpush1.bf16.msra.mxu0 0
      %2686 = vmatprep.subr.bf16.mxu0 0
      %2687 = vmatpush1.bf16.msra.mxu0 0
      %2688 = vmatprep.subr.bf16.mxu0 0
      %2689 = vmatpush1.bf16.msra.mxu0 0
      %2690 = vmatprep.mubr.bf16.mxu0 0
      %2691 = vmatmul.mubr.bf16.gmra.mrb[0].mxu0 %v414
      %v2692 = vpop.f32.mrb[0].mxu0
      %v2693 = vadd.f32 0.0, %v2692
      %v2694 = vpop.f32.mrb[0].mxu0
      %v2695 = vpop.f32.mrb[0].mxu0
      %v2696 = vadd.f32 0.0, %v2695
      %v2697 = vpop.f32.mrb[0].mxu0
      %2698 = vmatprep.mubr.bf16.mxu0 0
      %2699 = vmatmul.mubr.bf16.gmra.mrb[0].mxu0 %v415
      %v2700 = vpop.f32.mrb[0].mxu0
      %v2701 = vadd.f32 0.0, %v2700
      %v2702 = vpop.f32.mrb[0].mxu0
      %v2703 = vpop.f32.mrb[0].mxu0
      %v2704 = vadd.f32 0.0, %v2703
      %v2705 = vpop.f32.mrb[0].mxu0
      %2706 = vmatprep.mubr.bf16.mxu0 0
      %2707 = vmatmul.mubr.bf16.gmra.mrb[0].mxu0 %v416
      %v2708 = vpop.f32.mrb[0].mxu0
      %v2709 = vadd.f32 0.0, %v2708
      %v2710 = vpop.f32.mrb[0].mxu0
      %v2711 = vpop.f32.mrb[0].mxu0
      %v2712 = vadd.f32 0.0, %v2711
      %v2713 = vpop.f32.mrb[0].mxu0
      %2714 = vmatprep.mubr.bf16.mxu0 0
      %2715 = vmatmul.mubr.bf16.gmra.mrb[0].mxu0 %v417
      %v2716 = vpop.f32.mrb[0].mxu0
      %v2717 = vadd.f32 0.0, %v2716
      %v2718 = vpop.f32.mrb[0].mxu0
      %v2719 = vpop.f32.mrb[0].mxu0
      %v2720 = vadd.f32 0.0, %v2719
      %v2721 = vpop.f32.mrb[0].mxu0
      %2722 = vmatprep.mubr.bf16.mxu0 0
      %2723 = vmatmul.mubr.bf16.gmra.mrb[0].mxu0 %v418
      %v2724 = vpop.f32.mrb[0].mxu0
      %v2725 = vadd.f32 0.0, %v2724
      %v2726 = vpop.f32.mrb[0].mxu0
      %v2727 = vpop.f32.mrb[0].mxu0
      %v2728 = vadd.f32 0.0, %v2727
      %v2729 = vpop.f32.mrb[0].mxu0
      %2730 = vmatprep.mubr.bf16.mxu0 0
      %2731 = vmatmul.mubr.bf16.gmra.mrb[0].mxu0 %v419
      %v2732 = vpop.f32.mrb[0].mxu0
      %v2733 = vadd.f32 0.0, %v2732
      %v2734 = vpop.f32.mrb[0].mxu0
      %v2735 = vpop.f32.mrb[0].mxu0
      %v2736 = vadd.f32 0.0, %v2735
      %v2737 = vpop.f32.mrb[0].mxu0
      %2738 = vmatprep.mubr.bf16.mxu0 0
      %2739 = vmatmul.mubr.bf16.gmra.mrb[0].mxu0 %v420
      %v2740 = vpop.f32.mrb[0].mxu0
      %v2741 = vadd.f32 0.0, %v2740
      %v2742 = vpop.f32.mrb[0].mxu0
      %v2743 = vpop.f32.mrb[0].mxu0
      %v2744 = vadd.f32 0.0, %v2743
      %v2745 = vpop.f32.mrb[0].mxu0
      %2746 = vmatprep.mubr.bf16.mxu0 0
      %2747 = vmatmul.mubr.bf16.gmra.mrb[0].mxu0 %v421
      %v2748 = vpop.f32.mrb[0].mxu0
      %v2749 = vadd.f32 0.0, %v2748
      %v2750 = vpop.f32.mrb[0].mxu0
      %v2751 = vpop.f32.mrb[0].mxu0
      %v2752 = vadd.f32 0.0, %v2751
      %v2753 = vpop.f32.mrb[0].mxu0
      %2754 = vmatprep.mubr.bf16.mxu0 0
      %2755 = vmatmul.mubr.bf16.gmra.mrb[0].mxu0 %v422
      %v2756 = vpop.f32.mrb[0].mxu0
      %v2757 = vadd.f32 0.0, %v2756
      %v2758 = vpop.f32.mrb[0].mxu0
      %v2759 = vpop.f32.mrb[0].mxu0
      %v2760 = vadd.f32 0.0, %v2759
      %v2761 = vpop.f32.mrb[0].mxu0
      %2762 = vmatprep.mubr.bf16.mxu0 0
      %2763 = vmatmul.mubr.bf16.gmra.mrb[0].mxu0 %v423
      %v2764 = vpop.f32.mrb[0].mxu0
      %v2765 = vadd.f32 0.0, %v2764
      %v2766 = vpop.f32.mrb[0].mxu0
      %v2767 = vpop.f32.mrb[0].mxu0
      %v2768 = vadd.f32 0.0, %v2767
      %v2769 = vpop.f32.mrb[0].mxu0
      %2770 = vmatprep.mubr.bf16.mxu0 0
      %2771 = vmatmul.mubr.bf16.gmra.mrb[0].mxu0 %v424
      %v2772 = vpop.f32.mrb[0].mxu0
      %v2773 = vadd.f32 0.0, %v2772
      %v2774 = vpop.f32.mrb[0].mxu0
      %v2775 = vpop.f32.mrb[0].mxu0
      %v2776 = vadd.f32 0.0, %v2775
      %v2777 = vpop.f32.mrb[0].mxu0
      %2778 = vmatprep.mubr.bf16.mxu0 0
      %2779 = vmatmul.mubr.bf16.gmra.mrb[0].mxu0 %v425
      %v2780 = vpop.f32.mrb[0].mxu0
      %v2781 = vadd.f32 0.0, %v2780
      %v2782 = vpop.f32.mrb[0].mxu0
      %v2783 = vpop.f32.mrb[0].mxu0
      %v2784 = vadd.f32 0.0, %v2783
      %v2785 = vpop.f32.mrb[0].mxu0
      %2786 = vmatprep.mubr.bf16.mxu0 0
      %2787 = vmatmul.mubr.bf16.gmra.mrb[0].mxu0 %v426
      %v2788 = vpop.f32.mrb[0].mxu0
      %v2789 = vadd.f32 0.0, %v2788
      %v2790 = vpop.f32.mrb[0].mxu0
      %v2791 = vpop.f32.mrb[0].mxu0
      %v2792 = vadd.f32 0.0, %v2791
      %v2793 = vpop.f32.mrb[0].mxu0
      %2794 = vmatprep.mubr.bf16.mxu0 0
      %2795 = vmatmul.mubr.bf16.gmra.mrb[0].mxu0 %v427
      %v2796 = vpop.f32.mrb[0].mxu0
      %v2797 = vadd.f32 0.0, %v2796
      %v2798 = vpop.f32.mrb[0].mxu0
      %v2799 = vpop.f32.mrb[0].mxu0
      %v2800 = vadd.f32 0.0, %v2799
      %v2801 = vpop.f32.mrb[0].mxu0
      %2802 = vmatprep.mubr.bf16.mxu0 0
      %2803 = vmatmul.mubr.bf16.gmra.mrb[0].mxu0 %v428
      %v2804 = vpop.f32.mrb[0].mxu0
      %v2805 = vadd.f32 0.0, %v2804
      %v2806 = vpop.f32.mrb[0].mxu0
      %v2807 = vpop.f32.mrb[0].mxu0
      %v2808 = vadd.f32 0.0, %v2807
      %v2809 = vpop.f32.mrb[0].mxu0
      %2810 = vmatprep.mubr.bf16.mxu0 0
      %2811 = vmatmul.mubr.bf16.gmra.mrb[0].mxu0 %v429
      %v2812 = vpop.f32.mrb[0].mxu0
      %v2813 = vadd.f32 0.0, %v2812
      %v2814 = vpop.f32.mrb[0].mxu0
      %v2815 = vpop.f32.mrb[0].mxu0
      %v2816 = vadd.f32 0.0, %v2815
      %v2817 = vpop.f32.mrb[0].mxu0
      %2818 = vdwg.mxu0
      %v2819 = vadd.f32 %v2561, %v2693
      %v2820 = vadd.f32 %v2562, %v2696
      %v2821 = vadd.f32 %v2563, %v2701
      %v2822 = vadd.f32 %v2564, %v2704
      %v2823 = vadd.f32 %v2565, %v2709
      %v2824 = vadd.f32 %v2566, %v2712
      %v2825 = vadd.f32 %v2567, %v2717
      %v2826 = vadd.f32 %v2568, %v2720
      %v2827 = vadd.f32 %v2569, %v2725
      %v2828 = vadd.f32 %v2570, %v2728
      %v2829 = vadd.f32 %v2571, %v2733
      %v2830 = vadd.f32 %v2572, %v2736
      %v2831 = vadd.f32 %v2573, %v2741
      %v2832 = vadd.f32 %v2574, %v2744
      %v2833 = vadd.f32 %v2575, %v2749
      %v2834 = vadd.f32 %v2576, %v2752
      %v2835 = vadd.f32 %v2577, %v2757
      %v2836 = vadd.f32 %v2578, %v2760
      %v2837 = vadd.f32 %v2579, %v2765
      %v2838 = vadd.f32 %v2580, %v2768
      %v2839 = vadd.f32 %v2581, %v2773
      %v2840 = vadd.f32 %v2582, %v2776
      %v2841 = vadd.f32 %v2583, %v2781
      %v2842 = vadd.f32 %v2584, %v2784
      %v2843 = vadd.f32 %v2585, %v2789
      %v2844 = vadd.f32 %v2586, %v2792
      %v2845 = vadd.f32 %v2587, %v2797
      %v2846 = vadd.f32 %v2588, %v2800
      %v2847 = vadd.f32 %v2589, %v2805
      %v2848 = vadd.f32 %v2590, %v2808
      %v2849 = vadd.f32 %v2591, %v2813
      %v2850 = vadd.f32 %v2592, %v2816
      %s2851 = scalar_lea.vmem %s3, 320
      %v2852 = vld [vmem:[%s2851] sm:$0xf]
      %v2853 = vld [vmem:[%s2851 + $0x4] sm:$0xf]
      %v2854 = vld [vmem:[%s2851 + $0x8] sm:$0xf]
      %v2855 = vld [vmem:[%s2851 + $0xc] sm:$0xf]
      %v2856 = vld [vmem:[%s2851 + $0x10] sm:$0xf]
      %v2857 = vld [vmem:[%s2851 + $0x14] sm:$0xf]
      %v2858 = vld [vmem:[%s2851 + $0x18] sm:$0xf]
      %v2859 = vld [vmem:[%s2851 + $0x1c] sm:$0xf]
      %v2860 = vld [vmem:[%s2851 + $0x20] sm:$0xf]
      %v2861 = vld [vmem:[%s2851 + $0x24] sm:$0xf]
      %v2862 = vld [vmem:[%s2851 + $0x28] sm:$0xf]
      %v2863 = vld [vmem:[%s2851 + $0x2c] sm:$0xf]
      %v2864 = vld [vmem:[%s2851 + $0x30] sm:$0xf]
      %v2865 = vld [vmem:[%s2851 + $0x34] sm:$0xf]
      %v2866 = vld [vmem:[%s2851 + $0x38] sm:$0xf]
      %v2867 = vld [vmem:[%s2851 + $0x3c] sm:$0xf]
      %v2868 = vshrl.u32 %v1327, 16
      %v2870 = vor.u32 %v2868, %v2067
      %v2871 = vsel %vm1941, %v2870, %v1942
      %v2889 = vunpack.c.l.b16 %v2852
      %v2890 = vunpack.c.l.b16 %v2853
      %v2891 = vunpack.c.l.b16 %v2854
      %v2892 = vunpack.c.l.b16 %v2855
      %v2893 = vunpack.c.l.b16 %v2856
      %v2894 = vunpack.c.l.b16 %v2857
      %v2895 = vunpack.c.l.b16 %v2858
      %v2896 = vunpack.c.l.b16 %v2859
      %v2897 = vunpack.c.l.b16 %v2860
      %v2898 = vunpack.c.l.b16 %v2861
      %v2899 = vunpack.c.l.b16 %v2862
      %v2900 = vunpack.c.l.b16 %v2863
      %v2901 = vunpack.c.l.b16 %v2864
      %v2902 = vunpack.c.l.b16 %v2865
      %v2903 = vunpack.c.l.b16 %v2866
      %v2904 = vunpack.c.l.b16 %v2867
      %v2905 = vpack.c.b16 %v2890, %v2889
      %v2906 = vpack.c.b16 %v2892, %v2891
      %v2907 = vpack.c.b16 %v2894, %v2893
      %v2908 = vpack.c.b16 %v2896, %v2895
      %v2909 = vpack.c.b16 %v2898, %v2897
      %v2910 = vpack.c.b16 %v2900, %v2899
      %v2911 = vpack.c.b16 %v2902, %v2901
      %v2912 = vpack.c.b16 %v2904, %v2903
      %2921 = vmatprep.subr.bf16.mxu0 0
      %2922 = vmatpush1.bf16.msra.mxu0 %v2905
      %2923 = vmatprep.subr.bf16.mxu0 0
      %2924 = vmatpush1.bf16.msra.mxu0 %v2906
      %2925 = vmatprep.subr.bf16.mxu0 0
      %2926 = vmatpush1.bf16.msra.mxu0 %v2907
      %2927 = vmatprep.subr.bf16.mxu0 0
      %2928 = vmatpush1.bf16.msra.mxu0 %v2908
      %2929 = vmatprep.subr.bf16.mxu0 0
      %2930 = vmatpush1.bf16.msra.mxu0 %v2909
      %2931 = vmatprep.subr.bf16.mxu0 0
      %2932 = vmatpush1.bf16.msra.mxu0 %v2910
      %2933 = vmatprep.subr.bf16.mxu0 0
      %2934 = vmatpush1.bf16.msra.mxu0 %v2911
      %2935 = vmatprep.subr.bf16.mxu0 0
      %2936 = vmatpush1.bf16.msra.mxu0 %v2912
      %2937 = vmatprep.subr.bf16.mxu0 0
      %2938 = vmatpush1.bf16.msra.mxu0 0
      %2939 = vmatprep.subr.bf16.mxu0 0
      %2940 = vmatpush1.bf16.msra.mxu0 0
      %2941 = vmatprep.subr.bf16.mxu0 0
      %2942 = vmatpush1.bf16.msra.mxu0 0
      %2943 = vmatprep.subr.bf16.mxu0 0
      %2944 = vmatpush1.bf16.msra.mxu0 0
      %2945 = vmatprep.subr.bf16.mxu0 0
      %2946 = vmatpush1.bf16.msra.mxu0 0
      %2947 = vmatprep.subr.bf16.mxu0 0
      %2948 = vmatpush1.bf16.msra.mxu0 0
      %2949 = vmatprep.subr.bf16.mxu0 0
      %2950 = vmatpush1.bf16.msra.mxu0 0
      %2951 = vmatprep.subr.bf16.mxu0 0
      %2952 = vmatpush1.bf16.msra.mxu0 0
      %2953 = vmatprep.mubr.bf16.mxu0 0
      %2954 = vmatmul.mubr.bf16.gmra.mrb[0].mxu0 %v1956
      %v2955 = vpop.f32.mrb[0].mxu0
      %v2956 = vadd.f32 0.0, %v2955
      %v2957 = vpop.f32.mrb[0].mxu0
      %v2958 = vpop.f32.mrb[0].mxu0
      %v2959 = vadd.f32 0.0, %v2958
      %v2960 = vpop.f32.mrb[0].mxu0
      %2961 = vmatprep.mubr.bf16.mxu0 0
      %2962 = vmatmul.mubr.bf16.gmra.mrb[0].mxu0 %v1964
      %v2963 = vpop.f32.mrb[0].mxu0
      %v2964 = vadd.f32 0.0, %v2963
      %v2965 = vpop.f32.mrb[0].mxu0
      %v2966 = vpop.f32.mrb[0].mxu0
      %v2967 = vadd.f32 0.0, %v2966
      %v2968 = vpop.f32.mrb[0].mxu0
      %2969 = vmatprep.mubr.bf16.mxu0 0
      %2970 = vmatmul.mubr.bf16.gmra.mrb[0].mxu0 %v1972
      %v2971 = vpop.f32.mrb[0].mxu0
      %v2972 = vadd.f32 0.0, %v2971
      %v2973 = vpop.f32.mrb[0].mxu0
      %v2974 = vpop.f32.mrb[0].mxu0
      %v2975 = vadd.f32 0.0, %v2974
      %v2976 = vpop.f32.mrb[0].mxu0
      %2977 = vmatprep.mubr.bf16.mxu0 0
      %2978 = vmatmul.mubr.bf16.gmra.mrb[0].mxu0 %v1980
      %v2979 = vpop.f32.mrb[0].mxu0
      %v2980 = vadd.f32 0.0, %v2979
      %v2981 = vpop.f32.mrb[0].mxu0
      %v2982 = vpop.f32.mrb[0].mxu0
      %v2983 = vadd.f32 0.0, %v2982
      %v2984 = vpop.f32.mrb[0].mxu0
      %2985 = vmatprep.mubr.bf16.mxu0 0
      %2986 = vmatmul.mubr.bf16.gmra.mrb[0].mxu0 %v1988
      %v2987 = vpop.f32.mrb[0].mxu0
      %v2988 = vadd.f32 0.0, %v2987
      %v2989 = vpop.f32.mrb[0].mxu0
      %v2990 = vpop.f32.mrb[0].mxu0
      %v2991 = vadd.f32 0.0, %v2990
      %v2992 = vpop.f32.mrb[0].mxu0
      %2993 = vmatprep.mubr.bf16.mxu0 0
      %2994 = vmatmul.mubr.bf16.gmra.mrb[0].mxu0 %v1996
      %v2995 = vpop.f32.mrb[0].mxu0
      %v2996 = vadd.f32 0.0, %v2995
      %v2997 = vpop.f32.mrb[0].mxu0
      %v2998 = vpop.f32.mrb[0].mxu0
      %v2999 = vadd.f32 0.0, %v2998
      %v3000 = vpop.f32.mrb[0].mxu0
      %3001 = vmatprep.mubr.bf16.mxu0 0
      %3002 = vmatmul.mubr.bf16.gmra.mrb[0].mxu0 %v2004
      %v3003 = vpop.f32.mrb[0].mxu0
      %v3004 = vadd.f32 0.0, %v3003
      %v3005 = vpop.f32.mrb[0].mxu0
      %v3006 = vpop.f32.mrb[0].mxu0
      %v3007 = vadd.f32 0.0, %v3006
      %v3008 = vpop.f32.mrb[0].mxu0
      %3009 = vmatprep.mubr.bf16.mxu0 0
      %3010 = vmatmul.mubr.bf16.gmra.mrb[0].mxu0 %v2012
      %v3011 = vpop.f32.mrb[0].mxu0
      %v3012 = vadd.f32 0.0, %v3011
      %v3013 = vpop.f32.mrb[0].mxu0
      %v3014 = vpop.f32.mrb[0].mxu0
      %v3015 = vadd.f32 0.0, %v3014
      %v3016 = vpop.f32.mrb[0].mxu0
      %3017 = vmatprep.mubr.bf16.mxu0 0
      %3018 = vmatmul.mubr.bf16.gmra.mrb[0].mxu0 %v2020
      %v3019 = vpop.f32.mrb[0].mxu0
      %v3020 = vadd.f32 0.0, %v3019
      %v3021 = vpop.f32.mrb[0].mxu0
      %v3022 = vpop.f32.mrb[0].mxu0
      %v3023 = vadd.f32 0.0, %v3022
      %v3024 = vpop.f32.mrb[0].mxu0
      %3025 = vmatprep.mubr.bf16.mxu0 0
      %3026 = vmatmul.mubr.bf16.gmra.mrb[0].mxu0 %v2028
      %v3027 = vpop.f32.mrb[0].mxu0
      %v3028 = vadd.f32 0.0, %v3027
      %v3029 = vpop.f32.mrb[0].mxu0
      %v3030 = vpop.f32.mrb[0].mxu0
      %v3031 = vadd.f32 0.0, %v3030
      %v3032 = vpop.f32.mrb[0].mxu0
      %3033 = vmatprep.mubr.bf16.mxu0 0
      %3034 = vmatmul.mubr.bf16.gmra.mrb[0].mxu0 %v2036
      %v3035 = vpop.f32.mrb[0].mxu0
      %v3036 = vadd.f32 0.0, %v3035
      %v3037 = vpop.f32.mrb[0].mxu0
      %v3038 = vpop.f32.mrb[0].mxu0
      %v3039 = vadd.f32 0.0, %v3038
      %v3040 = vpop.f32.mrb[0].mxu0
      %3041 = vmatprep.mubr.bf16.mxu0 0
      %3042 = vmatmul.mubr.bf16.gmra.mrb[0].mxu0 %v2044
      %v3043 = vpop.f32.mrb[0].mxu0
      %v3044 = vadd.f32 0.0, %v3043
      %v3045 = vpop.f32.mrb[0].mxu0
      %v3046 = vpop.f32.mrb[0].mxu0
      %v3047 = vadd.f32 0.0, %v3046
      %v3048 = vpop.f32.mrb[0].mxu0
      %3049 = vmatprep.mubr.bf16.mxu0 0
      %3050 = vmatmul.mubr.bf16.gmra.mrb[0].mxu0 %v2052
      %v3051 = vpop.f32.mrb[0].mxu0
      %v3052 = vadd.f32 0.0, %v3051
      %v3053 = vpop.f32.mrb[0].mxu0
      %v3054 = vpop.f32.mrb[0].mxu0
      %v3055 = vadd.f32 0.0, %v3054
      %v3056 = vpop.f32.mrb[0].mxu0
      %3057 = vmatprep.mubr.bf16.mxu0 0
      %3058 = vmatmul.mubr.bf16.gmra.mrb[0].mxu0 %v2060
      %v3059 = vpop.f32.mrb[0].mxu0
      %v3060 = vadd.f32 0.0, %v3059
      %v3061 = vpop.f32.mrb[0].mxu0
      %v3062 = vpop.f32.mrb[0].mxu0
      %v3063 = vadd.f32 0.0, %v3062
      %v3064 = vpop.f32.mrb[0].mxu0
      %3065 = vmatprep.mubr.bf16.mxu0 0
      %3066 = vmatmul.mubr.bf16.gmra.mrb[0].mxu0 %v2068
      %v3067 = vpop.f32.mrb[0].mxu0
      %v3068 = vadd.f32 0.0, %v3067
      %v3069 = vpop.f32.mrb[0].mxu0
      %v3070 = vpop.f32.mrb[0].mxu0
      %v3071 = vadd.f32 0.0, %v3070
      %v3072 = vpop.f32.mrb[0].mxu0
      %3073 = vmatprep.mubr.bf16.mxu0 0
      %3074 = vmatmul.mubr.bf16.gmra.mrb[0].mxu0 %v2871
      %v3075 = vpop.f32.mrb[0].mxu0
      %v3076 = vadd.f32 0.0, %v3075
      %v3077 = vpop.f32.mrb[0].mxu0
      %v3078 = vpop.f32.mrb[0].mxu0
      %v3079 = vadd.f32 0.0, %v3078
      %v3080 = vpop.f32.mrb[0].mxu0
      %3081 = vdwg.mxu0
      %v3082 = vadd.f32 %v2819, %v2956
      %v3083 = vadd.f32 %v2820, %v2959
      %v3084 = vadd.f32 %v2821, %v2964
      %v3085 = vadd.f32 %v2822, %v2967
      %v3086 = vadd.f32 %v2823, %v2972
      %v3087 = vadd.f32 %v2824, %v2975
      %v3088 = vadd.f32 %v2825, %v2980
      %v3089 = vadd.f32 %v2826, %v2983
      %v3090 = vadd.f32 %v2827, %v2988
      %v3091 = vadd.f32 %v2828, %v2991
      %v3092 = vadd.f32 %v2829, %v2996
      %v3093 = vadd.f32 %v2830, %v2999
      %v3094 = vadd.f32 %v2831, %v3004
      %v3095 = vadd.f32 %v2832, %v3007
      %v3096 = vadd.f32 %v2833, %v3012
      %v3097 = vadd.f32 %v2834, %v3015
      %v3098 = vadd.f32 %v2835, %v3020
      %v3099 = vadd.f32 %v2836, %v3023
      %v3100 = vadd.f32 %v2837, %v3028
      %v3101 = vadd.f32 %v2838, %v3031
      %v3102 = vadd.f32 %v2839, %v3036
      %v3103 = vadd.f32 %v2840, %v3039
      %v3104 = vadd.f32 %v2841, %v3044
      %v3105 = vadd.f32 %v2842, %v3047
      %v3106 = vadd.f32 %v2843, %v3052
      %v3107 = vadd.f32 %v2844, %v3055
      %v3108 = vadd.f32 %v2845, %v3060
      %v3109 = vadd.f32 %v2846, %v3063
      %v3110 = vadd.f32 %v2847, %v3068
      %v3111 = vadd.f32 %v2848, %v3071
      %v3112 = vadd.f32 %v2849, %v3076
      %v3113 = vadd.f32 %v2850, %v3079
      %s3114 = scalar_lea.vmem %s3, 384
      %v3115 = vld [vmem:[%s3114] sm:$0xf]
      %v3116 = vld [vmem:[%s3114 + $0x4] sm:$0xf]
      %v3117 = vld [vmem:[%s3114 + $0x8] sm:$0xf]
      %v3118 = vld [vmem:[%s3114 + $0xc] sm:$0xf]
      %v3119 = vld [vmem:[%s3114 + $0x10] sm:$0xf]
      %v3120 = vld [vmem:[%s3114 + $0x14] sm:$0xf]
      %v3121 = vld [vmem:[%s3114 + $0x18] sm:$0xf]
      %v3122 = vld [vmem:[%s3114 + $0x1c] sm:$0xf]
      %v3123 = vld [vmem:[%s3114 + $0x20] sm:$0xf]
      %v3124 = vld [vmem:[%s3114 + $0x24] sm:$0xf]
      %v3125 = vld [vmem:[%s3114 + $0x28] sm:$0xf]
      %v3126 = vld [vmem:[%s3114 + $0x2c] sm:$0xf]
      %v3127 = vld [vmem:[%s3114 + $0x30] sm:$0xf]
      %v3128 = vld [vmem:[%s3114 + $0x34] sm:$0xf]
      %v3129 = vld [vmem:[%s3114 + $0x38] sm:$0xf]
      %v3130 = vld [vmem:[%s3114 + $0x3c] sm:$0xf]
      %v3131 = vsel %vm1570, %v2346, %v1577
      %v3149 = vunpack.c.l.b16 %v3115
      %v3150 = vunpack.c.l.b16 %v3116
      %v3151 = vunpack.c.l.b16 %v3117
      %v3152 = vunpack.c.l.b16 %v3118
      %v3153 = vunpack.c.l.b16 %v3119
      %v3154 = vunpack.c.l.b16 %v3120
      %v3155 = vunpack.c.l.b16 %v3121
      %v3156 = vunpack.c.l.b16 %v3122
      %v3157 = vunpack.c.l.b16 %v3123
      %v3158 = vunpack.c.l.b16 %v3124
      %v3159 = vunpack.c.l.b16 %v3125
      %v3160 = vunpack.c.l.b16 %v3126
      %v3161 = vunpack.c.l.b16 %v3127
      %v3162 = vunpack.c.l.b16 %v3128
      %v3163 = vunpack.c.l.b16 %v3129
      %v3164 = vunpack.c.l.b16 %v3130
      %v3165 = vpack.c.b16 %v3150, %v3149
      %v3166 = vpack.c.b16 %v3152, %v3151
      %v3167 = vpack.c.b16 %v3154, %v3153
      %v3168 = vpack.c.b16 %v3156, %v3155
      %v3169 = vpack.c.b16 %v3158, %v3157
      %v3170 = vpack.c.b16 %v3160, %v3159
      %v3171 = vpack.c.b16 %v3162, %v3161
      %v3172 = vpack.c.b16 %v3164, %v3163
      %3181 = vmatprep.subr.bf16.mxu0 0
      %3182 = vmatpush1.bf16.msra.mxu0 %v3165
      %3183 = vmatprep.subr.bf16.mxu0 0
      %3184 = vmatpush1.bf16.msra.mxu0 %v3166
      %3185 = vmatprep.subr.bf16.mxu0 0
      %3186 = vmatpush1.bf16.msra.mxu0 %v3167
      %3187 = vmatprep.subr.bf16.mxu0 0
      %3188 = vmatpush1.bf16.msra.mxu0 %v3168
      %3189 = vmatprep.subr.bf16.mxu0 0
      %3190 = vmatpush1.bf16.msra.mxu0 %v3169
      %3191 = vmatprep.subr.bf16.mxu0 0
      %3192 = vmatpush1.bf16.msra.mxu0 %v3170
      %3193 = vmatprep.subr.bf16.mxu0 0
      %3194 = vmatpush1.bf16.msra.mxu0 %v3171
      %3195 = vmatprep.subr.bf16.mxu0 0
      %3196 = vmatpush1.bf16.msra.mxu0 %v3172
      %3197 = vmatprep.subr.bf16.mxu0 0
      %3198 = vmatpush1.bf16.msra.mxu0 0
      %3199 = vmatprep.subr.bf16.mxu0 0
      %3200 = vmatpush1.bf16.msra.mxu0 0
      %3201 = vmatprep.subr.bf16.mxu0 0
      %3202 = vmatpush1.bf16.msra.mxu0 0
      %3203 = vmatprep.subr.bf16.mxu0 0
      %3204 = vmatpush1.bf16.msra.mxu0 0
      %3205 = vmatprep.subr.bf16.mxu0 0
      %3206 = vmatpush1.bf16.msra.mxu0 0
      %3207 = vmatprep.subr.bf16.mxu0 0
      %3208 = vmatpush1.bf16.msra.mxu0 0
      %3209 = vmatprep.subr.bf16.mxu0 0
      %3210 = vmatpush1.bf16.msra.mxu0 0
      %3211 = vmatprep.subr.bf16.mxu0 0
      %3212 = vmatpush1.bf16.msra.mxu0 0
      %3213 = vmatprep.mubr.bf16.mxu0 0
      %3214 = vmatmul.mubr.bf16.gmra.mrb[0].mxu0 %v1594
      %v3215 = vpop.f32.mrb[0].mxu0
      %v3216 = vadd.f32 0.0, %v3215
      %v3217 = vpop.f32.mrb[0].mxu0
      %v3218 = vpop.f32.mrb[0].mxu0
      %v3219 = vadd.f32 0.0, %v3218
      %v3220 = vpop.f32.mrb[0].mxu0
      %3221 = vmatprep.mubr.bf16.mxu0 0
      %3222 = vmatmul.mubr.bf16.gmra.mrb[0].mxu0 %v1602
      %v3223 = vpop.f32.mrb[0].mxu0
      %v3224 = vadd.f32 0.0, %v3223
      %v3225 = vpop.f32.mrb[0].mxu0
      %v3226 = vpop.f32.mrb[0].mxu0
      %v3227 = vadd.f32 0.0, %v3226
      %v3228 = vpop.f32.mrb[0].mxu0
      %3229 = vmatprep.mubr.bf16.mxu0 0
      %3230 = vmatmul.mubr.bf16.gmra.mrb[0].mxu0 %v1610
      %v3231 = vpop.f32.mrb[0].mxu0
      %v3232 = vadd.f32 0.0, %v3231
      %v3233 = vpop.f32.mrb[0].mxu0
      %v3234 = vpop.f32.mrb[0].mxu0
      %v3235 = vadd.f32 0.0, %v3234
      %v3236 = vpop.f32.mrb[0].mxu0
      %3237 = vmatprep.mubr.bf16.mxu0 0
      %3238 = vmatmul.mubr.bf16.gmra.mrb[0].mxu0 %v1618
      %v3239 = vpop.f32.mrb[0].mxu0
      %v3240 = vadd.f32 0.0, %v3239
      %v3241 = vpop.f32.mrb[0].mxu0
      %v3242 = vpop.f32.mrb[0].mxu0
      %v3243 = vadd.f32 0.0, %v3242
      %v3244 = vpop.f32.mrb[0].mxu0
      %3245 = vmatprep.mubr.bf16.mxu0 0
      %3246 = vmatmul.mubr.bf16.gmra.mrb[0].mxu0 %v1626
      %v3247 = vpop.f32.mrb[0].mxu0
      %v3248 = vadd.f32 0.0, %v3247
      %v3249 = vpop.f32.mrb[0].mxu0
      %v3250 = vpop.f32.mrb[0].mxu0
      %v3251 = vadd.f32 0.0, %v3250
      %v3252 = vpop.f32.mrb[0].mxu0
      %3253 = vmatprep.mubr.bf16.mxu0 0
      %3254 = vmatmul.mubr.bf16.gmra.mrb[0].mxu0 %v1634
      %v3255 = vpop.f32.mrb[0].mxu0
      %v3256 = vadd.f32 0.0, %v3255
      %v3257 = vpop.f32.mrb[0].mxu0
      %v3258 = vpop.f32.mrb[0].mxu0
      %v3259 = vadd.f32 0.0, %v3258
      %v3260 = vpop.f32.mrb[0].mxu0
      %3261 = vmatprep.mubr.bf16.mxu0 0
      %3262 = vmatmul.mubr.bf16.gmra.mrb[0].mxu0 %v1642
      %v3263 = vpop.f32.mrb[0].mxu0
      %v3264 = vadd.f32 0.0, %v3263
      %v3265 = vpop.f32.mrb[0].mxu0
      %v3266 = vpop.f32.mrb[0].mxu0
      %v3267 = vadd.f32 0.0, %v3266
      %v3268 = vpop.f32.mrb[0].mxu0
      %3269 = vmatprep.mubr.bf16.mxu0 0
      %3270 = vmatmul.mubr.bf16.gmra.mrb[0].mxu0 %v1650
      %v3271 = vpop.f32.mrb[0].mxu0
      %v3272 = vadd.f32 0.0, %v3271
      %v3273 = vpop.f32.mrb[0].mxu0
      %v3274 = vpop.f32.mrb[0].mxu0
      %v3275 = vadd.f32 0.0, %v3274
      %v3276 = vpop.f32.mrb[0].mxu0
      %3277 = vmatprep.mubr.bf16.mxu0 0
      %3278 = vmatmul.mubr.bf16.gmra.mrb[0].mxu0 %v1658
      %v3279 = vpop.f32.mrb[0].mxu0
      %v3280 = vadd.f32 0.0, %v3279
      %v3281 = vpop.f32.mrb[0].mxu0
      %v3282 = vpop.f32.mrb[0].mxu0
      %v3283 = vadd.f32 0.0, %v3282
      %v3284 = vpop.f32.mrb[0].mxu0
      %3285 = vmatprep.mubr.bf16.mxu0 0
      %3286 = vmatmul.mubr.bf16.gmra.mrb[0].mxu0 %v1666
      %v3287 = vpop.f32.mrb[0].mxu0
      %v3288 = vadd.f32 0.0, %v3287
      %v3289 = vpop.f32.mrb[0].mxu0
      %v3290 = vpop.f32.mrb[0].mxu0
      %v3291 = vadd.f32 0.0, %v3290
      %v3292 = vpop.f32.mrb[0].mxu0
      %3293 = vmatprep.mubr.bf16.mxu0 0
      %3294 = vmatmul.mubr.bf16.gmra.mrb[0].mxu0 %v1674
      %v3295 = vpop.f32.mrb[0].mxu0
      %v3296 = vadd.f32 0.0, %v3295
      %v3297 = vpop.f32.mrb[0].mxu0
      %v3298 = vpop.f32.mrb[0].mxu0
      %v3299 = vadd.f32 0.0, %v3298
      %v3300 = vpop.f32.mrb[0].mxu0
      %3301 = vmatprep.mubr.bf16.mxu0 0
      %3302 = vmatmul.mubr.bf16.gmra.mrb[0].mxu0 %v1682
      %v3303 = vpop.f32.mrb[0].mxu0
      %v3304 = vadd.f32 0.0, %v3303
      %v3305 = vpop.f32.mrb[0].mxu0
      %v3306 = vpop.f32.mrb[0].mxu0
      %v3307 = vadd.f32 0.0, %v3306
      %v3308 = vpop.f32.mrb[0].mxu0
      %3309 = vmatprep.mubr.bf16.mxu0 0
      %3310 = vmatmul.mubr.bf16.gmra.mrb[0].mxu0 %v1690
      %v3311 = vpop.f32.mrb[0].mxu0
      %v3312 = vadd.f32 0.0, %v3311
      %v3313 = vpop.f32.mrb[0].mxu0
      %v3314 = vpop.f32.mrb[0].mxu0
      %v3315 = vadd.f32 0.0, %v3314
      %v3316 = vpop.f32.mrb[0].mxu0
      %3317 = vmatprep.mubr.bf16.mxu0 0
      %3318 = vmatmul.mubr.bf16.gmra.mrb[0].mxu0 %v1698
      %v3319 = vpop.f32.mrb[0].mxu0
      %v3320 = vadd.f32 0.0, %v3319
      %v3321 = vpop.f32.mrb[0].mxu0
      %v3322 = vpop.f32.mrb[0].mxu0
      %v3323 = vadd.f32 0.0, %v3322
      %v3324 = vpop.f32.mrb[0].mxu0
      %3325 = vmatprep.mubr.bf16.mxu0 0
      %3326 = vmatmul.mubr.bf16.gmra.mrb[0].mxu0 %v2350
      %v3327 = vpop.f32.mrb[0].mxu0
      %v3328 = vadd.f32 0.0, %v3327
      %v3329 = vpop.f32.mrb[0].mxu0
      %v3330 = vpop.f32.mrb[0].mxu0
      %v3331 = vadd.f32 0.0, %v3330
      %v3332 = vpop.f32.mrb[0].mxu0
      %3333 = vmatprep.mubr.bf16.mxu0 0
      %3334 = vmatmul.mubr.bf16.gmra.mrb[0].mxu0 %v3131
      %v3335 = vpop.f32.mrb[0].mxu0
      %v3336 = vadd.f32 0.0, %v3335
      %v3337 = vpop.f32.mrb[0].mxu0
      %v3338 = vpop.f32.mrb[0].mxu0
      %v3339 = vadd.f32 0.0, %v3338
      %v3340 = vpop.f32.mrb[0].mxu0
      %3341 = vdwg.mxu0
      %v3342 = vadd.f32 %v3082, %v3216
      %v3343 = vadd.f32 %v3083, %v3219
      %v3344 = vadd.f32 %v3084, %v3224
      %v3345 = vadd.f32 %v3085, %v3227
      %v3346 = vadd.f32 %v3086, %v3232
      %v3347 = vadd.f32 %v3087, %v3235
      %v3348 = vadd.f32 %v3088, %v3240
      %v3349 = vadd.f32 %v3089, %v3243
      %v3350 = vadd.f32 %v3090, %v3248
      %v3351 = vadd.f32 %v3091, %v3251
      %v3352 = vadd.f32 %v3092, %v3256
      %v3353 = vadd.f32 %v3093, %v3259
      %v3354 = vadd.f32 %v3094, %v3264
      %v3355 = vadd.f32 %v3095, %v3267
      %v3356 = vadd.f32 %v3096, %v3272
      %v3357 = vadd.f32 %v3097, %v3275
      %v3358 = vadd.f32 %v3098, %v3280
      %v3359 = vadd.f32 %v3099, %v3283
      %v3360 = vadd.f32 %v3100, %v3288
      %v3361 = vadd.f32 %v3101, %v3291
      %v3362 = vadd.f32 %v3102, %v3296
      %v3363 = vadd.f32 %v3103, %v3299
      %v3364 = vadd.f32 %v3104, %v3304
      %v3365 = vadd.f32 %v3105, %v3307
      %v3366 = vadd.f32 %v3106, %v3312
      %v3367 = vadd.f32 %v3107, %v3315
      %v3368 = vadd.f32 %v3108, %v3320
      %v3369 = vadd.f32 %v3109, %v3323
      %v3370 = vadd.f32 %v3110, %v3328
      %v3371 = vadd.f32 %v3111, %v3331
      %v3372 = vadd.f32 %v3112, %v3336
      %v3373 = vadd.f32 %v3113, %v3339
      %s3374 = scalar_lea.vmem %s3, 448
      %v3375 = vld [vmem:[%s3374] sm:$0xf]
      %v3376 = vld [vmem:[%s3374 + $0x4] sm:$0xf]
      %v3377 = vld [vmem:[%s3374 + $0x8] sm:$0xf]
      %v3378 = vld [vmem:[%s3374 + $0xc] sm:$0xf]
      %v3379 = vld [vmem:[%s3374 + $0x10] sm:$0xf]
      %v3380 = vld [vmem:[%s3374 + $0x14] sm:$0xf]
      %v3381 = vld [vmem:[%s3374 + $0x18] sm:$0xf]
      %v3382 = vld [vmem:[%s3374 + $0x1c] sm:$0xf]
      %v3383 = vld [vmem:[%s3374 + $0x20] sm:$0xf]
      %v3384 = vld [vmem:[%s3374 + $0x24] sm:$0xf]
      %v3385 = vld [vmem:[%s3374 + $0x28] sm:$0xf]
      %v3386 = vld [vmem:[%s3374 + $0x2c] sm:$0xf]
      %v3387 = vld [vmem:[%s3374 + $0x30] sm:$0xf]
      %v3388 = vld [vmem:[%s3374 + $0x34] sm:$0xf]
      %v3389 = vld [vmem:[%s3374 + $0x38] sm:$0xf]
      %v3390 = vld [vmem:[%s3374 + $0x3c] sm:$0xf]
      %v3407 = vunpack.c.l.b16 %v3375
      %v3408 = vunpack.c.l.b16 %v3376
      %v3409 = vunpack.c.l.b16 %v3377
      %v3410 = vunpack.c.l.b16 %v3378
      %v3411 = vunpack.c.l.b16 %v3379
      %v3412 = vunpack.c.l.b16 %v3380
      %v3413 = vunpack.c.l.b16 %v3381
      %v3414 = vunpack.c.l.b16 %v3382
      %v3415 = vunpack.c.l.b16 %v3383
      %v3416 = vunpack.c.l.b16 %v3384
      %v3417 = vunpack.c.l.b16 %v3385
      %v3418 = vunpack.c.l.b16 %v3386
      %v3419 = vunpack.c.l.b16 %v3387
      %v3420 = vunpack.c.l.b16 %v3388
      %v3421 = vunpack.c.l.b16 %v3389
      %v3422 = vunpack.c.l.b16 %v3390
      %v3423 = vpack.c.b16 %v3408, %v3407
      %v3424 = vpack.c.b16 %v3410, %v3409
      %v3425 = vpack.c.b16 %v3412, %v3411
      %v3426 = vpack.c.b16 %v3414, %v3413
      %v3427 = vpack.c.b16 %v3416, %v3415
      %v3428 = vpack.c.b16 %v3418, %v3417
      %v3429 = vpack.c.b16 %v3420, %v3419
      %v3430 = vpack.c.b16 %v3422, %v3421
      %3439 = vmatprep.subr.bf16.mxu0 0
      %3440 = vmatpush1.bf16.msra.mxu0 %v3423
      %3441 = vmatprep.subr.bf16.mxu0 0
      %3442 = vmatpush1.bf16.msra.mxu0 %v3424
      %3443 = vmatprep.subr.bf16.mxu0 0
      %3444 = vmatpush1.bf16.msra.mxu0 %v3425
      %3445 = vmatprep.subr.bf16.mxu0 0
      %3446 = vmatpush1.bf16.msra.mxu0 %v3426
      %3447 = vmatprep.subr.bf16.mxu0 0
      %3448 = vmatpush1.bf16.msra.mxu0 %v3427
      %3449 = vmatprep.subr.bf16.mxu0 0
      %3450 = vmatpush1.bf16.msra.mxu0 %v3428
      %3451 = vmatprep.subr.bf16.mxu0 0
      %3452 = vmatpush1.bf16.msra.mxu0 %v3429
      %3453 = vmatprep.subr.bf16.mxu0 0
      %3454 = vmatpush1.bf16.msra.mxu0 %v3430
      %3455 = vmatprep.subr.bf16.mxu0 0
      %3456 = vmatpush1.bf16.msra.mxu0 0
      %3457 = vmatprep.subr.bf16.mxu0 0
      %3458 = vmatpush1.bf16.msra.mxu0 0
      %3459 = vmatprep.subr.bf16.mxu0 0
      %3460 = vmatpush1.bf16.msra.mxu0 0
      %3461 = vmatprep.subr.bf16.mxu0 0
      %3462 = vmatpush1.bf16.msra.mxu0 0
      %3463 = vmatprep.subr.bf16.mxu0 0
      %3464 = vmatpush1.bf16.msra.mxu0 0
      %3465 = vmatprep.subr.bf16.mxu0 0
      %3466 = vmatpush1.bf16.msra.mxu0 0
      %3467 = vmatprep.subr.bf16.mxu0 0
      %3468 = vmatpush1.bf16.msra.mxu0 0
      %3469 = vmatprep.subr.bf16.mxu0 0
      %3470 = vmatpush1.bf16.msra.mxu0 0
      %3471 = vmatprep.mubr.bf16.mxu0 0
      %3472 = vmatmul.mubr.bf16.gmra.mrb[0].mxu0 %v415
      %v3473 = vpop.f32.mrb[0].mxu0
      %v3474 = vadd.f32 0.0, %v3473
      %v3475 = vpop.f32.mrb[0].mxu0
      %v3476 = vpop.f32.mrb[0].mxu0
      %v3477 = vadd.f32 0.0, %v3476
      %v3478 = vpop.f32.mrb[0].mxu0
      %3479 = vmatprep.mubr.bf16.mxu0 0
      %3480 = vmatmul.mubr.bf16.gmra.mrb[0].mxu0 %v416
      %v3481 = vpop.f32.mrb[0].mxu0
      %v3482 = vadd.f32 0.0, %v3481
      %v3483 = vpop.f32.mrb[0].mxu0
      %v3484 = vpop.f32.mrb[0].mxu0
      %v3485 = vadd.f32 0.0, %v3484
      %v3486 = vpop.f32.mrb[0].mxu0
      %3487 = vmatprep.mubr.bf16.mxu0 0
      %3488 = vmatmul.mubr.bf16.gmra.mrb[0].mxu0 %v417
      %v3489 = vpop.f32.mrb[0].mxu0
      %v3490 = vadd.f32 0.0, %v3489
      %v3491 = vpop.f32.mrb[0].mxu0
      %v3492 = vpop.f32.mrb[0].mxu0
      %v3493 = vadd.f32 0.0, %v3492
      %v3494 = vpop.f32.mrb[0].mxu0
      %3495 = vmatprep.mubr.bf16.mxu0 0
      %3496 = vmatmul.mubr.bf16.gmra.mrb[0].mxu0 %v418
      %v3497 = vpop.f32.mrb[0].mxu0
      %v3498 = vadd.f32 0.0, %v3497
      %v3499 = vpop.f32.mrb[0].mxu0
      %v3500 = vpop.f32.mrb[0].mxu0
      %v3501 = vadd.f32 0.0, %v3500
      %v3502 = vpop.f32.mrb[0].mxu0
      %3503 = vmatprep.mubr.bf16.mxu0 0
      %3504 = vmatmul.mubr.bf16.gmra.mrb[0].mxu0 %v419
      %v3505 = vpop.f32.mrb[0].mxu0
      %v3506 = vadd.f32 0.0, %v3505
      %v3507 = vpop.f32.mrb[0].mxu0
      %v3508 = vpop.f32.mrb[0].mxu0
      %v3509 = vadd.f32 0.0, %v3508
      %v3510 = vpop.f32.mrb[0].mxu0
      %3511 = vmatprep.mubr.bf16.mxu0 0
      %3512 = vmatmul.mubr.bf16.gmra.mrb[0].mxu0 %v420
      %v3513 = vpop.f32.mrb[0].mxu0
      %v3514 = vadd.f32 0.0, %v3513
      %v3515 = vpop.f32.mrb[0].mxu0
      %v3516 = vpop.f32.mrb[0].mxu0
      %v3517 = vadd.f32 0.0, %v3516
      %v3518 = vpop.f32.mrb[0].mxu0
      %3519 = vmatprep.mubr.bf16.mxu0 0
      %3520 = vmatmul.mubr.bf16.gmra.mrb[0].mxu0 %v421
      %v3521 = vpop.f32.mrb[0].mxu0
      %v3522 = vadd.f32 0.0, %v3521
      %v3523 = vpop.f32.mrb[0].mxu0
      %v3524 = vpop.f32.mrb[0].mxu0
      %v3525 = vadd.f32 0.0, %v3524
      %v3526 = vpop.f32.mrb[0].mxu0
      %3527 = vmatprep.mubr.bf16.mxu0 0
      %3528 = vmatmul.mubr.bf16.gmra.mrb[0].mxu0 %v422
      %v3529 = vpop.f32.mrb[0].mxu0
      %v3530 = vadd.f32 0.0, %v3529
      %v3531 = vpop.f32.mrb[0].mxu0
      %v3532 = vpop.f32.mrb[0].mxu0
      %v3533 = vadd.f32 0.0, %v3532
      %v3534 = vpop.f32.mrb[0].mxu0
      %3535 = vmatprep.mubr.bf16.mxu0 0
      %3536 = vmatmul.mubr.bf16.gmra.mrb[0].mxu0 %v423
      %v3537 = vpop.f32.mrb[0].mxu0
      %v3538 = vadd.f32 0.0, %v3537
      %v3539 = vpop.f32.mrb[0].mxu0
      %v3540 = vpop.f32.mrb[0].mxu0
      %v3541 = vadd.f32 0.0, %v3540
      %v3542 = vpop.f32.mrb[0].mxu0
      %3543 = vmatprep.mubr.bf16.mxu0 0
      %3544 = vmatmul.mubr.bf16.gmra.mrb[0].mxu0 %v424
      %v3545 = vpop.f32.mrb[0].mxu0
      %v3546 = vadd.f32 0.0, %v3545
      %v3547 = vpop.f32.mrb[0].mxu0
      %v3548 = vpop.f32.mrb[0].mxu0
      %v3549 = vadd.f32 0.0, %v3548
      %v3550 = vpop.f32.mrb[0].mxu0
      %3551 = vmatprep.mubr.bf16.mxu0 0
      %3552 = vmatmul.mubr.bf16.gmra.mrb[0].mxu0 %v425
      %v3553 = vpop.f32.mrb[0].mxu0
      %v3554 = vadd.f32 0.0, %v3553
      %v3555 = vpop.f32.mrb[0].mxu0
      %v3556 = vpop.f32.mrb[0].mxu0
      %v3557 = vadd.f32 0.0, %v3556
      %v3558 = vpop.f32.mrb[0].mxu0
      %3559 = vmatprep.mubr.bf16.mxu0 0
      %3560 = vmatmul.mubr.bf16.gmra.mrb[0].mxu0 %v426
      %v3561 = vpop.f32.mrb[0].mxu0
      %v3562 = vadd.f32 0.0, %v3561
      %v3563 = vpop.f32.mrb[0].mxu0
      %v3564 = vpop.f32.mrb[0].mxu0
      %v3565 = vadd.f32 0.0, %v3564
      %v3566 = vpop.f32.mrb[0].mxu0
      %3567 = vmatprep.mubr.bf16.mxu0 0
      %3568 = vmatmul.mubr.bf16.gmra.mrb[0].mxu0 %v427
      %v3569 = vpop.f32.mrb[0].mxu0
      %v3570 = vadd.f32 0.0, %v3569
      %v3571 = vpop.f32.mrb[0].mxu0
      %v3572 = vpop.f32.mrb[0].mxu0
      %v3573 = vadd.f32 0.0, %v3572
      %v3574 = vpop.f32.mrb[0].mxu0
      %3575 = vmatprep.mubr.bf16.mxu0 0
      %3576 = vmatmul.mubr.bf16.gmra.mrb[0].mxu0 %v428
      %v3577 = vpop.f32.mrb[0].mxu0
      %v3578 = vadd.f32 0.0, %v3577
      %v3579 = vpop.f32.mrb[0].mxu0
      %v3580 = vpop.f32.mrb[0].mxu0
      %v3581 = vadd.f32 0.0, %v3580
      %v3582 = vpop.f32.mrb[0].mxu0
      %3583 = vmatprep.mubr.bf16.mxu0 0
      %3584 = vmatmul.mubr.bf16.gmra.mrb[0].mxu0 %v429
      %v3585 = vpop.f32.mrb[0].mxu0
      %v3586 = vadd.f32 0.0, %v3585
      %v3587 = vpop.f32.mrb[0].mxu0
      %v3588 = vpop.f32.mrb[0].mxu0
      %v3589 = vadd.f32 0.0, %v3588
      %v3590 = vpop.f32.mrb[0].mxu0
      %3591 = vmatprep.mubr.bf16.mxu0 0
      %3592 = vmatmul.mubr.bf16.gmra.mrb[0].mxu0 0
      %v3593 = vpop.f32.mrb[0].mxu0
      %v3594 = vadd.f32 0.0, %v3593
      %v3595 = vpop.f32.mrb[0].mxu0
      %v3596 = vpop.f32.mrb[0].mxu0
      %v3597 = vadd.f32 0.0, %v3596
      %v3598 = vpop.f32.mrb[0].mxu0
      %3599 = vdwg.mxu0
      %v3600 = vadd.f32 %v3342, %v3474
      %v3601 = vadd.f32 %v3343, %v3477
      %v3602 = vadd.f32 %v3344, %v3482
      %v3603 = vadd.f32 %v3345, %v3485
      %v3604 = vadd.f32 %v3346, %v3490
      %v3605 = vadd.f32 %v3347, %v3493
      %v3606 = vadd.f32 %v3348, %v3498
      %v3607 = vadd.f32 %v3349, %v3501
      %v3608 = vadd.f32 %v3350, %v3506
      %v3609 = vadd.f32 %v3351, %v3509
      %v3610 = vadd.f32 %v3352, %v3514
      %v3611 = vadd.f32 %v3353, %v3517
      %v3612 = vadd.f32 %v3354, %v3522
      %v3613 = vadd.f32 %v3355, %v3525
      %v3614 = vadd.f32 %v3356, %v3530
      %v3615 = vadd.f32 %v3357, %v3533
      %v3616 = vadd.f32 %v3358, %v3538
      %v3617 = vadd.f32 %v3359, %v3541
      %v3618 = vadd.f32 %v3360, %v3546
      %v3619 = vadd.f32 %v3361, %v3549
      %v3620 = vadd.f32 %v3362, %v3554
      %v3621 = vadd.f32 %v3363, %v3557
      %v3622 = vadd.f32 %v3364, %v3562
      %v3623 = vadd.f32 %v3365, %v3565
      %v3624 = vadd.f32 %v3366, %v3570
      %v3625 = vadd.f32 %v3367, %v3573
      %v3626 = vadd.f32 %v3368, %v3578
      %v3627 = vadd.f32 %v3369, %v3581
      %v3628 = vadd.f32 %v3370, %v3586
      %v3629 = vadd.f32 %v3371, %v3589
      %v3630 = vadd.f32 %v3372, %v3594
      %v3631 = vadd.f32 %v3373, %v3597
      %s3632 = scalar_lea.vmem %s3, 512
      %v3633 = vld [vmem:[%s3632] sm:$0xf]
      %v3634 = vld [vmem:[%s3632 + $0x4] sm:$0xf]
      %v3635 = vld [vmem:[%s3632 + $0x8] sm:$0xf]
      %v3636 = vld [vmem:[%s3632 + $0xc] sm:$0xf]
      %v3637 = vld [vmem:[%s3632 + $0x10] sm:$0xf]
      %v3638 = vld [vmem:[%s3632 + $0x14] sm:$0xf]
      %v3639 = vld [vmem:[%s3632 + $0x18] sm:$0xf]
      %v3640 = vld [vmem:[%s3632 + $0x1c] sm:$0xf]
      %v3641 = vld [vmem:[%s3632 + $0x20] sm:$0xf]
      %v3642 = vld [vmem:[%s3632 + $0x24] sm:$0xf]
      %v3643 = vld [vmem:[%s3632 + $0x28] sm:$0xf]
      %v3644 = vld [vmem:[%s3632 + $0x2c] sm:$0xf]
      %v3645 = vld [vmem:[%s3632 + $0x30] sm:$0xf]
      %v3646 = vld [vmem:[%s3632 + $0x34] sm:$0xf]
      %v3647 = vld [vmem:[%s3632 + $0x38] sm:$0xf]
      %v3648 = vld [vmem:[%s3632 + $0x3c] sm:$0xf]
      %v3649 = vsel %vm1941, %v1943, %v1942
      %v3667 = vunpack.c.l.b16 %v3633
      %v3668 = vunpack.c.l.b16 %v3634
      %v3669 = vunpack.c.l.b16 %v3635
      %v3670 = vunpack.c.l.b16 %v3636
      %v3671 = vunpack.c.l.b16 %v3637
      %v3672 = vunpack.c.l.b16 %v3638
      %v3673 = vunpack.c.l.b16 %v3639
      %v3674 = vunpack.c.l.b16 %v3640
      %v3675 = vunpack.c.l.b16 %v3641
      %v3676 = vunpack.c.l.b16 %v3642
      %v3677 = vunpack.c.l.b16 %v3643
      %v3678 = vunpack.c.l.b16 %v3644
      %v3679 = vunpack.c.l.b16 %v3645
      %v3680 = vunpack.c.l.b16 %v3646
      %v3681 = vunpack.c.l.b16 %v3647
      %v3682 = vunpack.c.l.b16 %v3648
      %v3683 = vpack.c.b16 %v3668, %v3667
      %v3684 = vpack.c.b16 %v3670, %v3669
      %v3685 = vpack.c.b16 %v3672, %v3671
      %v3686 = vpack.c.b16 %v3674, %v3673
      %v3687 = vpack.c.b16 %v3676, %v3675
      %v3688 = vpack.c.b16 %v3678, %v3677
      %v3689 = vpack.c.b16 %v3680, %v3679
      %v3690 = vpack.c.b16 %v3682, %v3681
      %3699 = vmatprep.subr.bf16.mxu0 0
      %3700 = vmatpush1.bf16.msra.mxu0 %v3683
      %3701 = vmatprep.subr.bf16.mxu0 0
      %3702 = vmatpush1.bf16.msra.mxu0 %v3684
      %3703 = vmatprep.subr.bf16.mxu0 0
      %3704 = vmatpush1.bf16.msra.mxu0 %v3685
      %3705 = vmatprep.subr.bf16.mxu0 0
      %3706 = vmatpush1.bf16.msra.mxu0 %v3686
      %3707 = vmatprep.subr.bf16.mxu0 0
      %3708 = vmatpush1.bf16.msra.mxu0 %v3687
      %3709 = vmatprep.subr.bf16.mxu0 0
      %3710 = vmatpush1.bf16.msra.mxu0 %v3688
      %3711 = vmatprep.subr.bf16.mxu0 0
      %3712 = vmatpush1.bf16.msra.mxu0 %v3689
      %3713 = vmatprep.subr.bf16.mxu0 0
      %3714 = vmatpush1.bf16.msra.mxu0 %v3690
      %3715 = vmatprep.subr.bf16.mxu0 0
      %3716 = vmatpush1.bf16.msra.mxu0 0
      %3717 = vmatprep.subr.bf16.mxu0 0
      %3718 = vmatpush1.bf16.msra.mxu0 0
      %3719 = vmatprep.subr.bf16.mxu0 0
      %3720 = vmatpush1.bf16.msra.mxu0 0
      %3721 = vmatprep.subr.bf16.mxu0 0
      %3722 = vmatpush1.bf16.msra.mxu0 0
      %3723 = vmatprep.subr.bf16.mxu0 0
      %3724 = vmatpush1.bf16.msra.mxu0 0
      %3725 = vmatprep.subr.bf16.mxu0 0
      %3726 = vmatpush1.bf16.msra.mxu0 0
      %3727 = vmatprep.subr.bf16.mxu0 0
      %3728 = vmatpush1.bf16.msra.mxu0 0
      %3729 = vmatprep.subr.bf16.mxu0 0
      %3730 = vmatpush1.bf16.msra.mxu0 0
      %3731 = vmatprep.mubr.bf16.mxu0 0
      %3732 = vmatmul.mubr.bf16.gmra.mrb[0].mxu0 %v1964
      %v3733 = vpop.f32.mrb[0].mxu0
      %v3734 = vadd.f32 0.0, %v3733
      %v3735 = vpop.f32.mrb[0].mxu0
      %v3736 = vpop.f32.mrb[0].mxu0
      %v3737 = vadd.f32 0.0, %v3736
      %v3738 = vpop.f32.mrb[0].mxu0
      %3739 = vmatprep.mubr.bf16.mxu0 0
      %3740 = vmatmul.mubr.bf16.gmra.mrb[0].mxu0 %v1972
      %v3741 = vpop.f32.mrb[0].mxu0
      %v3742 = vadd.f32 0.0, %v3741
      %v3743 = vpop.f32.mrb[0].mxu0
      %v3744 = vpop.f32.mrb[0].mxu0
      %v3745 = vadd.f32 0.0, %v3744
      %v3746 = vpop.f32.mrb[0].mxu0
      %3747 = vmatprep.mubr.bf16.mxu0 0
      %3748 = vmatmul.mubr.bf16.gmra.mrb[0].mxu0 %v1980
      %v3749 = vpop.f32.mrb[0].mxu0
      %v3750 = vadd.f32 0.0, %v3749
      %v3751 = vpop.f32.mrb[0].mxu0
      %v3752 = vpop.f32.mrb[0].mxu0
      %v3753 = vadd.f32 0.0, %v3752
      %v3754 = vpop.f32.mrb[0].mxu0
      %3755 = vmatprep.mubr.bf16.mxu0 0
      %3756 = vmatmul.mubr.bf16.gmra.mrb[0].mxu0 %v1988
      %v3757 = vpop.f32.mrb[0].mxu0
      %v3758 = vadd.f32 0.0, %v3757
      %v3759 = vpop.f32.mrb[0].mxu0
      %v3760 = vpop.f32.mrb[0].mxu0
      %v3761 = vadd.f32 0.0, %v3760
      %v3762 = vpop.f32.mrb[0].mxu0
      %3763 = vmatprep.mubr.bf16.mxu0 0
      %3764 = vmatmul.mubr.bf16.gmra.mrb[0].mxu0 %v1996
      %v3765 = vpop.f32.mrb[0].mxu0
      %v3766 = vadd.f32 0.0, %v3765
      %v3767 = vpop.f32.mrb[0].mxu0
      %v3768 = vpop.f32.mrb[0].mxu0
      %v3769 = vadd.f32 0.0, %v3768
      %v3770 = vpop.f32.mrb[0].mxu0
      %3771 = vmatprep.mubr.bf16.mxu0 0
      %3772 = vmatmul.mubr.bf16.gmra.mrb[0].mxu0 %v2004
      %v3773 = vpop.f32.mrb[0].mxu0
      %v3774 = vadd.f32 0.0, %v3773
      %v3775 = vpop.f32.mrb[0].mxu0
      %v3776 = vpop.f32.mrb[0].mxu0
      %v3777 = vadd.f32 0.0, %v3776
      %v3778 = vpop.f32.mrb[0].mxu0
      %3779 = vmatprep.mubr.bf16.mxu0 0
      %3780 = vmatmul.mubr.bf16.gmra.mrb[0].mxu0 %v2012
      %v3781 = vpop.f32.mrb[0].mxu0
      %v3782 = vadd.f32 0.0, %v3781
      %v3783 = vpop.f32.mrb[0].mxu0
      %v3784 = vpop.f32.mrb[0].mxu0
      %v3785 = vadd.f32 0.0, %v3784
      %v3786 = vpop.f32.mrb[0].mxu0
      %3787 = vmatprep.mubr.bf16.mxu0 0
      %3788 = vmatmul.mubr.bf16.gmra.mrb[0].mxu0 %v2020
      %v3789 = vpop.f32.mrb[0].mxu0
      %v3790 = vadd.f32 0.0, %v3789
      %v3791 = vpop.f32.mrb[0].mxu0
      %v3792 = vpop.f32.mrb[0].mxu0
      %v3793 = vadd.f32 0.0, %v3792
      %v3794 = vpop.f32.mrb[0].mxu0
      %3795 = vmatprep.mubr.bf16.mxu0 0
      %3796 = vmatmul.mubr.bf16.gmra.mrb[0].mxu0 %v2028
      %v3797 = vpop.f32.mrb[0].mxu0
      %v3798 = vadd.f32 0.0, %v3797
      %v3799 = vpop.f32.mrb[0].mxu0
      %v3800 = vpop.f32.mrb[0].mxu0
      %v3801 = vadd.f32 0.0, %v3800
      %v3802 = vpop.f32.mrb[0].mxu0
      %3803 = vmatprep.mubr.bf16.mxu0 0
      %3804 = vmatmul.mubr.bf16.gmra.mrb[0].mxu0 %v2036
      %v3805 = vpop.f32.mrb[0].mxu0
      %v3806 = vadd.f32 0.0, %v3805
      %v3807 = vpop.f32.mrb[0].mxu0
      %v3808 = vpop.f32.mrb[0].mxu0
      %v3809 = vadd.f32 0.0, %v3808
      %v3810 = vpop.f32.mrb[0].mxu0
      %3811 = vmatprep.mubr.bf16.mxu0 0
      %3812 = vmatmul.mubr.bf16.gmra.mrb[0].mxu0 %v2044
      %v3813 = vpop.f32.mrb[0].mxu0
      %v3814 = vadd.f32 0.0, %v3813
      %v3815 = vpop.f32.mrb[0].mxu0
      %v3816 = vpop.f32.mrb[0].mxu0
      %v3817 = vadd.f32 0.0, %v3816
      %v3818 = vpop.f32.mrb[0].mxu0
      %3819 = vmatprep.mubr.bf16.mxu0 0
      %3820 = vmatmul.mubr.bf16.gmra.mrb[0].mxu0 %v2052
      %v3821 = vpop.f32.mrb[0].mxu0
      %v3822 = vadd.f32 0.0, %v3821
      %v3823 = vpop.f32.mrb[0].mxu0
      %v3824 = vpop.f32.mrb[0].mxu0
      %v3825 = vadd.f32 0.0, %v3824
      %v3826 = vpop.f32.mrb[0].mxu0
      %3827 = vmatprep.mubr.bf16.mxu0 0
      %3828 = vmatmul.mubr.bf16.gmra.mrb[0].mxu0 %v2060
      %v3829 = vpop.f32.mrb[0].mxu0
      %v3830 = vadd.f32 0.0, %v3829
      %v3831 = vpop.f32.mrb[0].mxu0
      %v3832 = vpop.f32.mrb[0].mxu0
      %v3833 = vadd.f32 0.0, %v3832
      %v3834 = vpop.f32.mrb[0].mxu0
      %3835 = vmatprep.mubr.bf16.mxu0 0
      %3836 = vmatmul.mubr.bf16.gmra.mrb[0].mxu0 %v2068
      %v3837 = vpop.f32.mrb[0].mxu0
      %v3838 = vadd.f32 0.0, %v3837
      %v3839 = vpop.f32.mrb[0].mxu0
      %v3840 = vpop.f32.mrb[0].mxu0
      %v3841 = vadd.f32 0.0, %v3840
      %v3842 = vpop.f32.mrb[0].mxu0
      %3843 = vmatprep.mubr.bf16.mxu0 0
      %3844 = vmatmul.mubr.bf16.gmra.mrb[0].mxu0 %v2871
      %v3845 = vpop.f32.mrb[0].mxu0
      %v3846 = vadd.f32 0.0, %v3845
      %v3847 = vpop.f32.mrb[0].mxu0
      %v3848 = vpop.f32.mrb[0].mxu0
      %v3849 = vadd.f32 0.0, %v3848
      %v3850 = vpop.f32.mrb[0].mxu0
      %3851 = vmatprep.mubr.bf16.mxu0 0
      %3852 = vmatmul.mubr.bf16.gmra.mrb[0].mxu0 %v3649
      %v3853 = vpop.f32.mrb[0].mxu0
      %v3854 = vadd.f32 0.0, %v3853
      %v3855 = vpop.f32.mrb[0].mxu0
      %v3856 = vpop.f32.mrb[0].mxu0
      %v3857 = vadd.f32 0.0, %v3856
      %v3858 = vpop.f32.mrb[0].mxu0
      %3859 = vdwg.mxu0
      %v3860 = vadd.f32 %v3600, %v3734
      %v3861 = vadd.f32 %v3601, %v3737
      %v3862 = vadd.f32 %v3602, %v3742
      %v3863 = vadd.f32 %v3603, %v3745
      %v3864 = vadd.f32 %v3604, %v3750
      %v3865 = vadd.f32 %v3605, %v3753
      %v3866 = vadd.f32 %v3606, %v3758
      %v3867 = vadd.f32 %v3607, %v3761
      %v3868 = vadd.f32 %v3608, %v3766
      %v3869 = vadd.f32 %v3609, %v3769
      %v3870 = vadd.f32 %v3610, %v3774
      %v3871 = vadd.f32 %v3611, %v3777
      %v3872 = vadd.f32 %v3612, %v3782
      %v3873 = vadd.f32 %v3613, %v3785
      %v3874 = vadd.f32 %v3614, %v3790
      %v3875 = vadd.f32 %v3615, %v3793
      %v3876 = vadd.f32 %v3616, %v3798
      %v3877 = vadd.f32 %v3617, %v3801
      %v3878 = vadd.f32 %v3618, %v3806
      %v3879 = vadd.f32 %v3619, %v3809
      %v3880 = vadd.f32 %v3620, %v3814
      %v3881 = vadd.f32 %v3621, %v3817
      %v3882 = vadd.f32 %v3622, %v3822
      %v3883 = vadd.f32 %v3623, %v3825
      %v3884 = vadd.f32 %v3624, %v3830
      %v3885 = vadd.f32 %v3625, %v3833
      %v3886 = vadd.f32 %v3626, %v3838
      %v3887 = vadd.f32 %v3627, %v3841
      %v3888 = vadd.f32 %v3628, %v3846
      %v3889 = vadd.f32 %v3629, %v3849
      %v3890 = vadd.f32 %v3630, %v3854
      %v3891 = vadd.f32 %v3631, %v3857
      %3892 = vst [vmem:[%s262] sm:$0xff] %v3860
      %3893 = vst [vmem:[%s262 + $0x8] sm:$0xff] %v3861
      %3894 = vst [vmem:[%s262 + $0x10] sm:$0xff] %v3862
      %3895 = vst [vmem:[%s262 + $0x18] sm:$0xff] %v3863
      %3896 = vst [vmem:[%s262 + $0x20] sm:$0xff] %v3864
      %3897 = vst [vmem:[%s262 + $0x28] sm:$0xff] %v3865
      %3898 = vst [vmem:[%s262 + $0x30] sm:$0xff] %v3866
      %3899 = vst [vmem:[%s262 + $0x38] sm:$0xff] %v3867
      %3900 = vst [vmem:[%s262 + $0x40] sm:$0xff] %v3868
      %3901 = vst [vmem:[%s262 + $0x48] sm:$0xff] %v3869
      %3902 = vst [vmem:[%s262 + $0x50] sm:$0xff] %v3870
      %3903 = vst [vmem:[%s262 + $0x58] sm:$0xff] %v3871
      %3904 = vst [vmem:[%s262 + $0x60] sm:$0xff] %v3872
      %3905 = vst [vmem:[%s262 + $0x68] sm:$0xff] %v3873
      %3906 = vst [vmem:[%s262 + $0x70] sm:$0xff] %v3874
      %3907 = vst [vmem:[%s262 + $0x78] sm:$0xff] %v3875
      %3908 = vst [vmem:[%s262 + $0x80] sm:$0xff] %v3876
      %3909 = vst [vmem:[%s262 + $0x88] sm:$0xff] %v3877
      %3910 = vst [vmem:[%s262 + $0x90] sm:$0xff] %v3878
      %3911 = vst [vmem:[%s262 + $0x98] sm:$0xff] %v3879
      %3912 = vst [vmem:[%s262 + $0xa0] sm:$0xff] %v3880
      %3913 = vst [vmem:[%s262 + $0xa8] sm:$0xff] %v3881
      %3914 = vst [vmem:[%s262 + $0xb0] sm:$0xff] %v3882
      %3915 = vst [vmem:[%s262 + $0xb8] sm:$0xff] %v3883
      %3916 = vst [vmem:[%s262 + $0xc0] sm:$0xff] %v3884
      %3917 = vst [vmem:[%s262 + $0xc8] sm:$0xff] %v3885
      %3918 = vst [vmem:[%s262 + $0xd0] sm:$0xff] %v3886
      %3919 = vst [vmem:[%s262 + $0xd8] sm:$0xff] %v3887
      %3920 = vst [vmem:[%s262 + $0xe0] sm:$0xff] %v3888
      %3921 = vst [vmem:[%s262 + $0xe8] sm:$0xff] %v3889
      %3922 = vst [vmem:[%s262 + $0xf0] sm:$0xff] %v3890
      %3923 = vst [vmem:[%s262 + $0xf8] sm:$0xff] %v3891
      %v3924 = vadd.f32 %v3860, %v3861
      %v3925 = vadd.f32 %v3924, %v3862
      %v3926 = vadd.f32 %v3925, %v3863
      %v3927 = vadd.f32 %v3926, %v3864
      %v3928 = vadd.f32 %v3927, %v3865
      %v3929 = vadd.f32 %v3928, %v3866
      %v3930 = vadd.f32 %v3929, %v3867
      %v3931 = vadd.f32 %v3930, %v3868
      %v3932 = vadd.f32 %v3931, %v3869
      %v3933 = vadd.f32 %v3932, %v3870
      %v3934 = vadd.f32 %v3933, %v3871
      %v3935 = vadd.f32 %v3934, %v3872
      %v3936 = vadd.f32 %v3935, %v3873
      %v3937 = vadd.f32 %v3936, %v3874
      %v3938 = vadd.f32 %v3937, %v3875
      %v3939 = vadd.f32 %v3938, %v3876
      %v3940 = vadd.f32 %v3939, %v3877
      %v3941 = vadd.f32 %v3940, %v3878
      %v3942 = vadd.f32 %v3941, %v3879
      %v3943 = vadd.f32 %v3942, %v3880
      %v3944 = vadd.f32 %v3943, %v3881
      %v3945 = vadd.f32 %v3944, %v3882
      %v3946 = vadd.f32 %v3945, %v3883
      %v3947 = vadd.f32 %v3946, %v3884
      %v3948 = vadd.f32 %v3947, %v3885
      %v3949 = vadd.f32 %v3948, %v3886
      %v3950 = vadd.f32 %v3949, %v3887
      %v3951 = vadd.f32 %v3950, %v3888
      %v3952 = vadd.f32 %v3951, %v3889
      %v3953 = vadd.f32 %v3952, %v3890
      %v3954 = vadd.f32 %v3953, %v3891
      %v3955 = vrot.slane %v3954, 4
      %v3956 = vadd.f32 %v3954, %v3955
      %v3957 = vrot.slane %v3956, 2
      %v3958 = vadd.f32 %v3956, %v3957
      %v3959 = vrot.slane %v3958, 1
      %v3960 = vadd.f32 %v3958, %v3959
      %3961 = vst [vmem:[%s265] sm:$0x1] %v3960
      %v3962 = vmul.f32 %v3860, %v3860
      %v3963 = vmul.f32 %v3861, %v3861
      %v3964 = vmul.f32 %v3862, %v3862
      %v3965 = vmul.f32 %v3863, %v3863
      %v3966 = vmul.f32 %v3864, %v3864
      %v3967 = vmul.f32 %v3865, %v3865
      %v3968 = vmul.f32 %v3866, %v3866
      %v3969 = vmul.f32 %v3867, %v3867
      %v3970 = vmul.f32 %v3868, %v3868
      %v3971 = vmul.f32 %v3869, %v3869
      %v3972 = vmul.f32 %v3870, %v3870
      %v3973 = vmul.f32 %v3871, %v3871
      %v3974 = vmul.f32 %v3872, %v3872
      %v3975 = vmul.f32 %v3873, %v3873
      %v3976 = vmul.f32 %v3874, %v3874
      %v3977 = vmul.f32 %v3875, %v3875
      %v3978 = vmul.f32 %v3876, %v3876
      %v3979 = vmul.f32 %v3877, %v3877
      %v3980 = vmul.f32 %v3878, %v3878
      %v3981 = vmul.f32 %v3879, %v3879
      %v3982 = vmul.f32 %v3880, %v3880
      %v3983 = vmul.f32 %v3881, %v3881
      %v3984 = vmul.f32 %v3882, %v3882
      %v3985 = vmul.f32 %v3883, %v3883
      %v3986 = vmul.f32 %v3884, %v3884
      %v3987 = vmul.f32 %v3885, %v3885
      %v3988 = vmul.f32 %v3886, %v3886
      %v3989 = vmul.f32 %v3887, %v3887
      %v3990 = vmul.f32 %v3888, %v3888
      %v3991 = vmul.f32 %v3889, %v3889
      %v3992 = vmul.f32 %v3890, %v3890
      %v3993 = vmul.f32 %v3891, %v3891
      %v3994 = vadd.f32 %v3962, %v3963
      %v3995 = vadd.f32 %v3994, %v3964
      %v3996 = vadd.f32 %v3995, %v3965
      %v3997 = vadd.f32 %v3996, %v3966
      %v3998 = vadd.f32 %v3997, %v3967
      %v3999 = vadd.f32 %v3998, %v3968
      %v4000 = vadd.f32 %v3999, %v3969
      %v4001 = vadd.f32 %v4000, %v3970
      %v4002 = vadd.f32 %v4001, %v3971
      %v4003 = vadd.f32 %v4002, %v3972
      %v4004 = vadd.f32 %v4003, %v3973
      %v4005 = vadd.f32 %v4004, %v3974
      %v4006 = vadd.f32 %v4005, %v3975
      %v4007 = vadd.f32 %v4006, %v3976
      %v4008 = vadd.f32 %v4007, %v3977
      %v4009 = vadd.f32 %v4008, %v3978
      %v4010 = vadd.f32 %v4009, %v3979
      %v4011 = vadd.f32 %v4010, %v3980
      %v4012 = vadd.f32 %v4011, %v3981
      %v4013 = vadd.f32 %v4012, %v3982
      %v4014 = vadd.f32 %v4013, %v3983
      %v4015 = vadd.f32 %v4014, %v3984
      %v4016 = vadd.f32 %v4015, %v3985
      %v4017 = vadd.f32 %v4016, %v3986
      %v4018 = vadd.f32 %v4017, %v3987
      %v4019 = vadd.f32 %v4018, %v3988
      %v4020 = vadd.f32 %v4019, %v3989
      %v4021 = vadd.f32 %v4020, %v3990
      %v4022 = vadd.f32 %v4021, %v3991
      %v4023 = vadd.f32 %v4022, %v3992
      %v4024 = vadd.f32 %v4023, %v3993
      %v4025 = vrot.slane %v4024, 4
      %v4026 = vadd.f32 %v4024, %v4025
      %v4027 = vrot.slane %v4026, 2
      %v4028 = vadd.f32 %v4026, %v4027
      %v4029 = vrot.slane %v4028, 1
      %v4030 = vadd.f32 %v4028, %v4029
      %4031 = vst [vmem:[%s268] sm:$0x1] %v4030
      %p4032 = scmp.lt.s32.totalorder %s18, 1
      %s4033 = scalar_select %p4032, %s18, 1
      %s4034 = smul.addr %s4033, 32
      %s4035 = smul.addr %s4034, 8
      %s4036 = scalar_lea.vmem %s4, %s4035
      %p4037 = scmp.lt.s32.totalorder %s18, 1
      %s4038 = scalar_select %p4037, %s18, 1
      %s4039 = scalar_lea.vmem %s5, %s4038
      %p4040 = scmp.lt.s32.totalorder %s18, 1
      %s4041 = scalar_select %p4040, %s18, 1
      %s4042 = scalar_lea.vmem %s6, %s4041
      // Predicated region
      $region37: #{bottleneck2conv.4} parent=35 // pred_check
        %p4043 = pneg %p125
      $region38: #{bottleneck2conv.4} parent=35 // pred_check_branch
        %4045 = sbr.rel (%p4043) target = $region40
      $region39: #{bottleneck2conv.4} parent=35 // pred_region
        _
      $region40: #{bottleneck2conv.4} parent=35 // pred_fallthru
        _
      // Predicated region
      $region41: #{bottleneck2conv.4} parent=35 // pred_check
        %p4046 = pneg %p151
      $region42: #{bottleneck2conv.4} parent=35 // pred_check_branch
        %4048 = sbr.rel (%p4046) target = $region44
      $region43: #{bottleneck2conv.4} parent=35 // pred_region
        _
      $region44: #{bottleneck2conv.4} parent=35 // pred_fallthru
        _
      // Predicated region
      $region45: #{bottleneck2conv.4} parent=35 // pred_check
        %p4049 = pneg %p177
      $region46: #{bottleneck2conv.4} parent=35 // pred_check_branch
        %4051 = sbr.rel (%p4049) target = $region48
      $region47: #{bottleneck2conv.4} parent=35 // pred_region
        _
      $region48: #{bottleneck2conv.4} parent=35 // pred_fallthru
        _
    $region36: #{bottleneck2conv.4} parent=5 // pred_fallthru
      _
    %p4052 = scmp.le.s32.totalorder 2, %s13
    // Predicated region
    $region49: #{bottleneck2conv.4} parent=5 // pred_check
      %p4053 = pneg %p4052
    $region50: #{bottleneck2conv.4} parent=5 // pred_check_branch
      %4055 = sbr.rel (%p4053) target = $region52
    $region51: #{bottleneck2conv.4} parent=5 // pred_region
      %s4056 = ssub.s32 %s13, 2
      // Predicated region
      $region53: #{bottleneck2conv.4} parent=51 // pred_check
        %p4057 = pneg %p131
      $region54: #{bottleneck2conv.4} parent=51 // pred_check_branch
        %4059 = sbr.rel (%p4057) target = $region56
      $region55: #{bottleneck2conv.4} parent=51 // pred_region
        %p4060 = scmp.lt.s32.totalorder %s19, 1
        %s4061 = scalar_select %p4060, %s19, 1
        %s4062 = smul.addr %s4061, 32
        %s4063 = smul.addr %s4062, 8
        %s4064 = scalar_lea.vmem %s4, %s4063
      $region56: #{bottleneck2conv.4} parent=51 // pred_fallthru
        _
      // Predicated region
      $region57: #{bottleneck2conv.4} parent=51 // pred_check
        %p4065 = pneg %p157
      $region58: #{bottleneck2conv.4} parent=51 // pred_check_branch
        %4067 = sbr.rel (%p4065) target = $region60
      $region59: #{bottleneck2conv.4} parent=51 // pred_region
        %p4068 = scmp.lt.s32.totalorder %s19, 1
        %s4069 = scalar_select %p4068, %s19, 1
        %s4070 = scalar_lea.vmem %s5, %s4069
      $region60: #{bottleneck2conv.4} parent=51 // pred_fallthru
        _
      // Predicated region
      $region61: #{bottleneck2conv.4} parent=51 // pred_check
        %p4071 = pneg %p183
      $region62: #{bottleneck2conv.4} parent=51 // pred_check_branch
        %4073 = sbr.rel (%p4071) target = $region64
      $region63: #{bottleneck2conv.4} parent=51 // pred_region
        %p4074 = scmp.lt.s32.totalorder %s19, 1
        %s4075 = scalar_select %p4074, %s19, 1
        %s4076 = scalar_lea.vmem %s6, %s4075
      $region64: #{bottleneck2conv.4} parent=51 // pred_fallthru
        _
    $region52: #{bottleneck2conv.4} parent=5 // pred_fallthru
      _
  $region6: #{bottleneck2conv.4} parent=0 // loop_footer
    %s17 = sadd.s32 1, %s13
  $region7: #{bottleneck2conv.4} parent=0 // loop_footer_branch
    %12 = sbr.rel target = $region3
  $region8: #{bottleneck2conv.4} parent=0 // loop_exit
    _

</llo_original>
